<compile_context>
chip_gen: v5e
topology: v5e:2x2
jax: 0.10.0
libtpu: 0.0.40
codegen_flags: <defaults>
</compile_context>

<pallas_src>
import math
import functools

import jax
import jax.numpy as jnp
from jax import lax
from jax.experimental import pallas as pl
from jax.experimental.pallas import tpu as pltpu

LN_EPS = 1e-5

_VMEM_LIMIT_CACHE = None


def _vmem_limit_bytes():
    """Generation-aware scoped-VMEM budget (~7/8 of physical VMEM)."""
    global _VMEM_LIMIT_CACHE
    if _VMEM_LIMIT_CACHE is None:
        cap = 64 * 1024 * 1024            # safe default (v7x-sized)
        try:
            info = pltpu.get_tpu_info()
            cap = int(getattr(info, "vmem_capacity_bytes", cap))
        except Exception:
            pass
        _VMEM_LIMIT_CACHE = (cap // 8) * 7
    return _VMEM_LIMIT_CACHE


def _choose_batch_tile(batch, seq_len, target_rows=512, max_tile=8):
    """Pack several batch elements per grid step so the projection / FFN / LN
    matmuls see M ~= target_rows rows (better MXU row fill)."""
    best = 1
    for cand in range(1, batch + 1):
        if batch % cand == 0 and cand <= max_tile and cand * seq_len <= max(target_rows, seq_len):
            best = cand
    return best


# -----------------------------------------------------------------------------
# One full EncoderLayer (relative-position MHA + out-proj + FFN + 2x LayerNorm)
# -----------------------------------------------------------------------------
def _encoder_layer_kernel(x_ref, wqkv_ref, bqkv_ref, et_ref, wo_ref, bo_ref,
                          g1_ref, beta1_ref, w1_ref, b1_ref, w2_ref, b2_ref,
                          g2_ref, beta2_ref, out_ref,
                          *, batch_tile, seq_len, num_heads, head_dim):
    f32 = jnp.float32
    bf16 = jnp.bfloat16
    Bt, L = batch_tile, seq_len
    D = num_heads * head_dim
    R = Bt * L

    # (Bt, L, D) -> (Bt*L, D): leading-dim merge, layout-free (L % 8 == 0).
    x = x_ref[...].reshape(R, D)
    x_bf = x.astype(bf16)

    # Fused QKV projection: one (R, D) x (D, 3D) bf16 MXU matmul, f32 accum.
    # Wq / bq were pre-scaled by 1/sqrt(Dh) host-side (compensated on e^T).
    qkv = jnp.dot(x_bf, wqkv_ref[...], preferred_element_type=f32) + bqkv_ref[...]
    q_bf = qkv[:, 0 * D:1 * D].astype(bf16)      # lane-tile aligned slices
    k_bf = qkv[:, 1 * D:2 * D].astype(bf16)
    v_bf = qkv[:, 2 * D:3 * D].astype(bf16)
    et_bf = et_ref[...]                          # (D, L) bf16: head-tiled e_sub^T

    # Hoisted index planes (JAX does not CSE broadcast_in_dim -> build once).
    row_i = lax.broadcasted_iota(jnp.int32, (L, L), 0)
    col_i = lax.broadcasted_iota(jnp.int32, (L, L), 1)
    causal = col_i <= row_i                      # post-skew validity mask
    lane_i = lax.broadcasted_iota(jnp.int32, (1, D), 1)

    ctx_parts = []
    for b in range(Bt):                          # static, small
        rows = slice(b * L, (b + 1) * L)         # sublane-aligned (L % 8 == 0)
        qb, kb, vb = q_bf[rows], k_bf[rows], v_bf[rows]
        ctx_b = jnp.zeros((L, D), f32)
        for h in range(num_heads):               # static, small
            head_cols = (lane_i >= h * head_dim) & (lane_i < (h + 1) * head_dim)
            # Zero the other heads' features: full-width operands, no 64-lane
            # slice copies; the contraction then picks out head h only.
            qh = jnp.where(head_cols, qb, 0)
            # Content logits q_h k_h^T (MXU, contraction over the feature axis,
            # no in-kernel transpose).
            scores = lax.dot_general(qh, kb, (((1,), (1,)), ((), ())),
                                     preferred_element_type=f32)
            # Relative logits on the MXU: qe[i, r] = q_h[i] . e_sub[r].
            qe = jnp.dot(qh, et_bf, preferred_element_type=f32)
            # Music-Transformer skew: S_rel[i, j] = qe[i, j + (L-1-i)] for j<=i,
            # 0 otherwise.  One strided lane rotation (XLU) + one select.
            s_rel = pltpu.roll(qe, shift=1, axis=1, stride=1, stride_axis=0)
            logits = scores + jnp.where(causal, s_rel, 0.0)
            # Softmax in f32; exp / reciprocal land on the EUP slot.
            logits = logits - jnp.max(logits, axis=-1, keepdims=True)
            p = jnp.exp(logits)
            inv_den = pl.reciprocal(jnp.sum(p, axis=-1, keepdims=True),
                                    approx=True)
            # Unnormalized context, then normalize the (L, D) result (cheaper
            # than normalizing the (L, L) probabilities) and keep only head h's
            # columns -> accumulate into the full-width context (no scratch,
            # no masked sub-tile stores).
            ctx_h = jnp.dot(p.astype(bf16), vb, preferred_element_type=f32)
            ctx_b = ctx_b + jnp.where(head_cols, ctx_h * inv_den, 0.0)
        ctx_parts.append(ctx_b)
    attn_ctx = ctx_parts[0] if Bt == 1 else jnp.concatenate(ctx_parts, axis=0)

    # Output projection at M = Bt*L rows.
    attn_out = jnp.dot(attn_ctx.astype(bf16), wo_ref[...],
                       preferred_element_type=f32) + bo_ref[...]

    # Residual + LayerNorm 1 (f32).
    h1 = x + attn_out
    mu1 = jnp.mean(h1, axis=-1, keepdims=True)
    var1 = jnp.mean(jnp.square(h1 - mu1), axis=-1, keepdims=True)
    h1n = (h1 - mu1) * lax.rsqrt(var1 + LN_EPS) * g1_ref[...] + beta1_ref[...]

    # Feed-forward: Linear -> GELU (tanh approx) -> Linear.
    ff = jnp.dot(h1n.astype(bf16), w1_ref[...],
                 preferred_element_type=f32) + b1_ref[...]
    c = math.sqrt(2.0 / math.pi)
    ff = 0.5 * ff * (1.0 + jnp.tanh(c * (ff + 0.044715 * ff * ff * ff)))
    ff2 = jnp.dot(ff.astype(bf16), w2_ref[...],
                  preferred_element_type=f32) + b2_ref[...]

    # Residual + LayerNorm 2.
    h2 = h1n + ff2
    mu2 = jnp.mean(h2, axis=-1, keepdims=True)
    var2 = jnp.mean(jnp.square(h2 - mu2), axis=-1, keepdims=True)
    out = (h2 - mu2) * lax.rsqrt(var2 + LN_EPS) * g2_ref[...] + beta2_ref[...]
    out_ref[...] = out.reshape(Bt, L, D)


# -----------------------------------------------------------------------------
# One-time host-side weight packing (review: no per-call transposes/concats)
# -----------------------------------------------------------------------------
def pack_layer_params(lp, seq_len, num_heads):
    d_model = lp["wq"].shape[0]
    d_ff = lp["w1"].shape[0]
    head_dim = d_model // num_heads
    max_len = lp["e_r"].shape[0]
    if max_len < seq_len:
        raise ValueError(
            f"sequence length {seq_len} exceeds the relative-embedding table "
            f"length (MAX_SEQ_LEN={max_len})")
    f32, bf16 = jnp.float32, jnp.bfloat16
    inv_sqrt_d = 1.0 / math.sqrt(head_dim)

    # torch Linear stores (out, in): y = x @ W.T + b  -> pre-transpose once.
    # 1/sqrt(Dh) folded into the Q projection; compensated on e^T below.
    wqkv = jnp.concatenate(
        [lp["wq"].T * inv_sqrt_d, lp["wk"].T, lp["wv"].T], axis=1).astype(bf16)
    bqkv = jnp.concatenate(
        [lp["bq"] * inv_sqrt_d, lp["bk"], lp["bv"]]).reshape(1, 3 * d_model).astype(f32)

    # e_sub^T, scaled by sqrt(Dh), tiled over heads -> (D, L): the relative
    # logits become a single full-width MXU contraction with the head-masked q.
    e_sub = lp["e_r"][max_len - seq_len:, :]
    et = jnp.tile(e_sub.T * math.sqrt(head_dim), (num_heads, 1)).astype(bf16)

    return dict(
        wqkv=wqkv, bqkv=bqkv, et=et,
        wo=lp["wo"].T.astype(bf16), bo=lp["bo"].reshape(1, d_model).astype(f32),
        g1=lp["ln1_g"].reshape(1, d_model).astype(f32),
        beta1=lp["ln1_b"].reshape(1, d_model).astype(f32),
        w1=lp["w1"].T.astype(bf16), b1=lp["b1"].reshape(1, d_ff).astype(f32),
        w2=lp["w2"].T.astype(bf16), b2=lp["b2"].reshape(1, d_model).astype(f32),
        g2=lp["ln2_g"].reshape(1, d_model).astype(f32),
        beta2=lp["ln2_b"].reshape(1, d_model).astype(f32),
    )


def pack_encoder_params(params, seq_len, num_heads):
    assert params["pe"].shape[0] >= seq_len, "PE buffer shorter than sequence"
    return dict(
        emb=params["emb"].astype(jnp.float32),
        pe=params["pe"][:seq_len].astype(jnp.float32),
        layers=[pack_layer_params(lp, seq_len, num_heads)
                for lp in params["layers"]],
    )


# -----------------------------------------------------------------------------
# Forward wrappers
# -----------------------------------------------------------------------------
def encoder_layer_forward(x, p, num_heads, batch_tile=None):
    B, L, D = x.shape
    head_dim = D // num_heads
    d_ff = p["w1"].shape[1]
    bt = batch_tile or _choose_batch_tile(B, L)
    assert B % bt == 0

    x_spec = pl.BlockSpec((bt, L, D), lambda g: (g, 0, 0))

    def const(shape):
        # Constant-index weight blocks (< 0.25 MiB total here).  At larger
        # d_model single-buffer these to halve their VMEM footprint on v7x.
        return pl.BlockSpec(shape, lambda g: (0, 0))

    kernel = functools.partial(_encoder_layer_kernel, batch_tile=bt, seq_len=L,
                               num_heads=num_heads, head_dim=head_dim)
    return pl.pallas_call(
        kernel,
        grid=(B // bt,),
        in_specs=[x_spec,
                  const((D, 3 * D)), const((1, 3 * D)),
                  const((D, L)),
                  const((D, D)), const((1, D)),
                  const((1, D)), const((1, D)),
                  const((D, d_ff)), const((1, d_ff)),
                  const((d_ff, D)), const((1, D)),
                  const((1, D)), const((1, D))],
        out_specs=x_spec,
        out_shape=jax.ShapeDtypeStruct((B, L, D), jnp.float32),
        compiler_params=pltpu.CompilerParams(
            dimension_semantics=("parallel",),
            vmem_limit_bytes=_vmem_limit_bytes()),
    )(x, p["wqkv"], p["bqkv"], p["et"], p["wo"], p["bo"],
      p["g1"], p["beta1"], p["w1"], p["b1"], p["w2"], p["b2"],
      p["g2"], p["beta2"])


def encoder_forward(ids, packed, num_heads):
    D = packed["emb"].shape[1]
    # Embedding gather * sqrt(D) + absolute PE in plain XLA (memcpy-class op;
    # the one-hot MXU embedding kernel was dropped per the perf review).
    x = packed["emb"][ids] * math.sqrt(D) + packed["pe"][None, :, :]
    # dropout layers are identity (inference mode)
    for lp in packed["layers"]:
        x = encoder_layer_forward(x, lp, num_heads)
    return x


# -----------------------------------------------------------------------------
# Pure-JAX reference (literal translation of the PyTorch forward, f32, exact).
# -----------------------------------------------------------------------------
def reference_encoder(ids, params, num_heads):
    B, L = ids.shape
    emb = params["emb"]
    D = emb.shape[1]
    Dh = D // num_heads
    x = emb[ids] * math.sqrt(D) + params["pe"][:L]

    def lin(t, w, b):                                              # y = x W^T + b
        return t @ w.T + b

    def layer_norm(t, g, b):
        mu = jnp.mean(t, axis=-1, keepdims=True)
        var = jnp.mean(jnp.square(t - mu), axis=-1, keepdims=True)
        return (t - mu) / jnp.sqrt(var + LN_EPS) * g + b

    for lp in params["layers"]:
        q = lin(x, lp["wq"], lp["bq"]).reshape(B, L, num_heads, Dh).transpose(0, 2, 1, 3)
        k = lin(x, lp["wk"], lp["bk"]).reshape(B, L, num_heads, Dh).transpose(0, 2, 1, 3)
        v = lin(x, lp["wv"], lp["bv"]).reshape(B, L, num_heads, Dh).transpose(0, 2, 1, 3)
        e_r = lp["e_r"]
        e_sub = e_r[max(0, e_r.shape[0] - L):, :]
        qe = jnp.einsum("bhqd,kd->bhqk", q, e_sub)
        qi = jnp.arange(L)[:, None]
        ri = jnp.arange(L)[None, :]
        pos_mask = (qi + ri >= L - 1).astype(jnp.float32)
        qe = qe * pos_mask[None, None]
        padded = jnp.pad(qe, ((0, 0), (0, 0), (0, 0), (1, 0)))     # skew
        s_rel = padded.reshape(B, num_heads, L + 1, L)[:, :, 1:, :]
        scores = jnp.einsum("bhqd,bhkd->bhqk", q, k) / math.sqrt(Dh)
        attn = jax.nn.softmax(scores + s_rel, axis=-1)
        ctx = jnp.einsum("bhqk,bhkd->bhqd", attn, v).transpose(0, 2, 1, 3).reshape(B, L, D)
        attn_out = lin(ctx, lp["wo"], lp["bo"])
        h1 = layer_norm(x + attn_out, lp["ln1_g"], lp["ln1_b"])
        ff = jax.nn.gelu(lin(h1, lp["w1"], lp["b1"]), approximate=False)
        ff = lin(ff, lp["w2"], lp["b2"])
        x = layer_norm(h1 + ff, lp["ln2_g"], lp["ln2_b"])
    return x


if __name__ == "__main__":
    B, L = 2, 128
    d_model = 128
    vocab_size = 50
    num_layers = 2
    max_seq_len = 256                   # config.MAX_SEQ_LEN (e_r table length)
    pe_len = 128                        # config.SEQ_LEN (absolute-PE buffer)
    num_heads = d_model // 64           # as in Encoder.__init__
    d_ff = d_model // 2
    head_dim = d_model // num_heads

    key = jax.random.PRNGKey(0)
    k_ids, k_emb, key = jax.random.split(key, 3)
    ids = jax.random.randint(k_ids, (B, L), 0, vocab_size)

    def nrm(k, shape, scale):
        return jax.random.normal(k, shape, jnp.float32) * scale

    emb = nrm(k_emb, (vocab_size, d_model), 1.0 / math.sqrt(d_model))

    # sinusoidal absolute positional encoding buffer (PositionalEncoding).
    position = jnp.arange(pe_len, dtype=jnp.float32)[:, None]
    div_term = jnp.exp(jnp.arange(0, d_model, 2, dtype=jnp.float32)
                       * (-math.log(10000.0) / d_model))
    pe = jnp.zeros((pe_len, d_model), jnp.float32)
    pe = pe.at[:, 0::2].set(jnp.sin(position * div_term))
    pe = pe.at[:, 1::2].set(jnp.cos(position * div_term))

    w_scale = 1.0 / math.sqrt(d_model)
    layers = []
    for _ in range(num_layers):
        ks = jax.random.split(key, 18)
        key = ks[-1]
        layers.append({
            "wq": nrm(ks[0], (d_model, d_model), w_scale),
            "bq": nrm(ks[1], (d_model,), w_scale),
            "wk": nrm(ks[2], (d_model, d_model), w_scale),
            "bk": nrm(ks[3], (d_model,), w_scale),
            "wv": nrm(ks[4], (d_model, d_model), w_scale),
            "bv": nrm(ks[5], (d_model,), w_scale),
            "wo": nrm(ks[6], (d_model, d_model), w_scale),
            "bo": nrm(ks[7], (d_model,), w_scale),
            "e_r": nrm(ks[8], (max_seq_len, head_dim), 1.0 / math.sqrt(head_dim)),
            "w1": nrm(ks[9], (d_ff, d_model), w_scale),
            "b1": nrm(ks[10], (d_ff,), w_scale),
            "w2": nrm(ks[11], (d_model, d_ff), 1.0 / math.sqrt(d_ff)),
            "b2": nrm(ks[12], (d_model,), w_scale),
            "ln1_g": 1.0 + nrm(ks[13], (d_model,), 0.1),
            "ln1_b": nrm(ks[14], (d_model,), 0.1),
            "ln2_g": 1.0 + nrm(ks[15], (d_model,), 0.1),
            "ln2_b": nrm(ks[16], (d_model,), 0.1),
        })

    params = {"emb": emb, "pe": pe, "layers": layers}

    # One-time weight packing (outside the per-step forward path).
    packed = pack_encoder_params(params, L, num_heads)

    fwd = jax.jit(functools.partial(encoder_forward, num_heads=num_heads))
    out = jax.block_until_ready(fwd(ids, packed))
    ref = reference_encoder(ids, params, num_heads)

    assert out.shape == ref.shape == (B, L, d_model)
    assert out.dtype == jnp.float32
    max_abs = float(jnp.max(jnp.abs(out - ref)))
    rel_l2 = float(jnp.linalg.norm(out - ref) / (jnp.linalg.norm(ref) + 1e-9))
    # Deviation sources (documented): bf16 matmul inputs (f32 accumulation),
    # tanh-approx GELU vs. exact erf, and the approximate softmax reciprocal.
    assert max_abs < 3e-1 and rel_l2 < 6e-2, (max_abs, rel_l2)

    print("KERNEL_OK")
</pallas_src>

<mosaic_0001>
module attributes {stable_mosaic.version = 11 : i64} {
  func.func @_encoder_layer_kernel(%arg0: i32, %arg1: memref<2x128x128xf32, #tpu.memory_space<vmem>>, %arg2: memref<128x384xbf16, #tpu.memory_space<vmem>>, %arg3: memref<1x384xf32, #tpu.memory_space<vmem>>, %arg4: memref<128x128xbf16, #tpu.memory_space<vmem>>, %arg5: memref<128x128xbf16, #tpu.memory_space<vmem>>, %arg6: memref<1x128xf32, #tpu.memory_space<vmem>>, %arg7: memref<1x128xf32, #tpu.memory_space<vmem>>, %arg8: memref<1x128xf32, #tpu.memory_space<vmem>>, %arg9: memref<128x64xbf16, #tpu.memory_space<vmem>>, %arg10: memref<1x64xf32, #tpu.memory_space<vmem>>, %arg11: memref<64x128xbf16, #tpu.memory_space<vmem>>, %arg12: memref<1x128xf32, #tpu.memory_space<vmem>>, %arg13: memref<1x128xf32, #tpu.memory_space<vmem>>, %arg14: memref<1x128xf32, #tpu.memory_space<vmem>>, %arg15: memref<2x128x128xf32, #tpu.memory_space<vmem>>) attributes {dimension_semantics = [#tpu.dimension_semantics<parallel>], iteration_bounds = array<i64: 1>, scalar_prefetch = 0 : i64, scratch_operands = 0 : i64, tpu.core_type = #tpu.core_type<tc>, window_params = [{transform_indices = @transform_0, window_bounds = array<i64: 2, 128, 128>}, {pipeline_mode = #tpu.pipeline_mode<synchronous>, transform_indices = @transform_1, window_bounds = array<i64: 128, 384>}, {pipeline_mode = #tpu.pipeline_mode<synchronous>, transform_indices = @transform_2, window_bounds = array<i64: 1, 384>}, {pipeline_mode = #tpu.pipeline_mode<synchronous>, transform_indices = @transform_3, window_bounds = array<i64: 128, 128>}, {pipeline_mode = #tpu.pipeline_mode<synchronous>, transform_indices = @transform_4, window_bounds = array<i64: 128, 128>}, {pipeline_mode = #tpu.pipeline_mode<synchronous>, transform_indices = @transform_5, window_bounds = array<i64: 1, 128>}, {pipeline_mode = #tpu.pipeline_mode<synchronous>, transform_indices = @transform_6, window_bounds = array<i64: 1, 128>}, {pipeline_mode = #tpu.pipeline_mode<synchronous>, transform_indices = @transform_7, window_bounds = array<i64: 1, 128>}, {pipeline_mode = #tpu.pipeline_mode<synchronous>, transform_indices = @transform_8, window_bounds = array<i64: 128, 64>}, {pipeline_mode = #tpu.pipeline_mode<synchronous>, transform_indices = @transform_9, window_bounds = array<i64: 1, 64>}, {pipeline_mode = #tpu.pipeline_mode<synchronous>, transform_indices = @transform_10, window_bounds = array<i64: 64, 128>}, {pipeline_mode = #tpu.pipeline_mode<synchronous>, transform_indices = @transform_11, window_bounds = array<i64: 1, 128>}, {pipeline_mode = #tpu.pipeline_mode<synchronous>, transform_indices = @transform_12, window_bounds = array<i64: 1, 128>}, {pipeline_mode = #tpu.pipeline_mode<synchronous>, transform_indices = @transform_13, window_bounds = array<i64: 1, 128>}, {transform_indices = @transform_14, window_bounds = array<i64: 2, 128, 128>}]} {
    %c0 = arith.constant 0 : index
    %c0_0 = arith.constant 0 : index
    %c0_1 = arith.constant 0 : index
    %0 = vector.load %arg1[%c0, %c0_0, %c0_1] : memref<2x128x128xf32, #tpu.memory_space<vmem>>, vector<2x128x128xf32>
    %1 = vector.shape_cast %0 : vector<2x128x128xf32> to vector<256x128xf32>
    %2 = arith.truncf %1 : vector<256x128xf32> to vector<256x128xbf16>
    %c0_2 = arith.constant 0 : index
    %c0_3 = arith.constant 0 : index
    %3 = vector.load %arg2[%c0_2, %c0_3] : memref<128x384xbf16, #tpu.memory_space<vmem>>, vector<128x384xbf16>
    %cst = arith.constant dense<0.000000e+00> : vector<256x384xf32>
    %4 = tpu.matmul %2, %3, %cst {dimension_numbers = #tpu.dot_dimension_numbers<[1], [0], [0], [1], [0, 0, 1, 1], [], []>} : vector<256x128xbf16>, vector<128x384xbf16>, vector<256x384xf32> -> vector<256x384xf32>
    %c0_4 = arith.constant 0 : index
    %c0_5 = arith.constant 0 : index
    %5 = vector.load %arg3[%c0_4, %c0_5] : memref<1x384xf32, #tpu.memory_space<vmem>>, vector<1x384xf32>
    %6 = vector.broadcast %5 : vector<1x384xf32> to vector<256x384xf32>
    %7 = arith.addf %4, %6 : vector<256x384xf32>
    %8 = vector.extract_strided_slice %7 {offsets = [0, 0], sizes = [256, 128], strides = [1, 1]} : vector<256x384xf32> to vector<256x128xf32>
    %9 = arith.truncf %8 : vector<256x128xf32> to vector<256x128xbf16>
    %10 = vector.extract_strided_slice %7 {offsets = [0, 128], sizes = [256, 128], strides = [1, 1]} : vector<256x384xf32> to vector<256x128xf32>
    %11 = arith.truncf %10 : vector<256x128xf32> to vector<256x128xbf16>
    %12 = vector.extract_strided_slice %7 {offsets = [0, 256], sizes = [256, 128], strides = [1, 1]} : vector<256x384xf32> to vector<256x128xf32>
    %13 = arith.truncf %12 : vector<256x128xf32> to vector<256x128xbf16>
    %c0_6 = arith.constant 0 : index
    %c0_7 = arith.constant 0 : index
    %14 = vector.load %arg4[%c0_6, %c0_7] : memref<128x128xbf16, #tpu.memory_space<vmem>>, vector<128x128xbf16>
    %15 = tpu.iota {dimensions = array<i32: 0>} : vector<128x128xi32>
    %16 = tpu.iota {dimensions = array<i32: 1>} : vector<128x128xi32>
    %17 = arith.cmpi sle, %16, %15 : vector<128x128xi32>
    %18 = tpu.iota {dimensions = array<i32: 1>} : vector<1x128xi32>
    %19 = vector.extract_strided_slice %9 {offsets = [0, 0], sizes = [128, 128], strides = [1, 1]} : vector<256x128xbf16> to vector<128x128xbf16>
    %20 = vector.extract_strided_slice %11 {offsets = [0, 0], sizes = [128, 128], strides = [1, 1]} : vector<256x128xbf16> to vector<128x128xbf16>
    %21 = vector.extract_strided_slice %13 {offsets = [0, 0], sizes = [128, 128], strides = [1, 1]} : vector<256x128xbf16> to vector<128x128xbf16>
    %cst_8 = arith.constant 0.000000e+00 : f32
    %22 = vector.broadcast %cst_8 : f32 to vector<128x128xf32>
    %c0_i32 = arith.constant 0 : i32
    %23 = vector.broadcast %c0_i32 : i32 to vector<1x128xi32>
    %24 = arith.cmpi sge, %18, %23 : vector<1x128xi32>
    %c64_i32 = arith.constant 64 : i32
    %25 = vector.broadcast %c64_i32 : i32 to vector<1x128xi32>
    %26 = arith.cmpi slt, %18, %25 : vector<1x128xi32>
    %27 = arith.andi %24, %26 : vector<1x128xi1>
    %c0_i32_9 = arith.constant 0 : i32
    %28 = arith.sitofp %c0_i32_9 : i32 to bf16
    %29 = vector.shape_cast %27 : vector<1x128xi1> to vector<1x128xi1>
    %30 = vector.broadcast %29 : vector<1x128xi1> to vector<128x128xi1>
    %31 = vector.broadcast %28 : bf16 to vector<128x128xbf16>
    %32 = arith.select %30, %19, %31 : vector<128x128xi1>, vector<128x128xbf16>
    %cst_10 = arith.constant dense<0.000000e+00> : vector<128x128xf32>
    %33 = tpu.matmul %32, %20, %cst_10 {dimension_numbers = #tpu.dot_dimension_numbers<[1], [1], [0], [0], [0, 0, 1, 0], [], []>} : vector<128x128xbf16>, vector<128x128xbf16>, vector<128x128xf32> -> vector<128x128xf32>
    %cst_11 = arith.constant dense<0.000000e+00> : vector<128x128xf32>
    %34 = tpu.matmul %32, %14, %cst_11 {dimension_numbers = #tpu.dot_dimension_numbers<[1], [0], [0], [1], [0, 0, 1, 1], [], []>} : vector<128x128xbf16>, vector<128x128xbf16>, vector<128x128xf32> -> vector<128x128xf32>
    %c1_i32 = arith.constant 1 : i32
    %35 = tpu.dynamic_rotate %34 by %c1_i32 dim 1 {stride = 1 : si32, stride_dimension = 0 : si32} : vector<128x128xf32>, i32 -> vector<128x128xf32>
    %cst_12 = arith.constant 0.000000e+00 : f32
    %36 = vector.broadcast %cst_12 : f32 to vector<128x128xf32>
    %37 = arith.select %17, %35, %36 : vector<128x128xi1>, vector<128x128xf32>
    %38 = arith.addf %33, %37 : vector<128x128xf32>
    %cst_13 = arith.constant dense<0xFF800000> : vector<128xf32>
    %39 = vector.multi_reduction <maximumf>, %38, %cst_13 [1] : vector<128x128xf32> to vector<128xf32>
    %40 = vector.shape_cast %39 : vector<128xf32> to vector<128x1xf32>
    %41 = vector.broadcast %40 : vector<128x1xf32> to vector<128x128xf32>
    %42 = arith.subf %38, %41 : vector<128x128xf32>
    %43 = math.exp %42 : vector<128x128xf32>
    %cst_14 = arith.constant dense<0.000000e+00> : vector<128xf32>
    %44 = vector.multi_reduction <add>, %43, %cst_14 [1] : vector<128x128xf32> to vector<128xf32>
    %45 = vector.shape_cast %44 : vector<128xf32> to vector<128x1xf32>
    %46 = tpu.reciprocal %45 {approx = true} : vector<128x1xf32> -> vector<128x1xf32>
    %47 = arith.truncf %43 : vector<128x128xf32> to vector<128x128xbf16>
    %cst_15 = arith.constant dense<0.000000e+00> : vector<128x128xf32>
    %48 = tpu.matmul %47, %21, %cst_15 {dimension_numbers = #tpu.dot_dimension_numbers<[1], [0], [0], [1], [0, 0, 1, 1], [], []>} : vector<128x128xbf16>, vector<128x128xbf16>, vector<128x128xf32> -> vector<128x128xf32>
    %49 = vector.broadcast %46 : vector<128x1xf32> to vector<128x128xf32>
    %50 = arith.mulf %48, %49 : vector<128x128xf32>
    %cst_16 = arith.constant 0.000000e+00 : f32
    %51 = vector.shape_cast %27 : vector<1x128xi1> to vector<1x128xi1>
    %52 = vector.broadcast %51 : vector<1x128xi1> to vector<128x128xi1>
    %53 = vector.broadcast %cst_16 : f32 to vector<128x128xf32>
    %54 = arith.select %52, %50, %53 : vector<128x128xi1>, vector<128x128xf32>
    %55 = arith.addf %22, %54 : vector<128x128xf32>
    %c64_i32_17 = arith.constant 64 : i32
    %56 = vector.broadcast %c64_i32_17 : i32 to vector<1x128xi32>
    %57 = arith.cmpi sge, %18, %56 : vector<1x128xi32>
    %c128_i32 = arith.constant 128 : i32
    %58 = vector.broadcast %c128_i32 : i32 to vector<1x128xi32>
    %59 = arith.cmpi slt, %18, %58 : vector<1x128xi32>
    %60 = arith.andi %57, %59 : vector<1x128xi1>
    %c0_i32_18 = arith.constant 0 : i32
    %61 = arith.sitofp %c0_i32_18 : i32 to bf16
    %62 = vector.shape_cast %60 : vector<1x128xi1> to vector<1x128xi1>
    %63 = vector.broadcast %62 : vector<1x128xi1> to vector<128x128xi1>
    %64 = vector.broadcast %61 : bf16 to vector<128x128xbf16>
    %65 = arith.select %63, %19, %64 : vector<128x128xi1>, vector<128x128xbf16>
    %cst_19 = arith.constant dense<0.000000e+00> : vector<128x128xf32>
    %66 = tpu.matmul %65, %20, %cst_19 {dimension_numbers = #tpu.dot_dimension_numbers<[1], [1], [0], [0], [0, 0, 1, 0], [], []>} : vector<128x128xbf16>, vector<128x128xbf16>, vector<128x128xf32> -> vector<128x128xf32>
    %cst_20 = arith.constant dense<0.000000e+00> : vector<128x128xf32>
    %67 = tpu.matmul %65, %14, %cst_20 {dimension_numbers = #tpu.dot_dimension_numbers<[1], [0], [0], [1], [0, 0, 1, 1], [], []>} : vector<128x128xbf16>, vector<128x128xbf16>, vector<128x128xf32> -> vector<128x128xf32>
    %c1_i32_21 = arith.constant 1 : i32
    %68 = tpu.dynamic_rotate %67 by %c1_i32_21 dim 1 {stride = 1 : si32, stride_dimension = 0 : si32} : vector<128x128xf32>, i32 -> vector<128x128xf32>
    %cst_22 = arith.constant 0.000000e+00 : f32
    %69 = vector.broadcast %cst_22 : f32 to vector<128x128xf32>
    %70 = arith.select %17, %68, %69 : vector<128x128xi1>, vector<128x128xf32>
    %71 = arith.addf %66, %70 : vector<128x128xf32>
    %cst_23 = arith.constant dense<0xFF800000> : vector<128xf32>
    %72 = vector.multi_reduction <maximumf>, %71, %cst_23 [1] : vector<128x128xf32> to vector<128xf32>
    %73 = vector.shape_cast %72 : vector<128xf32> to vector<128x1xf32>
    %74 = vector.broadcast %73 : vector<128x1xf32> to vector<128x128xf32>
    %75 = arith.subf %71, %74 : vector<128x128xf32>
    %76 = math.exp %75 : vector<128x128xf32>
    %cst_24 = arith.constant dense<0.000000e+00> : vector<128xf32>
    %77 = vector.multi_reduction <add>, %76, %cst_24 [1] : vector<128x128xf32> to vector<128xf32>
    %78 = vector.shape_cast %77 : vector<128xf32> to vector<128x1xf32>
    %79 = tpu.reciprocal %78 {approx = true} : vector<128x1xf32> -> vector<128x1xf32>
    %80 = arith.truncf %76 : vector<128x128xf32> to vector<128x128xbf16>
    %cst_25 = arith.constant dense<0.000000e+00> : vector<128x128xf32>
    %81 = tpu.matmul %80, %21, %cst_25 {dimension_numbers = #tpu.dot_dimension_numbers<[1], [0], [0], [1], [0, 0, 1, 1], [], []>} : vector<128x128xbf16>, vector<128x128xbf16>, vector<128x128xf32> -> vector<128x128xf32>
    %82 = vector.broadcast %79 : vector<128x1xf32> to vector<128x128xf32>
    %83 = arith.mulf %81, %82 : vector<128x128xf32>
    %cst_26 = arith.constant 0.000000e+00 : f32
    %84 = vector.shape_cast %60 : vector<1x128xi1> to vector<1x128xi1>
    %85 = vector.broadcast %84 : vector<1x128xi1> to vector<128x128xi1>
    %86 = vector.broadcast %cst_26 : f32 to vector<128x128xf32>
    %87 = arith.select %85, %83, %86 : vector<128x128xi1>, vector<128x128xf32>
    %88 = arith.addf %55, %87 : vector<128x128xf32>
    %89 = vector.extract_strided_slice %9 {offsets = [128, 0], sizes = [128, 128], strides = [1, 1]} : vector<256x128xbf16> to vector<128x128xbf16>
    %90 = vector.extract_strided_slice %11 {offsets = [128, 0], sizes = [128, 128], strides = [1, 1]} : vector<256x128xbf16> to vector<128x128xbf16>
    %91 = vector.extract_strided_slice %13 {offsets = [128, 0], sizes = [128, 128], strides = [1, 1]} : vector<256x128xbf16> to vector<128x128xbf16>
    %cst_27 = arith.constant 0.000000e+00 : f32
    %92 = vector.broadcast %cst_27 : f32 to vector<128x128xf32>
    %c0_i32_28 = arith.constant 0 : i32
    %93 = vector.broadcast %c0_i32_28 : i32 to vector<1x128xi32>
    %94 = arith.cmpi sge, %18, %93 : vector<1x128xi32>
    %c64_i32_29 = arith.constant 64 : i32
    %95 = vector.broadcast %c64_i32_29 : i32 to vector<1x128xi32>
    %96 = arith.cmpi slt, %18, %95 : vector<1x128xi32>
    %97 = arith.andi %94, %96 : vector<1x128xi1>
    %c0_i32_30 = arith.constant 0 : i32
    %98 = arith.sitofp %c0_i32_30 : i32 to bf16
    %99 = vector.shape_cast %97 : vector<1x128xi1> to vector<1x128xi1>
    %100 = vector.broadcast %99 : vector<1x128xi1> to vector<128x128xi1>
    %101 = vector.broadcast %98 : bf16 to vector<128x128xbf16>
    %102 = arith.select %100, %89, %101 : vector<128x128xi1>, vector<128x128xbf16>
    %cst_31 = arith.constant dense<0.000000e+00> : vector<128x128xf32>
    %103 = tpu.matmul %102, %90, %cst_31 {dimension_numbers = #tpu.dot_dimension_numbers<[1], [1], [0], [0], [0, 0, 1, 0], [], []>} : vector<128x128xbf16>, vector<128x128xbf16>, vector<128x128xf32> -> vector<128x128xf32>
    %cst_32 = arith.constant dense<0.000000e+00> : vector<128x128xf32>
    %104 = tpu.matmul %102, %14, %cst_32 {dimension_numbers = #tpu.dot_dimension_numbers<[1], [0], [0], [1], [0, 0, 1, 1], [], []>} : vector<128x128xbf16>, vector<128x128xbf16>, vector<128x128xf32> -> vector<128x128xf32>
    %c1_i32_33 = arith.constant 1 : i32
    %105 = tpu.dynamic_rotate %104 by %c1_i32_33 dim 1 {stride = 1 : si32, stride_dimension = 0 : si32} : vector<128x128xf32>, i32 -> vector<128x128xf32>
    %cst_34 = arith.constant 0.000000e+00 : f32
    %106 = vector.broadcast %cst_34 : f32 to vector<128x128xf32>
    %107 = arith.select %17, %105, %106 : vector<128x128xi1>, vector<128x128xf32>
    %108 = arith.addf %103, %107 : vector<128x128xf32>
    %cst_35 = arith.constant dense<0xFF800000> : vector<128xf32>
    %109 = vector.multi_reduction <maximumf>, %108, %cst_35 [1] : vector<128x128xf32> to vector<128xf32>
    %110 = vector.shape_cast %109 : vector<128xf32> to vector<128x1xf32>
    %111 = vector.broadcast %110 : vector<128x1xf32> to vector<128x128xf32>
    %112 = arith.subf %108, %111 : vector<128x128xf32>
    %113 = math.exp %112 : vector<128x128xf32>
    %cst_36 = arith.constant dense<0.000000e+00> : vector<128xf32>
    %114 = vector.multi_reduction <add>, %113, %cst_36 [1] : vector<128x128xf32> to vector<128xf32>
    %115 = vector.shape_cast %114 : vector<128xf32> to vector<128x1xf32>
    %116 = tpu.reciprocal %115 {approx = true} : vector<128x1xf32> -> vector<128x1xf32>
    %117 = arith.truncf %113 : vector<128x128xf32> to vector<128x128xbf16>
    %cst_37 = arith.constant dense<0.000000e+00> : vector<128x128xf32>
    %118 = tpu.matmul %117, %91, %cst_37 {dimension_numbers = #tpu.dot_dimension_numbers<[1], [0], [0], [1], [0, 0, 1, 1], [], []>} : vector<128x128xbf16>, vector<128x128xbf16>, vector<128x128xf32> -> vector<128x128xf32>
    %119 = vector.broadcast %116 : vector<128x1xf32> to vector<128x128xf32>
    %120 = arith.mulf %118, %119 : vector<128x128xf32>
    %cst_38 = arith.constant 0.000000e+00 : f32
    %121 = vector.shape_cast %97 : vector<1x128xi1> to vector<1x128xi1>
    %122 = vector.broadcast %121 : vector<1x128xi1> to vector<128x128xi1>
    %123 = vector.broadcast %cst_38 : f32 to vector<128x128xf32>
    %124 = arith.select %122, %120, %123 : vector<128x128xi1>, vector<128x128xf32>
    %125 = arith.addf %92, %124 : vector<128x128xf32>
    %c64_i32_39 = arith.constant 64 : i32
    %126 = vector.broadcast %c64_i32_39 : i32 to vector<1x128xi32>
    %127 = arith.cmpi sge, %18, %126 : vector<1x128xi32>
    %c128_i32_40 = arith.constant 128 : i32
    %128 = vector.broadcast %c128_i32_40 : i32 to vector<1x128xi32>
    %129 = arith.cmpi slt, %18, %128 : vector<1x128xi32>
    %130 = arith.andi %127, %129 : vector<1x128xi1>
    %c0_i32_41 = arith.constant 0 : i32
    %131 = arith.sitofp %c0_i32_41 : i32 to bf16
    %132 = vector.shape_cast %130 : vector<1x128xi1> to vector<1x128xi1>
    %133 = vector.broadcast %132 : vector<1x128xi1> to vector<128x128xi1>
    %134 = vector.broadcast %131 : bf16 to vector<128x128xbf16>
    %135 = arith.select %133, %89, %134 : vector<128x128xi1>, vector<128x128xbf16>
    %cst_42 = arith.constant dense<0.000000e+00> : vector<128x128xf32>
    %136 = tpu.matmul %135, %90, %cst_42 {dimension_numbers = #tpu.dot_dimension_numbers<[1], [1], [0], [0], [0, 0, 1, 0], [], []>} : vector<128x128xbf16>, vector<128x128xbf16>, vector<128x128xf32> -> vector<128x128xf32>
    %cst_43 = arith.constant dense<0.000000e+00> : vector<128x128xf32>
    %137 = tpu.matmul %135, %14, %cst_43 {dimension_numbers = #tpu.dot_dimension_numbers<[1], [0], [0], [1], [0, 0, 1, 1], [], []>} : vector<128x128xbf16>, vector<128x128xbf16>, vector<128x128xf32> -> vector<128x128xf32>
    %c1_i32_44 = arith.constant 1 : i32
    %138 = tpu.dynamic_rotate %137 by %c1_i32_44 dim 1 {stride = 1 : si32, stride_dimension = 0 : si32} : vector<128x128xf32>, i32 -> vector<128x128xf32>
    %cst_45 = arith.constant 0.000000e+00 : f32
    %139 = vector.broadcast %cst_45 : f32 to vector<128x128xf32>
    %140 = arith.select %17, %138, %139 : vector<128x128xi1>, vector<128x128xf32>
    %141 = arith.addf %136, %140 : vector<128x128xf32>
    %cst_46 = arith.constant dense<0xFF800000> : vector<128xf32>
    %142 = vector.multi_reduction <maximumf>, %141, %cst_46 [1] : vector<128x128xf32> to vector<128xf32>
    %143 = vector.shape_cast %142 : vector<128xf32> to vector<128x1xf32>
    %144 = vector.broadcast %143 : vector<128x1xf32> to vector<128x128xf32>
    %145 = arith.subf %141, %144 : vector<128x128xf32>
    %146 = math.exp %145 : vector<128x128xf32>
    %cst_47 = arith.constant dense<0.000000e+00> : vector<128xf32>
    %147 = vector.multi_reduction <add>, %146, %cst_47 [1] : vector<128x128xf32> to vector<128xf32>
    %148 = vector.shape_cast %147 : vector<128xf32> to vector<128x1xf32>
    %149 = tpu.reciprocal %148 {approx = true} : vector<128x1xf32> -> vector<128x1xf32>
    %150 = arith.truncf %146 : vector<128x128xf32> to vector<128x128xbf16>
    %cst_48 = arith.constant dense<0.000000e+00> : vector<128x128xf32>
    %151 = tpu.matmul %150, %91, %cst_48 {dimension_numbers = #tpu.dot_dimension_numbers<[1], [0], [0], [1], [0, 0, 1, 1], [], []>} : vector<128x128xbf16>, vector<128x128xbf16>, vector<128x128xf32> -> vector<128x128xf32>
    %152 = vector.broadcast %149 : vector<128x1xf32> to vector<128x128xf32>
    %153 = arith.mulf %151, %152 : vector<128x128xf32>
    %cst_49 = arith.constant 0.000000e+00 : f32
    %154 = vector.shape_cast %130 : vector<1x128xi1> to vector<1x128xi1>
    %155 = vector.broadcast %154 : vector<1x128xi1> to vector<128x128xi1>
    %156 = vector.broadcast %cst_49 : f32 to vector<128x128xf32>
    %157 = arith.select %155, %153, %156 : vector<128x128xi1>, vector<128x128xf32>
    %158 = arith.addf %125, %157 : vector<128x128xf32>
    %159 = tpu.concatenate %88, %158 in 0 : vector<128x128xf32>, vector<128x128xf32> -> vector<256x128xf32>
    %160 = arith.truncf %159 : vector<256x128xf32> to vector<256x128xbf16>
    %c0_50 = arith.constant 0 : index
    %c0_51 = arith.constant 0 : index
    %161 = vector.load %arg5[%c0_50, %c0_51] : memref<128x128xbf16, #tpu.memory_space<vmem>>, vector<128x128xbf16>
    %cst_52 = arith.constant dense<0.000000e+00> : vector<256x128xf32>
    %162 = tpu.matmul %160, %161, %cst_52 {dimension_numbers = #tpu.dot_dimension_numbers<[1], [0], [0], [1], [0, 0, 1, 1], [], []>} : vector<256x128xbf16>, vector<128x128xbf16>, vector<256x128xf32> -> vector<256x128xf32>
    %c0_53 = arith.constant 0 : index
    %c0_54 = arith.constant 0 : index
    %163 = vector.load %arg6[%c0_53, %c0_54] : memref<1x128xf32, #tpu.memory_space<vmem>>, vector<1x128xf32>
    %164 = vector.broadcast %163 : vector<1x128xf32> to vector<256x128xf32>
    %165 = arith.addf %162, %164 : vector<256x128xf32>
    %166 = arith.addf %1, %165 : vector<256x128xf32>
    %cst_55 = arith.constant dense<0.000000e+00> : vector<256xf32>
    %167 = vector.multi_reduction <add>, %166, %cst_55 [1] : vector<256x128xf32> to vector<256xf32>
    %168 = vector.shape_cast %167 : vector<256xf32> to vector<256x1xf32>
    %cst_56 = arith.constant 1.280000e+02 : f32
    %169 = vector.broadcast %cst_56 : f32 to vector<256x1xf32>
    %170 = arith.divf %168, %169 : vector<256x1xf32>
    %171 = vector.broadcast %170 : vector<256x1xf32> to vector<256x128xf32>
    %172 = arith.subf %166, %171 : vector<256x128xf32>
    %173 = arith.mulf %172, %172 : vector<256x128xf32>
    %cst_57 = arith.constant dense<0.000000e+00> : vector<256xf32>
    %174 = vector.multi_reduction <add>, %173, %cst_57 [1] : vector<256x128xf32> to vector<256xf32>
    %175 = vector.shape_cast %174 : vector<256xf32> to vector<256x1xf32>
    %cst_58 = arith.constant 1.280000e+02 : f32
    %176 = vector.broadcast %cst_58 : f32 to vector<256x1xf32>
    %177 = arith.divf %175, %176 : vector<256x1xf32>
    %178 = vector.broadcast %170 : vector<256x1xf32> to vector<256x128xf32>
    %179 = arith.subf %166, %178 : vector<256x128xf32>
    %cst_59 = arith.constant 9.99999974E-6 : f32
    %180 = vector.broadcast %cst_59 : f32 to vector<256x1xf32>
    %181 = arith.addf %177, %180 : vector<256x1xf32>
    %182 = math.rsqrt %181 : vector<256x1xf32>
    %183 = vector.broadcast %182 : vector<256x1xf32> to vector<256x128xf32>
    %184 = arith.mulf %179, %183 : vector<256x128xf32>
    %c0_60 = arith.constant 0 : index
    %c0_61 = arith.constant 0 : index
    %185 = vector.load %arg7[%c0_60, %c0_61] : memref<1x128xf32, #tpu.memory_space<vmem>>, vector<1x128xf32>
    %186 = vector.broadcast %185 : vector<1x128xf32> to vector<256x128xf32>
    %187 = arith.mulf %184, %186 : vector<256x128xf32>
    %c0_62 = arith.constant 0 : index
    %c0_63 = arith.constant 0 : index
    %188 = vector.load %arg8[%c0_62, %c0_63] : memref<1x128xf32, #tpu.memory_space<vmem>>, vector<1x128xf32>
    %189 = vector.broadcast %188 : vector<1x128xf32> to vector<256x128xf32>
    %190 = arith.addf %187, %189 : vector<256x128xf32>
    %191 = arith.truncf %190 : vector<256x128xf32> to vector<256x128xbf16>
    %c0_64 = arith.constant 0 : index
    %c0_65 = arith.constant 0 : index
    %192 = vector.load %arg9[%c0_64, %c0_65] : memref<128x64xbf16, #tpu.memory_space<vmem>>, vector<128x64xbf16>
    %cst_66 = arith.constant dense<0.000000e+00> : vector<256x64xf32>
    %193 = tpu.matmul %191, %192, %cst_66 {dimension_numbers = #tpu.dot_dimension_numbers<[1], [0], [0], [1], [0, 0, 1, 1], [], []>} : vector<256x128xbf16>, vector<128x64xbf16>, vector<256x64xf32> -> vector<256x64xf32>
    %c0_67 = arith.constant 0 : index
    %c0_68 = arith.constant 0 : index
    %194 = vector.load %arg10[%c0_67, %c0_68] : memref<1x64xf32, #tpu.memory_space<vmem>>, vector<1x64xf32>
    %195 = vector.broadcast %194 : vector<1x64xf32> to vector<256x64xf32>
    %196 = arith.addf %193, %195 : vector<256x64xf32>
    %cst_69 = arith.constant 5.000000e-01 : f32
    %197 = vector.broadcast %cst_69 : f32 to vector<256x64xf32>
    %198 = arith.mulf %197, %196 : vector<256x64xf32>
    %cst_70 = arith.constant 4.471500e-02 : f32
    %199 = vector.broadcast %cst_70 : f32 to vector<256x64xf32>
    %200 = arith.mulf %199, %196 : vector<256x64xf32>
    %201 = arith.mulf %200, %196 : vector<256x64xf32>
    %202 = arith.mulf %201, %196 : vector<256x64xf32>
    %203 = arith.addf %196, %202 : vector<256x64xf32>
    %cst_71 = arith.constant 0.797884583 : f32
    %204 = vector.broadcast %cst_71 : f32 to vector<256x64xf32>
    %205 = arith.mulf %204, %203 : vector<256x64xf32>
    %206 = math.tanh %205 : vector<256x64xf32>
    %cst_72 = arith.constant 1.000000e+00 : f32
    %207 = vector.broadcast %cst_72 : f32 to vector<256x64xf32>
    %208 = arith.addf %207, %206 : vector<256x64xf32>
    %209 = arith.mulf %198, %208 : vector<256x64xf32>
    %210 = arith.truncf %209 : vector<256x64xf32> to vector<256x64xbf16>
    %c0_73 = arith.constant 0 : index
    %c0_74 = arith.constant 0 : index
    %211 = vector.load %arg11[%c0_73, %c0_74] : memref<64x128xbf16, #tpu.memory_space<vmem>>, vector<64x128xbf16>
    %cst_75 = arith.constant dense<0.000000e+00> : vector<256x128xf32>
    %212 = tpu.matmul %210, %211, %cst_75 {dimension_numbers = #tpu.dot_dimension_numbers<[1], [0], [0], [1], [0, 0, 1, 1], [], []>} : vector<256x64xbf16>, vector<64x128xbf16>, vector<256x128xf32> -> vector<256x128xf32>
    %c0_76 = arith.constant 0 : index
    %c0_77 = arith.constant 0 : index
    %213 = vector.load %arg12[%c0_76, %c0_77] : memref<1x128xf32, #tpu.memory_space<vmem>>, vector<1x128xf32>
    %214 = vector.broadcast %213 : vector<1x128xf32> to vector<256x128xf32>
    %215 = arith.addf %212, %214 : vector<256x128xf32>
    %216 = arith.addf %190, %215 : vector<256x128xf32>
    %cst_78 = arith.constant dense<0.000000e+00> : vector<256xf32>
    %217 = vector.multi_reduction <add>, %216, %cst_78 [1] : vector<256x128xf32> to vector<256xf32>
    %218 = vector.shape_cast %217 : vector<256xf32> to vector<256x1xf32>
    %cst_79 = arith.constant 1.280000e+02 : f32
    %219 = vector.broadcast %cst_79 : f32 to vector<256x1xf32>
    %220 = arith.divf %218, %219 : vector<256x1xf32>
    %221 = vector.broadcast %220 : vector<256x1xf32> to vector<256x128xf32>
    %222 = arith.subf %216, %221 : vector<256x128xf32>
    %223 = arith.mulf %222, %222 : vector<256x128xf32>
    %cst_80 = arith.constant dense<0.000000e+00> : vector<256xf32>
    %224 = vector.multi_reduction <add>, %223, %cst_80 [1] : vector<256x128xf32> to vector<256xf32>
    %225 = vector.shape_cast %224 : vector<256xf32> to vector<256x1xf32>
    %cst_81 = arith.constant 1.280000e+02 : f32
    %226 = vector.broadcast %cst_81 : f32 to vector<256x1xf32>
    %227 = arith.divf %225, %226 : vector<256x1xf32>
    %228 = vector.broadcast %220 : vector<256x1xf32> to vector<256x128xf32>
    %229 = arith.subf %216, %228 : vector<256x128xf32>
    %cst_82 = arith.constant 9.99999974E-6 : f32
    %230 = vector.broadcast %cst_82 : f32 to vector<256x1xf32>
    %231 = arith.addf %227, %230 : vector<256x1xf32>
    %232 = math.rsqrt %231 : vector<256x1xf32>
    %233 = vector.broadcast %232 : vector<256x1xf32> to vector<256x128xf32>
    %234 = arith.mulf %229, %233 : vector<256x128xf32>
    %c0_83 = arith.constant 0 : index
    %c0_84 = arith.constant 0 : index
    %235 = vector.load %arg13[%c0_83, %c0_84] : memref<1x128xf32, #tpu.memory_space<vmem>>, vector<1x128xf32>
    %236 = vector.broadcast %235 : vector<1x128xf32> to vector<256x128xf32>
    %237 = arith.mulf %234, %236 : vector<256x128xf32>
    %c0_85 = arith.constant 0 : index
    %c0_86 = arith.constant 0 : index
    %238 = vector.load %arg14[%c0_85, %c0_86] : memref<1x128xf32, #tpu.memory_space<vmem>>, vector<1x128xf32>
    %239 = vector.broadcast %238 : vector<1x128xf32> to vector<256x128xf32>
    %240 = arith.addf %237, %239 : vector<256x128xf32>
    %241 = vector.shape_cast %240 : vector<256x128xf32> to vector<2x128x128xf32>
    %c0_87 = arith.constant 0 : index
    %c0_88 = arith.constant 0 : index
    %c0_89 = arith.constant 0 : index
    %242 = vector.load %arg15[%c0_87, %c0_88, %c0_89] : memref<2x128x128xf32, #tpu.memory_space<vmem>>, vector<2x128x128xf32>
    tpu.vector_store %arg15[%c0_87, %c0_88, %c0_89], %241 {strides = array<i32>} : memref<2x128x128xf32, #tpu.memory_space<vmem>>, vector<2x128x128xf32>,
    return
  }
  func.func @transform_0(%arg0: i32) -> (i32, i32, i32) {
    %c0_i32 = arith.constant 0 : i32
    %c0_i32_0 = arith.constant 0 : i32
    %c0_i32_1 = arith.constant 0 : i32
    return %arg0, %c0_i32, %c0_i32_0 : i32, i32, i32
  }
  func.func @transform_1(%arg0: i32) -> (i32, i32) {
    %c0_i32 = arith.constant 0 : i32
    %c0_i32_0 = arith.constant 0 : i32
    %c0_i32_1 = arith.constant 0 : i32
    return %c0_i32, %c0_i32_0 : i32, i32
  }
  func.func @transform_2(%arg0: i32) -> (i32, i32) {
    %c0_i32 = arith.constant 0 : i32
    %c0_i32_0 = arith.constant 0 : i32
    %c0_i32_1 = arith.constant 0 : i32
    return %c0_i32, %c0_i32_0 : i32, i32
  }
  func.func @transform_3(%arg0: i32) -> (i32, i32) {
    %c0_i32 = arith.constant 0 : i32
    %c0_i32_0 = arith.constant 0 : i32
    %c0_i32_1 = arith.constant 0 : i32
    return %c0_i32, %c0_i32_0 : i32, i32
  }
  func.func @transform_4(%arg0: i32) -> (i32, i32) {
    %c0_i32 = arith.constant 0 : i32
    %c0_i32_0 = arith.constant 0 : i32
    %c0_i32_1 = arith.constant 0 : i32
    return %c0_i32, %c0_i32_0 : i32, i32
  }
  func.func @transform_5(%arg0: i32) -> (i32, i32) {
    %c0_i32 = arith.constant 0 : i32
    %c0_i32_0 = arith.constant 0 : i32
    %c0_i32_1 = arith.constant 0 : i32
    return %c0_i32, %c0_i32_0 : i32, i32
  }
  func.func @transform_6(%arg0: i32) -> (i32, i32) {
    %c0_i32 = arith.constant 0 : i32
    %c0_i32_0 = arith.constant 0 : i32
    %c0_i32_1 = arith.constant 0 : i32
    return %c0_i32, %c0_i32_0 : i32, i32
  }
  func.func @transform_7(%arg0: i32) -> (i32, i32) {
    %c0_i32 = arith.constant 0 : i32
    %c0_i32_0 = arith.constant 0 : i32
    %c0_i32_1 = arith.constant 0 : i32
    return %c0_i32, %c0_i32_0 : i32, i32
  }
  func.func @transform_8(%arg0: i32) -> (i32, i32) {
    %c0_i32 = arith.constant 0 : i32
    %c0_i32_0 = arith.constant 0 : i32
    %c0_i32_1 = arith.constant 0 : i32
    return %c0_i32, %c0_i32_0 : i32, i32
  }
  func.func @transform_9(%arg0: i32) -> (i32, i32) {
    %c0_i32 = arith.constant 0 : i32
    %c0_i32_0 = arith.constant 0 : i32
    %c0_i32_1 = arith.constant 0 : i32
    return %c0_i32, %c0_i32_0 : i32, i32
  }
  func.func @transform_10(%arg0: i32) -> (i32, i32) {
    %c0_i32 = arith.constant 0 : i32
    %c0_i32_0 = arith.constant 0 : i32
    %c0_i32_1 = arith.constant 0 : i32
    return %c0_i32, %c0_i32_0 : i32, i32
  }
  func.func @transform_11(%arg0: i32) -> (i32, i32) {
    %c0_i32 = arith.constant 0 : i32
    %c0_i32_0 = arith.constant 0 : i32
    %c0_i32_1 = arith.constant 0 : i32
    return %c0_i32, %c0_i32_0 : i32, i32
  }
  func.func @transform_12(%arg0: i32) -> (i32, i32) {
    %c0_i32 = arith.constant 0 : i32
    %c0_i32_0 = arith.constant 0 : i32
    %c0_i32_1 = arith.constant 0 : i32
    return %c0_i32, %c0_i32_0 : i32, i32
  }
  func.func @transform_13(%arg0: i32) -> (i32, i32) {
    %c0_i32 = arith.constant 0 : i32
    %c0_i32_0 = arith.constant 0 : i32
    %c0_i32_1 = arith.constant 0 : i32
    return %c0_i32, %c0_i32_0 : i32, i32
  }
  func.func @transform_14(%arg0: i32) -> (i32, i32, i32) {
    %c0_i32 = arith.constant 0 : i32
    %c0_i32_0 = arith.constant 0 : i32
    %c0_i32_1 = arith.constant 0 : i32
    return %arg0, %c0_i32, %c0_i32_0 : i32, i32, i32
  }
}

module attributes {stable_mosaic.version = 11 : i64} {
  func.func @_encoder_layer_kernel(%arg0: i32, %arg1: memref<2x128x128xf32, #tpu.memory_space<vmem>>, %arg2: memref<128x384xbf16, #tpu.memory_space<vmem>>, %arg3: memref<1x384xf32, #tpu.memory_space<vmem>>, %arg4: memref<128x128xbf16, #tpu.memory_space<vmem>>, %arg5: memref<128x128xbf16, #tpu.memory_space<vmem>>, %arg6: memref<1x128xf32, #tpu.memory_space<vmem>>, %arg7: memref<1x128xf32, #tpu.memory_space<vmem>>, %arg8: memref<1x128xf32, #tpu.memory_space<vmem>>, %arg9: memref<128x64xbf16, #tpu.memory_space<vmem>>, %arg10: memref<1x64xf32, #tpu.memory_space<vmem>>, %arg11: memref<64x128xbf16, #tpu.memory_space<vmem>>, %arg12: memref<1x128xf32, #tpu.memory_space<vmem>>, %arg13: memref<1x128xf32, #tpu.memory_space<vmem>>, %arg14: memref<1x128xf32, #tpu.memory_space<vmem>>, %arg15: memref<2x128x128xf32, #tpu.memory_space<vmem>>) attributes {dimension_semantics = [#tpu.dimension_semantics<parallel>], iteration_bounds = array<i64: 1>, scalar_prefetch = 0 : i64, scratch_operands = 0 : i64, tpu.core_type = #tpu.core_type<tc>, window_params = [{transform_indices = @transform_0, window_bounds = array<i64: 2, 128, 128>}, {pipeline_mode = #tpu.pipeline_mode<synchronous>, transform_indices = @transform_1, window_bounds = array<i64: 128, 384>}, {pipeline_mode = #tpu.pipeline_mode<synchronous>, transform_indices = @transform_2, window_bounds = array<i64: 1, 384>}, {pipeline_mode = #tpu.pipeline_mode<synchronous>, transform_indices = @transform_3, window_bounds = array<i64: 128, 128>}, {pipeline_mode = #tpu.pipeline_mode<synchronous>, transform_indices = @transform_4, window_bounds = array<i64: 128, 128>}, {pipeline_mode = #tpu.pipeline_mode<synchronous>, transform_indices = @transform_5, window_bounds = array<i64: 1, 128>}, {pipeline_mode = #tpu.pipeline_mode<synchronous>, transform_indices = @transform_6, window_bounds = array<i64: 1, 128>}, {pipeline_mode = #tpu.pipeline_mode<synchronous>, transform_indices = @transform_7, window_bounds = array<i64: 1, 128>}, {pipeline_mode = #tpu.pipeline_mode<synchronous>, transform_indices = @transform_8, window_bounds = array<i64: 128, 64>}, {pipeline_mode = #tpu.pipeline_mode<synchronous>, transform_indices = @transform_9, window_bounds = array<i64: 1, 64>}, {pipeline_mode = #tpu.pipeline_mode<synchronous>, transform_indices = @transform_10, window_bounds = array<i64: 64, 128>}, {pipeline_mode = #tpu.pipeline_mode<synchronous>, transform_indices = @transform_11, window_bounds = array<i64: 1, 128>}, {pipeline_mode = #tpu.pipeline_mode<synchronous>, transform_indices = @transform_12, window_bounds = array<i64: 1, 128>}, {pipeline_mode = #tpu.pipeline_mode<synchronous>, transform_indices = @transform_13, window_bounds = array<i64: 1, 128>}, {transform_indices = @transform_14, window_bounds = array<i64: 2, 128, 128>}]} {
    %c0 = arith.constant 0 : index
    %c0_0 = arith.constant 0 : index
    %c0_1 = arith.constant 0 : index
    %0 = vector.load %arg1[%c0, %c0_0, %c0_1] : memref<2x128x128xf32, #tpu.memory_space<vmem>>, vector<2x128x128xf32>
    %1 = vector.shape_cast %0 : vector<2x128x128xf32> to vector<256x128xf32>
    %2 = arith.truncf %1 : vector<256x128xf32> to vector<256x128xbf16>
    %c0_2 = arith.constant 0 : index
    %c0_3 = arith.constant 0 : index
    %3 = vector.load %arg2[%c0_2, %c0_3] : memref<128x384xbf16, #tpu.memory_space<vmem>>, vector<128x384xbf16>
    %cst = arith.constant dense<0.000000e+00> : vector<256x384xf32>
    %4 = tpu.matmul %2, %3, %cst {dimension_numbers = #tpu.dot_dimension_numbers<[1], [0], [0], [1], [0, 0, 1, 1], [], []>} : vector<256x128xbf16>, vector<128x384xbf16>, vector<256x384xf32> -> vector<256x384xf32>
    %c0_4 = arith.constant 0 : index
    %c0_5 = arith.constant 0 : index
    %5 = vector.load %arg3[%c0_4, %c0_5] : memref<1x384xf32, #tpu.memory_space<vmem>>, vector<1x384xf32>
    %6 = vector.broadcast %5 : vector<1x384xf32> to vector<256x384xf32>
    %7 = arith.addf %4, %6 : vector<256x384xf32>
    %8 = vector.extract_strided_slice %7 {offsets = [0, 0], sizes = [256, 128], strides = [1, 1]} : vector<256x384xf32> to vector<256x128xf32>
    %9 = arith.truncf %8 : vector<256x128xf32> to vector<256x128xbf16>
    %10 = vector.extract_strided_slice %7 {offsets = [0, 128], sizes = [256, 128], strides = [1, 1]} : vector<256x384xf32> to vector<256x128xf32>
    %11 = arith.truncf %10 : vector<256x128xf32> to vector<256x128xbf16>
    %12 = vector.extract_strided_slice %7 {offsets = [0, 256], sizes = [256, 128], strides = [1, 1]} : vector<256x384xf32> to vector<256x128xf32>
    %13 = arith.truncf %12 : vector<256x128xf32> to vector<256x128xbf16>
    %c0_6 = arith.constant 0 : index
    %c0_7 = arith.constant 0 : index
    %14 = vector.load %arg4[%c0_6, %c0_7] : memref<128x128xbf16, #tpu.memory_space<vmem>>, vector<128x128xbf16>
    %15 = tpu.iota {dimensions = array<i32: 0>} : vector<128x128xi32>
    %16 = tpu.iota {dimensions = array<i32: 1>} : vector<128x128xi32>
    %17 = arith.cmpi sle, %16, %15 : vector<128x128xi32>
    %18 = tpu.iota {dimensions = array<i32: 1>} : vector<1x128xi32>
    %19 = vector.extract_strided_slice %9 {offsets = [0, 0], sizes = [128, 128], strides = [1, 1]} : vector<256x128xbf16> to vector<128x128xbf16>
    %20 = vector.extract_strided_slice %11 {offsets = [0, 0], sizes = [128, 128], strides = [1, 1]} : vector<256x128xbf16> to vector<128x128xbf16>
    %21 = vector.extract_strided_slice %13 {offsets = [0, 0], sizes = [128, 128], strides = [1, 1]} : vector<256x128xbf16> to vector<128x128xbf16>
    %cst_8 = arith.constant 0.000000e+00 : f32
    %22 = vector.broadcast %cst_8 : f32 to vector<128x128xf32>
    %c0_i32 = arith.constant 0 : i32
    %23 = vector.broadcast %c0_i32 : i32 to vector<1x128xi32>
    %24 = arith.cmpi sge, %18, %23 : vector<1x128xi32>
    %c64_i32 = arith.constant 64 : i32
    %25 = vector.broadcast %c64_i32 : i32 to vector<1x128xi32>
    %26 = arith.cmpi slt, %18, %25 : vector<1x128xi32>
    %27 = arith.andi %24, %26 : vector<1x128xi1>
    %c0_i32_9 = arith.constant 0 : i32
    %28 = arith.sitofp %c0_i32_9 : i32 to bf16
    %29 = vector.shape_cast %27 : vector<1x128xi1> to vector<1x128xi1>
    %30 = vector.broadcast %29 : vector<1x128xi1> to vector<128x128xi1>
    %31 = vector.broadcast %28 : bf16 to vector<128x128xbf16>
    %32 = arith.select %30, %19, %31 : vector<128x128xi1>, vector<128x128xbf16>
    %cst_10 = arith.constant dense<0.000000e+00> : vector<128x128xf32>
    %33 = tpu.matmul %32, %20, %cst_10 {dimension_numbers = #tpu.dot_dimension_numbers<[1], [1], [0], [0], [0, 0, 1, 0], [], []>} : vector<128x128xbf16>, vector<128x128xbf16>, vector<128x128xf32> -> vector<128x128xf32>
    %cst_11 = arith.constant dense<0.000000e+00> : vector<128x128xf32>
    %34 = tpu.matmul %32, %14, %cst_11 {dimension_numbers = #tpu.dot_dimension_numbers<[1], [0], [0], [1], [0, 0, 1, 1], [], []>} : vector<128x128xbf16>, vector<128x128xbf16>, vector<128x128xf32> -> vector<128x128xf32>
    %c1_i32 = arith.constant 1 : i32
    %35 = tpu.dynamic_rotate %34 by %c1_i32 dim 1 {stride = 1 : si32, stride_dimension = 0 : si32} : vector<128x128xf32>, i32 -> vector<128x128xf32>
    %cst_12 = arith.constant 0.000000e+00 : f32
    %36 = vector.broadcast %cst_12 : f32 to vector<128x128xf32>
    %37 = arith.select %17, %35, %36 : vector<128x128xi1>, vector<128x128xf32>
    %38 = arith.addf %33, %37 : vector<128x128xf32>
    %cst_13 = arith.constant dense<0xFF800000> : vector<128xf32>
    %39 = vector.multi_reduction <maximumf>, %38, %cst_13 [1] : vector<128x128xf32> to vector<128xf32>
    %40 = vector.shape_cast %39 : vector<128xf32> to vector<128x1xf32>
    %41 = vector.broadcast %40 : vector<128x1xf32> to vector<128x128xf32>
    %42 = arith.subf %38, %41 : vector<128x128xf32>
    %43 = math.exp %42 : vector<128x128xf32>
    %cst_14 = arith.constant dense<0.000000e+00> : vector<128xf32>
    %44 = vector.multi_reduction <add>, %43, %cst_14 [1] : vector<128x128xf32> to vector<128xf32>
    %45 = vector.shape_cast %44 : vector<128xf32> to vector<128x1xf32>
    %46 = tpu.reciprocal %45 {approx = true} : vector<128x1xf32> -> vector<128x1xf32>
    %47 = arith.truncf %43 : vector<128x128xf32> to vector<128x128xbf16>
    %cst_15 = arith.constant dense<0.000000e+00> : vector<128x128xf32>
    %48 = tpu.matmul %47, %21, %cst_15 {dimension_numbers = #tpu.dot_dimension_numbers<[1], [0], [0], [1], [0, 0, 1, 1], [], []>} : vector<128x128xbf16>, vector<128x128xbf16>, vector<128x128xf32> -> vector<128x128xf32>
    %49 = vector.broadcast %46 : vector<128x1xf32> to vector<128x128xf32>
    %50 = arith.mulf %48, %49 : vector<128x128xf32>
    %cst_16 = arith.constant 0.000000e+00 : f32
    %51 = vector.shape_cast %27 : vector<1x128xi1> to vector<1x128xi1>
    %52 = vector.broadcast %51 : vector<1x128xi1> to vector<128x128xi1>
    %53 = vector.broadcast %cst_16 : f32 to vector<128x128xf32>
    %54 = arith.select %52, %50, %53 : vector<128x128xi1>, vector<128x128xf32>
    %55 = arith.addf %22, %54 : vector<128x128xf32>
    %c64_i32_17 = arith.constant 64 : i32
    %56 = vector.broadcast %c64_i32_17 : i32 to vector<1x128xi32>
    %57 = arith.cmpi sge, %18, %56 : vector<1x128xi32>
    %c128_i32 = arith.constant 128 : i32
    %58 = vector.broadcast %c128_i32 : i32 to vector<1x128xi32>
    %59 = arith.cmpi slt, %18, %58 : vector<1x128xi32>
    %60 = arith.andi %57, %59 : vector<1x128xi1>
    %c0_i32_18 = arith.constant 0 : i32
    %61 = arith.sitofp %c0_i32_18 : i32 to bf16
    %62 = vector.shape_cast %60 : vector<1x128xi1> to vector<1x128xi1>
    %63 = vector.broadcast %62 : vector<1x128xi1> to vector<128x128xi1>
    %64 = vector.broadcast %61 : bf16 to vector<128x128xbf16>
    %65 = arith.select %63, %19, %64 : vector<128x128xi1>, vector<128x128xbf16>
    %cst_19 = arith.constant dense<0.000000e+00> : vector<128x128xf32>
    %66 = tpu.matmul %65, %20, %cst_19 {dimension_numbers = #tpu.dot_dimension_numbers<[1], [1], [0], [0], [0, 0, 1, 0], [], []>} : vector<128x128xbf16>, vector<128x128xbf16>, vector<128x128xf32> -> vector<128x128xf32>
    %cst_20 = arith.constant dense<0.000000e+00> : vector<128x128xf32>
    %67 = tpu.matmul %65, %14, %cst_20 {dimension_numbers = #tpu.dot_dimension_numbers<[1], [0], [0], [1], [0, 0, 1, 1], [], []>} : vector<128x128xbf16>, vector<128x128xbf16>, vector<128x128xf32> -> vector<128x128xf32>
    %c1_i32_21 = arith.constant 1 : i32
    %68 = tpu.dynamic_rotate %67 by %c1_i32_21 dim 1 {stride = 1 : si32, stride_dimension = 0 : si32} : vector<128x128xf32>, i32 -> vector<128x128xf32>
    %cst_22 = arith.constant 0.000000e+00 : f32
    %69 = vector.broadcast %cst_22 : f32 to vector<128x128xf32>
    %70 = arith.select %17, %68, %69 : vector<128x128xi1>, vector<128x128xf32>
    %71 = arith.addf %66, %70 : vector<128x128xf32>
    %cst_23 = arith.constant dense<0xFF800000> : vector<128xf32>
    %72 = vector.multi_reduction <maximumf>, %71, %cst_23 [1] : vector<128x128xf32> to vector<128xf32>
    %73 = vector.shape_cast %72 : vector<128xf32> to vector<128x1xf32>
    %74 = vector.broadcast %73 : vector<128x1xf32> to vector<128x128xf32>
    %75 = arith.subf %71, %74 : vector<128x128xf32>
    %76 = math.exp %75 : vector<128x128xf32>
    %cst_24 = arith.constant dense<0.000000e+00> : vector<128xf32>
    %77 = vector.multi_reduction <add>, %76, %cst_24 [1] : vector<128x128xf32> to vector<128xf32>
    %78 = vector.shape_cast %77 : vector<128xf32> to vector<128x1xf32>
    %79 = tpu.reciprocal %78 {approx = true} : vector<128x1xf32> -> vector<128x1xf32>
    %80 = arith.truncf %76 : vector<128x128xf32> to vector<128x128xbf16>
    %cst_25 = arith.constant dense<0.000000e+00> : vector<128x128xf32>
    %81 = tpu.matmul %80, %21, %cst_25 {dimension_numbers = #tpu.dot_dimension_numbers<[1], [0], [0], [1], [0, 0, 1, 1], [], []>} : vector<128x128xbf16>, vector<128x128xbf16>, vector<128x128xf32> -> vector<128x128xf32>
    %82 = vector.broadcast %79 : vector<128x1xf32> to vector<128x128xf32>
    %83 = arith.mulf %81, %82 : vector<128x128xf32>
    %cst_26 = arith.constant 0.000000e+00 : f32
    %84 = vector.shape_cast %60 : vector<1x128xi1> to vector<1x128xi1>
    %85 = vector.broadcast %84 : vector<1x128xi1> to vector<128x128xi1>
    %86 = vector.broadcast %cst_26 : f32 to vector<128x128xf32>
    %87 = arith.select %85, %83, %86 : vector<128x128xi1>, vector<128x128xf32>
    %88 = arith.addf %55, %87 : vector<128x128xf32>
    %89 = vector.extract_strided_slice %9 {offsets = [128, 0], sizes = [128, 128], strides = [1, 1]} : vector<256x128xbf16> to vector<128x128xbf16>
    %90 = vector.extract_strided_slice %11 {offsets = [128, 0], sizes = [128, 128], strides = [1, 1]} : vector<256x128xbf16> to vector<128x128xbf16>
    %91 = vector.extract_strided_slice %13 {offsets = [128, 0], sizes = [128, 128], strides = [1, 1]} : vector<256x128xbf16> to vector<128x128xbf16>
    %cst_27 = arith.constant 0.000000e+00 : f32
    %92 = vector.broadcast %cst_27 : f32 to vector<128x128xf32>
    %c0_i32_28 = arith.constant 0 : i32
    %93 = vector.broadcast %c0_i32_28 : i32 to vector<1x128xi32>
    %94 = arith.cmpi sge, %18, %93 : vector<1x128xi32>
    %c64_i32_29 = arith.constant 64 : i32
    %95 = vector.broadcast %c64_i32_29 : i32 to vector<1x128xi32>
    %96 = arith.cmpi slt, %18, %95 : vector<1x128xi32>
    %97 = arith.andi %94, %96 : vector<1x128xi1>
    %c0_i32_30 = arith.constant 0 : i32
    %98 = arith.sitofp %c0_i32_30 : i32 to bf16
    %99 = vector.shape_cast %97 : vector<1x128xi1> to vector<1x128xi1>
    %100 = vector.broadcast %99 : vector<1x128xi1> to vector<128x128xi1>
    %101 = vector.broadcast %98 : bf16 to vector<128x128xbf16>
    %102 = arith.select %100, %89, %101 : vector<128x128xi1>, vector<128x128xbf16>
    %cst_31 = arith.constant dense<0.000000e+00> : vector<128x128xf32>
    %103 = tpu.matmul %102, %90, %cst_31 {dimension_numbers = #tpu.dot_dimension_numbers<[1], [1], [0], [0], [0, 0, 1, 0], [], []>} : vector<128x128xbf16>, vector<128x128xbf16>, vector<128x128xf32> -> vector<128x128xf32>
    %cst_32 = arith.constant dense<0.000000e+00> : vector<128x128xf32>
    %104 = tpu.matmul %102, %14, %cst_32 {dimension_numbers = #tpu.dot_dimension_numbers<[1], [0], [0], [1], [0, 0, 1, 1], [], []>} : vector<128x128xbf16>, vector<128x128xbf16>, vector<128x128xf32> -> vector<128x128xf32>
    %c1_i32_33 = arith.constant 1 : i32
    %105 = tpu.dynamic_rotate %104 by %c1_i32_33 dim 1 {stride = 1 : si32, stride_dimension = 0 : si32} : vector<128x128xf32>, i32 -> vector<128x128xf32>
    %cst_34 = arith.constant 0.000000e+00 : f32
    %106 = vector.broadcast %cst_34 : f32 to vector<128x128xf32>
    %107 = arith.select %17, %105, %106 : vector<128x128xi1>, vector<128x128xf32>
    %108 = arith.addf %103, %107 : vector<128x128xf32>
    %cst_35 = arith.constant dense<0xFF800000> : vector<128xf32>
    %109 = vector.multi_reduction <maximumf>, %108, %cst_35 [1] : vector<128x128xf32> to vector<128xf32>
    %110 = vector.shape_cast %109 : vector<128xf32> to vector<128x1xf32>
    %111 = vector.broadcast %110 : vector<128x1xf32> to vector<128x128xf32>
    %112 = arith.subf %108, %111 : vector<128x128xf32>
    %113 = math.exp %112 : vector<128x128xf32>
    %cst_36 = arith.constant dense<0.000000e+00> : vector<128xf32>
    %114 = vector.multi_reduction <add>, %113, %cst_36 [1] : vector<128x128xf32> to vector<128xf32>
    %115 = vector.shape_cast %114 : vector<128xf32> to vector<128x1xf32>
    %116 = tpu.reciprocal %115 {approx = true} : vector<128x1xf32> -> vector<128x1xf32>
    %117 = arith.truncf %113 : vector<128x128xf32> to vector<128x128xbf16>
    %cst_37 = arith.constant dense<0.000000e+00> : vector<128x128xf32>
    %118 = tpu.matmul %117, %91, %cst_37 {dimension_numbers = #tpu.dot_dimension_numbers<[1], [0], [0], [1], [0, 0, 1, 1], [], []>} : vector<128x128xbf16>, vector<128x128xbf16>, vector<128x128xf32> -> vector<128x128xf32>
    %119 = vector.broadcast %116 : vector<128x1xf32> to vector<128x128xf32>
    %120 = arith.mulf %118, %119 : vector<128x128xf32>
    %cst_38 = arith.constant 0.000000e+00 : f32
    %121 = vector.shape_cast %97 : vector<1x128xi1> to vector<1x128xi1>
    %122 = vector.broadcast %121 : vector<1x128xi1> to vector<128x128xi1>
    %123 = vector.broadcast %cst_38 : f32 to vector<128x128xf32>
    %124 = arith.select %122, %120, %123 : vector<128x128xi1>, vector<128x128xf32>
    %125 = arith.addf %92, %124 : vector<128x128xf32>
    %c64_i32_39 = arith.constant 64 : i32
    %126 = vector.broadcast %c64_i32_39 : i32 to vector<1x128xi32>
    %127 = arith.cmpi sge, %18, %126 : vector<1x128xi32>
    %c128_i32_40 = arith.constant 128 : i32
    %128 = vector.broadcast %c128_i32_40 : i32 to vector<1x128xi32>
    %129 = arith.cmpi slt, %18, %128 : vector<1x128xi32>
    %130 = arith.andi %127, %129 : vector<1x128xi1>
    %c0_i32_41 = arith.constant 0 : i32
    %131 = arith.sitofp %c0_i32_41 : i32 to bf16
    %132 = vector.shape_cast %130 : vector<1x128xi1> to vector<1x128xi1>
    %133 = vector.broadcast %132 : vector<1x128xi1> to vector<128x128xi1>
    %134 = vector.broadcast %131 : bf16 to vector<128x128xbf16>
    %135 = arith.select %133, %89, %134 : vector<128x128xi1>, vector<128x128xbf16>
    %cst_42 = arith.constant dense<0.000000e+00> : vector<128x128xf32>
    %136 = tpu.matmul %135, %90, %cst_42 {dimension_numbers = #tpu.dot_dimension_numbers<[1], [1], [0], [0], [0, 0, 1, 0], [], []>} : vector<128x128xbf16>, vector<128x128xbf16>, vector<128x128xf32> -> vector<128x128xf32>
    %cst_43 = arith.constant dense<0.000000e+00> : vector<128x128xf32>
    %137 = tpu.matmul %135, %14, %cst_43 {dimension_numbers = #tpu.dot_dimension_numbers<[1], [0], [0], [1], [0, 0, 1, 1], [], []>} : vector<128x128xbf16>, vector<128x128xbf16>, vector<128x128xf32> -> vector<128x128xf32>
    %c1_i32_44 = arith.constant 1 : i32
    %138 = tpu.dynamic_rotate %137 by %c1_i32_44 dim 1 {stride = 1 : si32, stride_dimension = 0 : si32} : vector<128x128xf32>, i32 -> vector<128x128xf32>
    %cst_45 = arith.constant 0.000000e+00 : f32
    %139 = vector.broadcast %cst_45 : f32 to vector<128x128xf32>
    %140 = arith.select %17, %138, %139 : vector<128x128xi1>, vector<128x128xf32>
    %141 = arith.addf %136, %140 : vector<128x128xf32>
    %cst_46 = arith.constant dense<0xFF800000> : vector<128xf32>
    %142 = vector.multi_reduction <maximumf>, %141, %cst_46 [1] : vector<128x128xf32> to vector<128xf32>
    %143 = vector.shape_cast %142 : vector<128xf32> to vector<128x1xf32>
    %144 = vector.broadcast %143 : vector<128x1xf32> to vector<128x128xf32>
    %145 = arith.subf %141, %144 : vector<128x128xf32>
    %146 = math.exp %145 : vector<128x128xf32>
    %cst_47 = arith.constant dense<0.000000e+00> : vector<128xf32>
    %147 = vector.multi_reduction <add>, %146, %cst_47 [1] : vector<128x128xf32> to vector<128xf32>
    %148 = vector.shape_cast %147 : vector<128xf32> to vector<128x1xf32>
    %149 = tpu.reciprocal %148 {approx = true} : vector<128x1xf32> -> vector<128x1xf32>
    %150 = arith.truncf %146 : vector<128x128xf32> to vector<128x128xbf16>
    %cst_48 = arith.constant dense<0.000000e+00> : vector<128x128xf32>
    %151 = tpu.matmul %150, %91, %cst_48 {dimension_numbers = #tpu.dot_dimension_numbers<[1], [0], [0], [1], [0, 0, 1, 1], [], []>} : vector<128x128xbf16>, vector<128x128xbf16>, vector<128x128xf32> -> vector<128x128xf32>
    %152 = vector.broadcast %149 : vector<128x1xf32> to vector<128x128xf32>
    %153 = arith.mulf %151, %152 : vector<128x128xf32>
    %cst_49 = arith.constant 0.000000e+00 : f32
    %154 = vector.shape_cast %130 : vector<1x128xi1> to vector<1x128xi1>
    %155 = vector.broadcast %154 : vector<1x128xi1> to vector<128x128xi1>
    %156 = vector.broadcast %cst_49 : f32 to vector<128x128xf32>
    %157 = arith.select %155, %153, %156 : vector<128x128xi1>, vector<128x128xf32>
    %158 = arith.addf %125, %157 : vector<128x128xf32>
    %159 = tpu.concatenate %88, %158 in 0 : vector<128x128xf32>, vector<128x128xf32> -> vector<256x128xf32>
    %160 = arith.truncf %159 : vector<256x128xf32> to vector<256x128xbf16>
    %c0_50 = arith.constant 0 : index
    %c0_51 = arith.constant 0 : index
    %161 = vector.load %arg5[%c0_50, %c0_51] : memref<128x128xbf16, #tpu.memory_space<vmem>>, vector<128x128xbf16>
    %cst_52 = arith.constant dense<0.000000e+00> : vector<256x128xf32>
    %162 = tpu.matmul %160, %161, %cst_52 {dimension_numbers = #tpu.dot_dimension_numbers<[1], [0], [0], [1], [0, 0, 1, 1], [], []>} : vector<256x128xbf16>, vector<128x128xbf16>, vector<256x128xf32> -> vector<256x128xf32>
    %c0_53 = arith.constant 0 : index
    %c0_54 = arith.constant 0 : index
    %163 = vector.load %arg6[%c0_53, %c0_54] : memref<1x128xf32, #tpu.memory_space<vmem>>, vector<1x128xf32>
    %164 = vector.broadcast %163 : vector<1x128xf32> to vector<256x128xf32>
    %165 = arith.addf %162, %164 : vector<256x128xf32>
    %166 = arith.addf %1, %165 : vector<256x128xf32>
    %cst_55 = arith.constant dense<0.000000e+00> : vector<256xf32>
    %167 = vector.multi_reduction <add>, %166, %cst_55 [1] : vector<256x128xf32> to vector<256xf32>
    %168 = vector.shape_cast %167 : vector<256xf32> to vector<256x1xf32>
    %cst_56 = arith.constant 1.280000e+02 : f32
    %169 = vector.broadcast %cst_56 : f32 to vector<256x1xf32>
    %170 = arith.divf %168, %169 : vector<256x1xf32>
    %171 = vector.broadcast %170 : vector<256x1xf32> to vector<256x128xf32>
    %172 = arith.subf %166, %171 : vector<256x128xf32>
    %173 = arith.mulf %172, %172 : vector<256x128xf32>
    %cst_57 = arith.constant dense<0.000000e+00> : vector<256xf32>
    %174 = vector.multi_reduction <add>, %173, %cst_57 [1] : vector<256x128xf32> to vector<256xf32>
    %175 = vector.shape_cast %174 : vector<256xf32> to vector<256x1xf32>
    %cst_58 = arith.constant 1.280000e+02 : f32
    %176 = vector.broadcast %cst_58 : f32 to vector<256x1xf32>
    %177 = arith.divf %175, %176 : vector<256x1xf32>
    %178 = vector.broadcast %170 : vector<256x1xf32> to vector<256x128xf32>
    %179 = arith.subf %166, %178 : vector<256x128xf32>
    %cst_59 = arith.constant 9.99999974E-6 : f32
    %180 = vector.broadcast %cst_59 : f32 to vector<256x1xf32>
    %181 = arith.addf %177, %180 : vector<256x1xf32>
    %182 = math.rsqrt %181 : vector<256x1xf32>
    %183 = vector.broadcast %182 : vector<256x1xf32> to vector<256x128xf32>
    %184 = arith.mulf %179, %183 : vector<256x128xf32>
    %c0_60 = arith.constant 0 : index
    %c0_61 = arith.constant 0 : index
    %185 = vector.load %arg7[%c0_60, %c0_61] : memref<1x128xf32, #tpu.memory_space<vmem>>, vector<1x128xf32>
    %186 = vector.broadcast %185 : vector<1x128xf32> to vector<256x128xf32>
    %187 = arith.mulf %184, %186 : vector<256x128xf32>
    %c0_62 = arith.constant 0 : index
    %c0_63 = arith.constant 0 : index
    %188 = vector.load %arg8[%c0_62, %c0_63] : memref<1x128xf32, #tpu.memory_space<vmem>>, vector<1x128xf32>
    %189 = vector.broadcast %188 : vector<1x128xf32> to vector<256x128xf32>
    %190 = arith.addf %187, %189 : vector<256x128xf32>
    %191 = arith.truncf %190 : vector<256x128xf32> to vector<256x128xbf16>
    %c0_64 = arith.constant 0 : index
    %c0_65 = arith.constant 0 : index
    %192 = vector.load %arg9[%c0_64, %c0_65] : memref<128x64xbf16, #tpu.memory_space<vmem>>, vector<128x64xbf16>
    %cst_66 = arith.constant dense<0.000000e+00> : vector<256x64xf32>
    %193 = tpu.matmul %191, %192, %cst_66 {dimension_numbers = #tpu.dot_dimension_numbers<[1], [0], [0], [1], [0, 0, 1, 1], [], []>} : vector<256x128xbf16>, vector<128x64xbf16>, vector<256x64xf32> -> vector<256x64xf32>
    %c0_67 = arith.constant 0 : index
    %c0_68 = arith.constant 0 : index
    %194 = vector.load %arg10[%c0_67, %c0_68] : memref<1x64xf32, #tpu.memory_space<vmem>>, vector<1x64xf32>
    %195 = vector.broadcast %194 : vector<1x64xf32> to vector<256x64xf32>
    %196 = arith.addf %193, %195 : vector<256x64xf32>
    %cst_69 = arith.constant 5.000000e-01 : f32
    %197 = vector.broadcast %cst_69 : f32 to vector<256x64xf32>
    %198 = arith.mulf %197, %196 : vector<256x64xf32>
    %cst_70 = arith.constant 4.471500e-02 : f32
    %199 = vector.broadcast %cst_70 : f32 to vector<256x64xf32>
    %200 = arith.mulf %199, %196 : vector<256x64xf32>
    %201 = arith.mulf %200, %196 : vector<256x64xf32>
    %202 = arith.mulf %201, %196 : vector<256x64xf32>
    %203 = arith.addf %196, %202 : vector<256x64xf32>
    %cst_71 = arith.constant 0.797884583 : f32
    %204 = vector.broadcast %cst_71 : f32 to vector<256x64xf32>
    %205 = arith.mulf %204, %203 : vector<256x64xf32>
    %206 = math.tanh %205 : vector<256x64xf32>
    %cst_72 = arith.constant 1.000000e+00 : f32
    %207 = vector.broadcast %cst_72 : f32 to vector<256x64xf32>
    %208 = arith.addf %207, %206 : vector<256x64xf32>
    %209 = arith.mulf %198, %208 : vector<256x64xf32>
    %210 = arith.truncf %209 : vector<256x64xf32> to vector<256x64xbf16>
    %c0_73 = arith.constant 0 : index
    %c0_74 = arith.constant 0 : index
    %211 = vector.load %arg11[%c0_73, %c0_74] : memref<64x128xbf16, #tpu.memory_space<vmem>>, vector<64x128xbf16>
    %cst_75 = arith.constant dense<0.000000e+00> : vector<256x128xf32>
    %212 = tpu.matmul %210, %211, %cst_75 {dimension_numbers = #tpu.dot_dimension_numbers<[1], [0], [0], [1], [0, 0, 1, 1], [], []>} : vector<256x64xbf16>, vector<64x128xbf16>, vector<256x128xf32> -> vector<256x128xf32>
    %c0_76 = arith.constant 0 : index
    %c0_77 = arith.constant 0 : index
    %213 = vector.load %arg12[%c0_76, %c0_77] : memref<1x128xf32, #tpu.memory_space<vmem>>, vector<1x128xf32>
    %214 = vector.broadcast %213 : vector<1x128xf32> to vector<256x128xf32>
    %215 = arith.addf %212, %214 : vector<256x128xf32>
    %216 = arith.addf %190, %215 : vector<256x128xf32>
    %cst_78 = arith.constant dense<0.000000e+00> : vector<256xf32>
    %217 = vector.multi_reduction <add>, %216, %cst_78 [1] : vector<256x128xf32> to vector<256xf32>
    %218 = vector.shape_cast %217 : vector<256xf32> to vector<256x1xf32>
    %cst_79 = arith.constant 1.280000e+02 : f32
    %219 = vector.broadcast %cst_79 : f32 to vector<256x1xf32>
    %220 = arith.divf %218, %219 : vector<256x1xf32>
    %221 = vector.broadcast %220 : vector<256x1xf32> to vector<256x128xf32>
    %222 = arith.subf %216, %221 : vector<256x128xf32>
    %223 = arith.mulf %222, %222 : vector<256x128xf32>
    %cst_80 = arith.constant dense<0.000000e+00> : vector<256xf32>
    %224 = vector.multi_reduction <add>, %223, %cst_80 [1] : vector<256x128xf32> to vector<256xf32>
    %225 = vector.shape_cast %224 : vector<256xf32> to vector<256x1xf32>
    %cst_81 = arith.constant 1.280000e+02 : f32
    %226 = vector.broadcast %cst_81 : f32 to vector<256x1xf32>
    %227 = arith.divf %225, %226 : vector<256x1xf32>
    %228 = vector.broadcast %220 : vector<256x1xf32> to vector<256x128xf32>
    %229 = arith.subf %216, %228 : vector<256x128xf32>
    %cst_82 = arith.constant 9.99999974E-6 : f32
    %230 = vector.broadcast %cst_82 : f32 to vector<256x1xf32>
    %231 = arith.addf %227, %230 : vector<256x1xf32>
    %232 = math.rsqrt %231 : vector<256x1xf32>
    %233 = vector.broadcast %232 : vector<256x1xf32> to vector<256x128xf32>
    %234 = arith.mulf %229, %233 : vector<256x128xf32>
    %c0_83 = arith.constant 0 : index
    %c0_84 = arith.constant 0 : index
    %235 = vector.load %arg13[%c0_83, %c0_84] : memref<1x128xf32, #tpu.memory_space<vmem>>, vector<1x128xf32>
    %236 = vector.broadcast %235 : vector<1x128xf32> to vector<256x128xf32>
    %237 = arith.mulf %234, %236 : vector<256x128xf32>
    %c0_85 = arith.constant 0 : index
    %c0_86 = arith.constant 0 : index
    %238 = vector.load %arg14[%c0_85, %c0_86] : memref<1x128xf32, #tpu.memory_space<vmem>>, vector<1x128xf32>
    %239 = vector.broadcast %238 : vector<1x128xf32> to vector<256x128xf32>
    %240 = arith.addf %237, %239 : vector<256x128xf32>
    %241 = vector.shape_cast %240 : vector<256x128xf32> to vector<2x128x128xf32>
    %c0_87 = arith.constant 0 : index
    %c0_88 = arith.constant 0 : index
    %c0_89 = arith.constant 0 : index
    %242 = vector.load %arg15[%c0_87, %c0_88, %c0_89] : memref<2x128x128xf32, #tpu.memory_space<vmem>>, vector<2x128x128xf32>
    tpu.vector_store %arg15[%c0_87, %c0_88, %c0_89], %241 {strides = array<i32>} : memref<2x128x128xf32, #tpu.memory_space<vmem>>, vector<2x128x128xf32>,
    return
  }
  func.func @transform_0(%arg0: i32) -> (i32, i32, i32) {
    %c0_i32 = arith.constant 0 : i32
    %c0_i32_0 = arith.constant 0 : i32
    %c0_i32_1 = arith.constant 0 : i32
    return %arg0, %c0_i32, %c0_i32_0 : i32, i32, i32
  }
  func.func @transform_1(%arg0: i32) -> (i32, i32) {
    %c0_i32 = arith.constant 0 : i32
    %c0_i32_0 = arith.constant 0 : i32
    %c0_i32_1 = arith.constant 0 : i32
    return %c0_i32, %c0_i32_0 : i32, i32
  }
  func.func @transform_2(%arg0: i32) -> (i32, i32) {
    %c0_i32 = arith.constant 0 : i32
    %c0_i32_0 = arith.constant 0 : i32
    %c0_i32_1 = arith.constant 0 : i32
    return %c0_i32, %c0_i32_0 : i32, i32
  }
  func.func @transform_3(%arg0: i32) -> (i32, i32) {
    %c0_i32 = arith.constant 0 : i32
    %c0_i32_0 = arith.constant 0 : i32
    %c0_i32_1 = arith.constant 0 : i32
    return %c0_i32, %c0_i32_0 : i32, i32
  }
  func.func @transform_4(%arg0: i32) -> (i32, i32) {
    %c0_i32 = arith.constant 0 : i32
    %c0_i32_0 = arith.constant 0 : i32
    %c0_i32_1 = arith.constant 0 : i32
    return %c0_i32, %c0_i32_0 : i32, i32
  }
  func.func @transform_5(%arg0: i32) -> (i32, i32) {
    %c0_i32 = arith.constant 0 : i32
    %c0_i32_0 = arith.constant 0 : i32
    %c0_i32_1 = arith.constant 0 : i32
    return %c0_i32, %c0_i32_0 : i32, i32
  }
  func.func @transform_6(%arg0: i32) -> (i32, i32) {
    %c0_i32 = arith.constant 0 : i32
    %c0_i32_0 = arith.constant 0 : i32
    %c0_i32_1 = arith.constant 0 : i32
    return %c0_i32, %c0_i32_0 : i32, i32
  }
  func.func @transform_7(%arg0: i32) -> (i32, i32) {
    %c0_i32 = arith.constant 0 : i32
    %c0_i32_0 = arith.constant 0 : i32
    %c0_i32_1 = arith.constant 0 : i32
    return %c0_i32, %c0_i32_0 : i32, i32
  }
  func.func @transform_8(%arg0: i32) -> (i32, i32) {
    %c0_i32 = arith.constant 0 : i32
    %c0_i32_0 = arith.constant 0 : i32
    %c0_i32_1 = arith.constant 0 : i32
    return %c0_i32, %c0_i32_0 : i32, i32
  }
  func.func @transform_9(%arg0: i32) -> (i32, i32) {
    %c0_i32 = arith.constant 0 : i32
    %c0_i32_0 = arith.constant 0 : i32
    %c0_i32_1 = arith.constant 0 : i32
    return %c0_i32, %c0_i32_0 : i32, i32
  }
  func.func @transform_10(%arg0: i32) -> (i32, i32) {
    %c0_i32 = arith.constant 0 : i32
    %c0_i32_0 = arith.constant 0 : i32
    %c0_i32_1 = arith.constant 0 : i32
    return %c0_i32, %c0_i32_0 : i32, i32
  }
  func.func @transform_11(%arg0: i32) -> (i32, i32) {
    %c0_i32 = arith.constant 0 : i32
    %c0_i32_0 = arith.constant 0 : i32
    %c0_i32_1 = arith.constant 0 : i32
    return %c0_i32, %c0_i32_0 : i32, i32
  }
  func.func @transform_12(%arg0: i32) -> (i32, i32) {
    %c0_i32 = arith.constant 0 : i32
    %c0_i32_0 = arith.constant 0 : i32
    %c0_i32_1 = arith.constant 0 : i32
    return %c0_i32, %c0_i32_0 : i32, i32
  }
  func.func @transform_13(%arg0: i32) -> (i32, i32) {
    %c0_i32 = arith.constant 0 : i32
    %c0_i32_0 = arith.constant 0 : i32
    %c0_i32_1 = arith.constant 0 : i32
    return %c0_i32, %c0_i32_0 : i32, i32
  }
  func.func @transform_14(%arg0: i32) -> (i32, i32, i32) {
    %c0_i32 = arith.constant 0 : i32
    %c0_i32_0 = arith.constant 0 : i32
    %c0_i32_1 = arith.constant 0 : i32
    return %arg0, %c0_i32, %c0_i32_0 : i32, i32, i32
  }
}

</mosaic_0001>

<llo_original>
// kernel: encoder_forward.3
$region0: #{encoder_forward.3}
  #allocation0 [shape = 'u32[]', space=smem, size = 0x4, offset = 0x4, fixed_abs, tag = 'smem constant byte address 0x4 - core index']
  #allocation1 [shape = 'u32[72,128]{1,0:T(1,128)}', space=vmem, size = 0x9000, scoped, tag = 'internal scratch']
  %s0 = inlined_call_operand.vmem [shape: f32[2,128,128], index: 0, kind: input, shape index: {}]
  %s1 = inlined_call_operand.vmem [shape: bf16[128,384], index: 1, kind: input, shape index: {}]
  %s2 = inlined_call_operand.vmem [shape: f32[1,384], index: 2, kind: input, shape index: {}]
  %s3 = inlined_call_operand.vmem [shape: bf16[128,128], index: 3, kind: input, shape index: {}]
  %s4 = inlined_call_operand.vmem [shape: bf16[128,128], index: 4, kind: input, shape index: {}]
  %s5 = inlined_call_operand.vmem [shape: f32[1,128], index: 5, kind: input, shape index: {}]
  %s6 = inlined_call_operand.vmem [shape: f32[1,128], index: 6, kind: input, shape index: {}]
  %s7 = inlined_call_operand.vmem [shape: f32[1,128], index: 7, kind: input, shape index: {}]
  %s8 = inlined_call_operand.vmem [shape: bf16[128,64], index: 8, kind: input, shape index: {}]
  %s9 = inlined_call_operand.vmem [shape: f32[1,64], index: 9, kind: input, shape index: {}]
  %s10 = inlined_call_operand.vmem [shape: bf16[64,128], index: 10, kind: input, shape index: {}]
  %s11 = inlined_call_operand.vmem [shape: f32[1,128], index: 11, kind: input, shape index: {}]
  %s12 = inlined_call_operand.vmem [shape: f32[1,128], index: 12, kind: input, shape index: {}]
  %s13 = inlined_call_operand.vmem [shape: f32[1,128], index: 13, kind: input, shape index: {}]
  %s14 = inlined_call_operand.hbm [shape: f32[2,128,128], index: 14, kind: output, shape index: {}]
  %s15 = sld [smem:[#allocation0]]
  $region66: #{encoder_forward.3} parent=0
    _
  %s17 = ssub.s32 1, %s15
  %s18 = scalar_select 0, %s17, %s15
  $region1: #{encoder_forward.3} parent=0
    #allocation2 [shape = 'u8[131072]{0}', space=vmem, size = 0x20000, scoped, tag = 'output window, operand 0, single buffered']
    #allocation3 [shape = 's32[1]{0}', space=sflag, size = 0x4, scoped, tag = 'scoped memory for encoder_forward.3']
    %19 = vsyncpa [#allocation3], 0
    // Predicated region
    $region2: #{encoder_forward.3} parent=1 // pred_check
      _
    $region3: #{encoder_forward.3} parent=1 // pred_check_branch
      %21 = sbr.rel (0) target = $region5
    $region4: #{encoder_forward.3} parent=1 // pred_region
      _
    $region5: #{encoder_forward.3} parent=1 // pred_fallthru
      _
    // Predicated region
    $region6: #{encoder_forward.3} parent=1 // pred_check
      _
    $region7: #{encoder_forward.3} parent=1 // pred_check_branch
      %23 = sbr.rel (0) target = $region9
    $region8: #{encoder_forward.3} parent=1 // pred_region
      _
    $region9: #{encoder_forward.3} parent=1 // pred_fallthru
      _
    // Predicated region
    $region10: #{encoder_forward.3} parent=1 // pred_check
      _
    $region11: #{encoder_forward.3} parent=1 // pred_check_branch
      %25 = sbr.rel (0) target = $region13
    $region12: #{encoder_forward.3} parent=1 // pred_region
      _
    $region13: #{encoder_forward.3} parent=1 // pred_fallthru
      _
    // Predicated region
    $region14: #{encoder_forward.3} parent=1 // pred_check
      _
    $region15: #{encoder_forward.3} parent=1 // pred_check_branch
      %27 = sbr.rel (0) target = $region17
    $region16: #{encoder_forward.3} parent=1 // pred_region
      _
    $region17: #{encoder_forward.3} parent=1 // pred_fallthru
      _
    // Predicated region
    $region18: #{encoder_forward.3} parent=1 // pred_check
      _
    $region19: #{encoder_forward.3} parent=1 // pred_check_branch
      %29 = sbr.rel (0) target = $region21
    $region20: #{encoder_forward.3} parent=1 // pred_region
      _
    $region21: #{encoder_forward.3} parent=1 // pred_fallthru
      _
    // Predicated region
    $region22: #{encoder_forward.3} parent=1 // pred_check
      _
    $region23: #{encoder_forward.3} parent=1 // pred_check_branch
      %31 = sbr.rel (0) target = $region25
    $region24: #{encoder_forward.3} parent=1 // pred_region
      _
    $region25: #{encoder_forward.3} parent=1 // pred_fallthru
      _
    // Predicated region
    $region26: #{encoder_forward.3} parent=1 // pred_check
      _
    $region27: #{encoder_forward.3} parent=1 // pred_check_branch
      %33 = sbr.rel (0) target = $region29
    $region28: #{encoder_forward.3} parent=1 // pred_region
      _
    $region29: #{encoder_forward.3} parent=1 // pred_fallthru
      _
    // Predicated region
    $region30: #{encoder_forward.3} parent=1 // pred_check
      _
    $region31: #{encoder_forward.3} parent=1 // pred_check_branch
      %35 = sbr.rel (0) target = $region33
    $region32: #{encoder_forward.3} parent=1 // pred_region
      _
    $region33: #{encoder_forward.3} parent=1 // pred_fallthru
      _
    // Predicated region
    $region34: #{encoder_forward.3} parent=1 // pred_check
      _
    $region35: #{encoder_forward.3} parent=1 // pred_check_branch
      %37 = sbr.rel (0) target = $region37
    $region36: #{encoder_forward.3} parent=1 // pred_region
      _
    $region37: #{encoder_forward.3} parent=1 // pred_fallthru
      _
    // Predicated region
    $region38: #{encoder_forward.3} parent=1 // pred_check
      _
    $region39: #{encoder_forward.3} parent=1 // pred_check_branch
      %39 = sbr.rel (0) target = $region41
    $region40: #{encoder_forward.3} parent=1 // pred_region
      _
    $region41: #{encoder_forward.3} parent=1 // pred_fallthru
      _
    // Predicated region
    $region42: #{encoder_forward.3} parent=1 // pred_check
      _
    $region43: #{encoder_forward.3} parent=1 // pred_check_branch
      %41 = sbr.rel (0) target = $region45
    $region44: #{encoder_forward.3} parent=1 // pred_region
      _
    $region45: #{encoder_forward.3} parent=1 // pred_fallthru
      _
    // Predicated region
    $region46: #{encoder_forward.3} parent=1 // pred_check
      _
    $region47: #{encoder_forward.3} parent=1 // pred_check_branch
      %43 = sbr.rel (0) target = $region49
    $region48: #{encoder_forward.3} parent=1 // pred_region
      _
    $region49: #{encoder_forward.3} parent=1 // pred_fallthru
      _
    // Predicated region
    $region50: #{encoder_forward.3} parent=1 // pred_check
      _
    $region51: #{encoder_forward.3} parent=1 // pred_check_branch
      %45 = sbr.rel (0) target = $region53
    $region52: #{encoder_forward.3} parent=1 // pred_region
      _
    $region53: #{encoder_forward.3} parent=1 // pred_fallthru
      _
    // Predicated region
    $region54: #{encoder_forward.3} parent=1 // pred_check
      _
    $region55: #{encoder_forward.3} parent=1 // pred_check_branch
      %47 = sbr.rel (0) target = $region57
    $region56: #{encoder_forward.3} parent=1 // pred_region
      _
    $region57: #{encoder_forward.3} parent=1 // pred_fallthru
      _
    %v49 = vld [vmem:[%s0] sm:$0xff]
    %v50 = vld [vmem:[%s0 + $0x8] sm:$0xff]
    %v51 = vld [vmem:[%s0 + $0x10] sm:$0xff]
    %v52 = vld [vmem:[%s0 + $0x18] sm:$0xff]
    %v53 = vld [vmem:[%s0 + $0x20] sm:$0xff]
    %v54 = vld [vmem:[%s0 + $0x28] sm:$0xff]
    %v55 = vld [vmem:[%s0 + $0x30] sm:$0xff]
    %v56 = vld [vmem:[%s0 + $0x38] sm:$0xff]
    %v57 = vld [vmem:[%s0 + $0x40] sm:$0xff]
    %v58 = vld [vmem:[%s0 + $0x48] sm:$0xff]
    %v59 = vld [vmem:[%s0 + $0x50] sm:$0xff]
    %v60 = vld [vmem:[%s0 + $0x58] sm:$0xff]
    %v61 = vld [vmem:[%s0 + $0x60] sm:$0xff]
    %v62 = vld [vmem:[%s0 + $0x68] sm:$0xff]
    %v63 = vld [vmem:[%s0 + $0x70] sm:$0xff]
    %v64 = vld [vmem:[%s0 + $0x78] sm:$0xff]
    %v65 = vld [vmem:[%s0 + $0x80] sm:$0xff]
    %v66 = vld [vmem:[%s0 + $0x88] sm:$0xff]
    %v67 = vld [vmem:[%s0 + $0x90] sm:$0xff]
    %v68 = vld [vmem:[%s0 + $0x98] sm:$0xff]
    %v69 = vld [vmem:[%s0 + $0xa0] sm:$0xff]
    %v70 = vld [vmem:[%s0 + $0xa8] sm:$0xff]
    %v71 = vld [vmem:[%s0 + $0xb0] sm:$0xff]
    %v72 = vld [vmem:[%s0 + $0xb8] sm:$0xff]
    %v73 = vld [vmem:[%s0 + $0xc0] sm:$0xff]
    %v74 = vld [vmem:[%s0 + $0xc8] sm:$0xff]
    %v75 = vld [vmem:[%s0 + $0xd0] sm:$0xff]
    %v76 = vld [vmem:[%s0 + $0xd8] sm:$0xff]
    %v77 = vld [vmem:[%s0 + $0xe0] sm:$0xff]
    %v78 = vld [vmem:[%s0 + $0xe8] sm:$0xff]
    %v79 = vld [vmem:[%s0 + $0xf0] sm:$0xff]
    %v80 = vld [vmem:[%s0 + $0xf8] sm:$0xff]
    %v81 = vpack.c.bf16 %v50, %v49
    %v82 = vpack.c.bf16 %v52, %v51
    %v83 = vpack.c.bf16 %v54, %v53
    %v84 = vpack.c.bf16 %v56, %v55
    %v85 = vpack.c.bf16 %v58, %v57
    %v86 = vpack.c.bf16 %v60, %v59
    %v87 = vpack.c.bf16 %v62, %v61
    %v88 = vpack.c.bf16 %v64, %v63
    %v89 = vpack.c.bf16 %v66, %v65
    %v90 = vpack.c.bf16 %v68, %v67
    %v91 = vpack.c.bf16 %v70, %v69
    %v92 = vpack.c.bf16 %v72, %v71
    %v93 = vpack.c.bf16 %v74, %v73
    %v94 = vpack.c.bf16 %v76, %v75
    %v95 = vpack.c.bf16 %v78, %v77
    %v96 = vpack.c.bf16 %v80, %v79
    %v97 = vld [vmem:[%s1] sm:$0xff]
    %v98 = vld [vmem:[%s1 + $0x8] sm:$0xf]
    %v99 = vld [vmem:[%s1 + $0xc] sm:$0xff]
    %v100 = vld [vmem:[%s1 + $0x14] sm:$0xf]
    %v101 = vld [vmem:[%s1 + $0x18] sm:$0xff]
    %v102 = vld [vmem:[%s1 + $0x20] sm:$0xf]
    %v103 = vld [vmem:[%s1 + $0x24] sm:$0xff]
    %v104 = vld [vmem:[%s1 + $0x2c] sm:$0xf]
    %v105 = vld [vmem:[%s1 + $0x30] sm:$0xff]
    %v106 = vld [vmem:[%s1 + $0x38] sm:$0xf]
    %v107 = vld [vmem:[%s1 + $0x3c] sm:$0xff]
    %v108 = vld [vmem:[%s1 + $0x44] sm:$0xf]
    %v109 = vld [vmem:[%s1 + $0x48] sm:$0xff]
    %v110 = vld [vmem:[%s1 + $0x50] sm:$0xf]
    %v111 = vld [vmem:[%s1 + $0x54] sm:$0xff]
    %v112 = vld [vmem:[%s1 + $0x5c] sm:$0xf]
    %v113 = vld [vmem:[%s1 + $0x60] sm:$0xff]
    %v114 = vld [vmem:[%s1 + $0x68] sm:$0xf]
    %v115 = vld [vmem:[%s1 + $0x6c] sm:$0xff]
    %v116 = vld [vmem:[%s1 + $0x74] sm:$0xf]
    %v117 = vld [vmem:[%s1 + $0x78] sm:$0xff]
    %v118 = vld [vmem:[%s1 + $0x80] sm:$0xf]
    %v119 = vld [vmem:[%s1 + $0x84] sm:$0xff]
    %v120 = vld [vmem:[%s1 + $0x8c] sm:$0xf]
    %v121 = vld [vmem:[%s1 + $0x90] sm:$0xff]
    %v122 = vld [vmem:[%s1 + $0x98] sm:$0xf]
    %v123 = vld [vmem:[%s1 + $0x9c] sm:$0xff]
    %v124 = vld [vmem:[%s1 + $0xa4] sm:$0xf]
    %v125 = vld [vmem:[%s1 + $0xa8] sm:$0xff]
    %v126 = vld [vmem:[%s1 + $0xb0] sm:$0xf]
    %v127 = vld [vmem:[%s1 + $0xb4] sm:$0xff]
    %v128 = vld [vmem:[%s1 + $0xbc] sm:$0xf]
    %v129 = vld [vmem:[%s2] sm:$0x7]
    %v131 = vperm.slane %v129, 0
    %v132 = vperm.slane %v129, 1
    %v133 = vperm.slane %v129, 2
    %v169 = vunpack.c.l.b16 %v97
    %v170 = vunpack.c.h.b16 %v97
    %v171 = vunpack.c.l.b16 %v98
    %v172 = vunpack.c.l.b16 %v99
    %v173 = vunpack.c.h.b16 %v99
    %v174 = vunpack.c.l.b16 %v100
    %v175 = vunpack.c.l.b16 %v101
    %v176 = vunpack.c.h.b16 %v101
    %v177 = vunpack.c.l.b16 %v102
    %v178 = vunpack.c.l.b16 %v103
    %v179 = vunpack.c.h.b16 %v103
    %v180 = vunpack.c.l.b16 %v104
    %v181 = vunpack.c.l.b16 %v105
    %v182 = vunpack.c.h.b16 %v105
    %v183 = vunpack.c.l.b16 %v106
    %v184 = vunpack.c.l.b16 %v107
    %v185 = vunpack.c.h.b16 %v107
    %v186 = vunpack.c.l.b16 %v108
    %v187 = vunpack.c.l.b16 %v109
    %v188 = vunpack.c.h.b16 %v109
    %v189 = vunpack.c.l.b16 %v110
    %v190 = vunpack.c.l.b16 %v111
    %v191 = vunpack.c.h.b16 %v111
    %v192 = vunpack.c.l.b16 %v112
    %v193 = vunpack.c.l.b16 %v113
    %v194 = vunpack.c.h.b16 %v113
    %v195 = vunpack.c.l.b16 %v114
    %v196 = vunpack.c.l.b16 %v115
    %v197 = vunpack.c.h.b16 %v115
    %v198 = vunpack.c.l.b16 %v116
    %v199 = vunpack.c.l.b16 %v117
    %v200 = vunpack.c.h.b16 %v117
    %v201 = vunpack.c.l.b16 %v118
    %v202 = vunpack.c.l.b16 %v119
    %v203 = vunpack.c.h.b16 %v119
    %v204 = vunpack.c.l.b16 %v120
    %v205 = vunpack.c.l.b16 %v121
    %v206 = vunpack.c.h.b16 %v121
    %v207 = vunpack.c.l.b16 %v122
    %v208 = vunpack.c.l.b16 %v123
    %v209 = vunpack.c.h.b16 %v123
    %v210 = vunpack.c.l.b16 %v124
    %v211 = vunpack.c.l.b16 %v125
    %v212 = vunpack.c.h.b16 %v125
    %v213 = vunpack.c.l.b16 %v126
    %v214 = vunpack.c.l.b16 %v127
    %v215 = vunpack.c.h.b16 %v127
    %v216 = vunpack.c.l.b16 %v128
    %v217 = vpack.c.b16 %v172, %v169
    %v218 = vpack.c.b16 %v173, %v170
    %v219 = vpack.c.b16 %v174, %v171
    %v220 = vpack.c.b16 %v178, %v175
    %v221 = vpack.c.b16 %v179, %v176
    %v222 = vpack.c.b16 %v180, %v177
    %v223 = vpack.c.b16 %v184, %v181
    %v224 = vpack.c.b16 %v185, %v182
    %v225 = vpack.c.b16 %v186, %v183
    %v226 = vpack.c.b16 %v190, %v187
    %v227 = vpack.c.b16 %v191, %v188
    %v228 = vpack.c.b16 %v192, %v189
    %v229 = vpack.c.b16 %v196, %v193
    %v230 = vpack.c.b16 %v197, %v194
    %v231 = vpack.c.b16 %v198, %v195
    %v232 = vpack.c.b16 %v202, %v199
    %v233 = vpack.c.b16 %v203, %v200
    %v234 = vpack.c.b16 %v204, %v201
    %v235 = vpack.c.b16 %v208, %v205
    %v236 = vpack.c.b16 %v209, %v206
    %v237 = vpack.c.b16 %v210, %v207
    %v238 = vpack.c.b16 %v214, %v211
    %v239 = vpack.c.b16 %v215, %v212
    %v240 = vpack.c.b16 %v216, %v213
    %265 = vmatpush.bf16.msra.mxu0 %v238
    %266 = vmatpush.bf16.msra.mxu0 %v235
    %267 = vmatpush.bf16.msra.mxu0 %v232
    %268 = vmatpush.bf16.msra.mxu0 %v229
    %269 = vmatpush.bf16.msra.mxu0 %v226
    %270 = vmatpush.bf16.msra.mxu0 %v223
    %271 = vmatpush.bf16.msra.mxu0 %v220
    %272 = vmatpush.bf16.msra.mxu0 %v217
    %273 = vmatmul.bf16.gmra.mxu0 %v81
    %v274 = vpop.f32.mrf.mxu0
    %v275 = vadd.f32 %v131, %v274
    %v276 = vpop.f32.mrf.mxu0
    %v277 = vadd.f32 %v131, %v276
    %278 = vmatmul.bf16.gmra.mxu0 %v82
    %v279 = vpop.f32.mrf.mxu0
    %v280 = vadd.f32 %v131, %v279
    %v281 = vpop.f32.mrf.mxu0
    %v282 = vadd.f32 %v131, %v281
    %283 = vmatmul.bf16.gmra.mxu0 %v83
    %v284 = vpop.f32.mrf.mxu0
    %v285 = vadd.f32 %v131, %v284
    %v286 = vpop.f32.mrf.mxu0
    %v287 = vadd.f32 %v131, %v286
    %288 = vmatmul.bf16.gmra.mxu0 %v84
    %v289 = vpop.f32.mrf.mxu0
    %v290 = vadd.f32 %v131, %v289
    %v291 = vpop.f32.mrf.mxu0
    %v292 = vadd.f32 %v131, %v291
    %293 = vmatmul.bf16.gmra.mxu0 %v85
    %v294 = vpop.f32.mrf.mxu0
    %v295 = vadd.f32 %v131, %v294
    %v296 = vpop.f32.mrf.mxu0
    %v297 = vadd.f32 %v131, %v296
    %298 = vmatmul.bf16.gmra.mxu0 %v86
    %v299 = vpop.f32.mrf.mxu0
    %v300 = vadd.f32 %v131, %v299
    %v301 = vpop.f32.mrf.mxu0
    %v302 = vadd.f32 %v131, %v301
    %303 = vmatmul.bf16.gmra.mxu0 %v87
    %v304 = vpop.f32.mrf.mxu0
    %v305 = vadd.f32 %v131, %v304
    %v306 = vpop.f32.mrf.mxu0
    %v307 = vadd.f32 %v131, %v306
    %308 = vmatmul.bf16.gmra.mxu0 %v88
    %v309 = vpop.f32.mrf.mxu0
    %v310 = vadd.f32 %v131, %v309
    %v311 = vpop.f32.mrf.mxu0
    %v312 = vadd.f32 %v131, %v311
    %313 = vmatmul.bf16.gmra.mxu0 %v89
    %v314 = vpop.f32.mrf.mxu0
    %v315 = vadd.f32 %v131, %v314
    %v316 = vpop.f32.mrf.mxu0
    %v317 = vadd.f32 %v131, %v316
    %318 = vmatmul.bf16.gmra.mxu0 %v90
    %v319 = vpop.f32.mrf.mxu0
    %v320 = vadd.f32 %v131, %v319
    %v321 = vpop.f32.mrf.mxu0
    %v322 = vadd.f32 %v131, %v321
    %323 = vmatmul.bf16.gmra.mxu0 %v91
    %v324 = vpop.f32.mrf.mxu0
    %v325 = vadd.f32 %v131, %v324
    %v326 = vpop.f32.mrf.mxu0
    %v327 = vadd.f32 %v131, %v326
    %328 = vmatmul.bf16.gmra.mxu0 %v92
    %v329 = vpop.f32.mrf.mxu0
    %v330 = vadd.f32 %v131, %v329
    %v331 = vpop.f32.mrf.mxu0
    %v332 = vadd.f32 %v131, %v331
    %333 = vmatmul.bf16.gmra.mxu0 %v93
    %v334 = vpop.f32.mrf.mxu0
    %v335 = vadd.f32 %v131, %v334
    %v336 = vpop.f32.mrf.mxu0
    %v337 = vadd.f32 %v131, %v336
    %338 = vmatmul.bf16.gmra.mxu0 %v94
    %v339 = vpop.f32.mrf.mxu0
    %v340 = vadd.f32 %v131, %v339
    %v341 = vpop.f32.mrf.mxu0
    %v342 = vadd.f32 %v131, %v341
    %343 = vmatmul.bf16.gmra.mxu0 %v95
    %v344 = vpop.f32.mrf.mxu0
    %v345 = vadd.f32 %v131, %v344
    %v346 = vpop.f32.mrf.mxu0
    %v347 = vadd.f32 %v131, %v346
    %348 = vmatmul.bf16.gmra.mxu0 %v96
    %v349 = vpop.f32.mrf.mxu0
    %v350 = vadd.f32 %v131, %v349
    %v351 = vpop.f32.mrf.mxu0
    %v352 = vadd.f32 %v131, %v351
    %353 = vdwg.mxu0
    %354 = vmatpush.bf16.msra.mxu0 %v239
    %355 = vmatpush.bf16.msra.mxu0 %v236
    %356 = vmatpush.bf16.msra.mxu0 %v233
    %357 = vmatpush.bf16.msra.mxu0 %v230
    %358 = vmatpush.bf16.msra.mxu0 %v227
    %359 = vmatpush.bf16.msra.mxu0 %v224
    %360 = vmatpush.bf16.msra.mxu0 %v221
    %361 = vmatpush.bf16.msra.mxu0 %v218
    %362 = vmatmul.bf16.gmra.mxu0 %v81
    %v363 = vpop.f32.mrf.mxu0
    %v364 = vadd.f32 %v132, %v363
    %v365 = vpop.f32.mrf.mxu0
    %v366 = vadd.f32 %v132, %v365
    %367 = vmatmul.bf16.gmra.mxu0 %v82
    %v368 = vpop.f32.mrf.mxu0
    %v369 = vadd.f32 %v132, %v368
    %v370 = vpop.f32.mrf.mxu0
    %v371 = vadd.f32 %v132, %v370
    %372 = vmatmul.bf16.gmra.mxu0 %v83
    %v373 = vpop.f32.mrf.mxu0
    %v374 = vadd.f32 %v132, %v373
    %v375 = vpop.f32.mrf.mxu0
    %v376 = vadd.f32 %v132, %v375
    %377 = vmatmul.bf16.gmra.mxu0 %v84
    %v378 = vpop.f32.mrf.mxu0
    %v379 = vadd.f32 %v132, %v378
    %v380 = vpop.f32.mrf.mxu0
    %v381 = vadd.f32 %v132, %v380
    %382 = vmatmul.bf16.gmra.mxu0 %v85
    %v383 = vpop.f32.mrf.mxu0
    %v384 = vadd.f32 %v132, %v383
    %v385 = vpop.f32.mrf.mxu0
    %v386 = vadd.f32 %v132, %v385
    %387 = vmatmul.bf16.gmra.mxu0 %v86
    %v388 = vpop.f32.mrf.mxu0
    %v389 = vadd.f32 %v132, %v388
    %v390 = vpop.f32.mrf.mxu0
    %v391 = vadd.f32 %v132, %v390
    %392 = vmatmul.bf16.gmra.mxu0 %v87
    %v393 = vpop.f32.mrf.mxu0
    %v394 = vadd.f32 %v132, %v393
    %v395 = vpop.f32.mrf.mxu0
    %v396 = vadd.f32 %v132, %v395
    %397 = vmatmul.bf16.gmra.mxu0 %v88
    %v398 = vpop.f32.mrf.mxu0
    %v399 = vadd.f32 %v132, %v398
    %v400 = vpop.f32.mrf.mxu0
    %v401 = vadd.f32 %v132, %v400
    %402 = vmatmul.bf16.gmra.mxu0 %v89
    %v403 = vpop.f32.mrf.mxu0
    %v404 = vadd.f32 %v132, %v403
    %v405 = vpop.f32.mrf.mxu0
    %v406 = vadd.f32 %v132, %v405
    %407 = vmatmul.bf16.gmra.mxu0 %v90
    %v408 = vpop.f32.mrf.mxu0
    %v409 = vadd.f32 %v132, %v408
    %v410 = vpop.f32.mrf.mxu0
    %v411 = vadd.f32 %v132, %v410
    %412 = vmatmul.bf16.gmra.mxu0 %v91
    %v413 = vpop.f32.mrf.mxu0
    %v414 = vadd.f32 %v132, %v413
    %v415 = vpop.f32.mrf.mxu0
    %v416 = vadd.f32 %v132, %v415
    %417 = vmatmul.bf16.gmra.mxu0 %v92
    %v418 = vpop.f32.mrf.mxu0
    %v419 = vadd.f32 %v132, %v418
    %v420 = vpop.f32.mrf.mxu0
    %v421 = vadd.f32 %v132, %v420
    %422 = vmatmul.bf16.gmra.mxu0 %v93
    %v423 = vpop.f32.mrf.mxu0
    %v424 = vadd.f32 %v132, %v423
    %v425 = vpop.f32.mrf.mxu0
    %v426 = vadd.f32 %v132, %v425
    %427 = vmatmul.bf16.gmra.mxu0 %v94
    %v428 = vpop.f32.mrf.mxu0
    %v429 = vadd.f32 %v132, %v428
    %v430 = vpop.f32.mrf.mxu0
    %v431 = vadd.f32 %v132, %v430
    %432 = vmatmul.bf16.gmra.mxu0 %v95
    %v433 = vpop.f32.mrf.mxu0
    %v434 = vadd.f32 %v132, %v433
    %v435 = vpop.f32.mrf.mxu0
    %v436 = vadd.f32 %v132, %v435
    %437 = vmatmul.bf16.gmra.mxu0 %v96
    %v438 = vpop.f32.mrf.mxu0
    %v439 = vadd.f32 %v132, %v438
    %v440 = vpop.f32.mrf.mxu0
    %v441 = vadd.f32 %v132, %v440
    %442 = vdwg.mxu0
    %443 = vmatpush.bf16.msra.mxu0 %v240
    %444 = vmatpush.bf16.msra.mxu0 %v237
    %445 = vmatpush.bf16.msra.mxu0 %v234
    %446 = vmatpush.bf16.msra.mxu0 %v231
    %447 = vmatpush.bf16.msra.mxu0 %v228
    %448 = vmatpush.bf16.msra.mxu0 %v225
    %449 = vmatpush.bf16.msra.mxu0 %v222
    %450 = vmatpush.bf16.msra.mxu0 %v219
    %451 = vmatmul.bf16.gmra.mxu0 %v81
    %v452 = vpop.f32.mrf.mxu0
    %v453 = vadd.f32 %v133, %v452
    %v454 = vpop.f32.mrf.mxu0
    %v455 = vadd.f32 %v133, %v454
    %456 = vmatmul.bf16.gmra.mxu0 %v82
    %v457 = vpop.f32.mrf.mxu0
    %v458 = vadd.f32 %v133, %v457
    %v459 = vpop.f32.mrf.mxu0
    %v460 = vadd.f32 %v133, %v459
    %461 = vmatmul.bf16.gmra.mxu0 %v83
    %v462 = vpop.f32.mrf.mxu0
    %v463 = vadd.f32 %v133, %v462
    %v464 = vpop.f32.mrf.mxu0
    %v465 = vadd.f32 %v133, %v464
    %466 = vmatmul.bf16.gmra.mxu0 %v84
    %v467 = vpop.f32.mrf.mxu0
    %v468 = vadd.f32 %v133, %v467
    %v469 = vpop.f32.mrf.mxu0
    %v470 = vadd.f32 %v133, %v469
    %471 = vmatmul.bf16.gmra.mxu0 %v85
    %v472 = vpop.f32.mrf.mxu0
    %v473 = vadd.f32 %v133, %v472
    %v474 = vpop.f32.mrf.mxu0
    %v475 = vadd.f32 %v133, %v474
    %476 = vmatmul.bf16.gmra.mxu0 %v86
    %v477 = vpop.f32.mrf.mxu0
    %v478 = vadd.f32 %v133, %v477
    %v479 = vpop.f32.mrf.mxu0
    %v480 = vadd.f32 %v133, %v479
    %481 = vmatmul.bf16.gmra.mxu0 %v87
    %v482 = vpop.f32.mrf.mxu0
    %v483 = vadd.f32 %v133, %v482
    %v484 = vpop.f32.mrf.mxu0
    %v485 = vadd.f32 %v133, %v484
    %486 = vmatmul.bf16.gmra.mxu0 %v88
    %v487 = vpop.f32.mrf.mxu0
    %v488 = vadd.f32 %v133, %v487
    %v489 = vpop.f32.mrf.mxu0
    %v490 = vadd.f32 %v133, %v489
    %491 = vmatmul.bf16.gmra.mxu0 %v89
    %v492 = vpop.f32.mrf.mxu0
    %v493 = vadd.f32 %v133, %v492
    %v494 = vpop.f32.mrf.mxu0
    %v495 = vadd.f32 %v133, %v494
    %496 = vmatmul.bf16.gmra.mxu0 %v90
    %v497 = vpop.f32.mrf.mxu0
    %v498 = vadd.f32 %v133, %v497
    %v499 = vpop.f32.mrf.mxu0
    %v500 = vadd.f32 %v133, %v499
    %501 = vmatmul.bf16.gmra.mxu0 %v91
    %v502 = vpop.f32.mrf.mxu0
    %v503 = vadd.f32 %v133, %v502
    %v504 = vpop.f32.mrf.mxu0
    %v505 = vadd.f32 %v133, %v504
    %506 = vmatmul.bf16.gmra.mxu0 %v92
    %v507 = vpop.f32.mrf.mxu0
    %v508 = vadd.f32 %v133, %v507
    %v509 = vpop.f32.mrf.mxu0
    %v510 = vadd.f32 %v133, %v509
    %511 = vmatmul.bf16.gmra.mxu0 %v93
    %v512 = vpop.f32.mrf.mxu0
    %v513 = vadd.f32 %v133, %v512
    %v514 = vpop.f32.mrf.mxu0
    %v515 = vadd.f32 %v133, %v514
    %516 = vmatmul.bf16.gmra.mxu0 %v94
    %v517 = vpop.f32.mrf.mxu0
    %v518 = vadd.f32 %v133, %v517
    %v519 = vpop.f32.mrf.mxu0
    %v520 = vadd.f32 %v133, %v519
    %521 = vmatmul.bf16.gmra.mxu0 %v95
    %v522 = vpop.f32.mrf.mxu0
    %v523 = vadd.f32 %v133, %v522
    %v524 = vpop.f32.mrf.mxu0
    %v525 = vadd.f32 %v133, %v524
    %526 = vmatmul.bf16.gmra.mxu0 %v96
    %v527 = vpop.f32.mrf.mxu0
    %v528 = vadd.f32 %v133, %v527
    %v529 = vpop.f32.mrf.mxu0
    %v530 = vadd.f32 %v133, %v529
    %531 = vdwg.mxu0
    %v532 = vpack.c.bf16 %v275, %v275
    %v533 = vpack.c.bf16 %v277, %v277
    %v534 = vpack.c.bf16 %v280, %v280
    %v535 = vpack.c.bf16 %v282, %v282
    %v536 = vpack.c.bf16 %v285, %v285
    %v537 = vpack.c.bf16 %v287, %v287
    %v538 = vpack.c.bf16 %v290, %v290
    %v539 = vpack.c.bf16 %v292, %v292
    %v540 = vpack.c.bf16 %v295, %v295
    %v541 = vpack.c.bf16 %v297, %v297
    %v542 = vpack.c.bf16 %v300, %v300
    %v543 = vpack.c.bf16 %v302, %v302
    %v544 = vpack.c.bf16 %v305, %v305
    %v545 = vpack.c.bf16 %v307, %v307
    %v546 = vpack.c.bf16 %v310, %v310
    %v547 = vpack.c.bf16 %v312, %v312
    %v548 = vpack.c.bf16 %v315, %v315
    %v549 = vpack.c.bf16 %v317, %v317
    %v550 = vpack.c.bf16 %v320, %v320
    %v551 = vpack.c.bf16 %v322, %v322
    %v552 = vpack.c.bf16 %v325, %v325
    %v553 = vpack.c.bf16 %v327, %v327
    %v554 = vpack.c.bf16 %v330, %v330
    %v555 = vpack.c.bf16 %v332, %v332
    %v556 = vpack.c.bf16 %v335, %v335
    %v557 = vpack.c.bf16 %v337, %v337
    %v558 = vpack.c.bf16 %v340, %v340
    %v559 = vpack.c.bf16 %v342, %v342
    %v560 = vpack.c.bf16 %v345, %v345
    %v561 = vpack.c.bf16 %v347, %v347
    %v562 = vpack.c.bf16 %v350, %v350
    %v563 = vpack.c.bf16 %v352, %v352
    %v564 = vpack.c.bf16 %v364, %v364
    %v565 = vpack.c.bf16 %v366, %v366
    %v566 = vpack.c.bf16 %v369, %v369
    %v567 = vpack.c.bf16 %v371, %v371
    %v568 = vpack.c.bf16 %v374, %v374
    %v569 = vpack.c.bf16 %v376, %v376
    %v570 = vpack.c.bf16 %v379, %v379
    %v571 = vpack.c.bf16 %v381, %v381
    %v572 = vpack.c.bf16 %v384, %v384
    %v573 = vpack.c.bf16 %v386, %v386
    %v574 = vpack.c.bf16 %v389, %v389
    %v575 = vpack.c.bf16 %v391, %v391
    %v576 = vpack.c.bf16 %v394, %v394
    %v577 = vpack.c.bf16 %v396, %v396
    %v578 = vpack.c.bf16 %v399, %v399
    %v579 = vpack.c.bf16 %v401, %v401
    %v580 = vpack.c.bf16 %v404, %v404
    %v581 = vpack.c.bf16 %v406, %v406
    %v582 = vpack.c.bf16 %v409, %v409
    %v583 = vpack.c.bf16 %v411, %v411
    %v584 = vpack.c.bf16 %v414, %v414
    %v585 = vpack.c.bf16 %v416, %v416
    %v586 = vpack.c.bf16 %v419, %v419
    %v587 = vpack.c.bf16 %v421, %v421
    %v588 = vpack.c.bf16 %v424, %v424
    %v589 = vpack.c.bf16 %v426, %v426
    %v590 = vpack.c.bf16 %v429, %v429
    %v591 = vpack.c.bf16 %v431, %v431
    %v592 = vpack.c.bf16 %v434, %v434
    %v593 = vpack.c.bf16 %v436, %v436
    %v594 = vpack.c.bf16 %v439, %v439
    %v595 = vpack.c.bf16 %v441, %v441
    %v596 = vpack.c.bf16 %v453, %v453
    %v597 = vpack.c.bf16 %v455, %v455
    %v598 = vpack.c.bf16 %v458, %v458
    %v599 = vpack.c.bf16 %v460, %v460
    %v600 = vpack.c.bf16 %v463, %v463
    %v601 = vpack.c.bf16 %v465, %v465
    %v602 = vpack.c.bf16 %v468, %v468
    %v603 = vpack.c.bf16 %v470, %v470
    %v604 = vpack.c.bf16 %v473, %v473
    %v605 = vpack.c.bf16 %v475, %v475
    %v606 = vpack.c.bf16 %v478, %v478
    %v607 = vpack.c.bf16 %v480, %v480
    %v608 = vpack.c.bf16 %v483, %v483
    %v609 = vpack.c.bf16 %v485, %v485
    %v610 = vpack.c.bf16 %v488, %v488
    %v611 = vpack.c.bf16 %v490, %v490
    %v612 = vpack.c.bf16 %v493, %v493
    %v613 = vpack.c.bf16 %v495, %v495
    %v614 = vpack.c.bf16 %v498, %v498
    %v615 = vpack.c.bf16 %v500, %v500
    %v616 = vpack.c.bf16 %v503, %v503
    %v617 = vpack.c.bf16 %v505, %v505
    %v618 = vpack.c.bf16 %v508, %v508
    %v619 = vpack.c.bf16 %v510, %v510
    %v620 = vpack.c.bf16 %v513, %v513
    %v621 = vpack.c.bf16 %v515, %v515
    %v622 = vpack.c.bf16 %v518, %v518
    %v623 = vpack.c.bf16 %v520, %v520
    %v624 = vpack.c.bf16 %v523, %v523
    %v625 = vpack.c.bf16 %v525, %v525
    %v626 = vpack.c.bf16 %v528, %v528
    %v627 = vpack.c.bf16 %v530, %v530
    %v628 = vld [vmem:[%s3] sm:$0xf]
    %v629 = vld [vmem:[%s3 + $0x4] sm:$0xf]
    %v630 = vld [vmem:[%s3 + $0x8] sm:$0xf]
    %v631 = vld [vmem:[%s3 + $0xc] sm:$0xf]
    %v632 = vld [vmem:[%s3 + $0x10] sm:$0xf]
    %v633 = vld [vmem:[%s3 + $0x14] sm:$0xf]
    %v634 = vld [vmem:[%s3 + $0x18] sm:$0xf]
    %v635 = vld [vmem:[%s3 + $0x1c] sm:$0xf]
    %v636 = vld [vmem:[%s3 + $0x20] sm:$0xf]
    %v637 = vld [vmem:[%s3 + $0x24] sm:$0xf]
    %v638 = vld [vmem:[%s3 + $0x28] sm:$0xf]
    %v639 = vld [vmem:[%s3 + $0x2c] sm:$0xf]
    %v640 = vld [vmem:[%s3 + $0x30] sm:$0xf]
    %v641 = vld [vmem:[%s3 + $0x34] sm:$0xf]
    %v642 = vld [vmem:[%s3 + $0x38] sm:$0xf]
    %v643 = vld [vmem:[%s3 + $0x3c] sm:$0xf]
    %v644 = vlaneseq
    %v645 = vshrl.u32 %v644, 7
    %v646 = vadd.s32 %v645, 8
    %v647 = vadd.s32 %v645, 16
    %v648 = vadd.s32 %v645, 24
    %v649 = vadd.s32 %v645, 32
    %v650 = vadd.s32 %v645, 40
    %v651 = vadd.s32 %v645, 48
    %v652 = vadd.s32 %v645, 56
    %v653 = vadd.s32 %v645, 64
    %v654 = vadd.s32 %v645, 72
    %v655 = vadd.s32 %v645, 80
    %v656 = vadd.s32 %v645, 88
    %v657 = vadd.s32 %v645, 96
    %v658 = vadd.s32 %v645, 104
    %v659 = vadd.s32 %v645, 112
    %v660 = vadd.s32 %v645, 120
    %v661 = vlaneseq
    %v662 = vand.u32 %v661, 127
    %vm663 = vcmp.le.s32.totalorder %v662, %v645
    %vm664 = vcmp.le.s32.totalorder %v662, %v646
    %vm665 = vcmp.le.s32.totalorder %v662, %v647
    %vm666 = vcmp.le.s32.totalorder %v662, %v648
    %vm667 = vcmp.le.s32.totalorder %v662, %v649
    %vm668 = vcmp.le.s32.totalorder %v662, %v650
    %vm669 = vcmp.le.s32.totalorder %v662, %v651
    %vm670 = vcmp.le.s32.totalorder %v662, %v652
    %vm671 = vcmp.le.s32.totalorder %v662, %v653
    %vm672 = vcmp.le.s32.totalorder %v662, %v654
    %vm673 = vcmp.le.s32.totalorder %v662, %v655
    %vm674 = vcmp.le.s32.totalorder %v662, %v656
    %vm675 = vcmp.le.s32.totalorder %v662, %v657
    %vm676 = vcmp.le.s32.totalorder %v662, %v658
    %vm677 = vcmp.le.s32.totalorder %v662, %v659
    %vm678 = vcmp.le.s32.totalorder %v662, %v660
    %vm679 = vcmp.ge.s32.totalorder %v662, 0
    %vm680 = vcmp.lt.s32.totalorder %v662, 64
    %vm681 = vmand %vm679, %vm680
    %v682 = vsel %vm681, 1, 0
    %vm683 = vcmp.eq.s32.totalorder %v682, 1
    %vm684 = vmpackc.low %vm683, %vm683
    %v685 = vsel %vm684, %v532, 0
    %v686 = vsel %vm684, %v533, 0
    %v687 = vsel %vm684, %v534, 0
    %v688 = vsel %vm684, %v535, 0
    %v689 = vsel %vm684, %v536, 0
    %v690 = vsel %vm684, %v537, 0
    %v691 = vsel %vm684, %v538, 0
    %v692 = vsel %vm684, %v539, 0
    %v693 = vsel %vm684, %v540, 0
    %v694 = vsel %vm684, %v541, 0
    %v695 = vsel %vm684, %v542, 0
    %v696 = vsel %vm684, %v543, 0
    %v697 = vsel %vm684, %v544, 0
    %v698 = vsel %vm684, %v545, 0
    %v699 = vsel %vm684, %v546, 0
    %v700 = vsel %vm684, %v547, 0
    %v717 = vunpack.c.l.b16 %v685
    %v718 = vunpack.c.l.b16 %v686
    %v719 = vunpack.c.l.b16 %v687
    %v720 = vunpack.c.l.b16 %v688
    %v721 = vunpack.c.l.b16 %v689
    %v722 = vunpack.c.l.b16 %v690
    %v723 = vunpack.c.l.b16 %v691
    %v724 = vunpack.c.l.b16 %v692
    %v725 = vunpack.c.l.b16 %v693
    %v726 = vunpack.c.l.b16 %v694
    %v727 = vunpack.c.l.b16 %v695
    %v728 = vunpack.c.l.b16 %v696
    %v729 = vunpack.c.l.b16 %v697
    %v730 = vunpack.c.l.b16 %v698
    %v731 = vunpack.c.l.b16 %v699
    %v732 = vunpack.c.l.b16 %v700
    %v733 = vpack.c.b16 %v718, %v717
    %v734 = vpack.c.b16 %v720, %v719
    %v735 = vpack.c.b16 %v722, %v721
    %v736 = vpack.c.b16 %v724, %v723
    %v737 = vpack.c.b16 %v726, %v725
    %v738 = vpack.c.b16 %v728, %v727
    %v739 = vpack.c.b16 %v730, %v729
    %v740 = vpack.c.b16 %v732, %v731
    %v765 = vunpack.c.l.b16 %v628
    %v766 = vunpack.c.l.b16 %v629
    %v767 = vunpack.c.l.b16 %v630
    %v768 = vunpack.c.l.b16 %v631
    %v769 = vunpack.c.l.b16 %v632
    %v770 = vunpack.c.l.b16 %v633
    %v771 = vunpack.c.l.b16 %v634
    %v772 = vunpack.c.l.b16 %v635
    %v773 = vunpack.c.l.b16 %v636
    %v774 = vunpack.c.l.b16 %v637
    %v775 = vunpack.c.l.b16 %v638
    %v776 = vunpack.c.l.b16 %v639
    %v777 = vunpack.c.l.b16 %v640
    %v778 = vunpack.c.l.b16 %v641
    %v779 = vunpack.c.l.b16 %v642
    %v780 = vunpack.c.l.b16 %v643
    %v781 = vpack.c.b16 %v766, %v765
    %v782 = vpack.c.b16 %v768, %v767
    %v783 = vpack.c.b16 %v770, %v769
    %v784 = vpack.c.b16 %v772, %v771
    %v785 = vpack.c.b16 %v774, %v773
    %v786 = vpack.c.b16 %v776, %v775
    %v787 = vpack.c.b16 %v778, %v777
    %v788 = vpack.c.b16 %v780, %v779
    %797 = vmatpush.bf16.msra.mxu0 %v788
    %798 = vmatpush.bf16.msra.mxu0 %v787
    %799 = vmatpush.bf16.msra.mxu0 %v786
    %800 = vmatpush.bf16.msra.mxu0 %v785
    %801 = vmatpush.bf16.msra.mxu0 %v784
    %802 = vmatpush.bf16.msra.mxu0 %v783
    %803 = vmatpush.bf16.msra.mxu0 %v782
    %804 = vmatpush.bf16.msra.mxu0 %v781
    %805 = vmatmul.bf16.gmra.mxu0 %v733
    %v806 = vpop.f32.mrf.mxu0
    %v807 = vadd.f32 0.0, %v806
    %v808 = vpop.f32.mrf.mxu0
    %v809 = vadd.f32 0.0, %v808
    %810 = vmatmul.bf16.gmra.mxu0 %v734
    %v811 = vpop.f32.mrf.mxu0
    %v812 = vadd.f32 0.0, %v811
    %v813 = vpop.f32.mrf.mxu0
    %v814 = vadd.f32 0.0, %v813
    %815 = vmatmul.bf16.gmra.mxu0 %v735
    %v816 = vpop.f32.mrf.mxu0
    %v817 = vadd.f32 0.0, %v816
    %v818 = vpop.f32.mrf.mxu0
    %v819 = vadd.f32 0.0, %v818
    %820 = vmatmul.bf16.gmra.mxu0 %v736
    %v821 = vpop.f32.mrf.mxu0
    %v822 = vadd.f32 0.0, %v821
    %v823 = vpop.f32.mrf.mxu0
    %v824 = vadd.f32 0.0, %v823
    %825 = vmatmul.bf16.gmra.mxu0 %v737
    %v826 = vpop.f32.mrf.mxu0
    %v827 = vadd.f32 0.0, %v826
    %v828 = vpop.f32.mrf.mxu0
    %v829 = vadd.f32 0.0, %v828
    %830 = vmatmul.bf16.gmra.mxu0 %v738
    %v831 = vpop.f32.mrf.mxu0
    %v832 = vadd.f32 0.0, %v831
    %v833 = vpop.f32.mrf.mxu0
    %v834 = vadd.f32 0.0, %v833
    %835 = vmatmul.bf16.gmra.mxu0 %v739
    %v836 = vpop.f32.mrf.mxu0
    %v837 = vadd.f32 0.0, %v836
    %v838 = vpop.f32.mrf.mxu0
    %v839 = vadd.f32 0.0, %v838
    %840 = vmatmul.bf16.gmra.mxu0 %v740
    %v841 = vpop.f32.mrf.mxu0
    %v842 = vadd.f32 0.0, %v841
    %v843 = vpop.f32.mrf.mxu0
    %v844 = vadd.f32 0.0, %v843
    %845 = vdwg.mxu0
    %s847 = sor.u32 256, 1
    %848 = vrot.lane.b32.xlu0 %v807, %s847
    %v849 = vpop.permute.xlu0 %848
    %s851 = sor.u32 256, 9
    %852 = vrot.lane.b32.xlu0 %v809, %s851
    %v853 = vpop.permute.xlu0 %852
    %s855 = sor.u32 256, 17
    %856 = vrot.lane.b32.xlu0 %v812, %s855
    %v857 = vpop.permute.xlu0 %856
    %s859 = sor.u32 256, 25
    %860 = vrot.lane.b32.xlu0 %v814, %s859
    %v861 = vpop.permute.xlu0 %860
    %s863 = sor.u32 256, 33
    %864 = vrot.lane.b32.xlu0 %v817, %s863
    %v865 = vpop.permute.xlu0 %864
    %s867 = sor.u32 256, 41
    %868 = vrot.lane.b32.xlu0 %v819, %s867
    %v869 = vpop.permute.xlu0 %868
    %s871 = sor.u32 256, 49
    %872 = vrot.lane.b32.xlu0 %v822, %s871
    %v873 = vpop.permute.xlu0 %872
    %s875 = sor.u32 256, 57
    %876 = vrot.lane.b32.xlu0 %v824, %s875
    %v877 = vpop.permute.xlu0 %876
    %s879 = sor.u32 256, 65
    %880 = vrot.lane.b32.xlu0 %v827, %s879
    %v881 = vpop.permute.xlu0 %880
    %s883 = sor.u32 256, 73
    %884 = vrot.lane.b32.xlu0 %v829, %s883
    %v885 = vpop.permute.xlu0 %884
    %s887 = sor.u32 256, 81
    %888 = vrot.lane.b32.xlu0 %v832, %s887
    %v889 = vpop.permute.xlu0 %888
    %s891 = sor.u32 256, 89
    %892 = vrot.lane.b32.xlu0 %v834, %s891
    %v893 = vpop.permute.xlu0 %892
    %s895 = sor.u32 256, 97
    %896 = vrot.lane.b32.xlu0 %v837, %s895
    %v897 = vpop.permute.xlu0 %896
    %s899 = sor.u32 256, 105
    %900 = vrot.lane.b32.xlu0 %v839, %s899
    %v901 = vpop.permute.xlu0 %900
    %s903 = sor.u32 256, 113
    %904 = vrot.lane.b32.xlu0 %v842, %s903
    %v905 = vpop.permute.xlu0 %904
    %s907 = sor.u32 256, 121
    %908 = vrot.lane.b32.xlu0 %v844, %s907
    %v909 = vpop.permute.xlu0 %908
    %v910 = vsel %vm663, %v849, 0.0
    %v911 = vsel %vm664, %v853, 0.0
    %v912 = vsel %vm665, %v857, 0.0
    %v913 = vsel %vm666, %v861, 0.0
    %v914 = vsel %vm667, %v865, 0.0
    %v915 = vsel %vm668, %v869, 0.0
    %v916 = vsel %vm669, %v873, 0.0
    %v917 = vsel %vm670, %v877, 0.0
    %v918 = vsel %vm671, %v881, 0.0
    %v919 = vsel %vm672, %v885, 0.0
    %v920 = vsel %vm673, %v889, 0.0
    %v921 = vsel %vm674, %v893, 0.0
    %v922 = vsel %vm675, %v897, 0.0
    %v923 = vsel %vm676, %v901, 0.0
    %v924 = vsel %vm677, %v905, 0.0
    %v925 = vsel %vm678, %v909, 0.0
    %v942 = vunpack.c.l.b16 %v564
    %v943 = vunpack.c.l.b16 %v565
    %v944 = vunpack.c.l.b16 %v566
    %v945 = vunpack.c.l.b16 %v567
    %v946 = vunpack.c.l.b16 %v568
    %v947 = vunpack.c.l.b16 %v569
    %v948 = vunpack.c.l.b16 %v570
    %v949 = vunpack.c.l.b16 %v571
    %v950 = vunpack.c.l.b16 %v572
    %v951 = vunpack.c.l.b16 %v573
    %v952 = vunpack.c.l.b16 %v574
    %v953 = vunpack.c.l.b16 %v575
    %v954 = vunpack.c.l.b16 %v576
    %v955 = vunpack.c.l.b16 %v577
    %v956 = vunpack.c.l.b16 %v578
    %v957 = vunpack.c.l.b16 %v579
    %v958 = vpack.c.b16 %v943, %v942
    %v959 = vpack.c.b16 %v945, %v944
    %v960 = vpack.c.b16 %v947, %v946
    %v961 = vpack.c.b16 %v949, %v948
    %v962 = vpack.c.b16 %v951, %v950
    %v963 = vpack.c.b16 %v953, %v952
    %v964 = vpack.c.b16 %v955, %v954
    %v965 = vpack.c.b16 %v957, %v956
    %974 = vmatpush.bf16.xpose.msra.mxu0 %v965
    %975 = vmatpush.bf16.xpose.msra.mxu0 %v964
    %976 = vmatpush.bf16.xpose.msra.mxu0 %v963
    %977 = vmatpush.bf16.xpose.msra.mxu0 %v962
    %978 = vmatpush.bf16.xpose.msra.mxu0 %v961
    %979 = vmatpush.bf16.xpose.msra.mxu0 %v960
    %980 = vmatpush.bf16.xpose.msra.mxu0 %v959
    %981 = vmatpush.bf16.xpose.msra.mxu0 %v958
    %982 = vmatmul.bf16.gmra.mxu0 %v733
    %v983 = vpop.f32.mrf.mxu0
    %v984 = vadd.f32 %v910, %v983
    %v985 = vpop.f32.mrf.mxu0
    %v986 = vadd.f32 %v911, %v985
    %987 = vmatmul.bf16.gmra.mxu0 %v734
    %v988 = vpop.f32.mrf.mxu0
    %v989 = vadd.f32 %v912, %v988
    %v990 = vpop.f32.mrf.mxu0
    %v991 = vadd.f32 %v913, %v990
    %992 = vmatmul.bf16.gmra.mxu0 %v735
    %v993 = vpop.f32.mrf.mxu0
    %v994 = vadd.f32 %v914, %v993
    %v995 = vpop.f32.mrf.mxu0
    %v996 = vadd.f32 %v915, %v995
    %997 = vmatmul.bf16.gmra.mxu0 %v736
    %v998 = vpop.f32.mrf.mxu0
    %v999 = vadd.f32 %v916, %v998
    %v1000 = vpop.f32.mrf.mxu0
    %v1001 = vadd.f32 %v917, %v1000
    %1002 = vmatmul.bf16.gmra.mxu0 %v737
    %v1003 = vpop.f32.mrf.mxu0
    %v1004 = vadd.f32 %v918, %v1003
    %v1005 = vpop.f32.mrf.mxu0
    %v1006 = vadd.f32 %v919, %v1005
    %1007 = vmatmul.bf16.gmra.mxu0 %v738
    %v1008 = vpop.f32.mrf.mxu0
    %v1009 = vadd.f32 %v920, %v1008
    %v1010 = vpop.f32.mrf.mxu0
    %v1011 = vadd.f32 %v921, %v1010
    %1012 = vmatmul.bf16.gmra.mxu0 %v739
    %v1013 = vpop.f32.mrf.mxu0
    %v1014 = vadd.f32 %v922, %v1013
    %v1015 = vpop.f32.mrf.mxu0
    %v1016 = vadd.f32 %v923, %v1015
    %1017 = vmatmul.bf16.gmra.mxu0 %v740
    %v1018 = vpop.f32.mrf.mxu0
    %v1019 = vadd.f32 %v924, %v1018
    %v1020 = vpop.f32.mrf.mxu0
    %v1021 = vadd.f32 %v925, %v1020
    %1022 = vdwg.mxu0
    %1023 = vmax.xlane.f32.xlu0 %v984
    %v1024 = vpop.xlane.xlu0 %1023
    %1025 = vmax.xlane.f32.xlu0 %v986
    %v1026 = vpop.xlane.xlu0 %1025
    %1027 = vmax.xlane.f32.xlu0 %v989
    %v1028 = vpop.xlane.xlu0 %1027
    %1029 = vmax.xlane.f32.xlu0 %v991
    %v1030 = vpop.xlane.xlu0 %1029
    %1031 = vmax.xlane.f32.xlu0 %v994
    %v1032 = vpop.xlane.xlu0 %1031
    %1033 = vmax.xlane.f32.xlu0 %v996
    %v1034 = vpop.xlane.xlu0 %1033
    %1035 = vmax.xlane.f32.xlu0 %v999
    %v1036 = vpop.xlane.xlu0 %1035
    %1037 = vmax.xlane.f32.xlu0 %v1001
    %v1038 = vpop.xlane.xlu0 %1037
    %1039 = vmax.xlane.f32.xlu0 %v1004
    %v1040 = vpop.xlane.xlu0 %1039
    %1041 = vmax.xlane.f32.xlu0 %v1006
    %v1042 = vpop.xlane.xlu0 %1041
    %1043 = vmax.xlane.f32.xlu0 %v1009
    %v1044 = vpop.xlane.xlu0 %1043
    %1045 = vmax.xlane.f32.xlu0 %v1011
    %v1046 = vpop.xlane.xlu0 %1045
    %1047 = vmax.xlane.f32.xlu0 %v1014
    %v1048 = vpop.xlane.xlu0 %1047
    %1049 = vmax.xlane.f32.xlu0 %v1016
    %v1050 = vpop.xlane.xlu0 %1049
    %1051 = vmax.xlane.f32.xlu0 %v1019
    %v1052 = vpop.xlane.xlu0 %1051
    %1053 = vmax.xlane.f32.xlu0 %v1021
    %v1054 = vpop.xlane.xlu0 %1053
    %v1055 = vsub.f32 %v984, %v1024
    %v1056 = vsub.f32 %v986, %v1026
    %v1057 = vsub.f32 %v989, %v1028
    %v1058 = vsub.f32 %v991, %v1030
    %v1059 = vsub.f32 %v994, %v1032
    %v1060 = vsub.f32 %v996, %v1034
    %v1061 = vsub.f32 %v999, %v1036
    %v1062 = vsub.f32 %v1001, %v1038
    %v1063 = vsub.f32 %v1004, %v1040
    %v1064 = vsub.f32 %v1006, %v1042
    %v1065 = vsub.f32 %v1009, %v1044
    %v1066 = vsub.f32 %v1011, %v1046
    %v1067 = vsub.f32 %v1014, %v1048
    %v1068 = vsub.f32 %v1016, %v1050
    %v1069 = vsub.f32 %v1019, %v1052
    %v1070 = vsub.f32 %v1021, %v1054
    %v1071 = vmul.f32 %v1055, 1.442695
    %v1072 = vpow.pop %v1071
    %v1073 = vmul.f32 %v1056, 1.442695
    %v1074 = vpow.pop %v1073
    %v1075 = vmul.f32 %v1057, 1.442695
    %v1076 = vpow.pop %v1075
    %v1077 = vmul.f32 %v1058, 1.442695
    %v1078 = vpow.pop %v1077
    %v1079 = vmul.f32 %v1059, 1.442695
    %v1080 = vpow.pop %v1079
    %v1081 = vmul.f32 %v1060, 1.442695
    %v1082 = vpow.pop %v1081
    %v1083 = vmul.f32 %v1061, 1.442695
    %v1084 = vpow.pop %v1083
    %v1085 = vmul.f32 %v1062, 1.442695
    %v1086 = vpow.pop %v1085
    %v1087 = vmul.f32 %v1063, 1.442695
    %v1088 = vpow.pop %v1087
    %v1089 = vmul.f32 %v1064, 1.442695
    %v1090 = vpow.pop %v1089
    %v1091 = vmul.f32 %v1065, 1.442695
    %v1092 = vpow.pop %v1091
    %v1093 = vmul.f32 %v1066, 1.442695
    %v1094 = vpow.pop %v1093
    %v1095 = vmul.f32 %v1067, 1.442695
    %v1096 = vpow.pop %v1095
    %v1097 = vmul.f32 %v1068, 1.442695
    %v1098 = vpow.pop %v1097
    %v1099 = vmul.f32 %v1069, 1.442695
    %v1100 = vpow.pop %v1099
    %v1101 = vmul.f32 %v1070, 1.442695
    %v1102 = vpow.pop %v1101
    %1103 = vadd.xlane.f32.xlu0 %v1072
    %v1104 = vpop.xlane.xlu0 %1103
    %1105 = vadd.xlane.f32.xlu0 %v1074
    %v1106 = vpop.xlane.xlu0 %1105
    %1107 = vadd.xlane.f32.xlu0 %v1076
    %v1108 = vpop.xlane.xlu0 %1107
    %1109 = vadd.xlane.f32.xlu0 %v1078
    %v1110 = vpop.xlane.xlu0 %1109
    %1111 = vadd.xlane.f32.xlu0 %v1080
    %v1112 = vpop.xlane.xlu0 %1111
    %1113 = vadd.xlane.f32.xlu0 %v1082
    %v1114 = vpop.xlane.xlu0 %1113
    %1115 = vadd.xlane.f32.xlu0 %v1084
    %v1116 = vpop.xlane.xlu0 %1115
    %1117 = vadd.xlane.f32.xlu0 %v1086
    %v1118 = vpop.xlane.xlu0 %1117
    %1119 = vadd.xlane.f32.xlu0 %v1088
    %v1120 = vpop.xlane.xlu0 %1119
    %1121 = vadd.xlane.f32.xlu0 %v1090
    %v1122 = vpop.xlane.xlu0 %1121
    %1123 = vadd.xlane.f32.xlu0 %v1092
    %v1124 = vpop.xlane.xlu0 %1123
    %1125 = vadd.xlane.f32.xlu0 %v1094
    %v1126 = vpop.xlane.xlu0 %1125
    %1127 = vadd.xlane.f32.xlu0 %v1096
    %v1128 = vpop.xlane.xlu0 %1127
    %1129 = vadd.xlane.f32.xlu0 %v1098
    %v1130 = vpop.xlane.xlu0 %1129
    %1131 = vadd.xlane.f32.xlu0 %v1100
    %v1132 = vpop.xlane.xlu0 %1131
    %1133 = vadd.xlane.f32.xlu0 %v1102
    %v1134 = vpop.xlane.xlu0 %1133
    %v1135 = vrcp.pop %v1104
    %v1136 = vrcp.pop %v1106
    %v1137 = vrcp.pop %v1108
    %v1138 = vrcp.pop %v1110
    %v1139 = vrcp.pop %v1112
    %v1140 = vrcp.pop %v1114
    %v1141 = vrcp.pop %v1116
    %v1142 = vrcp.pop %v1118
    %v1143 = vrcp.pop %v1120
    %v1144 = vrcp.pop %v1122
    %v1145 = vrcp.pop %v1124
    %v1146 = vrcp.pop %v1126
    %v1147 = vrcp.pop %v1128
    %v1148 = vrcp.pop %v1130
    %v1149 = vrcp.pop %v1132
    %v1150 = vrcp.pop %v1134
    %v1151 = vpack.c.bf16 %v1074, %v1072
    %v1152 = vpack.c.bf16 %v1078, %v1076
    %v1153 = vpack.c.bf16 %v1082, %v1080
    %v1154 = vpack.c.bf16 %v1086, %v1084
    %v1155 = vpack.c.bf16 %v1090, %v1088
    %v1156 = vpack.c.bf16 %v1094, %v1092
    %v1157 = vpack.c.bf16 %v1098, %v1096
    %v1158 = vpack.c.bf16 %v1102, %v1100
    %v1175 = vunpack.c.l.b16 %v596
    %v1176 = vunpack.c.l.b16 %v597
    %v1177 = vunpack.c.l.b16 %v598
    %v1178 = vunpack.c.l.b16 %v599
    %v1179 = vunpack.c.l.b16 %v600
    %v1180 = vunpack.c.l.b16 %v601
    %v1181 = vunpack.c.l.b16 %v602
    %v1182 = vunpack.c.l.b16 %v603
    %v1183 = vunpack.c.l.b16 %v604
    %v1184 = vunpack.c.l.b16 %v605
    %v1185 = vunpack.c.l.b16 %v606
    %v1186 = vunpack.c.l.b16 %v607
    %v1187 = vunpack.c.l.b16 %v608
    %v1188 = vunpack.c.l.b16 %v609
    %v1189 = vunpack.c.l.b16 %v610
    %v1190 = vunpack.c.l.b16 %v611
    %v1191 = vpack.c.b16 %v1176, %v1175
    %v1192 = vpack.c.b16 %v1178, %v1177
    %v1193 = vpack.c.b16 %v1180, %v1179
    %v1194 = vpack.c.b16 %v1182, %v1181
    %v1195 = vpack.c.b16 %v1184, %v1183
    %v1196 = vpack.c.b16 %v1186, %v1185
    %v1197 = vpack.c.b16 %v1188, %v1187
    %v1198 = vpack.c.b16 %v1190, %v1189
    %1207 = vmatpush.bf16.msra.mxu0 %v1198
    %1208 = vmatpush.bf16.msra.mxu0 %v1197
    %1209 = vmatpush.bf16.msra.mxu0 %v1196
    %1210 = vmatpush.bf16.msra.mxu0 %v1195
    %1211 = vmatpush.bf16.msra.mxu0 %v1194
    %1212 = vmatpush.bf16.msra.mxu0 %v1193
    %1213 = vmatpush.bf16.msra.mxu0 %v1192
    %1214 = vmatpush.bf16.msra.mxu0 %v1191
    %1215 = vmatmul.bf16.gmra.mxu0 %v1151
    %v1216 = vpop.f32.mrf.mxu0
    %v1217 = vadd.f32 0.0, %v1216
    %v1218 = vpop.f32.mrf.mxu0
    %v1219 = vadd.f32 0.0, %v1218
    %1220 = vmatmul.bf16.gmra.mxu0 %v1152
    %v1221 = vpop.f32.mrf.mxu0
    %v1222 = vadd.f32 0.0, %v1221
    %v1223 = vpop.f32.mrf.mxu0
    %v1224 = vadd.f32 0.0, %v1223
    %1225 = vmatmul.bf16.gmra.mxu0 %v1153
    %v1226 = vpop.f32.mrf.mxu0
    %v1227 = vadd.f32 0.0, %v1226
    %v1228 = vpop.f32.mrf.mxu0
    %v1229 = vadd.f32 0.0, %v1228
    %1230 = vmatmul.bf16.gmra.mxu0 %v1154
    %v1231 = vpop.f32.mrf.mxu0
    %v1232 = vadd.f32 0.0, %v1231
    %v1233 = vpop.f32.mrf.mxu0
    %v1234 = vadd.f32 0.0, %v1233
    %1235 = vmatmul.bf16.gmra.mxu0 %v1155
    %v1236 = vpop.f32.mrf.mxu0
    %v1237 = vadd.f32 0.0, %v1236
    %v1238 = vpop.f32.mrf.mxu0
    %v1239 = vadd.f32 0.0, %v1238
    %1240 = vmatmul.bf16.gmra.mxu0 %v1156
    %v1241 = vpop.f32.mrf.mxu0
    %v1242 = vadd.f32 0.0, %v1241
    %v1243 = vpop.f32.mrf.mxu0
    %v1244 = vadd.f32 0.0, %v1243
    %1245 = vmatmul.bf16.gmra.mxu0 %v1157
    %v1246 = vpop.f32.mrf.mxu0
    %v1247 = vadd.f32 0.0, %v1246
    %v1248 = vpop.f32.mrf.mxu0
    %v1249 = vadd.f32 0.0, %v1248
    %1250 = vmatmul.bf16.gmra.mxu0 %v1158
    %v1251 = vpop.f32.mrf.mxu0
    %v1252 = vadd.f32 0.0, %v1251
    %v1253 = vpop.f32.mrf.mxu0
    %v1254 = vadd.f32 0.0, %v1253
    %1255 = vdwg.mxu0
    %v1256 = vmul.f32 %v1217, %v1135
    %v1257 = vmul.f32 %v1219, %v1136
    %v1258 = vmul.f32 %v1222, %v1137
    %v1259 = vmul.f32 %v1224, %v1138
    %v1260 = vmul.f32 %v1227, %v1139
    %v1261 = vmul.f32 %v1229, %v1140
    %v1262 = vmul.f32 %v1232, %v1141
    %v1263 = vmul.f32 %v1234, %v1142
    %v1264 = vmul.f32 %v1237, %v1143
    %v1265 = vmul.f32 %v1239, %v1144
    %v1266 = vmul.f32 %v1242, %v1145
    %v1267 = vmul.f32 %v1244, %v1146
    %v1268 = vmul.f32 %v1247, %v1147
    %v1269 = vmul.f32 %v1249, %v1148
    %v1270 = vmul.f32 %v1252, %v1149
    %v1271 = vmul.f32 %v1254, %v1150
    %v1272 = vsel %vm683, %v1256, 0.0
    %v1273 = vsel %vm683, %v1257, 0.0
    %v1274 = vsel %vm683, %v1258, 0.0
    %v1275 = vsel %vm683, %v1259, 0.0
    %v1276 = vsel %vm683, %v1260, 0.0
    %v1277 = vsel %vm683, %v1261, 0.0
    %v1278 = vsel %vm683, %v1262, 0.0
    %v1279 = vsel %vm683, %v1263, 0.0
    %v1280 = vsel %vm683, %v1264, 0.0
    %v1281 = vsel %vm683, %v1265, 0.0
    %v1282 = vsel %vm683, %v1266, 0.0
    %v1283 = vsel %vm683, %v1267, 0.0
    %v1284 = vsel %vm683, %v1268, 0.0
    %v1285 = vsel %vm683, %v1269, 0.0
    %v1286 = vsel %vm683, %v1270, 0.0
    %v1287 = vsel %vm683, %v1271, 0.0
    %v1288 = vadd.f32 %v1272, 0.0
    %v1289 = vadd.f32 %v1273, 0.0
    %v1290 = vadd.f32 %v1274, 0.0
    %v1291 = vadd.f32 %v1275, 0.0
    %v1292 = vadd.f32 %v1276, 0.0
    %v1293 = vadd.f32 %v1277, 0.0
    %v1294 = vadd.f32 %v1278, 0.0
    %v1295 = vadd.f32 %v1279, 0.0
    %v1296 = vadd.f32 %v1280, 0.0
    %v1297 = vadd.f32 %v1281, 0.0
    %v1298 = vadd.f32 %v1282, 0.0
    %v1299 = vadd.f32 %v1283, 0.0
    %v1300 = vadd.f32 %v1284, 0.0
    %v1301 = vadd.f32 %v1285, 0.0
    %v1302 = vadd.f32 %v1286, 0.0
    %v1303 = vadd.f32 %v1287, 0.0
    %vm1304 = vcmp.ge.s32.totalorder %v662, 64
    %vm1305 = vcmp.lt.s32.totalorder %v662, 128
    %vm1306 = vmand %vm1304, %vm1305
    %v1307 = vsel %vm1306, 1, 0
    %vm1308 = vcmp.eq.s32.totalorder %v1307, 1
    %vm1309 = vmpackc.low %vm1308, %vm1308
    %v1310 = vsel %vm1309, %v532, 0
    %v1311 = vsel %vm1309, %v533, 0
    %v1312 = vsel %vm1309, %v534, 0
    %v1313 = vsel %vm1309, %v535, 0
    %v1314 = vsel %vm1309, %v536, 0
    %v1315 = vsel %vm1309, %v537, 0
    %v1316 = vsel %vm1309, %v538, 0
    %v1317 = vsel %vm1309, %v539, 0
    %v1318 = vsel %vm1309, %v540, 0
    %v1319 = vsel %vm1309, %v541, 0
    %v1320 = vsel %vm1309, %v542, 0
    %v1321 = vsel %vm1309, %v543, 0
    %v1322 = vsel %vm1309, %v544, 0
    %v1323 = vsel %vm1309, %v545, 0
    %v1324 = vsel %vm1309, %v546, 0
    %v1325 = vsel %vm1309, %v547, 0
    %v1342 = vunpack.c.l.b16 %v1310
    %v1343 = vunpack.c.l.b16 %v1311
    %v1344 = vunpack.c.l.b16 %v1312
    %v1345 = vunpack.c.l.b16 %v1313
    %v1346 = vunpack.c.l.b16 %v1314
    %v1347 = vunpack.c.l.b16 %v1315
    %v1348 = vunpack.c.l.b16 %v1316
    %v1349 = vunpack.c.l.b16 %v1317
    %v1350 = vunpack.c.l.b16 %v1318
    %v1351 = vunpack.c.l.b16 %v1319
    %v1352 = vunpack.c.l.b16 %v1320
    %v1353 = vunpack.c.l.b16 %v1321
    %v1354 = vunpack.c.l.b16 %v1322
    %v1355 = vunpack.c.l.b16 %v1323
    %v1356 = vunpack.c.l.b16 %v1324
    %v1357 = vunpack.c.l.b16 %v1325
    %v1358 = vpack.c.b16 %v1343, %v1342
    %v1359 = vpack.c.b16 %v1345, %v1344
    %v1360 = vpack.c.b16 %v1347, %v1346
    %v1361 = vpack.c.b16 %v1349, %v1348
    %v1362 = vpack.c.b16 %v1351, %v1350
    %v1363 = vpack.c.b16 %v1353, %v1352
    %v1364 = vpack.c.b16 %v1355, %v1354
    %v1365 = vpack.c.b16 %v1357, %v1356
    %1374 = vmatpush.bf16.msra.mxu0 %v788
    %1375 = vmatpush.bf16.msra.mxu0 %v787
    %1376 = vmatpush.bf16.msra.mxu0 %v786
    %1377 = vmatpush.bf16.msra.mxu0 %v785
    %1378 = vmatpush.bf16.msra.mxu0 %v784
    %1379 = vmatpush.bf16.msra.mxu0 %v783
    %1380 = vmatpush.bf16.msra.mxu0 %v782
    %1381 = vmatpush.bf16.msra.mxu0 %v781
    %1382 = vmatmul.bf16.gmra.mxu0 %v1358
    %v1383 = vpop.f32.mrf.mxu0
    %v1384 = vadd.f32 0.0, %v1383
    %v1385 = vpop.f32.mrf.mxu0
    %v1386 = vadd.f32 0.0, %v1385
    %1387 = vmatmul.bf16.gmra.mxu0 %v1359
    %v1388 = vpop.f32.mrf.mxu0
    %v1389 = vadd.f32 0.0, %v1388
    %v1390 = vpop.f32.mrf.mxu0
    %v1391 = vadd.f32 0.0, %v1390
    %1392 = vmatmul.bf16.gmra.mxu0 %v1360
    %v1393 = vpop.f32.mrf.mxu0
    %v1394 = vadd.f32 0.0, %v1393
    %v1395 = vpop.f32.mrf.mxu0
    %v1396 = vadd.f32 0.0, %v1395
    %1397 = vmatmul.bf16.gmra.mxu0 %v1361
    %v1398 = vpop.f32.mrf.mxu0
    %v1399 = vadd.f32 0.0, %v1398
    %v1400 = vpop.f32.mrf.mxu0
    %v1401 = vadd.f32 0.0, %v1400
    %1402 = vmatmul.bf16.gmra.mxu0 %v1362
    %v1403 = vpop.f32.mrf.mxu0
    %v1404 = vadd.f32 0.0, %v1403
    %v1405 = vpop.f32.mrf.mxu0
    %v1406 = vadd.f32 0.0, %v1405
    %1407 = vmatmul.bf16.gmra.mxu0 %v1363
    %v1408 = vpop.f32.mrf.mxu0
    %v1409 = vadd.f32 0.0, %v1408
    %v1410 = vpop.f32.mrf.mxu0
    %v1411 = vadd.f32 0.0, %v1410
    %1412 = vmatmul.bf16.gmra.mxu0 %v1364
    %v1413 = vpop.f32.mrf.mxu0
    %v1414 = vadd.f32 0.0, %v1413
    %v1415 = vpop.f32.mrf.mxu0
    %v1416 = vadd.f32 0.0, %v1415
    %1417 = vmatmul.bf16.gmra.mxu0 %v1365
    %v1418 = vpop.f32.mrf.mxu0
    %v1419 = vadd.f32 0.0, %v1418
    %v1420 = vpop.f32.mrf.mxu0
    %v1421 = vadd.f32 0.0, %v1420
    %1422 = vdwg.mxu0
    %s1424 = sor.u32 256, 1
    %1425 = vrot.lane.b32.xlu0 %v1384, %s1424
    %v1426 = vpop.permute.xlu0 %1425
    %s1428 = sor.u32 256, 9
    %1429 = vrot.lane.b32.xlu0 %v1386, %s1428
    %v1430 = vpop.permute.xlu0 %1429
    %s1432 = sor.u32 256, 17
    %1433 = vrot.lane.b32.xlu0 %v1389, %s1432
    %v1434 = vpop.permute.xlu0 %1433
    %s1436 = sor.u32 256, 25
    %1437 = vrot.lane.b32.xlu0 %v1391, %s1436
    %v1438 = vpop.permute.xlu0 %1437
    %s1440 = sor.u32 256, 33
    %1441 = vrot.lane.b32.xlu0 %v1394, %s1440
    %v1442 = vpop.permute.xlu0 %1441
    %s1444 = sor.u32 256, 41
    %1445 = vrot.lane.b32.xlu0 %v1396, %s1444
    %v1446 = vpop.permute.xlu0 %1445
    %s1448 = sor.u32 256, 49
    %1449 = vrot.lane.b32.xlu0 %v1399, %s1448
    %v1450 = vpop.permute.xlu0 %1449
    %s1452 = sor.u32 256, 57
    %1453 = vrot.lane.b32.xlu0 %v1401, %s1452
    %v1454 = vpop.permute.xlu0 %1453
    %s1456 = sor.u32 256, 65
    %1457 = vrot.lane.b32.xlu0 %v1404, %s1456
    %v1458 = vpop.permute.xlu0 %1457
    %s1460 = sor.u32 256, 73
    %1461 = vrot.lane.b32.xlu0 %v1406, %s1460
    %v1462 = vpop.permute.xlu0 %1461
    %s1464 = sor.u32 256, 81
    %1465 = vrot.lane.b32.xlu0 %v1409, %s1464
    %v1466 = vpop.permute.xlu0 %1465
    %s1468 = sor.u32 256, 89
    %1469 = vrot.lane.b32.xlu0 %v1411, %s1468
    %v1470 = vpop.permute.xlu0 %1469
    %s1472 = sor.u32 256, 97
    %1473 = vrot.lane.b32.xlu0 %v1414, %s1472
    %v1474 = vpop.permute.xlu0 %1473
    %s1476 = sor.u32 256, 105
    %1477 = vrot.lane.b32.xlu0 %v1416, %s1476
    %v1478 = vpop.permute.xlu0 %1477
    %s1480 = sor.u32 256, 113
    %1481 = vrot.lane.b32.xlu0 %v1419, %s1480
    %v1482 = vpop.permute.xlu0 %1481
    %s1484 = sor.u32 256, 121
    %1485 = vrot.lane.b32.xlu0 %v1421, %s1484
    %v1486 = vpop.permute.xlu0 %1485
    %v1487 = vsel %vm663, %v1426, 0.0
    %v1488 = vsel %vm664, %v1430, 0.0
    %v1489 = vsel %vm665, %v1434, 0.0
    %v1490 = vsel %vm666, %v1438, 0.0
    %v1491 = vsel %vm667, %v1442, 0.0
    %v1492 = vsel %vm668, %v1446, 0.0
    %v1493 = vsel %vm669, %v1450, 0.0
    %v1494 = vsel %vm670, %v1454, 0.0
    %v1495 = vsel %vm671, %v1458, 0.0
    %v1496 = vsel %vm672, %v1462, 0.0
    %v1497 = vsel %vm673, %v1466, 0.0
    %v1498 = vsel %vm674, %v1470, 0.0
    %v1499 = vsel %vm675, %v1474, 0.0
    %v1500 = vsel %vm676, %v1478, 0.0
    %v1501 = vsel %vm677, %v1482, 0.0
    %v1502 = vsel %vm678, %v1486, 0.0
    %1503 = vmatpush.bf16.xpose.msra.mxu0 %v965
    %1504 = vmatpush.bf16.xpose.msra.mxu0 %v964
    %1505 = vmatpush.bf16.xpose.msra.mxu0 %v963
    %1506 = vmatpush.bf16.xpose.msra.mxu0 %v962
    %1507 = vmatpush.bf16.xpose.msra.mxu0 %v961
    %1508 = vmatpush.bf16.xpose.msra.mxu0 %v960
    %1509 = vmatpush.bf16.xpose.msra.mxu0 %v959
    %1510 = vmatpush.bf16.xpose.msra.mxu0 %v958
    %1511 = vmatmul.bf16.gmra.mxu0 %v1358
    %v1512 = vpop.f32.mrf.mxu0
    %v1513 = vadd.f32 %v1487, %v1512
    %v1514 = vpop.f32.mrf.mxu0
    %v1515 = vadd.f32 %v1488, %v1514
    %1516 = vmatmul.bf16.gmra.mxu0 %v1359
    %v1517 = vpop.f32.mrf.mxu0
    %v1518 = vadd.f32 %v1489, %v1517
    %v1519 = vpop.f32.mrf.mxu0
    %v1520 = vadd.f32 %v1490, %v1519
    %1521 = vmatmul.bf16.gmra.mxu0 %v1360
    %v1522 = vpop.f32.mrf.mxu0
    %v1523 = vadd.f32 %v1491, %v1522
    %v1524 = vpop.f32.mrf.mxu0
    %v1525 = vadd.f32 %v1492, %v1524
    %1526 = vmatmul.bf16.gmra.mxu0 %v1361
    %v1527 = vpop.f32.mrf.mxu0
    %v1528 = vadd.f32 %v1493, %v1527
    %v1529 = vpop.f32.mrf.mxu0
    %v1530 = vadd.f32 %v1494, %v1529
    %1531 = vmatmul.bf16.gmra.mxu0 %v1362
    %v1532 = vpop.f32.mrf.mxu0
    %v1533 = vadd.f32 %v1495, %v1532
    %v1534 = vpop.f32.mrf.mxu0
    %v1535 = vadd.f32 %v1496, %v1534
    %1536 = vmatmul.bf16.gmra.mxu0 %v1363
    %v1537 = vpop.f32.mrf.mxu0
    %v1538 = vadd.f32 %v1497, %v1537
    %v1539 = vpop.f32.mrf.mxu0
    %v1540 = vadd.f32 %v1498, %v1539
    %1541 = vmatmul.bf16.gmra.mxu0 %v1364
    %v1542 = vpop.f32.mrf.mxu0
    %v1543 = vadd.f32 %v1499, %v1542
    %v1544 = vpop.f32.mrf.mxu0
    %v1545 = vadd.f32 %v1500, %v1544
    %1546 = vmatmul.bf16.gmra.mxu0 %v1365
    %v1547 = vpop.f32.mrf.mxu0
    %v1548 = vadd.f32 %v1501, %v1547
    %v1549 = vpop.f32.mrf.mxu0
    %v1550 = vadd.f32 %v1502, %v1549
    %1551 = vdwg.mxu0
    %1552 = vmax.xlane.f32.xlu0 %v1513
    %v1553 = vpop.xlane.xlu0 %1552
    %1554 = vmax.xlane.f32.xlu0 %v1515
    %v1555 = vpop.xlane.xlu0 %1554
    %1556 = vmax.xlane.f32.xlu0 %v1518
    %v1557 = vpop.xlane.xlu0 %1556
    %1558 = vmax.xlane.f32.xlu0 %v1520
    %v1559 = vpop.xlane.xlu0 %1558
    %1560 = vmax.xlane.f32.xlu0 %v1523
    %v1561 = vpop.xlane.xlu0 %1560
    %1562 = vmax.xlane.f32.xlu0 %v1525
    %v1563 = vpop.xlane.xlu0 %1562
    %1564 = vmax.xlane.f32.xlu0 %v1528
    %v1565 = vpop.xlane.xlu0 %1564
    %1566 = vmax.xlane.f32.xlu0 %v1530
    %v1567 = vpop.xlane.xlu0 %1566
    %1568 = vmax.xlane.f32.xlu0 %v1533
    %v1569 = vpop.xlane.xlu0 %1568
    %1570 = vmax.xlane.f32.xlu0 %v1535
    %v1571 = vpop.xlane.xlu0 %1570
    %1572 = vmax.xlane.f32.xlu0 %v1538
    %v1573 = vpop.xlane.xlu0 %1572
    %1574 = vmax.xlane.f32.xlu0 %v1540
    %v1575 = vpop.xlane.xlu0 %1574
    %1576 = vmax.xlane.f32.xlu0 %v1543
    %v1577 = vpop.xlane.xlu0 %1576
    %1578 = vmax.xlane.f32.xlu0 %v1545
    %v1579 = vpop.xlane.xlu0 %1578
    %1580 = vmax.xlane.f32.xlu0 %v1548
    %v1581 = vpop.xlane.xlu0 %1580
    %1582 = vmax.xlane.f32.xlu0 %v1550
    %v1583 = vpop.xlane.xlu0 %1582
    %v1584 = vsub.f32 %v1513, %v1553
    %v1585 = vsub.f32 %v1515, %v1555
    %v1586 = vsub.f32 %v1518, %v1557
    %v1587 = vsub.f32 %v1520, %v1559
    %v1588 = vsub.f32 %v1523, %v1561
    %v1589 = vsub.f32 %v1525, %v1563
    %v1590 = vsub.f32 %v1528, %v1565
    %v1591 = vsub.f32 %v1530, %v1567
    %v1592 = vsub.f32 %v1533, %v1569
    %v1593 = vsub.f32 %v1535, %v1571
    %v1594 = vsub.f32 %v1538, %v1573
    %v1595 = vsub.f32 %v1540, %v1575
    %v1596 = vsub.f32 %v1543, %v1577
    %v1597 = vsub.f32 %v1545, %v1579
    %v1598 = vsub.f32 %v1548, %v1581
    %v1599 = vsub.f32 %v1550, %v1583
    %v1600 = vmul.f32 %v1584, 1.442695
    %v1601 = vpow.pop %v1600
    %v1602 = vmul.f32 %v1585, 1.442695
    %v1603 = vpow.pop %v1602
    %v1604 = vmul.f32 %v1586, 1.442695
    %v1605 = vpow.pop %v1604
    %v1606 = vmul.f32 %v1587, 1.442695
    %v1607 = vpow.pop %v1606
    %v1608 = vmul.f32 %v1588, 1.442695
    %v1609 = vpow.pop %v1608
    %v1610 = vmul.f32 %v1589, 1.442695
    %v1611 = vpow.pop %v1610
    %v1612 = vmul.f32 %v1590, 1.442695
    %v1613 = vpow.pop %v1612
    %v1614 = vmul.f32 %v1591, 1.442695
    %v1615 = vpow.pop %v1614
    %v1616 = vmul.f32 %v1592, 1.442695
    %v1617 = vpow.pop %v1616
    %v1618 = vmul.f32 %v1593, 1.442695
    %v1619 = vpow.pop %v1618
    %v1620 = vmul.f32 %v1594, 1.442695
    %v1621 = vpow.pop %v1620
    %v1622 = vmul.f32 %v1595, 1.442695
    %v1623 = vpow.pop %v1622
    %v1624 = vmul.f32 %v1596, 1.442695
    %v1625 = vpow.pop %v1624
    %v1626 = vmul.f32 %v1597, 1.442695
    %v1627 = vpow.pop %v1626
    %v1628 = vmul.f32 %v1598, 1.442695
    %v1629 = vpow.pop %v1628
    %v1630 = vmul.f32 %v1599, 1.442695
    %v1631 = vpow.pop %v1630
    %1632 = vadd.xlane.f32.xlu0 %v1601
    %v1633 = vpop.xlane.xlu0 %1632
    %1634 = vadd.xlane.f32.xlu0 %v1603
    %v1635 = vpop.xlane.xlu0 %1634
    %1636 = vadd.xlane.f32.xlu0 %v1605
    %v1637 = vpop.xlane.xlu0 %1636
    %1638 = vadd.xlane.f32.xlu0 %v1607
    %v1639 = vpop.xlane.xlu0 %1638
    %1640 = vadd.xlane.f32.xlu0 %v1609
    %v1641 = vpop.xlane.xlu0 %1640
    %1642 = vadd.xlane.f32.xlu0 %v1611
    %v1643 = vpop.xlane.xlu0 %1642
    %1644 = vadd.xlane.f32.xlu0 %v1613
    %v1645 = vpop.xlane.xlu0 %1644
    %1646 = vadd.xlane.f32.xlu0 %v1615
    %v1647 = vpop.xlane.xlu0 %1646
    %1648 = vadd.xlane.f32.xlu0 %v1617
    %v1649 = vpop.xlane.xlu0 %1648
    %1650 = vadd.xlane.f32.xlu0 %v1619
    %v1651 = vpop.xlane.xlu0 %1650
    %1652 = vadd.xlane.f32.xlu0 %v1621
    %v1653 = vpop.xlane.xlu0 %1652
    %1654 = vadd.xlane.f32.xlu0 %v1623
    %v1655 = vpop.xlane.xlu0 %1654
    %1656 = vadd.xlane.f32.xlu0 %v1625
    %v1657 = vpop.xlane.xlu0 %1656
    %1658 = vadd.xlane.f32.xlu0 %v1627
    %v1659 = vpop.xlane.xlu0 %1658
    %1660 = vadd.xlane.f32.xlu0 %v1629
    %v1661 = vpop.xlane.xlu0 %1660
    %1662 = vadd.xlane.f32.xlu0 %v1631
    %v1663 = vpop.xlane.xlu0 %1662
    %v1664 = vrcp.pop %v1633
    %v1665 = vrcp.pop %v1635
    %v1666 = vrcp.pop %v1637
    %v1667 = vrcp.pop %v1639
    %v1668 = vrcp.pop %v1641
    %v1669 = vrcp.pop %v1643
    %v1670 = vrcp.pop %v1645
    %v1671 = vrcp.pop %v1647
    %v1672 = vrcp.pop %v1649
    %v1673 = vrcp.pop %v1651
    %v1674 = vrcp.pop %v1653
    %v1675 = vrcp.pop %v1655
    %v1676 = vrcp.pop %v1657
    %v1677 = vrcp.pop %v1659
    %v1678 = vrcp.pop %v1661
    %v1679 = vrcp.pop %v1663
    %v1680 = vpack.c.bf16 %v1603, %v1601
    %v1681 = vpack.c.bf16 %v1607, %v1605
    %v1682 = vpack.c.bf16 %v1611, %v1609
    %v1683 = vpack.c.bf16 %v1615, %v1613
    %v1684 = vpack.c.bf16 %v1619, %v1617
    %v1685 = vpack.c.bf16 %v1623, %v1621
    %v1686 = vpack.c.bf16 %v1627, %v1625
    %v1687 = vpack.c.bf16 %v1631, %v1629
    %1688 = vmatpush.bf16.msra.mxu0 %v1198
    %1689 = vmatpush.bf16.msra.mxu0 %v1197
    %1690 = vmatpush.bf16.msra.mxu0 %v1196
    %1691 = vmatpush.bf16.msra.mxu0 %v1195
    %1692 = vmatpush.bf16.msra.mxu0 %v1194
    %1693 = vmatpush.bf16.msra.mxu0 %v1193
    %1694 = vmatpush.bf16.msra.mxu0 %v1192
    %1695 = vmatpush.bf16.msra.mxu0 %v1191
    %1696 = vmatmul.bf16.gmra.mxu0 %v1680
    %v1697 = vpop.f32.mrf.mxu0
    %v1698 = vadd.f32 0.0, %v1697
    %v1699 = vpop.f32.mrf.mxu0
    %v1700 = vadd.f32 0.0, %v1699
    %1701 = vmatmul.bf16.gmra.mxu0 %v1681
    %v1702 = vpop.f32.mrf.mxu0
    %v1703 = vadd.f32 0.0, %v1702
    %v1704 = vpop.f32.mrf.mxu0
    %v1705 = vadd.f32 0.0, %v1704
    %1706 = vmatmul.bf16.gmra.mxu0 %v1682
    %v1707 = vpop.f32.mrf.mxu0
    %v1708 = vadd.f32 0.0, %v1707
    %v1709 = vpop.f32.mrf.mxu0
    %v1710 = vadd.f32 0.0, %v1709
    %1711 = vmatmul.bf16.gmra.mxu0 %v1683
    %v1712 = vpop.f32.mrf.mxu0
    %v1713 = vadd.f32 0.0, %v1712
    %v1714 = vpop.f32.mrf.mxu0
    %v1715 = vadd.f32 0.0, %v1714
    %1716 = vmatmul.bf16.gmra.mxu0 %v1684
    %v1717 = vpop.f32.mrf.mxu0
    %v1718 = vadd.f32 0.0, %v1717
    %v1719 = vpop.f32.mrf.mxu0
    %v1720 = vadd.f32 0.0, %v1719
    %1721 = vmatmul.bf16.gmra.mxu0 %v1685
    %v1722 = vpop.f32.mrf.mxu0
    %v1723 = vadd.f32 0.0, %v1722
    %v1724 = vpop.f32.mrf.mxu0
    %v1725 = vadd.f32 0.0, %v1724
    %1726 = vmatmul.bf16.gmra.mxu0 %v1686
    %v1727 = vpop.f32.mrf.mxu0
    %v1728 = vadd.f32 0.0, %v1727
    %v1729 = vpop.f32.mrf.mxu0
    %v1730 = vadd.f32 0.0, %v1729
    %1731 = vmatmul.bf16.gmra.mxu0 %v1687
    %v1732 = vpop.f32.mrf.mxu0
    %v1733 = vadd.f32 0.0, %v1732
    %v1734 = vpop.f32.mrf.mxu0
    %v1735 = vadd.f32 0.0, %v1734
    %1736 = vdwg.mxu0
    %v1737 = vmul.f32 %v1698, %v1664
    %v1738 = vmul.f32 %v1700, %v1665
    %v1739 = vmul.f32 %v1703, %v1666
    %v1740 = vmul.f32 %v1705, %v1667
    %v1741 = vmul.f32 %v1708, %v1668
    %v1742 = vmul.f32 %v1710, %v1669
    %v1743 = vmul.f32 %v1713, %v1670
    %v1744 = vmul.f32 %v1715, %v1671
    %v1745 = vmul.f32 %v1718, %v1672
    %v1746 = vmul.f32 %v1720, %v1673
    %v1747 = vmul.f32 %v1723, %v1674
    %v1748 = vmul.f32 %v1725, %v1675
    %v1749 = vmul.f32 %v1728, %v1676
    %v1750 = vmul.f32 %v1730, %v1677
    %v1751 = vmul.f32 %v1733, %v1678
    %v1752 = vmul.f32 %v1735, %v1679
    %v1753 = vsel %vm1308, %v1737, 0.0
    %v1754 = vsel %vm1308, %v1738, 0.0
    %v1755 = vsel %vm1308, %v1739, 0.0
    %v1756 = vsel %vm1308, %v1740, 0.0
    %v1757 = vsel %vm1308, %v1741, 0.0
    %v1758 = vsel %vm1308, %v1742, 0.0
    %v1759 = vsel %vm1308, %v1743, 0.0
    %v1760 = vsel %vm1308, %v1744, 0.0
    %v1761 = vsel %vm1308, %v1745, 0.0
    %v1762 = vsel %vm1308, %v1746, 0.0
    %v1763 = vsel %vm1308, %v1747, 0.0
    %v1764 = vsel %vm1308, %v1748, 0.0
    %v1765 = vsel %vm1308, %v1749, 0.0
    %v1766 = vsel %vm1308, %v1750, 0.0
    %v1767 = vsel %vm1308, %v1751, 0.0
    %v1768 = vsel %vm1308, %v1752, 0.0
    %v1769 = vadd.f32 %v1288, %v1753
    %v1770 = vadd.f32 %v1289, %v1754
    %v1771 = vadd.f32 %v1290, %v1755
    %v1772 = vadd.f32 %v1291, %v1756
    %v1773 = vadd.f32 %v1292, %v1757
    %v1774 = vadd.f32 %v1293, %v1758
    %v1775 = vadd.f32 %v1294, %v1759
    %v1776 = vadd.f32 %v1295, %v1760
    %v1777 = vadd.f32 %v1296, %v1761
    %v1778 = vadd.f32 %v1297, %v1762
    %v1779 = vadd.f32 %v1298, %v1763
    %v1780 = vadd.f32 %v1299, %v1764
    %v1781 = vadd.f32 %v1300, %v1765
    %v1782 = vadd.f32 %v1301, %v1766
    %v1783 = vadd.f32 %v1302, %v1767
    %v1784 = vadd.f32 %v1303, %v1768
    %v1785 = vsel %vm684, %v548, 0
    %v1786 = vsel %vm684, %v549, 0
    %v1787 = vsel %vm684, %v550, 0
    %v1788 = vsel %vm684, %v551, 0
    %v1789 = vsel %vm684, %v552, 0
    %v1790 = vsel %vm684, %v553, 0
    %v1791 = vsel %vm684, %v554, 0
    %v1792 = vsel %vm684, %v555, 0
    %v1793 = vsel %vm684, %v556, 0
    %v1794 = vsel %vm684, %v557, 0
    %v1795 = vsel %vm684, %v558, 0
    %v1796 = vsel %vm684, %v559, 0
    %v1797 = vsel %vm684, %v560, 0
    %v1798 = vsel %vm684, %v561, 0
    %v1799 = vsel %vm684, %v562, 0
    %v1800 = vsel %vm684, %v563, 0
    %v1817 = vunpack.c.l.b16 %v1785
    %v1818 = vunpack.c.l.b16 %v1786
    %v1819 = vunpack.c.l.b16 %v1787
    %v1820 = vunpack.c.l.b16 %v1788
    %v1821 = vunpack.c.l.b16 %v1789
    %v1822 = vunpack.c.l.b16 %v1790
    %v1823 = vunpack.c.l.b16 %v1791
    %v1824 = vunpack.c.l.b16 %v1792
    %v1825 = vunpack.c.l.b16 %v1793
    %v1826 = vunpack.c.l.b16 %v1794
    %v1827 = vunpack.c.l.b16 %v1795
    %v1828 = vunpack.c.l.b16 %v1796
    %v1829 = vunpack.c.l.b16 %v1797
    %v1830 = vunpack.c.l.b16 %v1798
    %v1831 = vunpack.c.l.b16 %v1799
    %v1832 = vunpack.c.l.b16 %v1800
    %v1833 = vpack.c.b16 %v1818, %v1817
    %v1834 = vpack.c.b16 %v1820, %v1819
    %v1835 = vpack.c.b16 %v1822, %v1821
    %v1836 = vpack.c.b16 %v1824, %v1823
    %v1837 = vpack.c.b16 %v1826, %v1825
    %v1838 = vpack.c.b16 %v1828, %v1827
    %v1839 = vpack.c.b16 %v1830, %v1829
    %v1840 = vpack.c.b16 %v1832, %v1831
    %1849 = vmatpush.bf16.msra.mxu0 %v788
    %1850 = vmatpush.bf16.msra.mxu0 %v787
    %1851 = vmatpush.bf16.msra.mxu0 %v786
    %1852 = vmatpush.bf16.msra.mxu0 %v785
    %1853 = vmatpush.bf16.msra.mxu0 %v784
    %1854 = vmatpush.bf16.msra.mxu0 %v783
    %1855 = vmatpush.bf16.msra.mxu0 %v782
    %1856 = vmatpush.bf16.msra.mxu0 %v781
    %1857 = vmatmul.bf16.gmra.mxu0 %v1833
    %v1858 = vpop.f32.mrf.mxu0
    %v1859 = vadd.f32 0.0, %v1858
    %v1860 = vpop.f32.mrf.mxu0
    %v1861 = vadd.f32 0.0, %v1860
    %1862 = vmatmul.bf16.gmra.mxu0 %v1834
    %v1863 = vpop.f32.mrf.mxu0
    %v1864 = vadd.f32 0.0, %v1863
    %v1865 = vpop.f32.mrf.mxu0
    %v1866 = vadd.f32 0.0, %v1865
    %1867 = vmatmul.bf16.gmra.mxu0 %v1835
    %v1868 = vpop.f32.mrf.mxu0
    %v1869 = vadd.f32 0.0, %v1868
    %v1870 = vpop.f32.mrf.mxu0
    %v1871 = vadd.f32 0.0, %v1870
    %1872 = vmatmul.bf16.gmra.mxu0 %v1836
    %v1873 = vpop.f32.mrf.mxu0
    %v1874 = vadd.f32 0.0, %v1873
    %v1875 = vpop.f32.mrf.mxu0
    %v1876 = vadd.f32 0.0, %v1875
    %1877 = vmatmul.bf16.gmra.mxu0 %v1837
    %v1878 = vpop.f32.mrf.mxu0
    %v1879 = vadd.f32 0.0, %v1878
    %v1880 = vpop.f32.mrf.mxu0
    %v1881 = vadd.f32 0.0, %v1880
    %1882 = vmatmul.bf16.gmra.mxu0 %v1838
    %v1883 = vpop.f32.mrf.mxu0
    %v1884 = vadd.f32 0.0, %v1883
    %v1885 = vpop.f32.mrf.mxu0
    %v1886 = vadd.f32 0.0, %v1885
    %1887 = vmatmul.bf16.gmra.mxu0 %v1839
    %v1888 = vpop.f32.mrf.mxu0
    %v1889 = vadd.f32 0.0, %v1888
    %v1890 = vpop.f32.mrf.mxu0
    %v1891 = vadd.f32 0.0, %v1890
    %1892 = vmatmul.bf16.gmra.mxu0 %v1840
    %v1893 = vpop.f32.mrf.mxu0
    %v1894 = vadd.f32 0.0, %v1893
    %v1895 = vpop.f32.mrf.mxu0
    %v1896 = vadd.f32 0.0, %v1895
    %1897 = vdwg.mxu0
    %s1899 = sor.u32 256, 1
    %1900 = vrot.lane.b32.xlu0 %v1859, %s1899
    %v1901 = vpop.permute.xlu0 %1900
    %s1903 = sor.u32 256, 9
    %1904 = vrot.lane.b32.xlu0 %v1861, %s1903
    %v1905 = vpop.permute.xlu0 %1904
    %s1907 = sor.u32 256, 17
    %1908 = vrot.lane.b32.xlu0 %v1864, %s1907
    %v1909 = vpop.permute.xlu0 %1908
    %s1911 = sor.u32 256, 25
    %1912 = vrot.lane.b32.xlu0 %v1866, %s1911
    %v1913 = vpop.permute.xlu0 %1912
    %s1915 = sor.u32 256, 33
    %1916 = vrot.lane.b32.xlu0 %v1869, %s1915
    %v1917 = vpop.permute.xlu0 %1916
    %s1919 = sor.u32 256, 41
    %1920 = vrot.lane.b32.xlu0 %v1871, %s1919
    %v1921 = vpop.permute.xlu0 %1920
    %s1923 = sor.u32 256, 49
    %1924 = vrot.lane.b32.xlu0 %v1874, %s1923
    %v1925 = vpop.permute.xlu0 %1924
    %s1927 = sor.u32 256, 57
    %1928 = vrot.lane.b32.xlu0 %v1876, %s1927
    %v1929 = vpop.permute.xlu0 %1928
    %s1931 = sor.u32 256, 65
    %1932 = vrot.lane.b32.xlu0 %v1879, %s1931
    %v1933 = vpop.permute.xlu0 %1932
    %s1935 = sor.u32 256, 73
    %1936 = vrot.lane.b32.xlu0 %v1881, %s1935
    %v1937 = vpop.permute.xlu0 %1936
    %s1939 = sor.u32 256, 81
    %1940 = vrot.lane.b32.xlu0 %v1884, %s1939
    %v1941 = vpop.permute.xlu0 %1940
    %s1943 = sor.u32 256, 89
    %1944 = vrot.lane.b32.xlu0 %v1886, %s1943
    %v1945 = vpop.permute.xlu0 %1944
    %s1947 = sor.u32 256, 97
    %1948 = vrot.lane.b32.xlu0 %v1889, %s1947
    %v1949 = vpop.permute.xlu0 %1948
    %s1951 = sor.u32 256, 105
    %1952 = vrot.lane.b32.xlu0 %v1891, %s1951
    %v1953 = vpop.permute.xlu0 %1952
    %s1955 = sor.u32 256, 113
    %1956 = vrot.lane.b32.xlu0 %v1894, %s1955
    %v1957 = vpop.permute.xlu0 %1956
    %s1959 = sor.u32 256, 121
    %1960 = vrot.lane.b32.xlu0 %v1896, %s1959
    %v1961 = vpop.permute.xlu0 %1960
    %v1962 = vsel %vm663, %v1901, 0.0
    %v1963 = vsel %vm664, %v1905, 0.0
    %v1964 = vsel %vm665, %v1909, 0.0
    %v1965 = vsel %vm666, %v1913, 0.0
    %v1966 = vsel %vm667, %v1917, 0.0
    %v1967 = vsel %vm668, %v1921, 0.0
    %v1968 = vsel %vm669, %v1925, 0.0
    %v1969 = vsel %vm670, %v1929, 0.0
    %v1970 = vsel %vm671, %v1933, 0.0
    %v1971 = vsel %vm672, %v1937, 0.0
    %v1972 = vsel %vm673, %v1941, 0.0
    %v1973 = vsel %vm674, %v1945, 0.0
    %v1974 = vsel %vm675, %v1949, 0.0
    %v1975 = vsel %vm676, %v1953, 0.0
    %v1976 = vsel %vm677, %v1957, 0.0
    %v1977 = vsel %vm678, %v1961, 0.0
    %v1994 = vunpack.c.l.b16 %v580
    %v1995 = vunpack.c.l.b16 %v581
    %v1996 = vunpack.c.l.b16 %v582
    %v1997 = vunpack.c.l.b16 %v583
    %v1998 = vunpack.c.l.b16 %v584
    %v1999 = vunpack.c.l.b16 %v585
    %v2000 = vunpack.c.l.b16 %v586
    %v2001 = vunpack.c.l.b16 %v587
    %v2002 = vunpack.c.l.b16 %v588
    %v2003 = vunpack.c.l.b16 %v589
    %v2004 = vunpack.c.l.b16 %v590
    %v2005 = vunpack.c.l.b16 %v591
    %v2006 = vunpack.c.l.b16 %v592
    %v2007 = vunpack.c.l.b16 %v593
    %v2008 = vunpack.c.l.b16 %v594
    %v2009 = vunpack.c.l.b16 %v595
    %v2010 = vpack.c.b16 %v1995, %v1994
    %v2011 = vpack.c.b16 %v1997, %v1996
    %v2012 = vpack.c.b16 %v1999, %v1998
    %v2013 = vpack.c.b16 %v2001, %v2000
    %v2014 = vpack.c.b16 %v2003, %v2002
    %v2015 = vpack.c.b16 %v2005, %v2004
    %v2016 = vpack.c.b16 %v2007, %v2006
    %v2017 = vpack.c.b16 %v2009, %v2008
    %2026 = vmatpush.bf16.xpose.msra.mxu0 %v2017
    %2027 = vmatpush.bf16.xpose.msra.mxu0 %v2016
    %2028 = vmatpush.bf16.xpose.msra.mxu0 %v2015
    %2029 = vmatpush.bf16.xpose.msra.mxu0 %v2014
    %2030 = vmatpush.bf16.xpose.msra.mxu0 %v2013
    %2031 = vmatpush.bf16.xpose.msra.mxu0 %v2012
    %2032 = vmatpush.bf16.xpose.msra.mxu0 %v2011
    %2033 = vmatpush.bf16.xpose.msra.mxu0 %v2010
    %2034 = vmatmul.bf16.gmra.mxu0 %v1833
    %v2035 = vpop.f32.mrf.mxu0
    %v2036 = vadd.f32 %v1962, %v2035
    %v2037 = vpop.f32.mrf.mxu0
    %v2038 = vadd.f32 %v1963, %v2037
    %2039 = vmatmul.bf16.gmra.mxu0 %v1834
    %v2040 = vpop.f32.mrf.mxu0
    %v2041 = vadd.f32 %v1964, %v2040
    %v2042 = vpop.f32.mrf.mxu0
    %v2043 = vadd.f32 %v1965, %v2042
    %2044 = vmatmul.bf16.gmra.mxu0 %v1835
    %v2045 = vpop.f32.mrf.mxu0
    %v2046 = vadd.f32 %v1966, %v2045
    %v2047 = vpop.f32.mrf.mxu0
    %v2048 = vadd.f32 %v1967, %v2047
    %2049 = vmatmul.bf16.gmra.mxu0 %v1836
    %v2050 = vpop.f32.mrf.mxu0
    %v2051 = vadd.f32 %v1968, %v2050
    %v2052 = vpop.f32.mrf.mxu0
    %v2053 = vadd.f32 %v1969, %v2052
    %2054 = vmatmul.bf16.gmra.mxu0 %v1837
    %v2055 = vpop.f32.mrf.mxu0
    %v2056 = vadd.f32 %v1970, %v2055
    %v2057 = vpop.f32.mrf.mxu0
    %v2058 = vadd.f32 %v1971, %v2057
    %2059 = vmatmul.bf16.gmra.mxu0 %v1838
    %v2060 = vpop.f32.mrf.mxu0
    %v2061 = vadd.f32 %v1972, %v2060
    %v2062 = vpop.f32.mrf.mxu0
    %v2063 = vadd.f32 %v1973, %v2062
    %2064 = vmatmul.bf16.gmra.mxu0 %v1839
    %v2065 = vpop.f32.mrf.mxu0
    %v2066 = vadd.f32 %v1974, %v2065
    %v2067 = vpop.f32.mrf.mxu0
    %v2068 = vadd.f32 %v1975, %v2067
    %2069 = vmatmul.bf16.gmra.mxu0 %v1840
    %v2070 = vpop.f32.mrf.mxu0
    %v2071 = vadd.f32 %v1976, %v2070
    %v2072 = vpop.f32.mrf.mxu0
    %v2073 = vadd.f32 %v1977, %v2072
    %2074 = vdwg.mxu0
    %2075 = vmax.xlane.f32.xlu0 %v2036
    %v2076 = vpop.xlane.xlu0 %2075
    %2077 = vmax.xlane.f32.xlu0 %v2038
    %v2078 = vpop.xlane.xlu0 %2077
    %2079 = vmax.xlane.f32.xlu0 %v2041
    %v2080 = vpop.xlane.xlu0 %2079
    %2081 = vmax.xlane.f32.xlu0 %v2043
    %v2082 = vpop.xlane.xlu0 %2081
    %2083 = vmax.xlane.f32.xlu0 %v2046
    %v2084 = vpop.xlane.xlu0 %2083
    %2085 = vmax.xlane.f32.xlu0 %v2048
    %v2086 = vpop.xlane.xlu0 %2085
    %2087 = vmax.xlane.f32.xlu0 %v2051
    %v2088 = vpop.xlane.xlu0 %2087
    %2089 = vmax.xlane.f32.xlu0 %v2053
    %v2090 = vpop.xlane.xlu0 %2089
    %2091 = vmax.xlane.f32.xlu0 %v2056
    %v2092 = vpop.xlane.xlu0 %2091
    %2093 = vmax.xlane.f32.xlu0 %v2058
    %v2094 = vpop.xlane.xlu0 %2093
    %2095 = vmax.xlane.f32.xlu0 %v2061
    %v2096 = vpop.xlane.xlu0 %2095
    %2097 = vmax.xlane.f32.xlu0 %v2063
    %v2098 = vpop.xlane.xlu0 %2097
    %2099 = vmax.xlane.f32.xlu0 %v2066
    %v2100 = vpop.xlane.xlu0 %2099
    %2101 = vmax.xlane.f32.xlu0 %v2068
    %v2102 = vpop.xlane.xlu0 %2101
    %2103 = vmax.xlane.f32.xlu0 %v2071
    %v2104 = vpop.xlane.xlu0 %2103
    %2105 = vmax.xlane.f32.xlu0 %v2073
    %v2106 = vpop.xlane.xlu0 %2105
    %v2107 = vsub.f32 %v2036, %v2076
    %v2108 = vsub.f32 %v2038, %v2078
    %v2109 = vsub.f32 %v2041, %v2080
    %v2110 = vsub.f32 %v2043, %v2082
    %v2111 = vsub.f32 %v2046, %v2084
    %v2112 = vsub.f32 %v2048, %v2086
    %v2113 = vsub.f32 %v2051, %v2088
    %v2114 = vsub.f32 %v2053, %v2090
    %v2115 = vsub.f32 %v2056, %v2092
    %v2116 = vsub.f32 %v2058, %v2094
    %v2117 = vsub.f32 %v2061, %v2096
    %v2118 = vsub.f32 %v2063, %v2098
    %v2119 = vsub.f32 %v2066, %v2100
    %v2120 = vsub.f32 %v2068, %v2102
    %v2121 = vsub.f32 %v2071, %v2104
    %v2122 = vsub.f32 %v2073, %v2106
    %v2123 = vmul.f32 %v2107, 1.442695
    %v2124 = vpow.pop %v2123
    %v2125 = vmul.f32 %v2108, 1.442695
    %v2126 = vpow.pop %v2125
    %v2127 = vmul.f32 %v2109, 1.442695
    %v2128 = vpow.pop %v2127
    %v2129 = vmul.f32 %v2110, 1.442695
    %v2130 = vpow.pop %v2129
    %v2131 = vmul.f32 %v2111, 1.442695
    %v2132 = vpow.pop %v2131
    %v2133 = vmul.f32 %v2112, 1.442695
    %v2134 = vpow.pop %v2133
    %v2135 = vmul.f32 %v2113, 1.442695
    %v2136 = vpow.pop %v2135
    %v2137 = vmul.f32 %v2114, 1.442695
    %v2138 = vpow.pop %v2137
    %v2139 = vmul.f32 %v2115, 1.442695
    %v2140 = vpow.pop %v2139
    %v2141 = vmul.f32 %v2116, 1.442695
    %v2142 = vpow.pop %v2141
    %v2143 = vmul.f32 %v2117, 1.442695
    %v2144 = vpow.pop %v2143
    %v2145 = vmul.f32 %v2118, 1.442695
    %v2146 = vpow.pop %v2145
    %v2147 = vmul.f32 %v2119, 1.442695
    %v2148 = vpow.pop %v2147
    %v2149 = vmul.f32 %v2120, 1.442695
    %v2150 = vpow.pop %v2149
    %v2151 = vmul.f32 %v2121, 1.442695
    %v2152 = vpow.pop %v2151
    %v2153 = vmul.f32 %v2122, 1.442695
    %v2154 = vpow.pop %v2153
    %2155 = vadd.xlane.f32.xlu0 %v2124
    %v2156 = vpop.xlane.xlu0 %2155
    %2157 = vadd.xlane.f32.xlu0 %v2126
    %v2158 = vpop.xlane.xlu0 %2157
    %2159 = vadd.xlane.f32.xlu0 %v2128
    %v2160 = vpop.xlane.xlu0 %2159
    %2161 = vadd.xlane.f32.xlu0 %v2130
    %v2162 = vpop.xlane.xlu0 %2161
    %2163 = vadd.xlane.f32.xlu0 %v2132
    %v2164 = vpop.xlane.xlu0 %2163
    %2165 = vadd.xlane.f32.xlu0 %v2134
    %v2166 = vpop.xlane.xlu0 %2165
    %2167 = vadd.xlane.f32.xlu0 %v2136
    %v2168 = vpop.xlane.xlu0 %2167
    %2169 = vadd.xlane.f32.xlu0 %v2138
    %v2170 = vpop.xlane.xlu0 %2169
    %2171 = vadd.xlane.f32.xlu0 %v2140
    %v2172 = vpop.xlane.xlu0 %2171
    %2173 = vadd.xlane.f32.xlu0 %v2142
    %v2174 = vpop.xlane.xlu0 %2173
    %2175 = vadd.xlane.f32.xlu0 %v2144
    %v2176 = vpop.xlane.xlu0 %2175
    %2177 = vadd.xlane.f32.xlu0 %v2146
    %v2178 = vpop.xlane.xlu0 %2177
    %2179 = vadd.xlane.f32.xlu0 %v2148
    %v2180 = vpop.xlane.xlu0 %2179
    %2181 = vadd.xlane.f32.xlu0 %v2150
    %v2182 = vpop.xlane.xlu0 %2181
    %2183 = vadd.xlane.f32.xlu0 %v2152
    %v2184 = vpop.xlane.xlu0 %2183
    %2185 = vadd.xlane.f32.xlu0 %v2154
    %v2186 = vpop.xlane.xlu0 %2185
    %v2187 = vrcp.pop %v2156
    %v2188 = vrcp.pop %v2158
    %v2189 = vrcp.pop %v2160
    %v2190 = vrcp.pop %v2162
    %v2191 = vrcp.pop %v2164
    %v2192 = vrcp.pop %v2166
    %v2193 = vrcp.pop %v2168
    %v2194 = vrcp.pop %v2170
    %v2195 = vrcp.pop %v2172
    %v2196 = vrcp.pop %v2174
    %v2197 = vrcp.pop %v2176
    %v2198 = vrcp.pop %v2178
    %v2199 = vrcp.pop %v2180
    %v2200 = vrcp.pop %v2182
    %v2201 = vrcp.pop %v2184
    %v2202 = vrcp.pop %v2186
    %v2203 = vpack.c.bf16 %v2126, %v2124
    %v2204 = vpack.c.bf16 %v2130, %v2128
    %v2205 = vpack.c.bf16 %v2134, %v2132
    %v2206 = vpack.c.bf16 %v2138, %v2136
    %v2207 = vpack.c.bf16 %v2142, %v2140
    %v2208 = vpack.c.bf16 %v2146, %v2144
    %v2209 = vpack.c.bf16 %v2150, %v2148
    %v2210 = vpack.c.bf16 %v2154, %v2152
    %v2227 = vunpack.c.l.b16 %v612
    %v2228 = vunpack.c.l.b16 %v613
    %v2229 = vunpack.c.l.b16 %v614
    %v2230 = vunpack.c.l.b16 %v615
    %v2231 = vunpack.c.l.b16 %v616
    %v2232 = vunpack.c.l.b16 %v617
    %v2233 = vunpack.c.l.b16 %v618
    %v2234 = vunpack.c.l.b16 %v619
    %v2235 = vunpack.c.l.b16 %v620
    %v2236 = vunpack.c.l.b16 %v621
    %v2237 = vunpack.c.l.b16 %v622
    %v2238 = vunpack.c.l.b16 %v623
    %v2239 = vunpack.c.l.b16 %v624
    %v2240 = vunpack.c.l.b16 %v625
    %v2241 = vunpack.c.l.b16 %v626
    %v2242 = vunpack.c.l.b16 %v627
    %v2243 = vpack.c.b16 %v2228, %v2227
    %v2244 = vpack.c.b16 %v2230, %v2229
    %v2245 = vpack.c.b16 %v2232, %v2231
    %v2246 = vpack.c.b16 %v2234, %v2233
    %v2247 = vpack.c.b16 %v2236, %v2235
    %v2248 = vpack.c.b16 %v2238, %v2237
    %v2249 = vpack.c.b16 %v2240, %v2239
    %v2250 = vpack.c.b16 %v2242, %v2241
    %2259 = vmatpush.bf16.msra.mxu0 %v2250
    %2260 = vmatpush.bf16.msra.mxu0 %v2249
    %2261 = vmatpush.bf16.msra.mxu0 %v2248
    %2262 = vmatpush.bf16.msra.mxu0 %v2247
    %2263 = vmatpush.bf16.msra.mxu0 %v2246
    %2264 = vmatpush.bf16.msra.mxu0 %v2245
    %2265 = vmatpush.bf16.msra.mxu0 %v2244
    %2266 = vmatpush.bf16.msra.mxu0 %v2243
    %2267 = vmatmul.bf16.gmra.mxu0 %v2203
    %v2268 = vpop.f32.mrf.mxu0
    %v2269 = vadd.f32 0.0, %v2268
    %v2270 = vpop.f32.mrf.mxu0
    %v2271 = vadd.f32 0.0, %v2270
    %2272 = vmatmul.bf16.gmra.mxu0 %v2204
    %v2273 = vpop.f32.mrf.mxu0
    %v2274 = vadd.f32 0.0, %v2273
    %v2275 = vpop.f32.mrf.mxu0
    %v2276 = vadd.f32 0.0, %v2275
    %2277 = vmatmul.bf16.gmra.mxu0 %v2205
    %v2278 = vpop.f32.mrf.mxu0
    %v2279 = vadd.f32 0.0, %v2278
    %v2280 = vpop.f32.mrf.mxu0
    %v2281 = vadd.f32 0.0, %v2280
    %2282 = vmatmul.bf16.gmra.mxu0 %v2206
    %v2283 = vpop.f32.mrf.mxu0
    %v2284 = vadd.f32 0.0, %v2283
    %v2285 = vpop.f32.mrf.mxu0
    %v2286 = vadd.f32 0.0, %v2285
    %2287 = vmatmul.bf16.gmra.mxu0 %v2207
    %v2288 = vpop.f32.mrf.mxu0
    %v2289 = vadd.f32 0.0, %v2288
    %v2290 = vpop.f32.mrf.mxu0
    %v2291 = vadd.f32 0.0, %v2290
    %2292 = vmatmul.bf16.gmra.mxu0 %v2208
    %v2293 = vpop.f32.mrf.mxu0
    %v2294 = vadd.f32 0.0, %v2293
    %v2295 = vpop.f32.mrf.mxu0
    %v2296 = vadd.f32 0.0, %v2295
    %2297 = vmatmul.bf16.gmra.mxu0 %v2209
    %v2298 = vpop.f32.mrf.mxu0
    %v2299 = vadd.f32 0.0, %v2298
    %v2300 = vpop.f32.mrf.mxu0
    %v2301 = vadd.f32 0.0, %v2300
    %2302 = vmatmul.bf16.gmra.mxu0 %v2210
    %v2303 = vpop.f32.mrf.mxu0
    %v2304 = vadd.f32 0.0, %v2303
    %v2305 = vpop.f32.mrf.mxu0
    %v2306 = vadd.f32 0.0, %v2305
    %2307 = vdwg.mxu0
    %v2308 = vmul.f32 %v2269, %v2187
    %v2309 = vmul.f32 %v2271, %v2188
    %v2310 = vmul.f32 %v2274, %v2189
    %v2311 = vmul.f32 %v2276, %v2190
    %v2312 = vmul.f32 %v2279, %v2191
    %v2313 = vmul.f32 %v2281, %v2192
    %v2314 = vmul.f32 %v2284, %v2193
    %v2315 = vmul.f32 %v2286, %v2194
    %v2316 = vmul.f32 %v2289, %v2195
    %v2317 = vmul.f32 %v2291, %v2196
    %v2318 = vmul.f32 %v2294, %v2197
    %v2319 = vmul.f32 %v2296, %v2198
    %v2320 = vmul.f32 %v2299, %v2199
    %v2321 = vmul.f32 %v2301, %v2200
    %v2322 = vmul.f32 %v2304, %v2201
    %v2323 = vmul.f32 %v2306, %v2202
    %v2324 = vsel %vm683, %v2308, 0.0
    %v2325 = vsel %vm683, %v2309, 0.0
    %v2326 = vsel %vm683, %v2310, 0.0
    %v2327 = vsel %vm683, %v2311, 0.0
    %v2328 = vsel %vm683, %v2312, 0.0
    %v2329 = vsel %vm683, %v2313, 0.0
    %v2330 = vsel %vm683, %v2314, 0.0
    %v2331 = vsel %vm683, %v2315, 0.0
    %v2332 = vsel %vm683, %v2316, 0.0
    %v2333 = vsel %vm683, %v2317, 0.0
    %v2334 = vsel %vm683, %v2318, 0.0
    %v2335 = vsel %vm683, %v2319, 0.0
    %v2336 = vsel %vm683, %v2320, 0.0
    %v2337 = vsel %vm683, %v2321, 0.0
    %v2338 = vsel %vm683, %v2322, 0.0
    %v2339 = vsel %vm683, %v2323, 0.0
    %v2340 = vadd.f32 %v2324, 0.0
    %v2341 = vadd.f32 %v2325, 0.0
    %v2342 = vadd.f32 %v2326, 0.0
    %v2343 = vadd.f32 %v2327, 0.0
    %v2344 = vadd.f32 %v2328, 0.0
    %v2345 = vadd.f32 %v2329, 0.0
    %v2346 = vadd.f32 %v2330, 0.0
    %v2347 = vadd.f32 %v2331, 0.0
    %v2348 = vadd.f32 %v2332, 0.0
    %v2349 = vadd.f32 %v2333, 0.0
    %v2350 = vadd.f32 %v2334, 0.0
    %v2351 = vadd.f32 %v2335, 0.0
    %v2352 = vadd.f32 %v2336, 0.0
    %v2353 = vadd.f32 %v2337, 0.0
    %v2354 = vadd.f32 %v2338, 0.0
    %v2355 = vadd.f32 %v2339, 0.0
    %v2356 = vsel %vm1309, %v548, 0
    %v2357 = vsel %vm1309, %v549, 0
    %v2358 = vsel %vm1309, %v550, 0
    %v2359 = vsel %vm1309, %v551, 0
    %v2360 = vsel %vm1309, %v552, 0
    %v2361 = vsel %vm1309, %v553, 0
    %v2362 = vsel %vm1309, %v554, 0
    %v2363 = vsel %vm1309, %v555, 0
    %v2364 = vsel %vm1309, %v556, 0
    %v2365 = vsel %vm1309, %v557, 0
    %v2366 = vsel %vm1309, %v558, 0
    %v2367 = vsel %vm1309, %v559, 0
    %v2368 = vsel %vm1309, %v560, 0
    %v2369 = vsel %vm1309, %v561, 0
    %v2370 = vsel %vm1309, %v562, 0
    %v2371 = vsel %vm1309, %v563, 0
    %v2388 = vunpack.c.l.b16 %v2356
    %v2389 = vunpack.c.l.b16 %v2357
    %v2390 = vunpack.c.l.b16 %v2358
    %v2391 = vunpack.c.l.b16 %v2359
    %v2392 = vunpack.c.l.b16 %v2360
    %v2393 = vunpack.c.l.b16 %v2361
    %v2394 = vunpack.c.l.b16 %v2362
    %v2395 = vunpack.c.l.b16 %v2363
    %v2396 = vunpack.c.l.b16 %v2364
    %v2397 = vunpack.c.l.b16 %v2365
    %v2398 = vunpack.c.l.b16 %v2366
    %v2399 = vunpack.c.l.b16 %v2367
    %v2400 = vunpack.c.l.b16 %v2368
    %v2401 = vunpack.c.l.b16 %v2369
    %v2402 = vunpack.c.l.b16 %v2370
    %v2403 = vunpack.c.l.b16 %v2371
    %v2404 = vpack.c.b16 %v2389, %v2388
    %v2405 = vpack.c.b16 %v2391, %v2390
    %v2406 = vpack.c.b16 %v2393, %v2392
    %v2407 = vpack.c.b16 %v2395, %v2394
    %v2408 = vpack.c.b16 %v2397, %v2396
    %v2409 = vpack.c.b16 %v2399, %v2398
    %v2410 = vpack.c.b16 %v2401, %v2400
    %v2411 = vpack.c.b16 %v2403, %v2402
    %2420 = vmatpush.bf16.msra.mxu0 %v788
    %2421 = vmatpush.bf16.msra.mxu0 %v787
    %2422 = vmatpush.bf16.msra.mxu0 %v786
    %2423 = vmatpush.bf16.msra.mxu0 %v785
    %2424 = vmatpush.bf16.msra.mxu0 %v784
    %2425 = vmatpush.bf16.msra.mxu0 %v783
    %2426 = vmatpush.bf16.msra.mxu0 %v782
    %2427 = vmatpush.bf16.msra.mxu0 %v781
    %2428 = vmatmul.bf16.gmra.mxu0 %v2404
    %v2429 = vpop.f32.mrf.mxu0
    %v2430 = vadd.f32 0.0, %v2429
    %v2431 = vpop.f32.mrf.mxu0
    %v2432 = vadd.f32 0.0, %v2431
    %2433 = vmatmul.bf16.gmra.mxu0 %v2405
    %v2434 = vpop.f32.mrf.mxu0
    %v2435 = vadd.f32 0.0, %v2434
    %v2436 = vpop.f32.mrf.mxu0
    %v2437 = vadd.f32 0.0, %v2436
    %2438 = vmatmul.bf16.gmra.mxu0 %v2406
    %v2439 = vpop.f32.mrf.mxu0
    %v2440 = vadd.f32 0.0, %v2439
    %v2441 = vpop.f32.mrf.mxu0
    %v2442 = vadd.f32 0.0, %v2441
    %2443 = vmatmul.bf16.gmra.mxu0 %v2407
    %v2444 = vpop.f32.mrf.mxu0
    %v2445 = vadd.f32 0.0, %v2444
    %v2446 = vpop.f32.mrf.mxu0
    %v2447 = vadd.f32 0.0, %v2446
    %2448 = vmatmul.bf16.gmra.mxu0 %v2408
    %v2449 = vpop.f32.mrf.mxu0
    %v2450 = vadd.f32 0.0, %v2449
    %v2451 = vpop.f32.mrf.mxu0
    %v2452 = vadd.f32 0.0, %v2451
    %2453 = vmatmul.bf16.gmra.mxu0 %v2409
    %v2454 = vpop.f32.mrf.mxu0
    %v2455 = vadd.f32 0.0, %v2454
    %v2456 = vpop.f32.mrf.mxu0
    %v2457 = vadd.f32 0.0, %v2456
    %2458 = vmatmul.bf16.gmra.mxu0 %v2410
    %v2459 = vpop.f32.mrf.mxu0
    %v2460 = vadd.f32 0.0, %v2459
    %v2461 = vpop.f32.mrf.mxu0
    %v2462 = vadd.f32 0.0, %v2461
    %2463 = vmatmul.bf16.gmra.mxu0 %v2411
    %v2464 = vpop.f32.mrf.mxu0
    %v2465 = vadd.f32 0.0, %v2464
    %v2466 = vpop.f32.mrf.mxu0
    %v2467 = vadd.f32 0.0, %v2466
    %2468 = vdwg.mxu0
    %s2470 = sor.u32 256, 1
    %2471 = vrot.lane.b32.xlu0 %v2430, %s2470
    %v2472 = vpop.permute.xlu0 %2471
    %s2474 = sor.u32 256, 9
    %2475 = vrot.lane.b32.xlu0 %v2432, %s2474
    %v2476 = vpop.permute.xlu0 %2475
    %s2478 = sor.u32 256, 17
    %2479 = vrot.lane.b32.xlu0 %v2435, %s2478
    %v2480 = vpop.permute.xlu0 %2479
    %s2482 = sor.u32 256, 25
    %2483 = vrot.lane.b32.xlu0 %v2437, %s2482
    %v2484 = vpop.permute.xlu0 %2483
    %s2486 = sor.u32 256, 33
    %2487 = vrot.lane.b32.xlu0 %v2440, %s2486
    %v2488 = vpop.permute.xlu0 %2487
    %s2490 = sor.u32 256, 41
    %2491 = vrot.lane.b32.xlu0 %v2442, %s2490
    %v2492 = vpop.permute.xlu0 %2491
    %s2494 = sor.u32 256, 49
    %2495 = vrot.lane.b32.xlu0 %v2445, %s2494
    %v2496 = vpop.permute.xlu0 %2495
    %s2498 = sor.u32 256, 57
    %2499 = vrot.lane.b32.xlu0 %v2447, %s2498
    %v2500 = vpop.permute.xlu0 %2499
    %s2502 = sor.u32 256, 65
    %2503 = vrot.lane.b32.xlu0 %v2450, %s2502
    %v2504 = vpop.permute.xlu0 %2503
    %s2506 = sor.u32 256, 73
    %2507 = vrot.lane.b32.xlu0 %v2452, %s2506
    %v2508 = vpop.permute.xlu0 %2507
    %s2510 = sor.u32 256, 81
    %2511 = vrot.lane.b32.xlu0 %v2455, %s2510
    %v2512 = vpop.permute.xlu0 %2511
    %s2514 = sor.u32 256, 89
    %2515 = vrot.lane.b32.xlu0 %v2457, %s2514
    %v2516 = vpop.permute.xlu0 %2515
    %s2518 = sor.u32 256, 97
    %2519 = vrot.lane.b32.xlu0 %v2460, %s2518
    %v2520 = vpop.permute.xlu0 %2519
    %s2522 = sor.u32 256, 105
    %2523 = vrot.lane.b32.xlu0 %v2462, %s2522
    %v2524 = vpop.permute.xlu0 %2523
    %s2526 = sor.u32 256, 113
    %2527 = vrot.lane.b32.xlu0 %v2465, %s2526
    %v2528 = vpop.permute.xlu0 %2527
    %s2530 = sor.u32 256, 121
    %2531 = vrot.lane.b32.xlu0 %v2467, %s2530
    %v2532 = vpop.permute.xlu0 %2531
    %v2533 = vsel %vm663, %v2472, 0.0
    %v2534 = vsel %vm664, %v2476, 0.0
    %v2535 = vsel %vm665, %v2480, 0.0
    %v2536 = vsel %vm666, %v2484, 0.0
    %v2537 = vsel %vm667, %v2488, 0.0
    %v2538 = vsel %vm668, %v2492, 0.0
    %v2539 = vsel %vm669, %v2496, 0.0
    %v2540 = vsel %vm670, %v2500, 0.0
    %v2541 = vsel %vm671, %v2504, 0.0
    %v2542 = vsel %vm672, %v2508, 0.0
    %v2543 = vsel %vm673, %v2512, 0.0
    %v2544 = vsel %vm674, %v2516, 0.0
    %v2545 = vsel %vm675, %v2520, 0.0
    %v2546 = vsel %vm676, %v2524, 0.0
    %v2547 = vsel %vm677, %v2528, 0.0
    %v2548 = vsel %vm678, %v2532, 0.0
    %2549 = vmatpush.bf16.xpose.msra.mxu0 %v2017
    %2550 = vmatpush.bf16.xpose.msra.mxu0 %v2016
    %2551 = vmatpush.bf16.xpose.msra.mxu0 %v2015
    %2552 = vmatpush.bf16.xpose.msra.mxu0 %v2014
    %2553 = vmatpush.bf16.xpose.msra.mxu0 %v2013
    %2554 = vmatpush.bf16.xpose.msra.mxu0 %v2012
    %2555 = vmatpush.bf16.xpose.msra.mxu0 %v2011
    %2556 = vmatpush.bf16.xpose.msra.mxu0 %v2010
    %2557 = vmatmul.bf16.gmra.mxu0 %v2404
    %v2558 = vpop.f32.mrf.mxu0
    %v2559 = vadd.f32 %v2533, %v2558
    %v2560 = vpop.f32.mrf.mxu0
    %v2561 = vadd.f32 %v2534, %v2560
    %2562 = vmatmul.bf16.gmra.mxu0 %v2405
    %v2563 = vpop.f32.mrf.mxu0
    %v2564 = vadd.f32 %v2535, %v2563
    %v2565 = vpop.f32.mrf.mxu0
    %v2566 = vadd.f32 %v2536, %v2565
    %2567 = vmatmul.bf16.gmra.mxu0 %v2406
    %v2568 = vpop.f32.mrf.mxu0
    %v2569 = vadd.f32 %v2537, %v2568
    %v2570 = vpop.f32.mrf.mxu0
    %v2571 = vadd.f32 %v2538, %v2570
    %2572 = vmatmul.bf16.gmra.mxu0 %v2407
    %v2573 = vpop.f32.mrf.mxu0
    %v2574 = vadd.f32 %v2539, %v2573
    %v2575 = vpop.f32.mrf.mxu0
    %v2576 = vadd.f32 %v2540, %v2575
    %2577 = vmatmul.bf16.gmra.mxu0 %v2408
    %v2578 = vpop.f32.mrf.mxu0
    %v2579 = vadd.f32 %v2541, %v2578
    %v2580 = vpop.f32.mrf.mxu0
    %v2581 = vadd.f32 %v2542, %v2580
    %2582 = vmatmul.bf16.gmra.mxu0 %v2409
    %v2583 = vpop.f32.mrf.mxu0
    %v2584 = vadd.f32 %v2543, %v2583
    %v2585 = vpop.f32.mrf.mxu0
    %v2586 = vadd.f32 %v2544, %v2585
    %2587 = vmatmul.bf16.gmra.mxu0 %v2410
    %v2588 = vpop.f32.mrf.mxu0
    %v2589 = vadd.f32 %v2545, %v2588
    %v2590 = vpop.f32.mrf.mxu0
    %v2591 = vadd.f32 %v2546, %v2590
    %2592 = vmatmul.bf16.gmra.mxu0 %v2411
    %v2593 = vpop.f32.mrf.mxu0
    %v2594 = vadd.f32 %v2547, %v2593
    %v2595 = vpop.f32.mrf.mxu0
    %v2596 = vadd.f32 %v2548, %v2595
    %2597 = vdwg.mxu0
    %2598 = vmax.xlane.f32.xlu0 %v2559
    %v2599 = vpop.xlane.xlu0 %2598
    %2600 = vmax.xlane.f32.xlu0 %v2561
    %v2601 = vpop.xlane.xlu0 %2600
    %2602 = vmax.xlane.f32.xlu0 %v2564
    %v2603 = vpop.xlane.xlu0 %2602
    %2604 = vmax.xlane.f32.xlu0 %v2566
    %v2605 = vpop.xlane.xlu0 %2604
    %2606 = vmax.xlane.f32.xlu0 %v2569
    %v2607 = vpop.xlane.xlu0 %2606
    %2608 = vmax.xlane.f32.xlu0 %v2571
    %v2609 = vpop.xlane.xlu0 %2608
    %2610 = vmax.xlane.f32.xlu0 %v2574
    %v2611 = vpop.xlane.xlu0 %2610
    %2612 = vmax.xlane.f32.xlu0 %v2576
    %v2613 = vpop.xlane.xlu0 %2612
    %2614 = vmax.xlane.f32.xlu0 %v2579
    %v2615 = vpop.xlane.xlu0 %2614
    %2616 = vmax.xlane.f32.xlu0 %v2581
    %v2617 = vpop.xlane.xlu0 %2616
    %2618 = vmax.xlane.f32.xlu0 %v2584
    %v2619 = vpop.xlane.xlu0 %2618
    %2620 = vmax.xlane.f32.xlu0 %v2586
    %v2621 = vpop.xlane.xlu0 %2620
    %2622 = vmax.xlane.f32.xlu0 %v2589
    %v2623 = vpop.xlane.xlu0 %2622
    %2624 = vmax.xlane.f32.xlu0 %v2591
    %v2625 = vpop.xlane.xlu0 %2624
    %2626 = vmax.xlane.f32.xlu0 %v2594
    %v2627 = vpop.xlane.xlu0 %2626
    %2628 = vmax.xlane.f32.xlu0 %v2596
    %v2629 = vpop.xlane.xlu0 %2628
    %v2630 = vsub.f32 %v2559, %v2599
    %v2631 = vsub.f32 %v2561, %v2601
    %v2632 = vsub.f32 %v2564, %v2603
    %v2633 = vsub.f32 %v2566, %v2605
    %v2634 = vsub.f32 %v2569, %v2607
    %v2635 = vsub.f32 %v2571, %v2609
    %v2636 = vsub.f32 %v2574, %v2611
    %v2637 = vsub.f32 %v2576, %v2613
    %v2638 = vsub.f32 %v2579, %v2615
    %v2639 = vsub.f32 %v2581, %v2617
    %v2640 = vsub.f32 %v2584, %v2619
    %v2641 = vsub.f32 %v2586, %v2621
    %v2642 = vsub.f32 %v2589, %v2623
    %v2643 = vsub.f32 %v2591, %v2625
    %v2644 = vsub.f32 %v2594, %v2627
    %v2645 = vsub.f32 %v2596, %v2629
    %v2646 = vmul.f32 %v2630, 1.442695
    %v2647 = vpow.pop %v2646
    %v2648 = vmul.f32 %v2631, 1.442695
    %v2649 = vpow.pop %v2648
    %v2650 = vmul.f32 %v2632, 1.442695
    %v2651 = vpow.pop %v2650
    %v2652 = vmul.f32 %v2633, 1.442695
    %v2653 = vpow.pop %v2652
    %v2654 = vmul.f32 %v2634, 1.442695
    %v2655 = vpow.pop %v2654
    %v2656 = vmul.f32 %v2635, 1.442695
    %v2657 = vpow.pop %v2656
    %v2658 = vmul.f32 %v2636, 1.442695
    %v2659 = vpow.pop %v2658
    %v2660 = vmul.f32 %v2637, 1.442695
    %v2661 = vpow.pop %v2660
    %v2662 = vmul.f32 %v2638, 1.442695
    %v2663 = vpow.pop %v2662
    %v2664 = vmul.f32 %v2639, 1.442695
    %v2665 = vpow.pop %v2664
    %v2666 = vmul.f32 %v2640, 1.442695
    %v2667 = vpow.pop %v2666
    %v2668 = vmul.f32 %v2641, 1.442695
    %v2669 = vpow.pop %v2668
    %v2670 = vmul.f32 %v2642, 1.442695
    %v2671 = vpow.pop %v2670
    %v2672 = vmul.f32 %v2643, 1.442695
    %v2673 = vpow.pop %v2672
    %v2674 = vmul.f32 %v2644, 1.442695
    %v2675 = vpow.pop %v2674
    %v2676 = vmul.f32 %v2645, 1.442695
    %v2677 = vpow.pop %v2676
    %2678 = vadd.xlane.f32.xlu0 %v2647
    %v2679 = vpop.xlane.xlu0 %2678
    %2680 = vadd.xlane.f32.xlu0 %v2649
    %v2681 = vpop.xlane.xlu0 %2680
    %2682 = vadd.xlane.f32.xlu0 %v2651
    %v2683 = vpop.xlane.xlu0 %2682
    %2684 = vadd.xlane.f32.xlu0 %v2653
    %v2685 = vpop.xlane.xlu0 %2684
    %2686 = vadd.xlane.f32.xlu0 %v2655
    %v2687 = vpop.xlane.xlu0 %2686
    %2688 = vadd.xlane.f32.xlu0 %v2657
    %v2689 = vpop.xlane.xlu0 %2688
    %2690 = vadd.xlane.f32.xlu0 %v2659
    %v2691 = vpop.xlane.xlu0 %2690
    %2692 = vadd.xlane.f32.xlu0 %v2661
    %v2693 = vpop.xlane.xlu0 %2692
    %2694 = vadd.xlane.f32.xlu0 %v2663
    %v2695 = vpop.xlane.xlu0 %2694
    %2696 = vadd.xlane.f32.xlu0 %v2665
    %v2697 = vpop.xlane.xlu0 %2696
    %2698 = vadd.xlane.f32.xlu0 %v2667
    %v2699 = vpop.xlane.xlu0 %2698
    %2700 = vadd.xlane.f32.xlu0 %v2669
    %v2701 = vpop.xlane.xlu0 %2700
    %2702 = vadd.xlane.f32.xlu0 %v2671
    %v2703 = vpop.xlane.xlu0 %2702
    %2704 = vadd.xlane.f32.xlu0 %v2673
    %v2705 = vpop.xlane.xlu0 %2704
    %2706 = vadd.xlane.f32.xlu0 %v2675
    %v2707 = vpop.xlane.xlu0 %2706
    %2708 = vadd.xlane.f32.xlu0 %v2677
    %v2709 = vpop.xlane.xlu0 %2708
    %v2710 = vrcp.pop %v2679
    %v2711 = vrcp.pop %v2681
    %v2712 = vrcp.pop %v2683
    %v2713 = vrcp.pop %v2685
    %v2714 = vrcp.pop %v2687
    %v2715 = vrcp.pop %v2689
    %v2716 = vrcp.pop %v2691
    %v2717 = vrcp.pop %v2693
    %v2718 = vrcp.pop %v2695
    %v2719 = vrcp.pop %v2697
    %v2720 = vrcp.pop %v2699
    %v2721 = vrcp.pop %v2701
    %v2722 = vrcp.pop %v2703
    %v2723 = vrcp.pop %v2705
    %v2724 = vrcp.pop %v2707
    %v2725 = vrcp.pop %v2709
    %v2726 = vpack.c.bf16 %v2649, %v2647
    %v2727 = vpack.c.bf16 %v2653, %v2651
    %v2728 = vpack.c.bf16 %v2657, %v2655
    %v2729 = vpack.c.bf16 %v2661, %v2659
    %v2730 = vpack.c.bf16 %v2665, %v2663
    %v2731 = vpack.c.bf16 %v2669, %v2667
    %v2732 = vpack.c.bf16 %v2673, %v2671
    %v2733 = vpack.c.bf16 %v2677, %v2675
    %2734 = vmatpush.bf16.msra.mxu0 %v2250
    %2735 = vmatpush.bf16.msra.mxu0 %v2249
    %2736 = vmatpush.bf16.msra.mxu0 %v2248
    %2737 = vmatpush.bf16.msra.mxu0 %v2247
    %2738 = vmatpush.bf16.msra.mxu0 %v2246
    %2739 = vmatpush.bf16.msra.mxu0 %v2245
    %2740 = vmatpush.bf16.msra.mxu0 %v2244
    %2741 = vmatpush.bf16.msra.mxu0 %v2243
    %2742 = vmatmul.bf16.gmra.mxu0 %v2726
    %v2743 = vpop.f32.mrf.mxu0
    %v2744 = vadd.f32 0.0, %v2743
    %v2745 = vpop.f32.mrf.mxu0
    %v2746 = vadd.f32 0.0, %v2745
    %2747 = vmatmul.bf16.gmra.mxu0 %v2727
    %v2748 = vpop.f32.mrf.mxu0
    %v2749 = vadd.f32 0.0, %v2748
    %v2750 = vpop.f32.mrf.mxu0
    %v2751 = vadd.f32 0.0, %v2750
    %2752 = vmatmul.bf16.gmra.mxu0 %v2728
    %v2753 = vpop.f32.mrf.mxu0
    %v2754 = vadd.f32 0.0, %v2753
    %v2755 = vpop.f32.mrf.mxu0
    %v2756 = vadd.f32 0.0, %v2755
    %2757 = vmatmul.bf16.gmra.mxu0 %v2729
    %v2758 = vpop.f32.mrf.mxu0
    %v2759 = vadd.f32 0.0, %v2758
    %v2760 = vpop.f32.mrf.mxu0
    %v2761 = vadd.f32 0.0, %v2760
    %2762 = vmatmul.bf16.gmra.mxu0 %v2730
    %v2763 = vpop.f32.mrf.mxu0
    %v2764 = vadd.f32 0.0, %v2763
    %v2765 = vpop.f32.mrf.mxu0
    %v2766 = vadd.f32 0.0, %v2765
    %2767 = vmatmul.bf16.gmra.mxu0 %v2731
    %v2768 = vpop.f32.mrf.mxu0
    %v2769 = vadd.f32 0.0, %v2768
    %v2770 = vpop.f32.mrf.mxu0
    %v2771 = vadd.f32 0.0, %v2770
    %2772 = vmatmul.bf16.gmra.mxu0 %v2732
    %v2773 = vpop.f32.mrf.mxu0
    %v2774 = vadd.f32 0.0, %v2773
    %v2775 = vpop.f32.mrf.mxu0
    %v2776 = vadd.f32 0.0, %v2775
    %2777 = vmatmul.bf16.gmra.mxu0 %v2733
    %v2778 = vpop.f32.mrf.mxu0
    %v2779 = vadd.f32 0.0, %v2778
    %v2780 = vpop.f32.mrf.mxu0
    %v2781 = vadd.f32 0.0, %v2780
    %2782 = vdwg.mxu0
    %v2783 = vmul.f32 %v2744, %v2710
    %v2784 = vmul.f32 %v2746, %v2711
    %v2785 = vmul.f32 %v2749, %v2712
    %v2786 = vmul.f32 %v2751, %v2713
    %v2787 = vmul.f32 %v2754, %v2714
    %v2788 = vmul.f32 %v2756, %v2715
    %v2789 = vmul.f32 %v2759, %v2716
    %v2790 = vmul.f32 %v2761, %v2717
    %v2791 = vmul.f32 %v2764, %v2718
    %v2792 = vmul.f32 %v2766, %v2719
    %v2793 = vmul.f32 %v2769, %v2720
    %v2794 = vmul.f32 %v2771, %v2721
    %v2795 = vmul.f32 %v2774, %v2722
    %v2796 = vmul.f32 %v2776, %v2723
    %v2797 = vmul.f32 %v2779, %v2724
    %v2798 = vmul.f32 %v2781, %v2725
    %v2799 = vsel %vm1308, %v2783, 0.0
    %v2800 = vsel %vm1308, %v2784, 0.0
    %v2801 = vsel %vm1308, %v2785, 0.0
    %v2802 = vsel %vm1308, %v2786, 0.0
    %v2803 = vsel %vm1308, %v2787, 0.0
    %v2804 = vsel %vm1308, %v2788, 0.0
    %v2805 = vsel %vm1308, %v2789, 0.0
    %v2806 = vsel %vm1308, %v2790, 0.0
    %v2807 = vsel %vm1308, %v2791, 0.0
    %v2808 = vsel %vm1308, %v2792, 0.0
    %v2809 = vsel %vm1308, %v2793, 0.0
    %v2810 = vsel %vm1308, %v2794, 0.0
    %v2811 = vsel %vm1308, %v2795, 0.0
    %v2812 = vsel %vm1308, %v2796, 0.0
    %v2813 = vsel %vm1308, %v2797, 0.0
    %v2814 = vsel %vm1308, %v2798, 0.0
    %v2815 = vadd.f32 %v2340, %v2799
    %v2816 = vadd.f32 %v2341, %v2800
    %v2817 = vadd.f32 %v2342, %v2801
    %v2818 = vadd.f32 %v2343, %v2802
    %v2819 = vadd.f32 %v2344, %v2803
    %v2820 = vadd.f32 %v2345, %v2804
    %v2821 = vadd.f32 %v2346, %v2805
    %v2822 = vadd.f32 %v2347, %v2806
    %v2823 = vadd.f32 %v2348, %v2807
    %v2824 = vadd.f32 %v2349, %v2808
    %v2825 = vadd.f32 %v2350, %v2809
    %v2826 = vadd.f32 %v2351, %v2810
    %v2827 = vadd.f32 %v2352, %v2811
    %v2828 = vadd.f32 %v2353, %v2812
    %v2829 = vadd.f32 %v2354, %v2813
    %v2830 = vadd.f32 %v2355, %v2814
    %v2831 = vpack.c.bf16 %v1770, %v1769
    %v2832 = vpack.c.bf16 %v1772, %v1771
    %v2833 = vpack.c.bf16 %v1774, %v1773
    %v2834 = vpack.c.bf16 %v1776, %v1775
    %v2835 = vpack.c.bf16 %v1778, %v1777
    %v2836 = vpack.c.bf16 %v1780, %v1779
    %v2837 = vpack.c.bf16 %v1782, %v1781
    %v2838 = vpack.c.bf16 %v1784, %v1783
    %v2839 = vpack.c.bf16 %v2816, %v2815
    %v2840 = vpack.c.bf16 %v2818, %v2817
    %v2841 = vpack.c.bf16 %v2820, %v2819
    %v2842 = vpack.c.bf16 %v2822, %v2821
    %v2843 = vpack.c.bf16 %v2824, %v2823
    %v2844 = vpack.c.bf16 %v2826, %v2825
    %v2845 = vpack.c.bf16 %v2828, %v2827
    %v2846 = vpack.c.bf16 %v2830, %v2829
    %v2847 = vld [vmem:[%s4] sm:$0xf]
    %v2848 = vld [vmem:[%s4 + $0x4] sm:$0xf]
    %v2849 = vld [vmem:[%s4 + $0x8] sm:$0xf]
    %v2850 = vld [vmem:[%s4 + $0xc] sm:$0xf]
    %v2851 = vld [vmem:[%s4 + $0x10] sm:$0xf]
    %v2852 = vld [vmem:[%s4 + $0x14] sm:$0xf]
    %v2853 = vld [vmem:[%s4 + $0x18] sm:$0xf]
    %v2854 = vld [vmem:[%s4 + $0x1c] sm:$0xf]
    %v2855 = vld [vmem:[%s4 + $0x20] sm:$0xf]
    %v2856 = vld [vmem:[%s4 + $0x24] sm:$0xf]
    %v2857 = vld [vmem:[%s4 + $0x28] sm:$0xf]
    %v2858 = vld [vmem:[%s4 + $0x2c] sm:$0xf]
    %v2859 = vld [vmem:[%s4 + $0x30] sm:$0xf]
    %v2860 = vld [vmem:[%s4 + $0x34] sm:$0xf]
    %v2861 = vld [vmem:[%s4 + $0x38] sm:$0xf]
    %v2862 = vld [vmem:[%s4 + $0x3c] sm:$0xf]
    %v2863 = vld [vmem:[%s5] sm:$0x1]
    %v2865 = vperm.slane %v2863, 0
    %v2883 = vunpack.c.l.b16 %v2847
    %v2884 = vunpack.c.l.b16 %v2848
    %v2885 = vunpack.c.l.b16 %v2849
    %v2886 = vunpack.c.l.b16 %v2850
    %v2887 = vunpack.c.l.b16 %v2851
    %v2888 = vunpack.c.l.b16 %v2852
    %v2889 = vunpack.c.l.b16 %v2853
    %v2890 = vunpack.c.l.b16 %v2854
    %v2891 = vunpack.c.l.b16 %v2855
    %v2892 = vunpack.c.l.b16 %v2856
    %v2893 = vunpack.c.l.b16 %v2857
    %v2894 = vunpack.c.l.b16 %v2858
    %v2895 = vunpack.c.l.b16 %v2859
    %v2896 = vunpack.c.l.b16 %v2860
    %v2897 = vunpack.c.l.b16 %v2861
    %v2898 = vunpack.c.l.b16 %v2862
    %v2899 = vpack.c.b16 %v2884, %v2883
    %v2900 = vpack.c.b16 %v2886, %v2885
    %v2901 = vpack.c.b16 %v2888, %v2887
    %v2902 = vpack.c.b16 %v2890, %v2889
    %v2903 = vpack.c.b16 %v2892, %v2891
    %v2904 = vpack.c.b16 %v2894, %v2893
    %v2905 = vpack.c.b16 %v2896, %v2895
    %v2906 = vpack.c.b16 %v2898, %v2897
    %2915 = vmatpush.bf16.msra.mxu0 %v2906
    %2916 = vmatpush.bf16.msra.mxu0 %v2905
    %2917 = vmatpush.bf16.msra.mxu0 %v2904
    %2918 = vmatpush.bf16.msra.mxu0 %v2903
    %2919 = vmatpush.bf16.msra.mxu0 %v2902
    %2920 = vmatpush.bf16.msra.mxu0 %v2901
    %2921 = vmatpush.bf16.msra.mxu0 %v2900
    %2922 = vmatpush.bf16.msra.mxu0 %v2899
    %2923 = vmatmul.bf16.gmra.mxu0 %v2831
    %v2924 = vpop.f32.mrf.mxu0
    %v2925 = vadd.f32 %v2865, %v2924
    %v2926 = vpop.f32.mrf.mxu0
    %v2927 = vadd.f32 %v2865, %v2926
    %2928 = vmatmul.bf16.gmra.mxu0 %v2832
    %v2929 = vpop.f32.mrf.mxu0
    %v2930 = vadd.f32 %v2865, %v2929
    %v2931 = vpop.f32.mrf.mxu0
    %v2932 = vadd.f32 %v2865, %v2931
    %2933 = vmatmul.bf16.gmra.mxu0 %v2833
    %v2934 = vpop.f32.mrf.mxu0
    %v2935 = vadd.f32 %v2865, %v2934
    %v2936 = vpop.f32.mrf.mxu0
    %v2937 = vadd.f32 %v2865, %v2936
    %2938 = vmatmul.bf16.gmra.mxu0 %v2834
    %v2939 = vpop.f32.mrf.mxu0
    %v2940 = vadd.f32 %v2865, %v2939
    %v2941 = vpop.f32.mrf.mxu0
    %v2942 = vadd.f32 %v2865, %v2941
    %2943 = vmatmul.bf16.gmra.mxu0 %v2835
    %v2944 = vpop.f32.mrf.mxu0
    %v2945 = vadd.f32 %v2865, %v2944
    %v2946 = vpop.f32.mrf.mxu0
    %v2947 = vadd.f32 %v2865, %v2946
    %2948 = vmatmul.bf16.gmra.mxu0 %v2836
    %v2949 = vpop.f32.mrf.mxu0
    %v2950 = vadd.f32 %v2865, %v2949
    %v2951 = vpop.f32.mrf.mxu0
    %v2952 = vadd.f32 %v2865, %v2951
    %2953 = vmatmul.bf16.gmra.mxu0 %v2837
    %v2954 = vpop.f32.mrf.mxu0
    %v2955 = vadd.f32 %v2865, %v2954
    %v2956 = vpop.f32.mrf.mxu0
    %v2957 = vadd.f32 %v2865, %v2956
    %2958 = vmatmul.bf16.gmra.mxu0 %v2838
    %v2959 = vpop.f32.mrf.mxu0
    %v2960 = vadd.f32 %v2865, %v2959
    %v2961 = vpop.f32.mrf.mxu0
    %v2962 = vadd.f32 %v2865, %v2961
    %2963 = vmatmul.bf16.gmra.mxu0 %v2839
    %v2964 = vpop.f32.mrf.mxu0
    %v2965 = vadd.f32 %v2865, %v2964
    %v2966 = vpop.f32.mrf.mxu0
    %v2967 = vadd.f32 %v2865, %v2966
    %2968 = vmatmul.bf16.gmra.mxu0 %v2840
    %v2969 = vpop.f32.mrf.mxu0
    %v2970 = vadd.f32 %v2865, %v2969
    %v2971 = vpop.f32.mrf.mxu0
    %v2972 = vadd.f32 %v2865, %v2971
    %2973 = vmatmul.bf16.gmra.mxu0 %v2841
    %v2974 = vpop.f32.mrf.mxu0
    %v2975 = vadd.f32 %v2865, %v2974
    %v2976 = vpop.f32.mrf.mxu0
    %v2977 = vadd.f32 %v2865, %v2976
    %2978 = vmatmul.bf16.gmra.mxu0 %v2842
    %v2979 = vpop.f32.mrf.mxu0
    %v2980 = vadd.f32 %v2865, %v2979
    %v2981 = vpop.f32.mrf.mxu0
    %v2982 = vadd.f32 %v2865, %v2981
    %2983 = vmatmul.bf16.gmra.mxu0 %v2843
    %v2984 = vpop.f32.mrf.mxu0
    %v2985 = vadd.f32 %v2865, %v2984
    %v2986 = vpop.f32.mrf.mxu0
    %v2987 = vadd.f32 %v2865, %v2986
    %2988 = vmatmul.bf16.gmra.mxu0 %v2844
    %v2989 = vpop.f32.mrf.mxu0
    %v2990 = vadd.f32 %v2865, %v2989
    %v2991 = vpop.f32.mrf.mxu0
    %v2992 = vadd.f32 %v2865, %v2991
    %2993 = vmatmul.bf16.gmra.mxu0 %v2845
    %v2994 = vpop.f32.mrf.mxu0
    %v2995 = vadd.f32 %v2865, %v2994
    %v2996 = vpop.f32.mrf.mxu0
    %v2997 = vadd.f32 %v2865, %v2996
    %2998 = vmatmul.bf16.gmra.mxu0 %v2846
    %v2999 = vpop.f32.mrf.mxu0
    %v3000 = vadd.f32 %v2865, %v2999
    %v3001 = vpop.f32.mrf.mxu0
    %v3002 = vadd.f32 %v2865, %v3001
    %3003 = vdwg.mxu0
    %v3004 = vadd.f32 %v49, %v2925
    %v3005 = vadd.f32 %v50, %v2927
    %v3006 = vadd.f32 %v51, %v2930
    %v3007 = vadd.f32 %v52, %v2932
    %v3008 = vadd.f32 %v53, %v2935
    %v3009 = vadd.f32 %v54, %v2937
    %v3010 = vadd.f32 %v55, %v2940
    %v3011 = vadd.f32 %v56, %v2942
    %v3012 = vadd.f32 %v57, %v2945
    %v3013 = vadd.f32 %v58, %v2947
    %v3014 = vadd.f32 %v59, %v2950
    %v3015 = vadd.f32 %v60, %v2952
    %v3016 = vadd.f32 %v61, %v2955
    %v3017 = vadd.f32 %v62, %v2957
    %v3018 = vadd.f32 %v63, %v2960
    %v3019 = vadd.f32 %v64, %v2962
    %v3020 = vadd.f32 %v65, %v2965
    %v3021 = vadd.f32 %v66, %v2967
    %v3022 = vadd.f32 %v67, %v2970
    %v3023 = vadd.f32 %v68, %v2972
    %v3024 = vadd.f32 %v69, %v2975
    %v3025 = vadd.f32 %v70, %v2977
    %v3026 = vadd.f32 %v71, %v2980
    %v3027 = vadd.f32 %v72, %v2982
    %v3028 = vadd.f32 %v73, %v2985
    %v3029 = vadd.f32 %v74, %v2987
    %v3030 = vadd.f32 %v75, %v2990
    %v3031 = vadd.f32 %v76, %v2992
    %v3032 = vadd.f32 %v77, %v2995
    %v3033 = vadd.f32 %v78, %v2997
    %v3034 = vadd.f32 %v79, %v3000
    %v3035 = vadd.f32 %v80, %v3002
    %3036 = vadd.xlane.f32.xlu0 %v3004
    %v3037 = vpop.xlane.xlu0 %3036
    %3038 = vadd.xlane.f32.xlu0 %v3005
    %v3039 = vpop.xlane.xlu0 %3038
    %3040 = vadd.xlane.f32.xlu0 %v3006
    %v3041 = vpop.xlane.xlu0 %3040
    %3042 = vadd.xlane.f32.xlu0 %v3007
    %v3043 = vpop.xlane.xlu0 %3042
    %3044 = vadd.xlane.f32.xlu0 %v3008
    %v3045 = vpop.xlane.xlu0 %3044
    %3046 = vadd.xlane.f32.xlu0 %v3009
    %v3047 = vpop.xlane.xlu0 %3046
    %3048 = vadd.xlane.f32.xlu0 %v3010
    %v3049 = vpop.xlane.xlu0 %3048
    %3050 = vadd.xlane.f32.xlu0 %v3011
    %v3051 = vpop.xlane.xlu0 %3050
    %3052 = vadd.xlane.f32.xlu0 %v3012
    %v3053 = vpop.xlane.xlu0 %3052
    %3054 = vadd.xlane.f32.xlu0 %v3013
    %v3055 = vpop.xlane.xlu0 %3054
    %3056 = vadd.xlane.f32.xlu0 %v3014
    %v3057 = vpop.xlane.xlu0 %3056
    %3058 = vadd.xlane.f32.xlu0 %v3015
    %v3059 = vpop.xlane.xlu0 %3058
    %3060 = vadd.xlane.f32.xlu0 %v3016
    %v3061 = vpop.xlane.xlu0 %3060
    %3062 = vadd.xlane.f32.xlu0 %v3017
    %v3063 = vpop.xlane.xlu0 %3062
    %3064 = vadd.xlane.f32.xlu0 %v3018
    %v3065 = vpop.xlane.xlu0 %3064
    %3066 = vadd.xlane.f32.xlu0 %v3019
    %v3067 = vpop.xlane.xlu0 %3066
    %3068 = vadd.xlane.f32.xlu0 %v3020
    %v3069 = vpop.xlane.xlu0 %3068
    %3070 = vadd.xlane.f32.xlu0 %v3021
    %v3071 = vpop.xlane.xlu0 %3070
    %3072 = vadd.xlane.f32.xlu0 %v3022
    %v3073 = vpop.xlane.xlu0 %3072
    %3074 = vadd.xlane.f32.xlu0 %v3023
    %v3075 = vpop.xlane.xlu0 %3074
    %3076 = vadd.xlane.f32.xlu0 %v3024
    %v3077 = vpop.xlane.xlu0 %3076
    %3078 = vadd.xlane.f32.xlu0 %v3025
    %v3079 = vpop.xlane.xlu0 %3078
    %3080 = vadd.xlane.f32.xlu0 %v3026
    %v3081 = vpop.xlane.xlu0 %3080
    %3082 = vadd.xlane.f32.xlu0 %v3027
    %v3083 = vpop.xlane.xlu0 %3082
    %3084 = vadd.xlane.f32.xlu0 %v3028
    %v3085 = vpop.xlane.xlu0 %3084
    %3086 = vadd.xlane.f32.xlu0 %v3029
    %v3087 = vpop.xlane.xlu0 %3086
    %3088 = vadd.xlane.f32.xlu0 %v3030
    %v3089 = vpop.xlane.xlu0 %3088
    %3090 = vadd.xlane.f32.xlu0 %v3031
    %v3091 = vpop.xlane.xlu0 %3090
    %3092 = vadd.xlane.f32.xlu0 %v3032
    %v3093 = vpop.xlane.xlu0 %3092
    %3094 = vadd.xlane.f32.xlu0 %v3033
    %v3095 = vpop.xlane.xlu0 %3094
    %3096 = vadd.xlane.f32.xlu0 %v3034
    %v3097 = vpop.xlane.xlu0 %3096
    %3098 = vadd.xlane.f32.xlu0 %v3035
    %v3099 = vpop.xlane.xlu0 %3098
    %v3100 = vrcp.pop 128.0
    %v3101 = vmul.f32 128.0, %v3100
    %v3102 = vsub.f32 1.0, %v3101
    %v3103 = vmul.f32 %v3100, %v3102
    %v3104 = vadd.f32 %v3100, %v3103
    %vm3105 = vweird.f32 %v3100
    %v3106 = vsel %vm3105, %v3100, %v3104
    %v3107 = vmul.f32 %v3037, %v3106
    %v3108 = vmul.f32 %v3039, %v3106
    %v3109 = vmul.f32 %v3041, %v3106
    %v3110 = vmul.f32 %v3043, %v3106
    %v3111 = vmul.f32 %v3045, %v3106
    %v3112 = vmul.f32 %v3047, %v3106
    %v3113 = vmul.f32 %v3049, %v3106
    %v3114 = vmul.f32 %v3051, %v3106
    %v3115 = vmul.f32 %v3053, %v3106
    %v3116 = vmul.f32 %v3055, %v3106
    %v3117 = vmul.f32 %v3057, %v3106
    %v3118 = vmul.f32 %v3059, %v3106
    %v3119 = vmul.f32 %v3061, %v3106
    %v3120 = vmul.f32 %v3063, %v3106
    %v3121 = vmul.f32 %v3065, %v3106
    %v3122 = vmul.f32 %v3067, %v3106
    %v3123 = vmul.f32 %v3069, %v3106
    %v3124 = vmul.f32 %v3071, %v3106
    %v3125 = vmul.f32 %v3073, %v3106
    %v3126 = vmul.f32 %v3075, %v3106
    %v3127 = vmul.f32 %v3077, %v3106
    %v3128 = vmul.f32 %v3079, %v3106
    %v3129 = vmul.f32 %v3081, %v3106
    %v3130 = vmul.f32 %v3083, %v3106
    %v3131 = vmul.f32 %v3085, %v3106
    %v3132 = vmul.f32 %v3087, %v3106
    %v3133 = vmul.f32 %v3089, %v3106
    %v3134 = vmul.f32 %v3091, %v3106
    %v3135 = vmul.f32 %v3093, %v3106
    %v3136 = vmul.f32 %v3095, %v3106
    %v3137 = vmul.f32 %v3097, %v3106
    %v3138 = vmul.f32 %v3099, %v3106
    %v3139 = vsub.f32 %v3004, %v3107
    %v3140 = vsub.f32 %v3005, %v3108
    %v3141 = vsub.f32 %v3006, %v3109
    %v3142 = vsub.f32 %v3007, %v3110
    %v3143 = vsub.f32 %v3008, %v3111
    %v3144 = vsub.f32 %v3009, %v3112
    %v3145 = vsub.f32 %v3010, %v3113
    %v3146 = vsub.f32 %v3011, %v3114
    %v3147 = vsub.f32 %v3012, %v3115
    %v3148 = vsub.f32 %v3013, %v3116
    %v3149 = vsub.f32 %v3014, %v3117
    %v3150 = vsub.f32 %v3015, %v3118
    %v3151 = vsub.f32 %v3016, %v3119
    %v3152 = vsub.f32 %v3017, %v3120
    %v3153 = vsub.f32 %v3018, %v3121
    %v3154 = vsub.f32 %v3019, %v3122
    %v3155 = vsub.f32 %v3020, %v3123
    %v3156 = vsub.f32 %v3021, %v3124
    %v3157 = vsub.f32 %v3022, %v3125
    %v3158 = vsub.f32 %v3023, %v3126
    %v3159 = vsub.f32 %v3024, %v3127
    %v3160 = vsub.f32 %v3025, %v3128
    %v3161 = vsub.f32 %v3026, %v3129
    %v3162 = vsub.f32 %v3027, %v3130
    %v3163 = vsub.f32 %v3028, %v3131
    %v3164 = vsub.f32 %v3029, %v3132
    %v3165 = vsub.f32 %v3030, %v3133
    %v3166 = vsub.f32 %v3031, %v3134
    %v3167 = vsub.f32 %v3032, %v3135
    %v3168 = vsub.f32 %v3033, %v3136
    %v3169 = vsub.f32 %v3034, %v3137
    %v3170 = vsub.f32 %v3035, %v3138
    %v3171 = vmul.f32 %v3139, %v3139
    %v3172 = vmul.f32 %v3140, %v3140
    %v3173 = vmul.f32 %v3141, %v3141
    %v3174 = vmul.f32 %v3142, %v3142
    %v3175 = vmul.f32 %v3143, %v3143
    %v3176 = vmul.f32 %v3144, %v3144
    %v3177 = vmul.f32 %v3145, %v3145
    %v3178 = vmul.f32 %v3146, %v3146
    %v3179 = vmul.f32 %v3147, %v3147
    %v3180 = vmul.f32 %v3148, %v3148
    %v3181 = vmul.f32 %v3149, %v3149
    %v3182 = vmul.f32 %v3150, %v3150
    %v3183 = vmul.f32 %v3151, %v3151
    %v3184 = vmul.f32 %v3152, %v3152
    %v3185 = vmul.f32 %v3153, %v3153
    %v3186 = vmul.f32 %v3154, %v3154
    %v3187 = vmul.f32 %v3155, %v3155
    %v3188 = vmul.f32 %v3156, %v3156
    %v3189 = vmul.f32 %v3157, %v3157
    %v3190 = vmul.f32 %v3158, %v3158
    %v3191 = vmul.f32 %v3159, %v3159
    %v3192 = vmul.f32 %v3160, %v3160
    %v3193 = vmul.f32 %v3161, %v3161
    %v3194 = vmul.f32 %v3162, %v3162
    %v3195 = vmul.f32 %v3163, %v3163
    %v3196 = vmul.f32 %v3164, %v3164
    %v3197 = vmul.f32 %v3165, %v3165
    %v3198 = vmul.f32 %v3166, %v3166
    %v3199 = vmul.f32 %v3167, %v3167
    %v3200 = vmul.f32 %v3168, %v3168
    %v3201 = vmul.f32 %v3169, %v3169
    %v3202 = vmul.f32 %v3170, %v3170
    %3203 = vadd.xlane.f32.xlu0 %v3171
    %v3204 = vpop.xlane.xlu0 %3203
    %3205 = vadd.xlane.f32.xlu0 %v3172
    %v3206 = vpop.xlane.xlu0 %3205
    %3207 = vadd.xlane.f32.xlu0 %v3173
    %v3208 = vpop.xlane.xlu0 %3207
    %3209 = vadd.xlane.f32.xlu0 %v3174
    %v3210 = vpop.xlane.xlu0 %3209
    %3211 = vadd.xlane.f32.xlu0 %v3175
    %v3212 = vpop.xlane.xlu0 %3211
    %3213 = vadd.xlane.f32.xlu0 %v3176
    %v3214 = vpop.xlane.xlu0 %3213
    %3215 = vadd.xlane.f32.xlu0 %v3177
    %v3216 = vpop.xlane.xlu0 %3215
    %3217 = vadd.xlane.f32.xlu0 %v3178
    %v3218 = vpop.xlane.xlu0 %3217
    %3219 = vadd.xlane.f32.xlu0 %v3179
    %v3220 = vpop.xlane.xlu0 %3219
    %3221 = vadd.xlane.f32.xlu0 %v3180
    %v3222 = vpop.xlane.xlu0 %3221
    %3223 = vadd.xlane.f32.xlu0 %v3181
    %v3224 = vpop.xlane.xlu0 %3223
    %3225 = vadd.xlane.f32.xlu0 %v3182
    %v3226 = vpop.xlane.xlu0 %3225
    %3227 = vadd.xlane.f32.xlu0 %v3183
    %v3228 = vpop.xlane.xlu0 %3227
    %3229 = vadd.xlane.f32.xlu0 %v3184
    %v3230 = vpop.xlane.xlu0 %3229
    %3231 = vadd.xlane.f32.xlu0 %v3185
    %v3232 = vpop.xlane.xlu0 %3231
    %3233 = vadd.xlane.f32.xlu0 %v3186
    %v3234 = vpop.xlane.xlu0 %3233
    %3235 = vadd.xlane.f32.xlu0 %v3187
    %v3236 = vpop.xlane.xlu0 %3235
    %3237 = vadd.xlane.f32.xlu0 %v3188
    %v3238 = vpop.xlane.xlu0 %3237
    %3239 = vadd.xlane.f32.xlu0 %v3189
    %v3240 = vpop.xlane.xlu0 %3239
    %3241 = vadd.xlane.f32.xlu0 %v3190
    %v3242 = vpop.xlane.xlu0 %3241
    %3243 = vadd.xlane.f32.xlu0 %v3191
    %v3244 = vpop.xlane.xlu0 %3243
    %3245 = vadd.xlane.f32.xlu0 %v3192
    %v3246 = vpop.xlane.xlu0 %3245
    %3247 = vadd.xlane.f32.xlu0 %v3193
    %v3248 = vpop.xlane.xlu0 %3247
    %3249 = vadd.xlane.f32.xlu0 %v3194
    %v3250 = vpop.xlane.xlu0 %3249
    %3251 = vadd.xlane.f32.xlu0 %v3195
    %v3252 = vpop.xlane.xlu0 %3251
    %3253 = vadd.xlane.f32.xlu0 %v3196
    %v3254 = vpop.xlane.xlu0 %3253
    %3255 = vadd.xlane.f32.xlu0 %v3197
    %v3256 = vpop.xlane.xlu0 %3255
    %3257 = vadd.xlane.f32.xlu0 %v3198
    %v3258 = vpop.xlane.xlu0 %3257
    %3259 = vadd.xlane.f32.xlu0 %v3199
    %v3260 = vpop.xlane.xlu0 %3259
    %3261 = vadd.xlane.f32.xlu0 %v3200
    %v3262 = vpop.xlane.xlu0 %3261
    %3263 = vadd.xlane.f32.xlu0 %v3201
    %v3264 = vpop.xlane.xlu0 %3263
    %3265 = vadd.xlane.f32.xlu0 %v3202
    %v3266 = vpop.xlane.xlu0 %3265
    %v3267 = vmul.f32 %v3204, %v3106
    %v3268 = vmul.f32 %v3206, %v3106
    %v3269 = vmul.f32 %v3208, %v3106
    %v3270 = vmul.f32 %v3210, %v3106
    %v3271 = vmul.f32 %v3212, %v3106
    %v3272 = vmul.f32 %v3214, %v3106
    %v3273 = vmul.f32 %v3216, %v3106
    %v3274 = vmul.f32 %v3218, %v3106
    %v3275 = vmul.f32 %v3220, %v3106
    %v3276 = vmul.f32 %v3222, %v3106
    %v3277 = vmul.f32 %v3224, %v3106
    %v3278 = vmul.f32 %v3226, %v3106
    %v3279 = vmul.f32 %v3228, %v3106
    %v3280 = vmul.f32 %v3230, %v3106
    %v3281 = vmul.f32 %v3232, %v3106
    %v3282 = vmul.f32 %v3234, %v3106
    %v3283 = vmul.f32 %v3236, %v3106
    %v3284 = vmul.f32 %v3238, %v3106
    %v3285 = vmul.f32 %v3240, %v3106
    %v3286 = vmul.f32 %v3242, %v3106
    %v3287 = vmul.f32 %v3244, %v3106
    %v3288 = vmul.f32 %v3246, %v3106
    %v3289 = vmul.f32 %v3248, %v3106
    %v3290 = vmul.f32 %v3250, %v3106
    %v3291 = vmul.f32 %v3252, %v3106
    %v3292 = vmul.f32 %v3254, %v3106
    %v3293 = vmul.f32 %v3256, %v3106
    %v3294 = vmul.f32 %v3258, %v3106
    %v3295 = vmul.f32 %v3260, %v3106
    %v3296 = vmul.f32 %v3262, %v3106
    %v3297 = vmul.f32 %v3264, %v3106
    %v3298 = vmul.f32 %v3266, %v3106
    %v3299 = vadd.f32 %v3267, 1e-05
    %v3300 = vadd.f32 %v3268, 1e-05
    %v3301 = vadd.f32 %v3269, 1e-05
    %v3302 = vadd.f32 %v3270, 1e-05
    %v3303 = vadd.f32 %v3271, 1e-05
    %v3304 = vadd.f32 %v3272, 1e-05
    %v3305 = vadd.f32 %v3273, 1e-05
    %v3306 = vadd.f32 %v3274, 1e-05
    %v3307 = vadd.f32 %v3275, 1e-05
    %v3308 = vadd.f32 %v3276, 1e-05
    %v3309 = vadd.f32 %v3277, 1e-05
    %v3310 = vadd.f32 %v3278, 1e-05
    %v3311 = vadd.f32 %v3279, 1e-05
    %v3312 = vadd.f32 %v3280, 1e-05
    %v3313 = vadd.f32 %v3281, 1e-05
    %v3314 = vadd.f32 %v3282, 1e-05
    %v3315 = vadd.f32 %v3283, 1e-05
    %v3316 = vadd.f32 %v3284, 1e-05
    %v3317 = vadd.f32 %v3285, 1e-05
    %v3318 = vadd.f32 %v3286, 1e-05
    %v3319 = vadd.f32 %v3287, 1e-05
    %v3320 = vadd.f32 %v3288, 1e-05
    %v3321 = vadd.f32 %v3289, 1e-05
    %v3322 = vadd.f32 %v3290, 1e-05
    %v3323 = vadd.f32 %v3291, 1e-05
    %v3324 = vadd.f32 %v3292, 1e-05
    %v3325 = vadd.f32 %v3293, 1e-05
    %v3326 = vadd.f32 %v3294, 1e-05
    %v3327 = vadd.f32 %v3295, 1e-05
    %v3328 = vadd.f32 %v3296, 1e-05
    %v3329 = vadd.f32 %v3297, 1e-05
    %v3330 = vadd.f32 %v3298, 1e-05
    %v3331 = vrsqrt.pop %v3299
    %v3332 = vmul.f32 %v3331, %v3299
    %v3333 = vmul.f32 %v3332, %v3331
    %v3334 = vmul.f32 0.5, %v3333
    %v3335 = vsub.f32 1.5, %v3334
    %v3336 = vmul.f32 %v3331, %v3335
    %vm3337 = vweird.f32 %v3299
    %vm3338 = vweird.f32 %v3331
    %vm3339 = vmor %vm3337, %vm3338
    %v3340 = vsel %vm3339, %v3331, %v3336
    %v3341 = vrsqrt.pop %v3300
    %v3342 = vmul.f32 %v3341, %v3300
    %v3343 = vmul.f32 %v3342, %v3341
    %v3344 = vmul.f32 0.5, %v3343
    %v3345 = vsub.f32 1.5, %v3344
    %v3346 = vmul.f32 %v3341, %v3345
    %vm3347 = vweird.f32 %v3300
    %vm3348 = vweird.f32 %v3341
    %vm3349 = vmor %vm3347, %vm3348
    %v3350 = vsel %vm3349, %v3341, %v3346
    %v3351 = vrsqrt.pop %v3301
    %v3352 = vmul.f32 %v3351, %v3301
    %v3353 = vmul.f32 %v3352, %v3351
    %v3354 = vmul.f32 0.5, %v3353
    %v3355 = vsub.f32 1.5, %v3354
    %v3356 = vmul.f32 %v3351, %v3355
    %vm3357 = vweird.f32 %v3301
    %vm3358 = vweird.f32 %v3351
    %vm3359 = vmor %vm3357, %vm3358
    %v3360 = vsel %vm3359, %v3351, %v3356
    %v3361 = vrsqrt.pop %v3302
    %v3362 = vmul.f32 %v3361, %v3302
    %v3363 = vmul.f32 %v3362, %v3361
    %v3364 = vmul.f32 0.5, %v3363
    %v3365 = vsub.f32 1.5, %v3364
    %v3366 = vmul.f32 %v3361, %v3365
    %vm3367 = vweird.f32 %v3302
    %vm3368 = vweird.f32 %v3361
    %vm3369 = vmor %vm3367, %vm3368
    %v3370 = vsel %vm3369, %v3361, %v3366
    %v3371 = vrsqrt.pop %v3303
    %v3372 = vmul.f32 %v3371, %v3303
    %v3373 = vmul.f32 %v3372, %v3371
    %v3374 = vmul.f32 0.5, %v3373
    %v3375 = vsub.f32 1.5, %v3374
    %v3376 = vmul.f32 %v3371, %v3375
    %vm3377 = vweird.f32 %v3303
    %vm3378 = vweird.f32 %v3371
    %vm3379 = vmor %vm3377, %vm3378
    %v3380 = vsel %vm3379, %v3371, %v3376
    %v3381 = vrsqrt.pop %v3304
    %v3382 = vmul.f32 %v3381, %v3304
    %v3383 = vmul.f32 %v3382, %v3381
    %v3384 = vmul.f32 0.5, %v3383
    %v3385 = vsub.f32 1.5, %v3384
    %v3386 = vmul.f32 %v3381, %v3385
    %vm3387 = vweird.f32 %v3304
    %vm3388 = vweird.f32 %v3381
    %vm3389 = vmor %vm3387, %vm3388
    %v3390 = vsel %vm3389, %v3381, %v3386
    %v3391 = vrsqrt.pop %v3305
    %v3392 = vmul.f32 %v3391, %v3305
    %v3393 = vmul.f32 %v3392, %v3391
    %v3394 = vmul.f32 0.5, %v3393
    %v3395 = vsub.f32 1.5, %v3394
    %v3396 = vmul.f32 %v3391, %v3395
    %vm3397 = vweird.f32 %v3305
    %vm3398 = vweird.f32 %v3391
    %vm3399 = vmor %vm3397, %vm3398
    %v3400 = vsel %vm3399, %v3391, %v3396
    %v3401 = vrsqrt.pop %v3306
    %v3402 = vmul.f32 %v3401, %v3306
    %v3403 = vmul.f32 %v3402, %v3401
    %v3404 = vmul.f32 0.5, %v3403
    %v3405 = vsub.f32 1.5, %v3404
    %v3406 = vmul.f32 %v3401, %v3405
    %vm3407 = vweird.f32 %v3306
    %vm3408 = vweird.f32 %v3401
    %vm3409 = vmor %vm3407, %vm3408
    %v3410 = vsel %vm3409, %v3401, %v3406
    %v3411 = vrsqrt.pop %v3307
    %v3412 = vmul.f32 %v3411, %v3307
    %v3413 = vmul.f32 %v3412, %v3411
    %v3414 = vmul.f32 0.5, %v3413
    %v3415 = vsub.f32 1.5, %v3414
    %v3416 = vmul.f32 %v3411, %v3415
    %vm3417 = vweird.f32 %v3307
    %vm3418 = vweird.f32 %v3411
    %vm3419 = vmor %vm3417, %vm3418
    %v3420 = vsel %vm3419, %v3411, %v3416
    %v3421 = vrsqrt.pop %v3308
    %v3422 = vmul.f32 %v3421, %v3308
    %v3423 = vmul.f32 %v3422, %v3421
    %v3424 = vmul.f32 0.5, %v3423
    %v3425 = vsub.f32 1.5, %v3424
    %v3426 = vmul.f32 %v3421, %v3425
    %vm3427 = vweird.f32 %v3308
    %vm3428 = vweird.f32 %v3421
    %vm3429 = vmor %vm3427, %vm3428
    %v3430 = vsel %vm3429, %v3421, %v3426
    %v3431 = vrsqrt.pop %v3309
    %v3432 = vmul.f32 %v3431, %v3309
    %v3433 = vmul.f32 %v3432, %v3431
    %v3434 = vmul.f32 0.5, %v3433
    %v3435 = vsub.f32 1.5, %v3434
    %v3436 = vmul.f32 %v3431, %v3435
    %vm3437 = vweird.f32 %v3309
    %vm3438 = vweird.f32 %v3431
    %vm3439 = vmor %vm3437, %vm3438
    %v3440 = vsel %vm3439, %v3431, %v3436
    %v3441 = vrsqrt.pop %v3310
    %v3442 = vmul.f32 %v3441, %v3310
    %v3443 = vmul.f32 %v3442, %v3441
    %v3444 = vmul.f32 0.5, %v3443
    %v3445 = vsub.f32 1.5, %v3444
    %v3446 = vmul.f32 %v3441, %v3445
    %vm3447 = vweird.f32 %v3310
    %vm3448 = vweird.f32 %v3441
    %vm3449 = vmor %vm3447, %vm3448
    %v3450 = vsel %vm3449, %v3441, %v3446
    %v3451 = vrsqrt.pop %v3311
    %v3452 = vmul.f32 %v3451, %v3311
    %v3453 = vmul.f32 %v3452, %v3451
    %v3454 = vmul.f32 0.5, %v3453
    %v3455 = vsub.f32 1.5, %v3454
    %v3456 = vmul.f32 %v3451, %v3455
    %vm3457 = vweird.f32 %v3311
    %vm3458 = vweird.f32 %v3451
    %vm3459 = vmor %vm3457, %vm3458
    %v3460 = vsel %vm3459, %v3451, %v3456
    %v3461 = vrsqrt.pop %v3312
    %v3462 = vmul.f32 %v3461, %v3312
    %v3463 = vmul.f32 %v3462, %v3461
    %v3464 = vmul.f32 0.5, %v3463
    %v3465 = vsub.f32 1.5, %v3464
    %v3466 = vmul.f32 %v3461, %v3465
    %vm3467 = vweird.f32 %v3312
    %vm3468 = vweird.f32 %v3461
    %vm3469 = vmor %vm3467, %vm3468
    %v3470 = vsel %vm3469, %v3461, %v3466
    %v3471 = vrsqrt.pop %v3313
    %v3472 = vmul.f32 %v3471, %v3313
    %v3473 = vmul.f32 %v3472, %v3471
    %v3474 = vmul.f32 0.5, %v3473
    %v3475 = vsub.f32 1.5, %v3474
    %v3476 = vmul.f32 %v3471, %v3475
    %vm3477 = vweird.f32 %v3313
    %vm3478 = vweird.f32 %v3471
    %vm3479 = vmor %vm3477, %vm3478
    %v3480 = vsel %vm3479, %v3471, %v3476
    %v3481 = vrsqrt.pop %v3314
    %v3482 = vmul.f32 %v3481, %v3314
    %v3483 = vmul.f32 %v3482, %v3481
    %v3484 = vmul.f32 0.5, %v3483
    %v3485 = vsub.f32 1.5, %v3484
    %v3486 = vmul.f32 %v3481, %v3485
    %vm3487 = vweird.f32 %v3314
    %vm3488 = vweird.f32 %v3481
    %vm3489 = vmor %vm3487, %vm3488
    %v3490 = vsel %vm3489, %v3481, %v3486
    %v3491 = vrsqrt.pop %v3315
    %v3492 = vmul.f32 %v3491, %v3315
    %v3493 = vmul.f32 %v3492, %v3491
    %v3494 = vmul.f32 0.5, %v3493
    %v3495 = vsub.f32 1.5, %v3494
    %v3496 = vmul.f32 %v3491, %v3495
    %vm3497 = vweird.f32 %v3315
    %vm3498 = vweird.f32 %v3491
    %vm3499 = vmor %vm3497, %vm3498
    %v3500 = vsel %vm3499, %v3491, %v3496
    %v3501 = vrsqrt.pop %v3316
    %v3502 = vmul.f32 %v3501, %v3316
    %v3503 = vmul.f32 %v3502, %v3501
    %v3504 = vmul.f32 0.5, %v3503
    %v3505 = vsub.f32 1.5, %v3504
    %v3506 = vmul.f32 %v3501, %v3505
    %vm3507 = vweird.f32 %v3316
    %vm3508 = vweird.f32 %v3501
    %vm3509 = vmor %vm3507, %vm3508
    %v3510 = vsel %vm3509, %v3501, %v3506
    %v3511 = vrsqrt.pop %v3317
    %v3512 = vmul.f32 %v3511, %v3317
    %v3513 = vmul.f32 %v3512, %v3511
    %v3514 = vmul.f32 0.5, %v3513
    %v3515 = vsub.f32 1.5, %v3514
    %v3516 = vmul.f32 %v3511, %v3515
    %vm3517 = vweird.f32 %v3317
    %vm3518 = vweird.f32 %v3511
    %vm3519 = vmor %vm3517, %vm3518
    %v3520 = vsel %vm3519, %v3511, %v3516
    %v3521 = vrsqrt.pop %v3318
    %v3522 = vmul.f32 %v3521, %v3318
    %v3523 = vmul.f32 %v3522, %v3521
    %v3524 = vmul.f32 0.5, %v3523
    %v3525 = vsub.f32 1.5, %v3524
    %v3526 = vmul.f32 %v3521, %v3525
    %vm3527 = vweird.f32 %v3318
    %vm3528 = vweird.f32 %v3521
    %vm3529 = vmor %vm3527, %vm3528
    %v3530 = vsel %vm3529, %v3521, %v3526
    %v3531 = vrsqrt.pop %v3319
    %v3532 = vmul.f32 %v3531, %v3319
    %v3533 = vmul.f32 %v3532, %v3531
    %v3534 = vmul.f32 0.5, %v3533
    %v3535 = vsub.f32 1.5, %v3534
    %v3536 = vmul.f32 %v3531, %v3535
    %vm3537 = vweird.f32 %v3319
    %vm3538 = vweird.f32 %v3531
    %vm3539 = vmor %vm3537, %vm3538
    %v3540 = vsel %vm3539, %v3531, %v3536
    %v3541 = vrsqrt.pop %v3320
    %v3542 = vmul.f32 %v3541, %v3320
    %v3543 = vmul.f32 %v3542, %v3541
    %v3544 = vmul.f32 0.5, %v3543
    %v3545 = vsub.f32 1.5, %v3544
    %v3546 = vmul.f32 %v3541, %v3545
    %vm3547 = vweird.f32 %v3320
    %vm3548 = vweird.f32 %v3541
    %vm3549 = vmor %vm3547, %vm3548
    %v3550 = vsel %vm3549, %v3541, %v3546
    %v3551 = vrsqrt.pop %v3321
    %v3552 = vmul.f32 %v3551, %v3321
    %v3553 = vmul.f32 %v3552, %v3551
    %v3554 = vmul.f32 0.5, %v3553
    %v3555 = vsub.f32 1.5, %v3554
    %v3556 = vmul.f32 %v3551, %v3555
    %vm3557 = vweird.f32 %v3321
    %vm3558 = vweird.f32 %v3551
    %vm3559 = vmor %vm3557, %vm3558
    %v3560 = vsel %vm3559, %v3551, %v3556
    %v3561 = vrsqrt.pop %v3322
    %v3562 = vmul.f32 %v3561, %v3322
    %v3563 = vmul.f32 %v3562, %v3561
    %v3564 = vmul.f32 0.5, %v3563
    %v3565 = vsub.f32 1.5, %v3564
    %v3566 = vmul.f32 %v3561, %v3565
    %vm3567 = vweird.f32 %v3322
    %vm3568 = vweird.f32 %v3561
    %vm3569 = vmor %vm3567, %vm3568
    %v3570 = vsel %vm3569, %v3561, %v3566
    %v3571 = vrsqrt.pop %v3323
    %v3572 = vmul.f32 %v3571, %v3323
    %v3573 = vmul.f32 %v3572, %v3571
    %v3574 = vmul.f32 0.5, %v3573
    %v3575 = vsub.f32 1.5, %v3574
    %v3576 = vmul.f32 %v3571, %v3575
    %vm3577 = vweird.f32 %v3323
    %vm3578 = vweird.f32 %v3571
    %vm3579 = vmor %vm3577, %vm3578
    %v3580 = vsel %vm3579, %v3571, %v3576
    %v3581 = vrsqrt.pop %v3324
    %v3582 = vmul.f32 %v3581, %v3324
    %v3583 = vmul.f32 %v3582, %v3581
    %v3584 = vmul.f32 0.5, %v3583
    %v3585 = vsub.f32 1.5, %v3584
    %v3586 = vmul.f32 %v3581, %v3585
    %vm3587 = vweird.f32 %v3324
    %vm3588 = vweird.f32 %v3581
    %vm3589 = vmor %vm3587, %vm3588
    %v3590 = vsel %vm3589, %v3581, %v3586
    %v3591 = vrsqrt.pop %v3325
    %v3592 = vmul.f32 %v3591, %v3325
    %v3593 = vmul.f32 %v3592, %v3591
    %v3594 = vmul.f32 0.5, %v3593
    %v3595 = vsub.f32 1.5, %v3594
    %v3596 = vmul.f32 %v3591, %v3595
    %vm3597 = vweird.f32 %v3325
    %vm3598 = vweird.f32 %v3591
    %vm3599 = vmor %vm3597, %vm3598
    %v3600 = vsel %vm3599, %v3591, %v3596
    %v3601 = vrsqrt.pop %v3326
    %v3602 = vmul.f32 %v3601, %v3326
    %v3603 = vmul.f32 %v3602, %v3601
    %v3604 = vmul.f32 0.5, %v3603
    %v3605 = vsub.f32 1.5, %v3604
    %v3606 = vmul.f32 %v3601, %v3605
    %vm3607 = vweird.f32 %v3326
    %vm3608 = vweird.f32 %v3601
    %vm3609 = vmor %vm3607, %vm3608
    %v3610 = vsel %vm3609, %v3601, %v3606
    %v3611 = vrsqrt.pop %v3327
    %v3612 = vmul.f32 %v3611, %v3327
    %v3613 = vmul.f32 %v3612, %v3611
    %v3614 = vmul.f32 0.5, %v3613
    %v3615 = vsub.f32 1.5, %v3614
    %v3616 = vmul.f32 %v3611, %v3615
    %vm3617 = vweird.f32 %v3327
    %vm3618 = vweird.f32 %v3611
    %vm3619 = vmor %vm3617, %vm3618
    %v3620 = vsel %vm3619, %v3611, %v3616
    %v3621 = vrsqrt.pop %v3328
    %v3622 = vmul.f32 %v3621, %v3328
    %v3623 = vmul.f32 %v3622, %v3621
    %v3624 = vmul.f32 0.5, %v3623
    %v3625 = vsub.f32 1.5, %v3624
    %v3626 = vmul.f32 %v3621, %v3625
    %vm3627 = vweird.f32 %v3328
    %vm3628 = vweird.f32 %v3621
    %vm3629 = vmor %vm3627, %vm3628
    %v3630 = vsel %vm3629, %v3621, %v3626
    %v3631 = vrsqrt.pop %v3329
    %v3632 = vmul.f32 %v3631, %v3329
    %v3633 = vmul.f32 %v3632, %v3631
    %v3634 = vmul.f32 0.5, %v3633
    %v3635 = vsub.f32 1.5, %v3634
    %v3636 = vmul.f32 %v3631, %v3635
    %vm3637 = vweird.f32 %v3329
    %vm3638 = vweird.f32 %v3631
    %vm3639 = vmor %vm3637, %vm3638
    %v3640 = vsel %vm3639, %v3631, %v3636
    %v3641 = vrsqrt.pop %v3330
    %v3642 = vmul.f32 %v3641, %v3330
    %v3643 = vmul.f32 %v3642, %v3641
    %v3644 = vmul.f32 0.5, %v3643
    %v3645 = vsub.f32 1.5, %v3644
    %v3646 = vmul.f32 %v3641, %v3645
    %vm3647 = vweird.f32 %v3330
    %vm3648 = vweird.f32 %v3641
    %vm3649 = vmor %vm3647, %vm3648
    %v3650 = vsel %vm3649, %v3641, %v3646
    %v3651 = vmul.f32 %v3139, %v3340
    %v3652 = vmul.f32 %v3140, %v3350
    %v3653 = vmul.f32 %v3141, %v3360
    %v3654 = vmul.f32 %v3142, %v3370
    %v3655 = vmul.f32 %v3143, %v3380
    %v3656 = vmul.f32 %v3144, %v3390
    %v3657 = vmul.f32 %v3145, %v3400
    %v3658 = vmul.f32 %v3146, %v3410
    %v3659 = vmul.f32 %v3147, %v3420
    %v3660 = vmul.f32 %v3148, %v3430
    %v3661 = vmul.f32 %v3149, %v3440
    %v3662 = vmul.f32 %v3150, %v3450
    %v3663 = vmul.f32 %v3151, %v3460
    %v3664 = vmul.f32 %v3152, %v3470
    %v3665 = vmul.f32 %v3153, %v3480
    %v3666 = vmul.f32 %v3154, %v3490
    %v3667 = vmul.f32 %v3155, %v3500
    %v3668 = vmul.f32 %v3156, %v3510
    %v3669 = vmul.f32 %v3157, %v3520
    %v3670 = vmul.f32 %v3158, %v3530
    %v3671 = vmul.f32 %v3159, %v3540
    %v3672 = vmul.f32 %v3160, %v3550
    %v3673 = vmul.f32 %v3161, %v3560
    %v3674 = vmul.f32 %v3162, %v3570
    %v3675 = vmul.f32 %v3163, %v3580
    %v3676 = vmul.f32 %v3164, %v3590
    %v3677 = vmul.f32 %v3165, %v3600
    %v3678 = vmul.f32 %v3166, %v3610
    %v3679 = vmul.f32 %v3167, %v3620
    %v3680 = vmul.f32 %v3168, %v3630
    %v3681 = vmul.f32 %v3169, %v3640
    %v3682 = vmul.f32 %v3170, %v3650
    %v3683 = vld [vmem:[%s6] sm:$0x1]
    %v3685 = vperm.slane %v3683, 0
    %v3687 = vmul.f32 %v3651, %v3685
    %v3688 = vmul.f32 %v3652, %v3685
    %v3689 = vmul.f32 %v3653, %v3685
    %v3690 = vmul.f32 %v3654, %v3685
    %v3691 = vmul.f32 %v3655, %v3685
    %v3692 = vmul.f32 %v3656, %v3685
    %v3693 = vmul.f32 %v3657, %v3685
    %v3694 = vmul.f32 %v3658, %v3685
    %v3695 = vmul.f32 %v3659, %v3685
    %v3696 = vmul.f32 %v3660, %v3685
    %v3697 = vmul.f32 %v3661, %v3685
    %v3698 = vmul.f32 %v3662, %v3685
    %v3699 = vmul.f32 %v3663, %v3685
    %v3700 = vmul.f32 %v3664, %v3685
    %v3701 = vmul.f32 %v3665, %v3685
    %v3702 = vmul.f32 %v3666, %v3685
    %v3703 = vmul.f32 %v3667, %v3685
    %v3704 = vmul.f32 %v3668, %v3685
    %v3705 = vmul.f32 %v3669, %v3685
    %v3706 = vmul.f32 %v3670, %v3685
    %v3707 = vmul.f32 %v3671, %v3685
    %v3708 = vmul.f32 %v3672, %v3685
    %v3709 = vmul.f32 %v3673, %v3685
    %v3710 = vmul.f32 %v3674, %v3685
    %v3711 = vmul.f32 %v3675, %v3685
    %v3712 = vmul.f32 %v3676, %v3685
    %v3713 = vmul.f32 %v3677, %v3685
    %v3714 = vmul.f32 %v3678, %v3685
    %v3715 = vmul.f32 %v3679, %v3685
    %v3716 = vmul.f32 %v3680, %v3685
    %v3717 = vmul.f32 %v3681, %v3685
    %v3718 = vmul.f32 %v3682, %v3685
    %v3719 = vld [vmem:[%s7] sm:$0x1]
    %v3721 = vperm.slane %v3719, 0
    %v3723 = vadd.f32 %v3687, %v3721
    %v3724 = vadd.f32 %v3688, %v3721
    %v3725 = vadd.f32 %v3689, %v3721
    %v3726 = vadd.f32 %v3690, %v3721
    %v3727 = vadd.f32 %v3691, %v3721
    %v3728 = vadd.f32 %v3692, %v3721
    %v3729 = vadd.f32 %v3693, %v3721
    %v3730 = vadd.f32 %v3694, %v3721
    %v3731 = vadd.f32 %v3695, %v3721
    %v3732 = vadd.f32 %v3696, %v3721
    %v3733 = vadd.f32 %v3697, %v3721
    %v3734 = vadd.f32 %v3698, %v3721
    %v3735 = vadd.f32 %v3699, %v3721
    %v3736 = vadd.f32 %v3700, %v3721
    %v3737 = vadd.f32 %v3701, %v3721
    %v3738 = vadd.f32 %v3702, %v3721
    %v3739 = vadd.f32 %v3703, %v3721
    %v3740 = vadd.f32 %v3704, %v3721
    %v3741 = vadd.f32 %v3705, %v3721
    %v3742 = vadd.f32 %v3706, %v3721
    %v3743 = vadd.f32 %v3707, %v3721
    %v3744 = vadd.f32 %v3708, %v3721
    %v3745 = vadd.f32 %v3709, %v3721
    %v3746 = vadd.f32 %v3710, %v3721
    %v3747 = vadd.f32 %v3711, %v3721
    %v3748 = vadd.f32 %v3712, %v3721
    %v3749 = vadd.f32 %v3713, %v3721
    %v3750 = vadd.f32 %v3714, %v3721
    %v3751 = vadd.f32 %v3715, %v3721
    %v3752 = vadd.f32 %v3716, %v3721
    %v3753 = vadd.f32 %v3717, %v3721
    %v3754 = vadd.f32 %v3718, %v3721
    %v3755 = vpack.c.bf16 %v3724, %v3723
    %v3756 = vpack.c.bf16 %v3726, %v3725
    %v3757 = vpack.c.bf16 %v3728, %v3727
    %v3758 = vpack.c.bf16 %v3730, %v3729
    %v3759 = vpack.c.bf16 %v3732, %v3731
    %v3760 = vpack.c.bf16 %v3734, %v3733
    %v3761 = vpack.c.bf16 %v3736, %v3735
    %v3762 = vpack.c.bf16 %v3738, %v3737
    %v3763 = vpack.c.bf16 %v3740, %v3739
    %v3764 = vpack.c.bf16 %v3742, %v3741
    %v3765 = vpack.c.bf16 %v3744, %v3743
    %v3766 = vpack.c.bf16 %v3746, %v3745
    %v3767 = vpack.c.bf16 %v3748, %v3747
    %v3768 = vpack.c.bf16 %v3750, %v3749
    %v3769 = vpack.c.bf16 %v3752, %v3751
    %v3770 = vpack.c.bf16 %v3754, %v3753
    %v3771 = vld [vmem:[%s8] sm:$0xf]
    %v3772 = vld [vmem:[%s8 + $0x4] sm:$0xf]
    %v3773 = vld [vmem:[%s8 + $0x8] sm:$0xf]
    %v3774 = vld [vmem:[%s8 + $0xc] sm:$0xf]
    %v3775 = vld [vmem:[%s8 + $0x10] sm:$0xf]
    %v3776 = vld [vmem:[%s8 + $0x14] sm:$0xf]
    %v3777 = vld [vmem:[%s8 + $0x18] sm:$0xf]
    %v3778 = vld [vmem:[%s8 + $0x1c] sm:$0xf]
    %v3779 = vld [vmem:[%s8 + $0x20] sm:$0xf]
    %v3780 = vld [vmem:[%s8 + $0x24] sm:$0xf]
    %v3781 = vld [vmem:[%s8 + $0x28] sm:$0xf]
    %v3782 = vld [vmem:[%s8 + $0x2c] sm:$0xf]
    %v3783 = vld [vmem:[%s8 + $0x30] sm:$0xf]
    %v3784 = vld [vmem:[%s8 + $0x34] sm:$0xf]
    %v3785 = vld [vmem:[%s8 + $0x38] sm:$0xf]
    %v3786 = vld [vmem:[%s8 + $0x3c] sm:$0xf]
    %v3787 = vld [vmem:[%s9] sm:$0x1]
    %v3789 = vperm.slane %v3787, 0
    %v3807 = vunpack.c.l.b16 %v3771
    %v3808 = vunpack.c.l.b16 %v3772
    %v3809 = vunpack.c.l.b16 %v3773
    %v3810 = vunpack.c.l.b16 %v3774
    %v3811 = vunpack.c.l.b16 %v3775
    %v3812 = vunpack.c.l.b16 %v3776
    %v3813 = vunpack.c.l.b16 %v3777
    %v3814 = vunpack.c.l.b16 %v3778
    %v3815 = vunpack.c.l.b16 %v3779
    %v3816 = vunpack.c.l.b16 %v3780
    %v3817 = vunpack.c.l.b16 %v3781
    %v3818 = vunpack.c.l.b16 %v3782
    %v3819 = vunpack.c.l.b16 %v3783
    %v3820 = vunpack.c.l.b16 %v3784
    %v3821 = vunpack.c.l.b16 %v3785
    %v3822 = vunpack.c.l.b16 %v3786
    %v3823 = vpack.c.b16 %v3808, %v3807
    %v3824 = vpack.c.b16 %v3810, %v3809
    %v3825 = vpack.c.b16 %v3812, %v3811
    %v3826 = vpack.c.b16 %v3814, %v3813
    %v3827 = vpack.c.b16 %v3816, %v3815
    %v3828 = vpack.c.b16 %v3818, %v3817
    %v3829 = vpack.c.b16 %v3820, %v3819
    %v3830 = vpack.c.b16 %v3822, %v3821
    %3839 = vmatpush.bf16.msra.mxu0 %v3830
    %3840 = vmatpush.bf16.msra.mxu0 %v3829
    %3841 = vmatpush.bf16.msra.mxu0 %v3828
    %3842 = vmatpush.bf16.msra.mxu0 %v3827
    %3843 = vmatpush.bf16.msra.mxu0 %v3826
    %3844 = vmatpush.bf16.msra.mxu0 %v3825
    %3845 = vmatpush.bf16.msra.mxu0 %v3824
    %3846 = vmatpush.bf16.msra.mxu0 %v3823
    %3847 = vmatmul.bf16.gmra.mxu0 %v3755
    %v3848 = vpop.f32.mrf.mxu0
    %v3849 = vadd.f32 %v3789, %v3848
    %v3850 = vpop.f32.mrf.mxu0
    %v3851 = vadd.f32 %v3789, %v3850
    %3852 = vmatmul.bf16.gmra.mxu0 %v3756
    %v3853 = vpop.f32.mrf.mxu0
    %v3854 = vadd.f32 %v3789, %v3853
    %v3855 = vpop.f32.mrf.mxu0
    %v3856 = vadd.f32 %v3789, %v3855
    %3857 = vmatmul.bf16.gmra.mxu0 %v3757
    %v3858 = vpop.f32.mrf.mxu0
    %v3859 = vadd.f32 %v3789, %v3858
    %v3860 = vpop.f32.mrf.mxu0
    %v3861 = vadd.f32 %v3789, %v3860
    %3862 = vmatmul.bf16.gmra.mxu0 %v3758
    %v3863 = vpop.f32.mrf.mxu0
    %v3864 = vadd.f32 %v3789, %v3863
    %v3865 = vpop.f32.mrf.mxu0
    %v3866 = vadd.f32 %v3789, %v3865
    %3867 = vmatmul.bf16.gmra.mxu0 %v3759
    %v3868 = vpop.f32.mrf.mxu0
    %v3869 = vadd.f32 %v3789, %v3868
    %v3870 = vpop.f32.mrf.mxu0
    %v3871 = vadd.f32 %v3789, %v3870
    %3872 = vmatmul.bf16.gmra.mxu0 %v3760
    %v3873 = vpop.f32.mrf.mxu0
    %v3874 = vadd.f32 %v3789, %v3873
    %v3875 = vpop.f32.mrf.mxu0
    %v3876 = vadd.f32 %v3789, %v3875
    %3877 = vmatmul.bf16.gmra.mxu0 %v3761
    %v3878 = vpop.f32.mrf.mxu0
    %v3879 = vadd.f32 %v3789, %v3878
    %v3880 = vpop.f32.mrf.mxu0
    %v3881 = vadd.f32 %v3789, %v3880
    %3882 = vmatmul.bf16.gmra.mxu0 %v3762
    %v3883 = vpop.f32.mrf.mxu0
    %v3884 = vadd.f32 %v3789, %v3883
    %v3885 = vpop.f32.mrf.mxu0
    %v3886 = vadd.f32 %v3789, %v3885
    %3887 = vmatmul.bf16.gmra.mxu0 %v3763
    %v3888 = vpop.f32.mrf.mxu0
    %v3889 = vadd.f32 %v3789, %v3888
    %v3890 = vpop.f32.mrf.mxu0
    %v3891 = vadd.f32 %v3789, %v3890
    %3892 = vmatmul.bf16.gmra.mxu0 %v3764
    %v3893 = vpop.f32.mrf.mxu0
    %v3894 = vadd.f32 %v3789, %v3893
    %v3895 = vpop.f32.mrf.mxu0
    %v3896 = vadd.f32 %v3789, %v3895
    %3897 = vmatmul.bf16.gmra.mxu0 %v3765
    %v3898 = vpop.f32.mrf.mxu0
    %v3899 = vadd.f32 %v3789, %v3898
    %v3900 = vpop.f32.mrf.mxu0
    %v3901 = vadd.f32 %v3789, %v3900
    %3902 = vmatmul.bf16.gmra.mxu0 %v3766
    %v3903 = vpop.f32.mrf.mxu0
    %v3904 = vadd.f32 %v3789, %v3903
    %v3905 = vpop.f32.mrf.mxu0
    %v3906 = vadd.f32 %v3789, %v3905
    %3907 = vmatmul.bf16.gmra.mxu0 %v3767
    %v3908 = vpop.f32.mrf.mxu0
    %v3909 = vadd.f32 %v3789, %v3908
    %v3910 = vpop.f32.mrf.mxu0
    %v3911 = vadd.f32 %v3789, %v3910
    %3912 = vmatmul.bf16.gmra.mxu0 %v3768
    %v3913 = vpop.f32.mrf.mxu0
    %v3914 = vadd.f32 %v3789, %v3913
    %v3915 = vpop.f32.mrf.mxu0
    %v3916 = vadd.f32 %v3789, %v3915
    %3917 = vmatmul.bf16.gmra.mxu0 %v3769
    %v3918 = vpop.f32.mrf.mxu0
    %v3919 = vadd.f32 %v3789, %v3918
    %v3920 = vpop.f32.mrf.mxu0
    %v3921 = vadd.f32 %v3789, %v3920
    %3922 = vmatmul.bf16.gmra.mxu0 %v3770
    %v3923 = vpop.f32.mrf.mxu0
    %v3924 = vadd.f32 %v3789, %v3923
    %v3925 = vpop.f32.mrf.mxu0
    %v3926 = vadd.f32 %v3789, %v3925
    %3927 = vdwg.mxu0
    %v3928 = vmul.f32 %v3849, 0.5
    %v3929 = vmul.f32 %v3851, 0.5
    %v3930 = vmul.f32 %v3854, 0.5
    %v3931 = vmul.f32 %v3856, 0.5
    %v3932 = vmul.f32 %v3859, 0.5
    %v3933 = vmul.f32 %v3861, 0.5
    %v3934 = vmul.f32 %v3864, 0.5
    %v3935 = vmul.f32 %v3866, 0.5
    %v3936 = vmul.f32 %v3869, 0.5
    %v3937 = vmul.f32 %v3871, 0.5
    %v3938 = vmul.f32 %v3874, 0.5
    %v3939 = vmul.f32 %v3876, 0.5
    %v3940 = vmul.f32 %v3879, 0.5
    %v3941 = vmul.f32 %v3881, 0.5
    %v3942 = vmul.f32 %v3884, 0.5
    %v3943 = vmul.f32 %v3886, 0.5
    %v3944 = vmul.f32 %v3889, 0.5
    %v3945 = vmul.f32 %v3891, 0.5
    %v3946 = vmul.f32 %v3894, 0.5
    %v3947 = vmul.f32 %v3896, 0.5
    %v3948 = vmul.f32 %v3899, 0.5
    %v3949 = vmul.f32 %v3901, 0.5
    %v3950 = vmul.f32 %v3904, 0.5
    %v3951 = vmul.f32 %v3906, 0.5
    %v3952 = vmul.f32 %v3909, 0.5
    %v3953 = vmul.f32 %v3911, 0.5
    %v3954 = vmul.f32 %v3914, 0.5
    %v3955 = vmul.f32 %v3916, 0.5
    %v3956 = vmul.f32 %v3919, 0.5
    %v3957 = vmul.f32 %v3921, 0.5
    %v3958 = vmul.f32 %v3924, 0.5
    %v3959 = vmul.f32 %v3926, 0.5
    %v3960 = vmul.f32 %v3849, 0.044715
    %v3961 = vmul.f32 %v3851, 0.044715
    %v3962 = vmul.f32 %v3854, 0.044715
    %v3963 = vmul.f32 %v3856, 0.044715
    %v3964 = vmul.f32 %v3859, 0.044715
    %v3965 = vmul.f32 %v3861, 0.044715
    %v3966 = vmul.f32 %v3864, 0.044715
    %v3967 = vmul.f32 %v3866, 0.044715
    %v3968 = vmul.f32 %v3869, 0.044715
    %v3969 = vmul.f32 %v3871, 0.044715
    %v3970 = vmul.f32 %v3874, 0.044715
    %v3971 = vmul.f32 %v3876, 0.044715
    %v3972 = vmul.f32 %v3879, 0.044715
    %v3973 = vmul.f32 %v3881, 0.044715
    %v3974 = vmul.f32 %v3884, 0.044715
    %v3975 = vmul.f32 %v3886, 0.044715
    %v3976 = vmul.f32 %v3889, 0.044715
    %v3977 = vmul.f32 %v3891, 0.044715
    %v3978 = vmul.f32 %v3894, 0.044715
    %v3979 = vmul.f32 %v3896, 0.044715
    %v3980 = vmul.f32 %v3899, 0.044715
    %v3981 = vmul.f32 %v3901, 0.044715
    %v3982 = vmul.f32 %v3904, 0.044715
    %v3983 = vmul.f32 %v3906, 0.044715
    %v3984 = vmul.f32 %v3909, 0.044715
    %v3985 = vmul.f32 %v3911, 0.044715
    %v3986 = vmul.f32 %v3914, 0.044715
    %v3987 = vmul.f32 %v3916, 0.044715
    %v3988 = vmul.f32 %v3919, 0.044715
    %v3989 = vmul.f32 %v3921, 0.044715
    %v3990 = vmul.f32 %v3924, 0.044715
    %v3991 = vmul.f32 %v3926, 0.044715
    %v3992 = vmul.f32 %v3960, %v3849
    %v3993 = vmul.f32 %v3961, %v3851
    %v3994 = vmul.f32 %v3962, %v3854
    %v3995 = vmul.f32 %v3963, %v3856
    %v3996 = vmul.f32 %v3964, %v3859
    %v3997 = vmul.f32 %v3965, %v3861
    %v3998 = vmul.f32 %v3966, %v3864
    %v3999 = vmul.f32 %v3967, %v3866
    %v4000 = vmul.f32 %v3968, %v3869
    %v4001 = vmul.f32 %v3969, %v3871
    %v4002 = vmul.f32 %v3970, %v3874
    %v4003 = vmul.f32 %v3971, %v3876
    %v4004 = vmul.f32 %v3972, %v3879
    %v4005 = vmul.f32 %v3973, %v3881
    %v4006 = vmul.f32 %v3974, %v3884
    %v4007 = vmul.f32 %v3975, %v3886
    %v4008 = vmul.f32 %v3976, %v3889
    %v4009 = vmul.f32 %v3977, %v3891
    %v4010 = vmul.f32 %v3978, %v3894
    %v4011 = vmul.f32 %v3979, %v3896
    %v4012 = vmul.f32 %v3980, %v3899
    %v4013 = vmul.f32 %v3981, %v3901
    %v4014 = vmul.f32 %v3982, %v3904
    %v4015 = vmul.f32 %v3983, %v3906
    %v4016 = vmul.f32 %v3984, %v3909
    %v4017 = vmul.f32 %v3985, %v3911
    %v4018 = vmul.f32 %v3986, %v3914
    %v4019 = vmul.f32 %v3987, %v3916
    %v4020 = vmul.f32 %v3988, %v3919
    %v4021 = vmul.f32 %v3989, %v3921
    %v4022 = vmul.f32 %v3990, %v3924
    %v4023 = vmul.f32 %v3991, %v3926
    %v4024 = vmul.f32 %v3992, %v3849
    %v4025 = vmul.f32 %v3993, %v3851
    %v4026 = vmul.f32 %v3994, %v3854
    %v4027 = vmul.f32 %v3995, %v3856
    %v4028 = vmul.f32 %v3996, %v3859
    %v4029 = vmul.f32 %v3997, %v3861
    %v4030 = vmul.f32 %v3998, %v3864
    %v4031 = vmul.f32 %v3999, %v3866
    %v4032 = vmul.f32 %v4000, %v3869
    %v4033 = vmul.f32 %v4001, %v3871
    %v4034 = vmul.f32 %v4002, %v3874
    %v4035 = vmul.f32 %v4003, %v3876
    %v4036 = vmul.f32 %v4004, %v3879
    %v4037 = vmul.f32 %v4005, %v3881
    %v4038 = vmul.f32 %v4006, %v3884
    %v4039 = vmul.f32 %v4007, %v3886
    %v4040 = vmul.f32 %v4008, %v3889
    %v4041 = vmul.f32 %v4009, %v3891
    %v4042 = vmul.f32 %v4010, %v3894
    %v4043 = vmul.f32 %v4011, %v3896
    %v4044 = vmul.f32 %v4012, %v3899
    %v4045 = vmul.f32 %v4013, %v3901
    %v4046 = vmul.f32 %v4014, %v3904
    %v4047 = vmul.f32 %v4015, %v3906
    %v4048 = vmul.f32 %v4016, %v3909
    %v4049 = vmul.f32 %v4017, %v3911
    %v4050 = vmul.f32 %v4018, %v3914
    %v4051 = vmul.f32 %v4019, %v3916
    %v4052 = vmul.f32 %v4020, %v3919
    %v4053 = vmul.f32 %v4021, %v3921
    %v4054 = vmul.f32 %v4022, %v3924
    %v4055 = vmul.f32 %v4023, %v3926
    %v4056 = vadd.f32 %v3849, %v4024
    %v4057 = vadd.f32 %v3851, %v4025
    %v4058 = vadd.f32 %v3854, %v4026
    %v4059 = vadd.f32 %v3856, %v4027
    %v4060 = vadd.f32 %v3859, %v4028
    %v4061 = vadd.f32 %v3861, %v4029
    %v4062 = vadd.f32 %v3864, %v4030
    %v4063 = vadd.f32 %v3866, %v4031
    %v4064 = vadd.f32 %v3869, %v4032
    %v4065 = vadd.f32 %v3871, %v4033
    %v4066 = vadd.f32 %v3874, %v4034
    %v4067 = vadd.f32 %v3876, %v4035
    %v4068 = vadd.f32 %v3879, %v4036
    %v4069 = vadd.f32 %v3881, %v4037
    %v4070 = vadd.f32 %v3884, %v4038
    %v4071 = vadd.f32 %v3886, %v4039
    %v4072 = vadd.f32 %v3889, %v4040
    %v4073 = vadd.f32 %v3891, %v4041
    %v4074 = vadd.f32 %v3894, %v4042
    %v4075 = vadd.f32 %v3896, %v4043
    %v4076 = vadd.f32 %v3899, %v4044
    %v4077 = vadd.f32 %v3901, %v4045
    %v4078 = vadd.f32 %v3904, %v4046
    %v4079 = vadd.f32 %v3906, %v4047
    %v4080 = vadd.f32 %v3909, %v4048
    %v4081 = vadd.f32 %v3911, %v4049
    %v4082 = vadd.f32 %v3914, %v4050
    %v4083 = vadd.f32 %v3916, %v4051
    %v4084 = vadd.f32 %v3919, %v4052
    %v4085 = vadd.f32 %v3921, %v4053
    %v4086 = vadd.f32 %v3924, %v4054
    %v4087 = vadd.f32 %v3926, %v4055
    %v4088 = vmul.f32 %v4056, 0.7978846
    %v4089 = vmul.f32 %v4057, 0.7978846
    %v4090 = vmul.f32 %v4058, 0.7978846
    %v4091 = vmul.f32 %v4059, 0.7978846
    %v4092 = vmul.f32 %v4060, 0.7978846
    %v4093 = vmul.f32 %v4061, 0.7978846
    %v4094 = vmul.f32 %v4062, 0.7978846
    %v4095 = vmul.f32 %v4063, 0.7978846
    %v4096 = vmul.f32 %v4064, 0.7978846
    %v4097 = vmul.f32 %v4065, 0.7978846
    %v4098 = vmul.f32 %v4066, 0.7978846
    %v4099 = vmul.f32 %v4067, 0.7978846
    %v4100 = vmul.f32 %v4068, 0.7978846
    %v4101 = vmul.f32 %v4069, 0.7978846
    %v4102 = vmul.f32 %v4070, 0.7978846
    %v4103 = vmul.f32 %v4071, 0.7978846
    %v4104 = vmul.f32 %v4072, 0.7978846
    %v4105 = vmul.f32 %v4073, 0.7978846
    %v4106 = vmul.f32 %v4074, 0.7978846
    %v4107 = vmul.f32 %v4075, 0.7978846
    %v4108 = vmul.f32 %v4076, 0.7978846
    %v4109 = vmul.f32 %v4077, 0.7978846
    %v4110 = vmul.f32 %v4078, 0.7978846
    %v4111 = vmul.f32 %v4079, 0.7978846
    %v4112 = vmul.f32 %v4080, 0.7978846
    %v4113 = vmul.f32 %v4081, 0.7978846
    %v4114 = vmul.f32 %v4082, 0.7978846
    %v4115 = vmul.f32 %v4083, 0.7978846
    %v4116 = vmul.f32 %v4084, 0.7978846
    %v4117 = vmul.f32 %v4085, 0.7978846
    %v4118 = vmul.f32 %v4086, 0.7978846
    %v4119 = vmul.f32 %v4087, 0.7978846
    %v4120 = vtanh.pop %v4088
    %v4121 = vtanh.pop %v4089
    %v4122 = vtanh.pop %v4090
    %v4123 = vtanh.pop %v4091
    %v4124 = vtanh.pop %v4092
    %v4125 = vtanh.pop %v4093
    %v4126 = vtanh.pop %v4094
    %v4127 = vtanh.pop %v4095
    %v4128 = vtanh.pop %v4096
    %v4129 = vtanh.pop %v4097
    %v4130 = vtanh.pop %v4098
    %v4131 = vtanh.pop %v4099
    %v4132 = vtanh.pop %v4100
    %v4133 = vtanh.pop %v4101
    %v4134 = vtanh.pop %v4102
    %v4135 = vtanh.pop %v4103
    %v4136 = vtanh.pop %v4104
    %v4137 = vtanh.pop %v4105
    %v4138 = vtanh.pop %v4106
    %v4139 = vtanh.pop %v4107
    %v4140 = vtanh.pop %v4108
    %v4141 = vtanh.pop %v4109
    %v4142 = vtanh.pop %v4110
    %v4143 = vtanh.pop %v4111
    %v4144 = vtanh.pop %v4112
    %v4145 = vtanh.pop %v4113
    %v4146 = vtanh.pop %v4114
    %v4147 = vtanh.pop %v4115
    %v4148 = vtanh.pop %v4116
    %v4149 = vtanh.pop %v4117
    %v4150 = vtanh.pop %v4118
    %v4151 = vtanh.pop %v4119
    %v4152 = vadd.f32 %v4120, 1.0
    %v4153 = vadd.f32 %v4121, 1.0
    %v4154 = vadd.f32 %v4122, 1.0
    %v4155 = vadd.f32 %v4123, 1.0
    %v4156 = vadd.f32 %v4124, 1.0
    %v4157 = vadd.f32 %v4125, 1.0
    %v4158 = vadd.f32 %v4126, 1.0
    %v4159 = vadd.f32 %v4127, 1.0
    %v4160 = vadd.f32 %v4128, 1.0
    %v4161 = vadd.f32 %v4129, 1.0
    %v4162 = vadd.f32 %v4130, 1.0
    %v4163 = vadd.f32 %v4131, 1.0
    %v4164 = vadd.f32 %v4132, 1.0
    %v4165 = vadd.f32 %v4133, 1.0
    %v4166 = vadd.f32 %v4134, 1.0
    %v4167 = vadd.f32 %v4135, 1.0
    %v4168 = vadd.f32 %v4136, 1.0
    %v4169 = vadd.f32 %v4137, 1.0
    %v4170 = vadd.f32 %v4138, 1.0
    %v4171 = vadd.f32 %v4139, 1.0
    %v4172 = vadd.f32 %v4140, 1.0
    %v4173 = vadd.f32 %v4141, 1.0
    %v4174 = vadd.f32 %v4142, 1.0
    %v4175 = vadd.f32 %v4143, 1.0
    %v4176 = vadd.f32 %v4144, 1.0
    %v4177 = vadd.f32 %v4145, 1.0
    %v4178 = vadd.f32 %v4146, 1.0
    %v4179 = vadd.f32 %v4147, 1.0
    %v4180 = vadd.f32 %v4148, 1.0
    %v4181 = vadd.f32 %v4149, 1.0
    %v4182 = vadd.f32 %v4150, 1.0
    %v4183 = vadd.f32 %v4151, 1.0
    %v4184 = vmul.f32 %v3928, %v4152
    %v4185 = vmul.f32 %v3929, %v4153
    %v4186 = vmul.f32 %v3930, %v4154
    %v4187 = vmul.f32 %v3931, %v4155
    %v4188 = vmul.f32 %v3932, %v4156
    %v4189 = vmul.f32 %v3933, %v4157
    %v4190 = vmul.f32 %v3934, %v4158
    %v4191 = vmul.f32 %v3935, %v4159
    %v4192 = vmul.f32 %v3936, %v4160
    %v4193 = vmul.f32 %v3937, %v4161
    %v4194 = vmul.f32 %v3938, %v4162
    %v4195 = vmul.f32 %v3939, %v4163
    %v4196 = vmul.f32 %v3940, %v4164
    %v4197 = vmul.f32 %v3941, %v4165
    %v4198 = vmul.f32 %v3942, %v4166
    %v4199 = vmul.f32 %v3943, %v4167
    %v4200 = vmul.f32 %v3944, %v4168
    %v4201 = vmul.f32 %v3945, %v4169
    %v4202 = vmul.f32 %v3946, %v4170
    %v4203 = vmul.f32 %v3947, %v4171
    %v4204 = vmul.f32 %v3948, %v4172
    %v4205 = vmul.f32 %v3949, %v4173
    %v4206 = vmul.f32 %v3950, %v4174
    %v4207 = vmul.f32 %v3951, %v4175
    %v4208 = vmul.f32 %v3952, %v4176
    %v4209 = vmul.f32 %v3953, %v4177
    %v4210 = vmul.f32 %v3954, %v4178
    %v4211 = vmul.f32 %v3955, %v4179
    %v4212 = vmul.f32 %v3956, %v4180
    %v4213 = vmul.f32 %v3957, %v4181
    %v4214 = vmul.f32 %v3958, %v4182
    %v4215 = vmul.f32 %v3959, %v4183
    %v4216 = vpack.c.bf16 %v4185, %v4184
    %v4217 = vpack.c.bf16 %v4187, %v4186
    %v4218 = vpack.c.bf16 %v4189, %v4188
    %v4219 = vpack.c.bf16 %v4191, %v4190
    %v4220 = vpack.c.bf16 %v4193, %v4192
    %v4221 = vpack.c.bf16 %v4195, %v4194
    %v4222 = vpack.c.bf16 %v4197, %v4196
    %v4223 = vpack.c.bf16 %v4199, %v4198
    %v4224 = vpack.c.bf16 %v4201, %v4200
    %v4225 = vpack.c.bf16 %v4203, %v4202
    %v4226 = vpack.c.bf16 %v4205, %v4204
    %v4227 = vpack.c.bf16 %v4207, %v4206
    %v4228 = vpack.c.bf16 %v4209, %v4208
    %v4229 = vpack.c.bf16 %v4211, %v4210
    %v4230 = vpack.c.bf16 %v4213, %v4212
    %v4231 = vpack.c.bf16 %v4215, %v4214
    %v4232 = vld [vmem:[%s10] sm:$0xf]
    %v4233 = vld [vmem:[%s10 + $0x4] sm:$0xf]
    %v4234 = vld [vmem:[%s10 + $0x8] sm:$0xf]
    %v4235 = vld [vmem:[%s10 + $0xc] sm:$0xf]
    %v4236 = vld [vmem:[%s10 + $0x10] sm:$0xf]
    %v4237 = vld [vmem:[%s10 + $0x14] sm:$0xf]
    %v4238 = vld [vmem:[%s10 + $0x18] sm:$0xf]
    %v4239 = vld [vmem:[%s10 + $0x1c] sm:$0xf]
    %v4240 = vld [vmem:[%s11] sm:$0x1]
    %v4242 = vperm.slane %v4240, 0
    %v4252 = vunpack.c.l.b16 %v4232
    %v4253 = vunpack.c.l.b16 %v4233
    %v4254 = vunpack.c.l.b16 %v4234
    %v4255 = vunpack.c.l.b16 %v4235
    %v4256 = vunpack.c.l.b16 %v4236
    %v4257 = vunpack.c.l.b16 %v4237
    %v4258 = vunpack.c.l.b16 %v4238
    %v4259 = vunpack.c.l.b16 %v4239
    %v4260 = vpack.c.b16 %v4253, %v4252
    %v4261 = vpack.c.b16 %v4255, %v4254
    %v4262 = vpack.c.b16 %v4257, %v4256
    %v4263 = vpack.c.b16 %v4259, %v4258
    %vm4268 = vcmask 523264
    %v4270 = vsel %vm4268, %v4216, 0
    %v4273 = vsel %vm4268, %v4217, 0
    %v4276 = vsel %vm4268, %v4218, 0
    %v4279 = vsel %vm4268, %v4219, 0
    %v4282 = vsel %vm4268, %v4220, 0
    %v4285 = vsel %vm4268, %v4221, 0
    %v4288 = vsel %vm4268, %v4222, 0
    %v4291 = vsel %vm4268, %v4223, 0
    %v4294 = vsel %vm4268, %v4224, 0
    %v4297 = vsel %vm4268, %v4225, 0
    %v4300 = vsel %vm4268, %v4226, 0
    %v4303 = vsel %vm4268, %v4227, 0
    %v4306 = vsel %vm4268, %v4228, 0
    %v4309 = vsel %vm4268, %v4229, 0
    %v4312 = vsel %vm4268, %v4230, 0
    %v4315 = vsel %vm4268, %v4231, 0
    %4317 = vmatpush.bf16.msra.mxu0 0
    %4318 = vmatpush.bf16.msra.mxu0 0
    %4319 = vmatpush.bf16.msra.mxu0 0
    %4320 = vmatpush.bf16.msra.mxu0 0
    %4321 = vmatpush.bf16.msra.mxu0 %v4263
    %4322 = vmatpush.bf16.msra.mxu0 %v4262
    %4323 = vmatpush.bf16.msra.mxu0 %v4261
    %4324 = vmatpush.bf16.msra.mxu0 %v4260
    %4325 = vmatmul.bf16.gmra.mxu0 %v4270
    %v4326 = vpop.f32.mrf.mxu0
    %v4327 = vadd.f32 %v4242, %v4326
    %v4328 = vpop.f32.mrf.mxu0
    %v4329 = vadd.f32 %v4242, %v4328
    %4330 = vmatmul.bf16.gmra.mxu0 %v4273
    %v4331 = vpop.f32.mrf.mxu0
    %v4332 = vadd.f32 %v4242, %v4331
    %v4333 = vpop.f32.mrf.mxu0
    %v4334 = vadd.f32 %v4242, %v4333
    %4335 = vmatmul.bf16.gmra.mxu0 %v4276
    %v4336 = vpop.f32.mrf.mxu0
    %v4337 = vadd.f32 %v4242, %v4336
    %v4338 = vpop.f32.mrf.mxu0
    %v4339 = vadd.f32 %v4242, %v4338
    %4340 = vmatmul.bf16.gmra.mxu0 %v4279
    %v4341 = vpop.f32.mrf.mxu0
    %v4342 = vadd.f32 %v4242, %v4341
    %v4343 = vpop.f32.mrf.mxu0
    %v4344 = vadd.f32 %v4242, %v4343
    %4345 = vmatmul.bf16.gmra.mxu0 %v4282
    %v4346 = vpop.f32.mrf.mxu0
    %v4347 = vadd.f32 %v4242, %v4346
    %v4348 = vpop.f32.mrf.mxu0
    %v4349 = vadd.f32 %v4242, %v4348
    %4350 = vmatmul.bf16.gmra.mxu0 %v4285
    %v4351 = vpop.f32.mrf.mxu0
    %v4352 = vadd.f32 %v4242, %v4351
    %v4353 = vpop.f32.mrf.mxu0
    %v4354 = vadd.f32 %v4242, %v4353
    %4355 = vmatmul.bf16.gmra.mxu0 %v4288
    %v4356 = vpop.f32.mrf.mxu0
    %v4357 = vadd.f32 %v4242, %v4356
    %v4358 = vpop.f32.mrf.mxu0
    %v4359 = vadd.f32 %v4242, %v4358
    %4360 = vmatmul.bf16.gmra.mxu0 %v4291
    %v4361 = vpop.f32.mrf.mxu0
    %v4362 = vadd.f32 %v4242, %v4361
    %v4363 = vpop.f32.mrf.mxu0
    %v4364 = vadd.f32 %v4242, %v4363
    %4365 = vmatmul.bf16.gmra.mxu0 %v4294
    %v4366 = vpop.f32.mrf.mxu0
    %v4367 = vadd.f32 %v4242, %v4366
    %v4368 = vpop.f32.mrf.mxu0
    %v4369 = vadd.f32 %v4242, %v4368
    %4370 = vmatmul.bf16.gmra.mxu0 %v4297
    %v4371 = vpop.f32.mrf.mxu0
    %v4372 = vadd.f32 %v4242, %v4371
    %v4373 = vpop.f32.mrf.mxu0
    %v4374 = vadd.f32 %v4242, %v4373
    %4375 = vmatmul.bf16.gmra.mxu0 %v4300
    %v4376 = vpop.f32.mrf.mxu0
    %v4377 = vadd.f32 %v4242, %v4376
    %v4378 = vpop.f32.mrf.mxu0
    %v4379 = vadd.f32 %v4242, %v4378
    %4380 = vmatmul.bf16.gmra.mxu0 %v4303
    %v4381 = vpop.f32.mrf.mxu0
    %v4382 = vadd.f32 %v4242, %v4381
    %v4383 = vpop.f32.mrf.mxu0
    %v4384 = vadd.f32 %v4242, %v4383
    %4385 = vmatmul.bf16.gmra.mxu0 %v4306
    %v4386 = vpop.f32.mrf.mxu0
    %v4387 = vadd.f32 %v4242, %v4386
    %v4388 = vpop.f32.mrf.mxu0
    %v4389 = vadd.f32 %v4242, %v4388
    %4390 = vmatmul.bf16.gmra.mxu0 %v4309
    %v4391 = vpop.f32.mrf.mxu0
    %v4392 = vadd.f32 %v4242, %v4391
    %v4393 = vpop.f32.mrf.mxu0
    %v4394 = vadd.f32 %v4242, %v4393
    %4395 = vmatmul.bf16.gmra.mxu0 %v4312
    %v4396 = vpop.f32.mrf.mxu0
    %v4397 = vadd.f32 %v4242, %v4396
    %v4398 = vpop.f32.mrf.mxu0
    %v4399 = vadd.f32 %v4242, %v4398
    %4400 = vmatmul.bf16.gmra.mxu0 %v4315
    %v4401 = vpop.f32.mrf.mxu0
    %v4402 = vadd.f32 %v4242, %v4401
    %v4403 = vpop.f32.mrf.mxu0
    %v4404 = vadd.f32 %v4242, %v4403
    %4405 = vdwg.mxu0
    %v4406 = vadd.f32 %v3723, %v4327
    %v4407 = vadd.f32 %v3724, %v4329
    %v4408 = vadd.f32 %v3725, %v4332
    %v4409 = vadd.f32 %v3726, %v4334
    %v4410 = vadd.f32 %v3727, %v4337
    %v4411 = vadd.f32 %v3728, %v4339
    %v4412 = vadd.f32 %v3729, %v4342
    %v4413 = vadd.f32 %v3730, %v4344
    %v4414 = vadd.f32 %v3731, %v4347
    %v4415 = vadd.f32 %v3732, %v4349
    %v4416 = vadd.f32 %v3733, %v4352
    %v4417 = vadd.f32 %v3734, %v4354
    %v4418 = vadd.f32 %v3735, %v4357
    %v4419 = vadd.f32 %v3736, %v4359
    %v4420 = vadd.f32 %v3737, %v4362
    %v4421 = vadd.f32 %v3738, %v4364
    %v4422 = vadd.f32 %v3739, %v4367
    %v4423 = vadd.f32 %v3740, %v4369
    %v4424 = vadd.f32 %v3741, %v4372
    %v4425 = vadd.f32 %v3742, %v4374
    %v4426 = vadd.f32 %v3743, %v4377
    %v4427 = vadd.f32 %v3744, %v4379
    %v4428 = vadd.f32 %v3745, %v4382
    %v4429 = vadd.f32 %v3746, %v4384
    %v4430 = vadd.f32 %v3747, %v4387
    %v4431 = vadd.f32 %v3748, %v4389
    %v4432 = vadd.f32 %v3749, %v4392
    %v4433 = vadd.f32 %v3750, %v4394
    %v4434 = vadd.f32 %v3751, %v4397
    %v4435 = vadd.f32 %v3752, %v4399
    %v4436 = vadd.f32 %v3753, %v4402
    %v4437 = vadd.f32 %v3754, %v4404
    %4438 = vadd.xlane.f32.xlu0 %v4406
    %v4439 = vpop.xlane.xlu0 %4438
    %4440 = vadd.xlane.f32.xlu0 %v4407
    %v4441 = vpop.xlane.xlu0 %4440
    %4442 = vadd.xlane.f32.xlu0 %v4408
    %v4443 = vpop.xlane.xlu0 %4442
    %4444 = vadd.xlane.f32.xlu0 %v4409
    %v4445 = vpop.xlane.xlu0 %4444
    %4446 = vadd.xlane.f32.xlu0 %v4410
    %v4447 = vpop.xlane.xlu0 %4446
    %4448 = vadd.xlane.f32.xlu0 %v4411
    %v4449 = vpop.xlane.xlu0 %4448
    %4450 = vadd.xlane.f32.xlu0 %v4412
    %v4451 = vpop.xlane.xlu0 %4450
    %4452 = vadd.xlane.f32.xlu0 %v4413
    %v4453 = vpop.xlane.xlu0 %4452
    %4454 = vadd.xlane.f32.xlu0 %v4414
    %v4455 = vpop.xlane.xlu0 %4454
    %4456 = vadd.xlane.f32.xlu0 %v4415
    %v4457 = vpop.xlane.xlu0 %4456
    %4458 = vadd.xlane.f32.xlu0 %v4416
    %v4459 = vpop.xlane.xlu0 %4458
    %4460 = vadd.xlane.f32.xlu0 %v4417
    %v4461 = vpop.xlane.xlu0 %4460
    %4462 = vadd.xlane.f32.xlu0 %v4418
    %v4463 = vpop.xlane.xlu0 %4462
    %4464 = vadd.xlane.f32.xlu0 %v4419
    %v4465 = vpop.xlane.xlu0 %4464
    %4466 = vadd.xlane.f32.xlu0 %v4420
    %v4467 = vpop.xlane.xlu0 %4466
    %4468 = vadd.xlane.f32.xlu0 %v4421
    %v4469 = vpop.xlane.xlu0 %4468
    %4470 = vadd.xlane.f32.xlu0 %v4422
    %v4471 = vpop.xlane.xlu0 %4470
    %4472 = vadd.xlane.f32.xlu0 %v4423
    %v4473 = vpop.xlane.xlu0 %4472
    %4474 = vadd.xlane.f32.xlu0 %v4424
    %v4475 = vpop.xlane.xlu0 %4474
    %4476 = vadd.xlane.f32.xlu0 %v4425
    %v4477 = vpop.xlane.xlu0 %4476
    %4478 = vadd.xlane.f32.xlu0 %v4426
    %v4479 = vpop.xlane.xlu0 %4478
    %4480 = vadd.xlane.f32.xlu0 %v4427
    %v4481 = vpop.xlane.xlu0 %4480
    %4482 = vadd.xlane.f32.xlu0 %v4428
    %v4483 = vpop.xlane.xlu0 %4482
    %4484 = vadd.xlane.f32.xlu0 %v4429
    %v4485 = vpop.xlane.xlu0 %4484
    %4486 = vadd.xlane.f32.xlu0 %v4430
    %v4487 = vpop.xlane.xlu0 %4486
    %4488 = vadd.xlane.f32.xlu0 %v4431
    %v4489 = vpop.xlane.xlu0 %4488
    %4490 = vadd.xlane.f32.xlu0 %v4432
    %v4491 = vpop.xlane.xlu0 %4490
    %4492 = vadd.xlane.f32.xlu0 %v4433
    %v4493 = vpop.xlane.xlu0 %4492
    %4494 = vadd.xlane.f32.xlu0 %v4434
    %v4495 = vpop.xlane.xlu0 %4494
    %4496 = vadd.xlane.f32.xlu0 %v4435
    %v4497 = vpop.xlane.xlu0 %4496
    %4498 = vadd.xlane.f32.xlu0 %v4436
    %v4499 = vpop.xlane.xlu0 %4498
    %4500 = vadd.xlane.f32.xlu0 %v4437
    %v4501 = vpop.xlane.xlu0 %4500
    %v4502 = vmul.f32 %v4439, %v3106
    %v4503 = vmul.f32 %v4441, %v3106
    %v4504 = vmul.f32 %v4443, %v3106
    %v4505 = vmul.f32 %v4445, %v3106
    %v4506 = vmul.f32 %v4447, %v3106
    %v4507 = vmul.f32 %v4449, %v3106
    %v4508 = vmul.f32 %v4451, %v3106
    %v4509 = vmul.f32 %v4453, %v3106
    %v4510 = vmul.f32 %v4455, %v3106
    %v4511 = vmul.f32 %v4457, %v3106
    %v4512 = vmul.f32 %v4459, %v3106
    %v4513 = vmul.f32 %v4461, %v3106
    %v4514 = vmul.f32 %v4463, %v3106
    %v4515 = vmul.f32 %v4465, %v3106
    %v4516 = vmul.f32 %v4467, %v3106
    %v4517 = vmul.f32 %v4469, %v3106
    %v4518 = vmul.f32 %v4471, %v3106
    %v4519 = vmul.f32 %v4473, %v3106
    %v4520 = vmul.f32 %v4475, %v3106
    %v4521 = vmul.f32 %v4477, %v3106
    %v4522 = vmul.f32 %v4479, %v3106
    %v4523 = vmul.f32 %v4481, %v3106
    %v4524 = vmul.f32 %v4483, %v3106
    %v4525 = vmul.f32 %v4485, %v3106
    %v4526 = vmul.f32 %v4487, %v3106
    %v4527 = vmul.f32 %v4489, %v3106
    %v4528 = vmul.f32 %v4491, %v3106
    %v4529 = vmul.f32 %v4493, %v3106
    %v4530 = vmul.f32 %v4495, %v3106
    %v4531 = vmul.f32 %v4497, %v3106
    %v4532 = vmul.f32 %v4499, %v3106
    %v4533 = vmul.f32 %v4501, %v3106
    %v4534 = vsub.f32 %v4406, %v4502
    %v4535 = vsub.f32 %v4407, %v4503
    %v4536 = vsub.f32 %v4408, %v4504
    %v4537 = vsub.f32 %v4409, %v4505
    %v4538 = vsub.f32 %v4410, %v4506
    %v4539 = vsub.f32 %v4411, %v4507
    %v4540 = vsub.f32 %v4412, %v4508
    %v4541 = vsub.f32 %v4413, %v4509
    %v4542 = vsub.f32 %v4414, %v4510
    %v4543 = vsub.f32 %v4415, %v4511
    %v4544 = vsub.f32 %v4416, %v4512
    %v4545 = vsub.f32 %v4417, %v4513
    %v4546 = vsub.f32 %v4418, %v4514
    %v4547 = vsub.f32 %v4419, %v4515
    %v4548 = vsub.f32 %v4420, %v4516
    %v4549 = vsub.f32 %v4421, %v4517
    %v4550 = vsub.f32 %v4422, %v4518
    %v4551 = vsub.f32 %v4423, %v4519
    %v4552 = vsub.f32 %v4424, %v4520
    %v4553 = vsub.f32 %v4425, %v4521
    %v4554 = vsub.f32 %v4426, %v4522
    %v4555 = vsub.f32 %v4427, %v4523
    %v4556 = vsub.f32 %v4428, %v4524
    %v4557 = vsub.f32 %v4429, %v4525
    %v4558 = vsub.f32 %v4430, %v4526
    %v4559 = vsub.f32 %v4431, %v4527
    %v4560 = vsub.f32 %v4432, %v4528
    %v4561 = vsub.f32 %v4433, %v4529
    %v4562 = vsub.f32 %v4434, %v4530
    %v4563 = vsub.f32 %v4435, %v4531
    %v4564 = vsub.f32 %v4436, %v4532
    %v4565 = vsub.f32 %v4437, %v4533
    %v4566 = vmul.f32 %v4534, %v4534
    %v4567 = vmul.f32 %v4535, %v4535
    %v4568 = vmul.f32 %v4536, %v4536
    %v4569 = vmul.f32 %v4537, %v4537
    %v4570 = vmul.f32 %v4538, %v4538
    %v4571 = vmul.f32 %v4539, %v4539
    %v4572 = vmul.f32 %v4540, %v4540
    %v4573 = vmul.f32 %v4541, %v4541
    %v4574 = vmul.f32 %v4542, %v4542
    %v4575 = vmul.f32 %v4543, %v4543
    %v4576 = vmul.f32 %v4544, %v4544
    %v4577 = vmul.f32 %v4545, %v4545
    %v4578 = vmul.f32 %v4546, %v4546
    %v4579 = vmul.f32 %v4547, %v4547
    %v4580 = vmul.f32 %v4548, %v4548
    %v4581 = vmul.f32 %v4549, %v4549
    %v4582 = vmul.f32 %v4550, %v4550
    %v4583 = vmul.f32 %v4551, %v4551
    %v4584 = vmul.f32 %v4552, %v4552
    %v4585 = vmul.f32 %v4553, %v4553
    %v4586 = vmul.f32 %v4554, %v4554
    %v4587 = vmul.f32 %v4555, %v4555
    %v4588 = vmul.f32 %v4556, %v4556
    %v4589 = vmul.f32 %v4557, %v4557
    %v4590 = vmul.f32 %v4558, %v4558
    %v4591 = vmul.f32 %v4559, %v4559
    %v4592 = vmul.f32 %v4560, %v4560
    %v4593 = vmul.f32 %v4561, %v4561
    %v4594 = vmul.f32 %v4562, %v4562
    %v4595 = vmul.f32 %v4563, %v4563
    %v4596 = vmul.f32 %v4564, %v4564
    %v4597 = vmul.f32 %v4565, %v4565
    %4598 = vadd.xlane.f32.xlu0 %v4566
    %v4599 = vpop.xlane.xlu0 %4598
    %4600 = vadd.xlane.f32.xlu0 %v4567
    %v4601 = vpop.xlane.xlu0 %4600
    %4602 = vadd.xlane.f32.xlu0 %v4568
    %v4603 = vpop.xlane.xlu0 %4602
    %4604 = vadd.xlane.f32.xlu0 %v4569
    %v4605 = vpop.xlane.xlu0 %4604
    %4606 = vadd.xlane.f32.xlu0 %v4570
    %v4607 = vpop.xlane.xlu0 %4606
    %4608 = vadd.xlane.f32.xlu0 %v4571
    %v4609 = vpop.xlane.xlu0 %4608
    %4610 = vadd.xlane.f32.xlu0 %v4572
    %v4611 = vpop.xlane.xlu0 %4610
    %4612 = vadd.xlane.f32.xlu0 %v4573
    %v4613 = vpop.xlane.xlu0 %4612
    %4614 = vadd.xlane.f32.xlu0 %v4574
    %v4615 = vpop.xlane.xlu0 %4614
    %4616 = vadd.xlane.f32.xlu0 %v4575
    %v4617 = vpop.xlane.xlu0 %4616
    %4618 = vadd.xlane.f32.xlu0 %v4576
    %v4619 = vpop.xlane.xlu0 %4618
    %4620 = vadd.xlane.f32.xlu0 %v4577
    %v4621 = vpop.xlane.xlu0 %4620
    %4622 = vadd.xlane.f32.xlu0 %v4578
    %v4623 = vpop.xlane.xlu0 %4622
    %4624 = vadd.xlane.f32.xlu0 %v4579
    %v4625 = vpop.xlane.xlu0 %4624
    %4626 = vadd.xlane.f32.xlu0 %v4580
    %v4627 = vpop.xlane.xlu0 %4626
    %4628 = vadd.xlane.f32.xlu0 %v4581
    %v4629 = vpop.xlane.xlu0 %4628
    %4630 = vadd.xlane.f32.xlu0 %v4582
    %v4631 = vpop.xlane.xlu0 %4630
    %4632 = vadd.xlane.f32.xlu0 %v4583
    %v4633 = vpop.xlane.xlu0 %4632
    %4634 = vadd.xlane.f32.xlu0 %v4584
    %v4635 = vpop.xlane.xlu0 %4634
    %4636 = vadd.xlane.f32.xlu0 %v4585
    %v4637 = vpop.xlane.xlu0 %4636
    %4638 = vadd.xlane.f32.xlu0 %v4586
    %v4639 = vpop.xlane.xlu0 %4638
    %4640 = vadd.xlane.f32.xlu0 %v4587
    %v4641 = vpop.xlane.xlu0 %4640
    %4642 = vadd.xlane.f32.xlu0 %v4588
    %v4643 = vpop.xlane.xlu0 %4642
    %4644 = vadd.xlane.f32.xlu0 %v4589
    %v4645 = vpop.xlane.xlu0 %4644
    %4646 = vadd.xlane.f32.xlu0 %v4590
    %v4647 = vpop.xlane.xlu0 %4646
    %4648 = vadd.xlane.f32.xlu0 %v4591
    %v4649 = vpop.xlane.xlu0 %4648
    %4650 = vadd.xlane.f32.xlu0 %v4592
    %v4651 = vpop.xlane.xlu0 %4650
    %4652 = vadd.xlane.f32.xlu0 %v4593
    %v4653 = vpop.xlane.xlu0 %4652
    %4654 = vadd.xlane.f32.xlu0 %v4594
    %v4655 = vpop.xlane.xlu0 %4654
    %4656 = vadd.xlane.f32.xlu0 %v4595
    %v4657 = vpop.xlane.xlu0 %4656
    %4658 = vadd.xlane.f32.xlu0 %v4596
    %v4659 = vpop.xlane.xlu0 %4658
    %4660 = vadd.xlane.f32.xlu0 %v4597
    %v4661 = vpop.xlane.xlu0 %4660
    %v4662 = vmul.f32 %v4599, %v3106
    %v4663 = vmul.f32 %v4601, %v3106
    %v4664 = vmul.f32 %v4603, %v3106
    %v4665 = vmul.f32 %v4605, %v3106
    %v4666 = vmul.f32 %v4607, %v3106
    %v4667 = vmul.f32 %v4609, %v3106
    %v4668 = vmul.f32 %v4611, %v3106
    %v4669 = vmul.f32 %v4613, %v3106
    %v4670 = vmul.f32 %v4615, %v3106
    %v4671 = vmul.f32 %v4617, %v3106
    %v4672 = vmul.f32 %v4619, %v3106
    %v4673 = vmul.f32 %v4621, %v3106
    %v4674 = vmul.f32 %v4623, %v3106
    %v4675 = vmul.f32 %v4625, %v3106
    %v4676 = vmul.f32 %v4627, %v3106
    %v4677 = vmul.f32 %v4629, %v3106
    %v4678 = vmul.f32 %v4631, %v3106
    %v4679 = vmul.f32 %v4633, %v3106
    %v4680 = vmul.f32 %v4635, %v3106
    %v4681 = vmul.f32 %v4637, %v3106
    %v4682 = vmul.f32 %v4639, %v3106
    %v4683 = vmul.f32 %v4641, %v3106
    %v4684 = vmul.f32 %v4643, %v3106
    %v4685 = vmul.f32 %v4645, %v3106
    %v4686 = vmul.f32 %v4647, %v3106
    %v4687 = vmul.f32 %v4649, %v3106
    %v4688 = vmul.f32 %v4651, %v3106
    %v4689 = vmul.f32 %v4653, %v3106
    %v4690 = vmul.f32 %v4655, %v3106
    %v4691 = vmul.f32 %v4657, %v3106
    %v4692 = vmul.f32 %v4659, %v3106
    %v4693 = vmul.f32 %v4661, %v3106
    %v4694 = vadd.f32 %v4662, 1e-05
    %v4695 = vadd.f32 %v4663, 1e-05
    %v4696 = vadd.f32 %v4664, 1e-05
    %v4697 = vadd.f32 %v4665, 1e-05
    %v4698 = vadd.f32 %v4666, 1e-05
    %v4699 = vadd.f32 %v4667, 1e-05
    %v4700 = vadd.f32 %v4668, 1e-05
    %v4701 = vadd.f32 %v4669, 1e-05
    %v4702 = vadd.f32 %v4670, 1e-05
    %v4703 = vadd.f32 %v4671, 1e-05
    %v4704 = vadd.f32 %v4672, 1e-05
    %v4705 = vadd.f32 %v4673, 1e-05
    %v4706 = vadd.f32 %v4674, 1e-05
    %v4707 = vadd.f32 %v4675, 1e-05
    %v4708 = vadd.f32 %v4676, 1e-05
    %v4709 = vadd.f32 %v4677, 1e-05
    %v4710 = vadd.f32 %v4678, 1e-05
    %v4711 = vadd.f32 %v4679, 1e-05
    %v4712 = vadd.f32 %v4680, 1e-05
    %v4713 = vadd.f32 %v4681, 1e-05
    %v4714 = vadd.f32 %v4682, 1e-05
    %v4715 = vadd.f32 %v4683, 1e-05
    %v4716 = vadd.f32 %v4684, 1e-05
    %v4717 = vadd.f32 %v4685, 1e-05
    %v4718 = vadd.f32 %v4686, 1e-05
    %v4719 = vadd.f32 %v4687, 1e-05
    %v4720 = vadd.f32 %v4688, 1e-05
    %v4721 = vadd.f32 %v4689, 1e-05
    %v4722 = vadd.f32 %v4690, 1e-05
    %v4723 = vadd.f32 %v4691, 1e-05
    %v4724 = vadd.f32 %v4692, 1e-05
    %v4725 = vadd.f32 %v4693, 1e-05
    %v4726 = vrsqrt.pop %v4694
    %v4727 = vmul.f32 %v4726, %v4694
    %v4728 = vmul.f32 %v4727, %v4726
    %v4729 = vmul.f32 0.5, %v4728
    %v4730 = vsub.f32 1.5, %v4729
    %v4731 = vmul.f32 %v4726, %v4730
    %vm4732 = vweird.f32 %v4694
    %vm4733 = vweird.f32 %v4726
    %vm4734 = vmor %vm4732, %vm4733
    %v4735 = vsel %vm4734, %v4726, %v4731
    %v4736 = vrsqrt.pop %v4695
    %v4737 = vmul.f32 %v4736, %v4695
    %v4738 = vmul.f32 %v4737, %v4736
    %v4739 = vmul.f32 0.5, %v4738
    %v4740 = vsub.f32 1.5, %v4739
    %v4741 = vmul.f32 %v4736, %v4740
    %vm4742 = vweird.f32 %v4695
    %vm4743 = vweird.f32 %v4736
    %vm4744 = vmor %vm4742, %vm4743
    %v4745 = vsel %vm4744, %v4736, %v4741
    %v4746 = vrsqrt.pop %v4696
    %v4747 = vmul.f32 %v4746, %v4696
    %v4748 = vmul.f32 %v4747, %v4746
    %v4749 = vmul.f32 0.5, %v4748
    %v4750 = vsub.f32 1.5, %v4749
    %v4751 = vmul.f32 %v4746, %v4750
    %vm4752 = vweird.f32 %v4696
    %vm4753 = vweird.f32 %v4746
    %vm4754 = vmor %vm4752, %vm4753
    %v4755 = vsel %vm4754, %v4746, %v4751
    %v4756 = vrsqrt.pop %v4697
    %v4757 = vmul.f32 %v4756, %v4697
    %v4758 = vmul.f32 %v4757, %v4756
    %v4759 = vmul.f32 0.5, %v4758
    %v4760 = vsub.f32 1.5, %v4759
    %v4761 = vmul.f32 %v4756, %v4760
    %vm4762 = vweird.f32 %v4697
    %vm4763 = vweird.f32 %v4756
    %vm4764 = vmor %vm4762, %vm4763
    %v4765 = vsel %vm4764, %v4756, %v4761
    %v4766 = vrsqrt.pop %v4698
    %v4767 = vmul.f32 %v4766, %v4698
    %v4768 = vmul.f32 %v4767, %v4766
    %v4769 = vmul.f32 0.5, %v4768
    %v4770 = vsub.f32 1.5, %v4769
    %v4771 = vmul.f32 %v4766, %v4770
    %vm4772 = vweird.f32 %v4698
    %vm4773 = vweird.f32 %v4766
    %vm4774 = vmor %vm4772, %vm4773
    %v4775 = vsel %vm4774, %v4766, %v4771
    %v4776 = vrsqrt.pop %v4699
    %v4777 = vmul.f32 %v4776, %v4699
    %v4778 = vmul.f32 %v4777, %v4776
    %v4779 = vmul.f32 0.5, %v4778
    %v4780 = vsub.f32 1.5, %v4779
    %v4781 = vmul.f32 %v4776, %v4780
    %vm4782 = vweird.f32 %v4699
    %vm4783 = vweird.f32 %v4776
    %vm4784 = vmor %vm4782, %vm4783
    %v4785 = vsel %vm4784, %v4776, %v4781
    %v4786 = vrsqrt.pop %v4700
    %v4787 = vmul.f32 %v4786, %v4700
    %v4788 = vmul.f32 %v4787, %v4786
    %v4789 = vmul.f32 0.5, %v4788
    %v4790 = vsub.f32 1.5, %v4789
    %v4791 = vmul.f32 %v4786, %v4790
    %vm4792 = vweird.f32 %v4700
    %vm4793 = vweird.f32 %v4786
    %vm4794 = vmor %vm4792, %vm4793
    %v4795 = vsel %vm4794, %v4786, %v4791
    %v4796 = vrsqrt.pop %v4701
    %v4797 = vmul.f32 %v4796, %v4701
    %v4798 = vmul.f32 %v4797, %v4796
    %v4799 = vmul.f32 0.5, %v4798
    %v4800 = vsub.f32 1.5, %v4799
    %v4801 = vmul.f32 %v4796, %v4800
    %vm4802 = vweird.f32 %v4701
    %vm4803 = vweird.f32 %v4796
    %vm4804 = vmor %vm4802, %vm4803
    %v4805 = vsel %vm4804, %v4796, %v4801
    %v4806 = vrsqrt.pop %v4702
    %v4807 = vmul.f32 %v4806, %v4702
    %v4808 = vmul.f32 %v4807, %v4806
    %v4809 = vmul.f32 0.5, %v4808
    %v4810 = vsub.f32 1.5, %v4809
    %v4811 = vmul.f32 %v4806, %v4810
    %vm4812 = vweird.f32 %v4702
    %vm4813 = vweird.f32 %v4806
    %vm4814 = vmor %vm4812, %vm4813
    %v4815 = vsel %vm4814, %v4806, %v4811
    %v4816 = vrsqrt.pop %v4703
    %v4817 = vmul.f32 %v4816, %v4703
    %v4818 = vmul.f32 %v4817, %v4816
    %v4819 = vmul.f32 0.5, %v4818
    %v4820 = vsub.f32 1.5, %v4819
    %v4821 = vmul.f32 %v4816, %v4820
    %vm4822 = vweird.f32 %v4703
    %vm4823 = vweird.f32 %v4816
    %vm4824 = vmor %vm4822, %vm4823
    %v4825 = vsel %vm4824, %v4816, %v4821
    %v4826 = vrsqrt.pop %v4704
    %v4827 = vmul.f32 %v4826, %v4704
    %v4828 = vmul.f32 %v4827, %v4826
    %v4829 = vmul.f32 0.5, %v4828
    %v4830 = vsub.f32 1.5, %v4829
    %v4831 = vmul.f32 %v4826, %v4830
    %vm4832 = vweird.f32 %v4704
    %vm4833 = vweird.f32 %v4826
    %vm4834 = vmor %vm4832, %vm4833
    %v4835 = vsel %vm4834, %v4826, %v4831
    %v4836 = vrsqrt.pop %v4705
    %v4837 = vmul.f32 %v4836, %v4705
    %v4838 = vmul.f32 %v4837, %v4836
    %v4839 = vmul.f32 0.5, %v4838
    %v4840 = vsub.f32 1.5, %v4839
    %v4841 = vmul.f32 %v4836, %v4840
    %vm4842 = vweird.f32 %v4705
    %vm4843 = vweird.f32 %v4836
    %vm4844 = vmor %vm4842, %vm4843
    %v4845 = vsel %vm4844, %v4836, %v4841
    %v4846 = vrsqrt.pop %v4706
    %v4847 = vmul.f32 %v4846, %v4706
    %v4848 = vmul.f32 %v4847, %v4846
    %v4849 = vmul.f32 0.5, %v4848
    %v4850 = vsub.f32 1.5, %v4849
    %v4851 = vmul.f32 %v4846, %v4850
    %vm4852 = vweird.f32 %v4706
    %vm4853 = vweird.f32 %v4846
    %vm4854 = vmor %vm4852, %vm4853
    %v4855 = vsel %vm4854, %v4846, %v4851
    %v4856 = vrsqrt.pop %v4707
    %v4857 = vmul.f32 %v4856, %v4707
    %v4858 = vmul.f32 %v4857, %v4856
    %v4859 = vmul.f32 0.5, %v4858
    %v4860 = vsub.f32 1.5, %v4859
    %v4861 = vmul.f32 %v4856, %v4860
    %vm4862 = vweird.f32 %v4707
    %vm4863 = vweird.f32 %v4856
    %vm4864 = vmor %vm4862, %vm4863
    %v4865 = vsel %vm4864, %v4856, %v4861
    %v4866 = vrsqrt.pop %v4708
    %v4867 = vmul.f32 %v4866, %v4708
    %v4868 = vmul.f32 %v4867, %v4866
    %v4869 = vmul.f32 0.5, %v4868
    %v4870 = vsub.f32 1.5, %v4869
    %v4871 = vmul.f32 %v4866, %v4870
    %vm4872 = vweird.f32 %v4708
    %vm4873 = vweird.f32 %v4866
    %vm4874 = vmor %vm4872, %vm4873
    %v4875 = vsel %vm4874, %v4866, %v4871
    %v4876 = vrsqrt.pop %v4709
    %v4877 = vmul.f32 %v4876, %v4709
    %v4878 = vmul.f32 %v4877, %v4876
    %v4879 = vmul.f32 0.5, %v4878
    %v4880 = vsub.f32 1.5, %v4879
    %v4881 = vmul.f32 %v4876, %v4880
    %vm4882 = vweird.f32 %v4709
    %vm4883 = vweird.f32 %v4876
    %vm4884 = vmor %vm4882, %vm4883
    %v4885 = vsel %vm4884, %v4876, %v4881
    %v4886 = vrsqrt.pop %v4710
    %v4887 = vmul.f32 %v4886, %v4710
    %v4888 = vmul.f32 %v4887, %v4886
    %v4889 = vmul.f32 0.5, %v4888
    %v4890 = vsub.f32 1.5, %v4889
    %v4891 = vmul.f32 %v4886, %v4890
    %vm4892 = vweird.f32 %v4710
    %vm4893 = vweird.f32 %v4886
    %vm4894 = vmor %vm4892, %vm4893
    %v4895 = vsel %vm4894, %v4886, %v4891
    %v4896 = vrsqrt.pop %v4711
    %v4897 = vmul.f32 %v4896, %v4711
    %v4898 = vmul.f32 %v4897, %v4896
    %v4899 = vmul.f32 0.5, %v4898
    %v4900 = vsub.f32 1.5, %v4899
    %v4901 = vmul.f32 %v4896, %v4900
    %vm4902 = vweird.f32 %v4711
    %vm4903 = vweird.f32 %v4896
    %vm4904 = vmor %vm4902, %vm4903
    %v4905 = vsel %vm4904, %v4896, %v4901
    %v4906 = vrsqrt.pop %v4712
    %v4907 = vmul.f32 %v4906, %v4712
    %v4908 = vmul.f32 %v4907, %v4906
    %v4909 = vmul.f32 0.5, %v4908
    %v4910 = vsub.f32 1.5, %v4909
    %v4911 = vmul.f32 %v4906, %v4910
    %vm4912 = vweird.f32 %v4712
    %vm4913 = vweird.f32 %v4906
    %vm4914 = vmor %vm4912, %vm4913
    %v4915 = vsel %vm4914, %v4906, %v4911
    %v4916 = vrsqrt.pop %v4713
    %v4917 = vmul.f32 %v4916, %v4713
    %v4918 = vmul.f32 %v4917, %v4916
    %v4919 = vmul.f32 0.5, %v4918
    %v4920 = vsub.f32 1.5, %v4919
    %v4921 = vmul.f32 %v4916, %v4920
    %vm4922 = vweird.f32 %v4713
    %vm4923 = vweird.f32 %v4916
    %vm4924 = vmor %vm4922, %vm4923
    %v4925 = vsel %vm4924, %v4916, %v4921
    %v4926 = vrsqrt.pop %v4714
    %v4927 = vmul.f32 %v4926, %v4714
    %v4928 = vmul.f32 %v4927, %v4926
    %v4929 = vmul.f32 0.5, %v4928
    %v4930 = vsub.f32 1.5, %v4929
    %v4931 = vmul.f32 %v4926, %v4930
    %vm4932 = vweird.f32 %v4714
    %vm4933 = vweird.f32 %v4926
    %vm4934 = vmor %vm4932, %vm4933
    %v4935 = vsel %vm4934, %v4926, %v4931
    %v4936 = vrsqrt.pop %v4715
    %v4937 = vmul.f32 %v4936, %v4715
    %v4938 = vmul.f32 %v4937, %v4936
    %v4939 = vmul.f32 0.5, %v4938
    %v4940 = vsub.f32 1.5, %v4939
    %v4941 = vmul.f32 %v4936, %v4940
    %vm4942 = vweird.f32 %v4715
    %vm4943 = vweird.f32 %v4936
    %vm4944 = vmor %vm4942, %vm4943
    %v4945 = vsel %vm4944, %v4936, %v4941
    %v4946 = vrsqrt.pop %v4716
    %v4947 = vmul.f32 %v4946, %v4716
    %v4948 = vmul.f32 %v4947, %v4946
    %v4949 = vmul.f32 0.5, %v4948
    %v4950 = vsub.f32 1.5, %v4949
    %v4951 = vmul.f32 %v4946, %v4950
    %vm4952 = vweird.f32 %v4716
    %vm4953 = vweird.f32 %v4946
    %vm4954 = vmor %vm4952, %vm4953
    %v4955 = vsel %vm4954, %v4946, %v4951
    %v4956 = vrsqrt.pop %v4717
    %v4957 = vmul.f32 %v4956, %v4717
    %v4958 = vmul.f32 %v4957, %v4956
    %v4959 = vmul.f32 0.5, %v4958
    %v4960 = vsub.f32 1.5, %v4959
    %v4961 = vmul.f32 %v4956, %v4960
    %vm4962 = vweird.f32 %v4717
    %vm4963 = vweird.f32 %v4956
    %vm4964 = vmor %vm4962, %vm4963
    %v4965 = vsel %vm4964, %v4956, %v4961
    %v4966 = vrsqrt.pop %v4718
    %v4967 = vmul.f32 %v4966, %v4718
    %v4968 = vmul.f32 %v4967, %v4966
    %v4969 = vmul.f32 0.5, %v4968
    %v4970 = vsub.f32 1.5, %v4969
    %v4971 = vmul.f32 %v4966, %v4970
    %vm4972 = vweird.f32 %v4718
    %vm4973 = vweird.f32 %v4966
    %vm4974 = vmor %vm4972, %vm4973
    %v4975 = vsel %vm4974, %v4966, %v4971
    %v4976 = vrsqrt.pop %v4719
    %v4977 = vmul.f32 %v4976, %v4719
    %v4978 = vmul.f32 %v4977, %v4976
    %v4979 = vmul.f32 0.5, %v4978
    %v4980 = vsub.f32 1.5, %v4979
    %v4981 = vmul.f32 %v4976, %v4980
    %vm4982 = vweird.f32 %v4719
    %vm4983 = vweird.f32 %v4976
    %vm4984 = vmor %vm4982, %vm4983
    %v4985 = vsel %vm4984, %v4976, %v4981
    %v4986 = vrsqrt.pop %v4720
    %v4987 = vmul.f32 %v4986, %v4720
    %v4988 = vmul.f32 %v4987, %v4986
    %v4989 = vmul.f32 0.5, %v4988
    %v4990 = vsub.f32 1.5, %v4989
    %v4991 = vmul.f32 %v4986, %v4990
    %vm4992 = vweird.f32 %v4720
    %vm4993 = vweird.f32 %v4986
    %vm4994 = vmor %vm4992, %vm4993
    %v4995 = vsel %vm4994, %v4986, %v4991
    %v4996 = vrsqrt.pop %v4721
    %v4997 = vmul.f32 %v4996, %v4721
    %v4998 = vmul.f32 %v4997, %v4996
    %v4999 = vmul.f32 0.5, %v4998
    %v5000 = vsub.f32 1.5, %v4999
    %v5001 = vmul.f32 %v4996, %v5000
    %vm5002 = vweird.f32 %v4721
    %vm5003 = vweird.f32 %v4996
    %vm5004 = vmor %vm5002, %vm5003
    %v5005 = vsel %vm5004, %v4996, %v5001
    %v5006 = vrsqrt.pop %v4722
    %v5007 = vmul.f32 %v5006, %v4722
    %v5008 = vmul.f32 %v5007, %v5006
    %v5009 = vmul.f32 0.5, %v5008
    %v5010 = vsub.f32 1.5, %v5009
    %v5011 = vmul.f32 %v5006, %v5010
    %vm5012 = vweird.f32 %v4722
    %vm5013 = vweird.f32 %v5006
    %vm5014 = vmor %vm5012, %vm5013
    %v5015 = vsel %vm5014, %v5006, %v5011
    %v5016 = vrsqrt.pop %v4723
    %v5017 = vmul.f32 %v5016, %v4723
    %v5018 = vmul.f32 %v5017, %v5016
    %v5019 = vmul.f32 0.5, %v5018
    %v5020 = vsub.f32 1.5, %v5019
    %v5021 = vmul.f32 %v5016, %v5020
    %vm5022 = vweird.f32 %v4723
    %vm5023 = vweird.f32 %v5016
    %vm5024 = vmor %vm5022, %vm5023
    %v5025 = vsel %vm5024, %v5016, %v5021
    %v5026 = vrsqrt.pop %v4724
    %v5027 = vmul.f32 %v5026, %v4724
    %v5028 = vmul.f32 %v5027, %v5026
    %v5029 = vmul.f32 0.5, %v5028
    %v5030 = vsub.f32 1.5, %v5029
    %v5031 = vmul.f32 %v5026, %v5030
    %vm5032 = vweird.f32 %v4724
    %vm5033 = vweird.f32 %v5026
    %vm5034 = vmor %vm5032, %vm5033
    %v5035 = vsel %vm5034, %v5026, %v5031
    %v5036 = vrsqrt.pop %v4725
    %v5037 = vmul.f32 %v5036, %v4725
    %v5038 = vmul.f32 %v5037, %v5036
    %v5039 = vmul.f32 0.5, %v5038
    %v5040 = vsub.f32 1.5, %v5039
    %v5041 = vmul.f32 %v5036, %v5040
    %vm5042 = vweird.f32 %v4725
    %vm5043 = vweird.f32 %v5036
    %vm5044 = vmor %vm5042, %vm5043
    %v5045 = vsel %vm5044, %v5036, %v5041
    %v5046 = vmul.f32 %v4534, %v4735
    %v5047 = vmul.f32 %v4535, %v4745
    %v5048 = vmul.f32 %v4536, %v4755
    %v5049 = vmul.f32 %v4537, %v4765
    %v5050 = vmul.f32 %v4538, %v4775
    %v5051 = vmul.f32 %v4539, %v4785
    %v5052 = vmul.f32 %v4540, %v4795
    %v5053 = vmul.f32 %v4541, %v4805
    %v5054 = vmul.f32 %v4542, %v4815
    %v5055 = vmul.f32 %v4543, %v4825
    %v5056 = vmul.f32 %v4544, %v4835
    %v5057 = vmul.f32 %v4545, %v4845
    %v5058 = vmul.f32 %v4546, %v4855
    %v5059 = vmul.f32 %v4547, %v4865
    %v5060 = vmul.f32 %v4548, %v4875
    %v5061 = vmul.f32 %v4549, %v4885
    %v5062 = vmul.f32 %v4550, %v4895
    %v5063 = vmul.f32 %v4551, %v4905
    %v5064 = vmul.f32 %v4552, %v4915
    %v5065 = vmul.f32 %v4553, %v4925
    %v5066 = vmul.f32 %v4554, %v4935
    %v5067 = vmul.f32 %v4555, %v4945
    %v5068 = vmul.f32 %v4556, %v4955
    %v5069 = vmul.f32 %v4557, %v4965
    %v5070 = vmul.f32 %v4558, %v4975
    %v5071 = vmul.f32 %v4559, %v4985
    %v5072 = vmul.f32 %v4560, %v4995
    %v5073 = vmul.f32 %v4561, %v5005
    %v5074 = vmul.f32 %v4562, %v5015
    %v5075 = vmul.f32 %v4563, %v5025
    %v5076 = vmul.f32 %v4564, %v5035
    %v5077 = vmul.f32 %v4565, %v5045
    %v5078 = vld [vmem:[%s12] sm:$0x1]
    %v5080 = vperm.slane %v5078, 0
    %v5082 = vmul.f32 %v5046, %v5080
    %v5083 = vmul.f32 %v5047, %v5080
    %v5084 = vmul.f32 %v5048, %v5080
    %v5085 = vmul.f32 %v5049, %v5080
    %v5086 = vmul.f32 %v5050, %v5080
    %v5087 = vmul.f32 %v5051, %v5080
    %v5088 = vmul.f32 %v5052, %v5080
    %v5089 = vmul.f32 %v5053, %v5080
    %v5090 = vmul.f32 %v5054, %v5080
    %v5091 = vmul.f32 %v5055, %v5080
    %v5092 = vmul.f32 %v5056, %v5080
    %v5093 = vmul.f32 %v5057, %v5080
    %v5094 = vmul.f32 %v5058, %v5080
    %v5095 = vmul.f32 %v5059, %v5080
    %v5096 = vmul.f32 %v5060, %v5080
    %v5097 = vmul.f32 %v5061, %v5080
    %v5098 = vmul.f32 %v5062, %v5080
    %v5099 = vmul.f32 %v5063, %v5080
    %v5100 = vmul.f32 %v5064, %v5080
    %v5101 = vmul.f32 %v5065, %v5080
    %v5102 = vmul.f32 %v5066, %v5080
    %v5103 = vmul.f32 %v5067, %v5080
    %v5104 = vmul.f32 %v5068, %v5080
    %v5105 = vmul.f32 %v5069, %v5080
    %v5106 = vmul.f32 %v5070, %v5080
    %v5107 = vmul.f32 %v5071, %v5080
    %v5108 = vmul.f32 %v5072, %v5080
    %v5109 = vmul.f32 %v5073, %v5080
    %v5110 = vmul.f32 %v5074, %v5080
    %v5111 = vmul.f32 %v5075, %v5080
    %v5112 = vmul.f32 %v5076, %v5080
    %v5113 = vmul.f32 %v5077, %v5080
    %v5114 = vld [vmem:[%s13] sm:$0x1]
    %v5116 = vperm.slane %v5114, 0
    %v5118 = vadd.f32 %v5082, %v5116
    %v5119 = vadd.f32 %v5083, %v5116
    %v5120 = vadd.f32 %v5084, %v5116
    %v5121 = vadd.f32 %v5085, %v5116
    %v5122 = vadd.f32 %v5086, %v5116
    %v5123 = vadd.f32 %v5087, %v5116
    %v5124 = vadd.f32 %v5088, %v5116
    %v5125 = vadd.f32 %v5089, %v5116
    %v5126 = vadd.f32 %v5090, %v5116
    %v5127 = vadd.f32 %v5091, %v5116
    %v5128 = vadd.f32 %v5092, %v5116
    %v5129 = vadd.f32 %v5093, %v5116
    %v5130 = vadd.f32 %v5094, %v5116
    %v5131 = vadd.f32 %v5095, %v5116
    %v5132 = vadd.f32 %v5096, %v5116
    %v5133 = vadd.f32 %v5097, %v5116
    %v5134 = vadd.f32 %v5098, %v5116
    %v5135 = vadd.f32 %v5099, %v5116
    %v5136 = vadd.f32 %v5100, %v5116
    %v5137 = vadd.f32 %v5101, %v5116
    %v5138 = vadd.f32 %v5102, %v5116
    %v5139 = vadd.f32 %v5103, %v5116
    %v5140 = vadd.f32 %v5104, %v5116
    %v5141 = vadd.f32 %v5105, %v5116
    %v5142 = vadd.f32 %v5106, %v5116
    %v5143 = vadd.f32 %v5107, %v5116
    %v5144 = vadd.f32 %v5108, %v5116
    %v5145 = vadd.f32 %v5109, %v5116
    %v5146 = vadd.f32 %v5110, %v5116
    %v5147 = vadd.f32 %v5111, %v5116
    %v5148 = vadd.f32 %v5112, %v5116
    %v5149 = vadd.f32 %v5113, %v5116
    %5150 = vst [vmem:[#allocation2] sm:$0xff] %v5118
    %5151 = vst [vmem:[#allocation2 + $0x8] sm:$0xff] %v5119
    %5152 = vst [vmem:[#allocation2 + $0x10] sm:$0xff] %v5120
    %5153 = vst [vmem:[#allocation2 + $0x18] sm:$0xff] %v5121
    %5154 = vst [vmem:[#allocation2 + $0x20] sm:$0xff] %v5122
    %5155 = vst [vmem:[#allocation2 + $0x28] sm:$0xff] %v5123
    %5156 = vst [vmem:[#allocation2 + $0x30] sm:$0xff] %v5124
    %5157 = vst [vmem:[#allocation2 + $0x38] sm:$0xff] %v5125
    %5158 = vst [vmem:[#allocation2 + $0x40] sm:$0xff] %v5126
    %5159 = vst [vmem:[#allocation2 + $0x48] sm:$0xff] %v5127
    %5160 = vst [vmem:[#allocation2 + $0x50] sm:$0xff] %v5128
    %5161 = vst [vmem:[#allocation2 + $0x58] sm:$0xff] %v5129
    %5162 = vst [vmem:[#allocation2 + $0x60] sm:$0xff] %v5130
    %5163 = vst [vmem:[#allocation2 + $0x68] sm:$0xff] %v5131
    %5164 = vst [vmem:[#allocation2 + $0x70] sm:$0xff] %v5132
    %5165 = vst [vmem:[#allocation2 + $0x78] sm:$0xff] %v5133
    %5166 = vst [vmem:[#allocation2 + $0x80] sm:$0xff] %v5134
    %5167 = vst [vmem:[#allocation2 + $0x88] sm:$0xff] %v5135
    %5168 = vst [vmem:[#allocation2 + $0x90] sm:$0xff] %v5136
    %5169 = vst [vmem:[#allocation2 + $0x98] sm:$0xff] %v5137
    %5170 = vst [vmem:[#allocation2 + $0xa0] sm:$0xff] %v5138
    %5171 = vst [vmem:[#allocation2 + $0xa8] sm:$0xff] %v5139
    %5172 = vst [vmem:[#allocation2 + $0xb0] sm:$0xff] %v5140
    %5173 = vst [vmem:[#allocation2 + $0xb8] sm:$0xff] %v5141
    %5174 = vst [vmem:[#allocation2 + $0xc0] sm:$0xff] %v5142
    %5175 = vst [vmem:[#allocation2 + $0xc8] sm:$0xff] %v5143
    %5176 = vst [vmem:[#allocation2 + $0xd0] sm:$0xff] %v5144
    %5177 = vst [vmem:[#allocation2 + $0xd8] sm:$0xff] %v5145
    %5178 = vst [vmem:[#allocation2 + $0xe0] sm:$0xff] %v5146
    %5179 = vst [vmem:[#allocation2 + $0xe8] sm:$0xff] %v5147
    %5180 = vst [vmem:[#allocation2 + $0xf0] sm:$0xff] %v5148
    %5181 = vst [vmem:[#allocation2 + $0xf8] sm:$0xff] %v5149
    // Predicated region
    $region58: #{encoder_forward.3} parent=1 // pred_check
      _
    $region59: #{encoder_forward.3} parent=1 // pred_check_branch
      %5183 = sbr.rel (0) target = $region61
    $region60: #{encoder_forward.3} parent=1 // pred_region
      %5185 = vsyncadd [#allocation3], 0
      %s5186 = sshll.u32 [#allocation2], 4
      %s5187 = int_to_ptr.vmem [resolvable:$true] %s5186
      %s5188 = sshll.u32 %s14, 4
      %s5189 = int_to_ptr.hbm [resolvable:$true] %s5188
      %5194 = dma.vmem_to_hbm [thread:$0]  %s5187, 4096, %s5189, [#allocation3], 128, 128, 8
    $region61: #{encoder_forward.3} parent=1 // pred_fallthru
      _
    // Predicated region
    $region62: #{encoder_forward.3} parent=1 // pred_check
      _
    $region63: #{encoder_forward.3} parent=1 // pred_check_branch
      %5196 = sbr.rel (0) target = $region65
    $region64: #{encoder_forward.3} parent=1 // pred_region
      %5198 = dma.done [#allocation3], 4096
    $region65: #{encoder_forward.3} parent=1 // pred_fallthru
      _
    %5199 = vsyncpa [#allocation3], 1

// kernel: encoder_forward.2
$region0: #{encoder_forward.2}
  #allocation0 [shape = 'u32[]', space=smem, size = 0x4, offset = 0x4, fixed_abs, tag = 'smem constant byte address 0x4 - core index']
  #allocation1 [shape = 'u32[72,128]{1,0:T(1,128)}', space=vmem, size = 0x9000, scoped, tag = 'internal scratch']
  %s0 = inlined_call_operand.vmem [shape: f32[2,128,128], index: 0, kind: input, shape index: {}]
  %s1 = inlined_call_operand.vmem [shape: bf16[128,384], index: 1, kind: input, shape index: {}]
  %s2 = inlined_call_operand.vmem [shape: f32[1,384], index: 2, kind: input, shape index: {}]
  %s3 = inlined_call_operand.vmem [shape: bf16[128,128], index: 3, kind: input, shape index: {}]
  %s4 = inlined_call_operand.vmem [shape: bf16[128,128], index: 4, kind: input, shape index: {}]
  %s5 = inlined_call_operand.vmem [shape: f32[1,128], index: 5, kind: input, shape index: {}]
  %s6 = inlined_call_operand.vmem [shape: f32[1,128], index: 6, kind: input, shape index: {}]
  %s7 = inlined_call_operand.vmem [shape: f32[1,128], index: 7, kind: input, shape index: {}]
  %s8 = inlined_call_operand.vmem [shape: bf16[128,64], index: 8, kind: input, shape index: {}]
  %s9 = inlined_call_operand.vmem [shape: f32[1,64], index: 9, kind: input, shape index: {}]
  %s10 = inlined_call_operand.vmem [shape: bf16[64,128], index: 10, kind: input, shape index: {}]
  %s11 = inlined_call_operand.vmem [shape: f32[1,128], index: 11, kind: input, shape index: {}]
  %s12 = inlined_call_operand.vmem [shape: f32[1,128], index: 12, kind: input, shape index: {}]
  %s13 = inlined_call_operand.vmem [shape: f32[1,128], index: 13, kind: input, shape index: {}]
  %s14 = inlined_call_operand.vmem [shape: f32[2,128,128], index: 14, kind: output, shape index: {}]
  %s15 = sld [smem:[#allocation0]]
  $region66: #{encoder_forward.2} parent=0
    _
  %s17 = ssub.s32 1, %s15
  %s18 = scalar_select 0, %s17, %s15
  // Predicated region
  $region2: #{encoder_forward.2} parent=0 // pred_check
    _
  $region3: #{encoder_forward.2} parent=0 // pred_check_branch
    %20 = sbr.rel (0) target = $region5
  $region4: #{encoder_forward.2} parent=0 // pred_region
    _
  $region5: #{encoder_forward.2} parent=0 // pred_fallthru
    _
  // Predicated region
  $region6: #{encoder_forward.2} parent=0 // pred_check
    _
  $region7: #{encoder_forward.2} parent=0 // pred_check_branch
    %22 = sbr.rel (0) target = $region9
  $region8: #{encoder_forward.2} parent=0 // pred_region
    _
  $region9: #{encoder_forward.2} parent=0 // pred_fallthru
    _
  // Predicated region
  $region10: #{encoder_forward.2} parent=0 // pred_check
    _
  $region11: #{encoder_forward.2} parent=0 // pred_check_branch
    %24 = sbr.rel (0) target = $region13
  $region12: #{encoder_forward.2} parent=0 // pred_region
    _
  $region13: #{encoder_forward.2} parent=0 // pred_fallthru
    _
  // Predicated region
  $region14: #{encoder_forward.2} parent=0 // pred_check
    _
  $region15: #{encoder_forward.2} parent=0 // pred_check_branch
    %26 = sbr.rel (0) target = $region17
  $region16: #{encoder_forward.2} parent=0 // pred_region
    _
  $region17: #{encoder_forward.2} parent=0 // pred_fallthru
    _
  // Predicated region
  $region18: #{encoder_forward.2} parent=0 // pred_check
    _
  $region19: #{encoder_forward.2} parent=0 // pred_check_branch
    %28 = sbr.rel (0) target = $region21
  $region20: #{encoder_forward.2} parent=0 // pred_region
    _
  $region21: #{encoder_forward.2} parent=0 // pred_fallthru
    _
  // Predicated region
  $region22: #{encoder_forward.2} parent=0 // pred_check
    _
  $region23: #{encoder_forward.2} parent=0 // pred_check_branch
    %30 = sbr.rel (0) target = $region25
  $region24: #{encoder_forward.2} parent=0 // pred_region
    _
  $region25: #{encoder_forward.2} parent=0 // pred_fallthru
    _
  // Predicated region
  $region26: #{encoder_forward.2} parent=0 // pred_check
    _
  $region27: #{encoder_forward.2} parent=0 // pred_check_branch
    %32 = sbr.rel (0) target = $region29
  $region28: #{encoder_forward.2} parent=0 // pred_region
    _
  $region29: #{encoder_forward.2} parent=0 // pred_fallthru
    _
  // Predicated region
  $region30: #{encoder_forward.2} parent=0 // pred_check
    _
  $region31: #{encoder_forward.2} parent=0 // pred_check_branch
    %34 = sbr.rel (0) target = $region33
  $region32: #{encoder_forward.2} parent=0 // pred_region
    _
  $region33: #{encoder_forward.2} parent=0 // pred_fallthru
    _
  // Predicated region
  $region34: #{encoder_forward.2} parent=0 // pred_check
    _
  $region35: #{encoder_forward.2} parent=0 // pred_check_branch
    %36 = sbr.rel (0) target = $region37
  $region36: #{encoder_forward.2} parent=0 // pred_region
    _
  $region37: #{encoder_forward.2} parent=0 // pred_fallthru
    _
  // Predicated region
  $region38: #{encoder_forward.2} parent=0 // pred_check
    _
  $region39: #{encoder_forward.2} parent=0 // pred_check_branch
    %38 = sbr.rel (0) target = $region41
  $region40: #{encoder_forward.2} parent=0 // pred_region
    _
  $region41: #{encoder_forward.2} parent=0 // pred_fallthru
    _
  // Predicated region
  $region42: #{encoder_forward.2} parent=0 // pred_check
    _
  $region43: #{encoder_forward.2} parent=0 // pred_check_branch
    %40 = sbr.rel (0) target = $region45
  $region44: #{encoder_forward.2} parent=0 // pred_region
    _
  $region45: #{encoder_forward.2} parent=0 // pred_fallthru
    _
  // Predicated region
  $region46: #{encoder_forward.2} parent=0 // pred_check
    _
  $region47: #{encoder_forward.2} parent=0 // pred_check_branch
    %42 = sbr.rel (0) target = $region49
  $region48: #{encoder_forward.2} parent=0 // pred_region
    _
  $region49: #{encoder_forward.2} parent=0 // pred_fallthru
    _
  // Predicated region
  $region50: #{encoder_forward.2} parent=0 // pred_check
    _
  $region51: #{encoder_forward.2} parent=0 // pred_check_branch
    %44 = sbr.rel (0) target = $region53
  $region52: #{encoder_forward.2} parent=0 // pred_region
    _
  $region53: #{encoder_forward.2} parent=0 // pred_fallthru
    _
  // Predicated region
  $region54: #{encoder_forward.2} parent=0 // pred_check
    _
  $region55: #{encoder_forward.2} parent=0 // pred_check_branch
    %46 = sbr.rel (0) target = $region57
  $region56: #{encoder_forward.2} parent=0 // pred_region
    _
  $region57: #{encoder_forward.2} parent=0 // pred_fallthru
    _
  %v48 = vld [vmem:[%s0] sm:$0xff]
  %v49 = vld [vmem:[%s0 + $0x8] sm:$0xff]
  %v50 = vld [vmem:[%s0 + $0x10] sm:$0xff]
  %v51 = vld [vmem:[%s0 + $0x18] sm:$0xff]
  %v52 = vld [vmem:[%s0 + $0x20] sm:$0xff]
  %v53 = vld [vmem:[%s0 + $0x28] sm:$0xff]
  %v54 = vld [vmem:[%s0 + $0x30] sm:$0xff]
  %v55 = vld [vmem:[%s0 + $0x38] sm:$0xff]
  %v56 = vld [vmem:[%s0 + $0x40] sm:$0xff]
  %v57 = vld [vmem:[%s0 + $0x48] sm:$0xff]
  %v58 = vld [vmem:[%s0 + $0x50] sm:$0xff]
  %v59 = vld [vmem:[%s0 + $0x58] sm:$0xff]
  %v60 = vld [vmem:[%s0 + $0x60] sm:$0xff]
  %v61 = vld [vmem:[%s0 + $0x68] sm:$0xff]
  %v62 = vld [vmem:[%s0 + $0x70] sm:$0xff]
  %v63 = vld [vmem:[%s0 + $0x78] sm:$0xff]
  %v64 = vld [vmem:[%s0 + $0x80] sm:$0xff]
  %v65 = vld [vmem:[%s0 + $0x88] sm:$0xff]
  %v66 = vld [vmem:[%s0 + $0x90] sm:$0xff]
  %v67 = vld [vmem:[%s0 + $0x98] sm:$0xff]
  %v68 = vld [vmem:[%s0 + $0xa0] sm:$0xff]
  %v69 = vld [vmem:[%s0 + $0xa8] sm:$0xff]
  %v70 = vld [vmem:[%s0 + $0xb0] sm:$0xff]
  %v71 = vld [vmem:[%s0 + $0xb8] sm:$0xff]
  %v72 = vld [vmem:[%s0 + $0xc0] sm:$0xff]
  %v73 = vld [vmem:[%s0 + $0xc8] sm:$0xff]
  %v74 = vld [vmem:[%s0 + $0xd0] sm:$0xff]
  %v75 = vld [vmem:[%s0 + $0xd8] sm:$0xff]
  %v76 = vld [vmem:[%s0 + $0xe0] sm:$0xff]
  %v77 = vld [vmem:[%s0 + $0xe8] sm:$0xff]
  %v78 = vld [vmem:[%s0 + $0xf0] sm:$0xff]
  %v79 = vld [vmem:[%s0 + $0xf8] sm:$0xff]
  %v80 = vpack.c.bf16 %v49, %v48
  %v81 = vpack.c.bf16 %v51, %v50
  %v82 = vpack.c.bf16 %v53, %v52
  %v83 = vpack.c.bf16 %v55, %v54
  %v84 = vpack.c.bf16 %v57, %v56
  %v85 = vpack.c.bf16 %v59, %v58
  %v86 = vpack.c.bf16 %v61, %v60
  %v87 = vpack.c.bf16 %v63, %v62
  %v88 = vpack.c.bf16 %v65, %v64
  %v89 = vpack.c.bf16 %v67, %v66
  %v90 = vpack.c.bf16 %v69, %v68
  %v91 = vpack.c.bf16 %v71, %v70
  %v92 = vpack.c.bf16 %v73, %v72
  %v93 = vpack.c.bf16 %v75, %v74
  %v94 = vpack.c.bf16 %v77, %v76
  %v95 = vpack.c.bf16 %v79, %v78
  %v96 = vld [vmem:[%s1] sm:$0xff]
  %v97 = vld [vmem:[%s1 + $0x8] sm:$0xf]
  %v98 = vld [vmem:[%s1 + $0xc] sm:$0xff]
  %v99 = vld [vmem:[%s1 + $0x14] sm:$0xf]
  %v100 = vld [vmem:[%s1 + $0x18] sm:$0xff]
  %v101 = vld [vmem:[%s1 + $0x20] sm:$0xf]
  %v102 = vld [vmem:[%s1 + $0x24] sm:$0xff]
  %v103 = vld [vmem:[%s1 + $0x2c] sm:$0xf]
  %v104 = vld [vmem:[%s1 + $0x30] sm:$0xff]
  %v105 = vld [vmem:[%s1 + $0x38] sm:$0xf]
  %v106 = vld [vmem:[%s1 + $0x3c] sm:$0xff]
  %v107 = vld [vmem:[%s1 + $0x44] sm:$0xf]
  %v108 = vld [vmem:[%s1 + $0x48] sm:$0xff]
  %v109 = vld [vmem:[%s1 + $0x50] sm:$0xf]
  %v110 = vld [vmem:[%s1 + $0x54] sm:$0xff]
  %v111 = vld [vmem:[%s1 + $0x5c] sm:$0xf]
  %v112 = vld [vmem:[%s1 + $0x60] sm:$0xff]
  %v113 = vld [vmem:[%s1 + $0x68] sm:$0xf]
  %v114 = vld [vmem:[%s1 + $0x6c] sm:$0xff]
  %v115 = vld [vmem:[%s1 + $0x74] sm:$0xf]
  %v116 = vld [vmem:[%s1 + $0x78] sm:$0xff]
  %v117 = vld [vmem:[%s1 + $0x80] sm:$0xf]
  %v118 = vld [vmem:[%s1 + $0x84] sm:$0xff]
  %v119 = vld [vmem:[%s1 + $0x8c] sm:$0xf]
  %v120 = vld [vmem:[%s1 + $0x90] sm:$0xff]
  %v121 = vld [vmem:[%s1 + $0x98] sm:$0xf]
  %v122 = vld [vmem:[%s1 + $0x9c] sm:$0xff]
  %v123 = vld [vmem:[%s1 + $0xa4] sm:$0xf]
  %v124 = vld [vmem:[%s1 + $0xa8] sm:$0xff]
  %v125 = vld [vmem:[%s1 + $0xb0] sm:$0xf]
  %v126 = vld [vmem:[%s1 + $0xb4] sm:$0xff]
  %v127 = vld [vmem:[%s1 + $0xbc] sm:$0xf]
  %v128 = vld [vmem:[%s2] sm:$0x7]
  %v130 = vperm.slane %v128, 0
  %v131 = vperm.slane %v128, 1
  %v132 = vperm.slane %v128, 2
  %v168 = vunpack.c.l.b16 %v96
  %v169 = vunpack.c.h.b16 %v96
  %v170 = vunpack.c.l.b16 %v97
  %v171 = vunpack.c.l.b16 %v98
  %v172 = vunpack.c.h.b16 %v98
  %v173 = vunpack.c.l.b16 %v99
  %v174 = vunpack.c.l.b16 %v100
  %v175 = vunpack.c.h.b16 %v100
  %v176 = vunpack.c.l.b16 %v101
  %v177 = vunpack.c.l.b16 %v102
  %v178 = vunpack.c.h.b16 %v102
  %v179 = vunpack.c.l.b16 %v103
  %v180 = vunpack.c.l.b16 %v104
  %v181 = vunpack.c.h.b16 %v104
  %v182 = vunpack.c.l.b16 %v105
  %v183 = vunpack.c.l.b16 %v106
  %v184 = vunpack.c.h.b16 %v106
  %v185 = vunpack.c.l.b16 %v107
  %v186 = vunpack.c.l.b16 %v108
  %v187 = vunpack.c.h.b16 %v108
  %v188 = vunpack.c.l.b16 %v109
  %v189 = vunpack.c.l.b16 %v110
  %v190 = vunpack.c.h.b16 %v110
  %v191 = vunpack.c.l.b16 %v111
  %v192 = vunpack.c.l.b16 %v112
  %v193 = vunpack.c.h.b16 %v112
  %v194 = vunpack.c.l.b16 %v113
  %v195 = vunpack.c.l.b16 %v114
  %v196 = vunpack.c.h.b16 %v114
  %v197 = vunpack.c.l.b16 %v115
  %v198 = vunpack.c.l.b16 %v116
  %v199 = vunpack.c.h.b16 %v116
  %v200 = vunpack.c.l.b16 %v117
  %v201 = vunpack.c.l.b16 %v118
  %v202 = vunpack.c.h.b16 %v118
  %v203 = vunpack.c.l.b16 %v119
  %v204 = vunpack.c.l.b16 %v120
  %v205 = vunpack.c.h.b16 %v120
  %v206 = vunpack.c.l.b16 %v121
  %v207 = vunpack.c.l.b16 %v122
  %v208 = vunpack.c.h.b16 %v122
  %v209 = vunpack.c.l.b16 %v123
  %v210 = vunpack.c.l.b16 %v124
  %v211 = vunpack.c.h.b16 %v124
  %v212 = vunpack.c.l.b16 %v125
  %v213 = vunpack.c.l.b16 %v126
  %v214 = vunpack.c.h.b16 %v126
  %v215 = vunpack.c.l.b16 %v127
  %v216 = vpack.c.b16 %v171, %v168
  %v217 = vpack.c.b16 %v172, %v169
  %v218 = vpack.c.b16 %v173, %v170
  %v219 = vpack.c.b16 %v177, %v174
  %v220 = vpack.c.b16 %v178, %v175
  %v221 = vpack.c.b16 %v179, %v176
  %v222 = vpack.c.b16 %v183, %v180
  %v223 = vpack.c.b16 %v184, %v181
  %v224 = vpack.c.b16 %v185, %v182
  %v225 = vpack.c.b16 %v189, %v186
  %v226 = vpack.c.b16 %v190, %v187
  %v227 = vpack.c.b16 %v191, %v188
  %v228 = vpack.c.b16 %v195, %v192
  %v229 = vpack.c.b16 %v196, %v193
  %v230 = vpack.c.b16 %v197, %v194
  %v231 = vpack.c.b16 %v201, %v198
  %v232 = vpack.c.b16 %v202, %v199
  %v233 = vpack.c.b16 %v203, %v200
  %v234 = vpack.c.b16 %v207, %v204
  %v235 = vpack.c.b16 %v208, %v205
  %v236 = vpack.c.b16 %v209, %v206
  %v237 = vpack.c.b16 %v213, %v210
  %v238 = vpack.c.b16 %v214, %v211
  %v239 = vpack.c.b16 %v215, %v212
  %264 = vmatpush.bf16.msra.mxu0 %v237
  %265 = vmatpush.bf16.msra.mxu0 %v234
  %266 = vmatpush.bf16.msra.mxu0 %v231
  %267 = vmatpush.bf16.msra.mxu0 %v228
  %268 = vmatpush.bf16.msra.mxu0 %v225
  %269 = vmatpush.bf16.msra.mxu0 %v222
  %270 = vmatpush.bf16.msra.mxu0 %v219
  %271 = vmatpush.bf16.msra.mxu0 %v216
  %272 = vmatmul.bf16.gmra.mxu0 %v80
  %v273 = vpop.f32.mrf.mxu0
  %v274 = vadd.f32 %v130, %v273
  %v275 = vpop.f32.mrf.mxu0
  %v276 = vadd.f32 %v130, %v275
  %277 = vmatmul.bf16.gmra.mxu0 %v81
  %v278 = vpop.f32.mrf.mxu0
  %v279 = vadd.f32 %v130, %v278
  %v280 = vpop.f32.mrf.mxu0
  %v281 = vadd.f32 %v130, %v280
  %282 = vmatmul.bf16.gmra.mxu0 %v82
  %v283 = vpop.f32.mrf.mxu0
  %v284 = vadd.f32 %v130, %v283
  %v285 = vpop.f32.mrf.mxu0
  %v286 = vadd.f32 %v130, %v285
  %287 = vmatmul.bf16.gmra.mxu0 %v83
  %v288 = vpop.f32.mrf.mxu0
  %v289 = vadd.f32 %v130, %v288
  %v290 = vpop.f32.mrf.mxu0
  %v291 = vadd.f32 %v130, %v290
  %292 = vmatmul.bf16.gmra.mxu0 %v84
  %v293 = vpop.f32.mrf.mxu0
  %v294 = vadd.f32 %v130, %v293
  %v295 = vpop.f32.mrf.mxu0
  %v296 = vadd.f32 %v130, %v295
  %297 = vmatmul.bf16.gmra.mxu0 %v85
  %v298 = vpop.f32.mrf.mxu0
  %v299 = vadd.f32 %v130, %v298
  %v300 = vpop.f32.mrf.mxu0
  %v301 = vadd.f32 %v130, %v300
  %302 = vmatmul.bf16.gmra.mxu0 %v86
  %v303 = vpop.f32.mrf.mxu0
  %v304 = vadd.f32 %v130, %v303
  %v305 = vpop.f32.mrf.mxu0
  %v306 = vadd.f32 %v130, %v305
  %307 = vmatmul.bf16.gmra.mxu0 %v87
  %v308 = vpop.f32.mrf.mxu0
  %v309 = vadd.f32 %v130, %v308
  %v310 = vpop.f32.mrf.mxu0
  %v311 = vadd.f32 %v130, %v310
  %312 = vmatmul.bf16.gmra.mxu0 %v88
  %v313 = vpop.f32.mrf.mxu0
  %v314 = vadd.f32 %v130, %v313
  %v315 = vpop.f32.mrf.mxu0
  %v316 = vadd.f32 %v130, %v315
  %317 = vmatmul.bf16.gmra.mxu0 %v89
  %v318 = vpop.f32.mrf.mxu0
  %v319 = vadd.f32 %v130, %v318
  %v320 = vpop.f32.mrf.mxu0
  %v321 = vadd.f32 %v130, %v320
  %322 = vmatmul.bf16.gmra.mxu0 %v90
  %v323 = vpop.f32.mrf.mxu0
  %v324 = vadd.f32 %v130, %v323
  %v325 = vpop.f32.mrf.mxu0
  %v326 = vadd.f32 %v130, %v325
  %327 = vmatmul.bf16.gmra.mxu0 %v91
  %v328 = vpop.f32.mrf.mxu0
  %v329 = vadd.f32 %v130, %v328
  %v330 = vpop.f32.mrf.mxu0
  %v331 = vadd.f32 %v130, %v330
  %332 = vmatmul.bf16.gmra.mxu0 %v92
  %v333 = vpop.f32.mrf.mxu0
  %v334 = vadd.f32 %v130, %v333
  %v335 = vpop.f32.mrf.mxu0
  %v336 = vadd.f32 %v130, %v335
  %337 = vmatmul.bf16.gmra.mxu0 %v93
  %v338 = vpop.f32.mrf.mxu0
  %v339 = vadd.f32 %v130, %v338
  %v340 = vpop.f32.mrf.mxu0
  %v341 = vadd.f32 %v130, %v340
  %342 = vmatmul.bf16.gmra.mxu0 %v94
  %v343 = vpop.f32.mrf.mxu0
  %v344 = vadd.f32 %v130, %v343
  %v345 = vpop.f32.mrf.mxu0
  %v346 = vadd.f32 %v130, %v345
  %347 = vmatmul.bf16.gmra.mxu0 %v95
  %v348 = vpop.f32.mrf.mxu0
  %v349 = vadd.f32 %v130, %v348
  %v350 = vpop.f32.mrf.mxu0
  %v351 = vadd.f32 %v130, %v350
  %352 = vdwg.mxu0
  %353 = vmatpush.bf16.msra.mxu0 %v238
  %354 = vmatpush.bf16.msra.mxu0 %v235
  %355 = vmatpush.bf16.msra.mxu0 %v232
  %356 = vmatpush.bf16.msra.mxu0 %v229
  %357 = vmatpush.bf16.msra.mxu0 %v226
  %358 = vmatpush.bf16.msra.mxu0 %v223
  %359 = vmatpush.bf16.msra.mxu0 %v220
  %360 = vmatpush.bf16.msra.mxu0 %v217
  %361 = vmatmul.bf16.gmra.mxu0 %v80
  %v362 = vpop.f32.mrf.mxu0
  %v363 = vadd.f32 %v131, %v362
  %v364 = vpop.f32.mrf.mxu0
  %v365 = vadd.f32 %v131, %v364
  %366 = vmatmul.bf16.gmra.mxu0 %v81
  %v367 = vpop.f32.mrf.mxu0
  %v368 = vadd.f32 %v131, %v367
  %v369 = vpop.f32.mrf.mxu0
  %v370 = vadd.f32 %v131, %v369
  %371 = vmatmul.bf16.gmra.mxu0 %v82
  %v372 = vpop.f32.mrf.mxu0
  %v373 = vadd.f32 %v131, %v372
  %v374 = vpop.f32.mrf.mxu0
  %v375 = vadd.f32 %v131, %v374
  %376 = vmatmul.bf16.gmra.mxu0 %v83
  %v377 = vpop.f32.mrf.mxu0
  %v378 = vadd.f32 %v131, %v377
  %v379 = vpop.f32.mrf.mxu0
  %v380 = vadd.f32 %v131, %v379
  %381 = vmatmul.bf16.gmra.mxu0 %v84
  %v382 = vpop.f32.mrf.mxu0
  %v383 = vadd.f32 %v131, %v382
  %v384 = vpop.f32.mrf.mxu0
  %v385 = vadd.f32 %v131, %v384
  %386 = vmatmul.bf16.gmra.mxu0 %v85
  %v387 = vpop.f32.mrf.mxu0
  %v388 = vadd.f32 %v131, %v387
  %v389 = vpop.f32.mrf.mxu0
  %v390 = vadd.f32 %v131, %v389
  %391 = vmatmul.bf16.gmra.mxu0 %v86
  %v392 = vpop.f32.mrf.mxu0
  %v393 = vadd.f32 %v131, %v392
  %v394 = vpop.f32.mrf.mxu0
  %v395 = vadd.f32 %v131, %v394
  %396 = vmatmul.bf16.gmra.mxu0 %v87
  %v397 = vpop.f32.mrf.mxu0
  %v398 = vadd.f32 %v131, %v397
  %v399 = vpop.f32.mrf.mxu0
  %v400 = vadd.f32 %v131, %v399
  %401 = vmatmul.bf16.gmra.mxu0 %v88
  %v402 = vpop.f32.mrf.mxu0
  %v403 = vadd.f32 %v131, %v402
  %v404 = vpop.f32.mrf.mxu0
  %v405 = vadd.f32 %v131, %v404
  %406 = vmatmul.bf16.gmra.mxu0 %v89
  %v407 = vpop.f32.mrf.mxu0
  %v408 = vadd.f32 %v131, %v407
  %v409 = vpop.f32.mrf.mxu0
  %v410 = vadd.f32 %v131, %v409
  %411 = vmatmul.bf16.gmra.mxu0 %v90
  %v412 = vpop.f32.mrf.mxu0
  %v413 = vadd.f32 %v131, %v412
  %v414 = vpop.f32.mrf.mxu0
  %v415 = vadd.f32 %v131, %v414
  %416 = vmatmul.bf16.gmra.mxu0 %v91
  %v417 = vpop.f32.mrf.mxu0
  %v418 = vadd.f32 %v131, %v417
  %v419 = vpop.f32.mrf.mxu0
  %v420 = vadd.f32 %v131, %v419
  %421 = vmatmul.bf16.gmra.mxu0 %v92
  %v422 = vpop.f32.mrf.mxu0
  %v423 = vadd.f32 %v131, %v422
  %v424 = vpop.f32.mrf.mxu0
  %v425 = vadd.f32 %v131, %v424
  %426 = vmatmul.bf16.gmra.mxu0 %v93
  %v427 = vpop.f32.mrf.mxu0
  %v428 = vadd.f32 %v131, %v427
  %v429 = vpop.f32.mrf.mxu0
  %v430 = vadd.f32 %v131, %v429
  %431 = vmatmul.bf16.gmra.mxu0 %v94
  %v432 = vpop.f32.mrf.mxu0
  %v433 = vadd.f32 %v131, %v432
  %v434 = vpop.f32.mrf.mxu0
  %v435 = vadd.f32 %v131, %v434
  %436 = vmatmul.bf16.gmra.mxu0 %v95
  %v437 = vpop.f32.mrf.mxu0
  %v438 = vadd.f32 %v131, %v437
  %v439 = vpop.f32.mrf.mxu0
  %v440 = vadd.f32 %v131, %v439
  %441 = vdwg.mxu0
  %442 = vmatpush.bf16.msra.mxu0 %v239
  %443 = vmatpush.bf16.msra.mxu0 %v236
  %444 = vmatpush.bf16.msra.mxu0 %v233
  %445 = vmatpush.bf16.msra.mxu0 %v230
  %446 = vmatpush.bf16.msra.mxu0 %v227
  %447 = vmatpush.bf16.msra.mxu0 %v224
  %448 = vmatpush.bf16.msra.mxu0 %v221
  %449 = vmatpush.bf16.msra.mxu0 %v218
  %450 = vmatmul.bf16.gmra.mxu0 %v80
  %v451 = vpop.f32.mrf.mxu0
  %v452 = vadd.f32 %v132, %v451
  %v453 = vpop.f32.mrf.mxu0
  %v454 = vadd.f32 %v132, %v453
  %455 = vmatmul.bf16.gmra.mxu0 %v81
  %v456 = vpop.f32.mrf.mxu0
  %v457 = vadd.f32 %v132, %v456
  %v458 = vpop.f32.mrf.mxu0
  %v459 = vadd.f32 %v132, %v458
  %460 = vmatmul.bf16.gmra.mxu0 %v82
  %v461 = vpop.f32.mrf.mxu0
  %v462 = vadd.f32 %v132, %v461
  %v463 = vpop.f32.mrf.mxu0
  %v464 = vadd.f32 %v132, %v463
  %465 = vmatmul.bf16.gmra.mxu0 %v83
  %v466 = vpop.f32.mrf.mxu0
  %v467 = vadd.f32 %v132, %v466
  %v468 = vpop.f32.mrf.mxu0
  %v469 = vadd.f32 %v132, %v468
  %470 = vmatmul.bf16.gmra.mxu0 %v84
  %v471 = vpop.f32.mrf.mxu0
  %v472 = vadd.f32 %v132, %v471
  %v473 = vpop.f32.mrf.mxu0
  %v474 = vadd.f32 %v132, %v473
  %475 = vmatmul.bf16.gmra.mxu0 %v85
  %v476 = vpop.f32.mrf.mxu0
  %v477 = vadd.f32 %v132, %v476
  %v478 = vpop.f32.mrf.mxu0
  %v479 = vadd.f32 %v132, %v478
  %480 = vmatmul.bf16.gmra.mxu0 %v86
  %v481 = vpop.f32.mrf.mxu0
  %v482 = vadd.f32 %v132, %v481
  %v483 = vpop.f32.mrf.mxu0
  %v484 = vadd.f32 %v132, %v483
  %485 = vmatmul.bf16.gmra.mxu0 %v87
  %v486 = vpop.f32.mrf.mxu0
  %v487 = vadd.f32 %v132, %v486
  %v488 = vpop.f32.mrf.mxu0
  %v489 = vadd.f32 %v132, %v488
  %490 = vmatmul.bf16.gmra.mxu0 %v88
  %v491 = vpop.f32.mrf.mxu0
  %v492 = vadd.f32 %v132, %v491
  %v493 = vpop.f32.mrf.mxu0
  %v494 = vadd.f32 %v132, %v493
  %495 = vmatmul.bf16.gmra.mxu0 %v89
  %v496 = vpop.f32.mrf.mxu0
  %v497 = vadd.f32 %v132, %v496
  %v498 = vpop.f32.mrf.mxu0
  %v499 = vadd.f32 %v132, %v498
  %500 = vmatmul.bf16.gmra.mxu0 %v90
  %v501 = vpop.f32.mrf.mxu0
  %v502 = vadd.f32 %v132, %v501
  %v503 = vpop.f32.mrf.mxu0
  %v504 = vadd.f32 %v132, %v503
  %505 = vmatmul.bf16.gmra.mxu0 %v91
  %v506 = vpop.f32.mrf.mxu0
  %v507 = vadd.f32 %v132, %v506
  %v508 = vpop.f32.mrf.mxu0
  %v509 = vadd.f32 %v132, %v508
  %510 = vmatmul.bf16.gmra.mxu0 %v92
  %v511 = vpop.f32.mrf.mxu0
  %v512 = vadd.f32 %v132, %v511
  %v513 = vpop.f32.mrf.mxu0
  %v514 = vadd.f32 %v132, %v513
  %515 = vmatmul.bf16.gmra.mxu0 %v93
  %v516 = vpop.f32.mrf.mxu0
  %v517 = vadd.f32 %v132, %v516
  %v518 = vpop.f32.mrf.mxu0
  %v519 = vadd.f32 %v132, %v518
  %520 = vmatmul.bf16.gmra.mxu0 %v94
  %v521 = vpop.f32.mrf.mxu0
  %v522 = vadd.f32 %v132, %v521
  %v523 = vpop.f32.mrf.mxu0
  %v524 = vadd.f32 %v132, %v523
  %525 = vmatmul.bf16.gmra.mxu0 %v95
  %v526 = vpop.f32.mrf.mxu0
  %v527 = vadd.f32 %v132, %v526
  %v528 = vpop.f32.mrf.mxu0
  %v529 = vadd.f32 %v132, %v528
  %530 = vdwg.mxu0
  %v531 = vpack.c.bf16 %v274, %v274
  %v532 = vpack.c.bf16 %v276, %v276
  %v533 = vpack.c.bf16 %v279, %v279
  %v534 = vpack.c.bf16 %v281, %v281
  %v535 = vpack.c.bf16 %v284, %v284
  %v536 = vpack.c.bf16 %v286, %v286
  %v537 = vpack.c.bf16 %v289, %v289
  %v538 = vpack.c.bf16 %v291, %v291
  %v539 = vpack.c.bf16 %v294, %v294
  %v540 = vpack.c.bf16 %v296, %v296
  %v541 = vpack.c.bf16 %v299, %v299
  %v542 = vpack.c.bf16 %v301, %v301
  %v543 = vpack.c.bf16 %v304, %v304
  %v544 = vpack.c.bf16 %v306, %v306
  %v545 = vpack.c.bf16 %v309, %v309
  %v546 = vpack.c.bf16 %v311, %v311
  %v547 = vpack.c.bf16 %v314, %v314
  %v548 = vpack.c.bf16 %v316, %v316
  %v549 = vpack.c.bf16 %v319, %v319
  %v550 = vpack.c.bf16 %v321, %v321
  %v551 = vpack.c.bf16 %v324, %v324
  %v552 = vpack.c.bf16 %v326, %v326
  %v553 = vpack.c.bf16 %v329, %v329
  %v554 = vpack.c.bf16 %v331, %v331
  %v555 = vpack.c.bf16 %v334, %v334
  %v556 = vpack.c.bf16 %v336, %v336
  %v557 = vpack.c.bf16 %v339, %v339
  %v558 = vpack.c.bf16 %v341, %v341
  %v559 = vpack.c.bf16 %v344, %v344
  %v560 = vpack.c.bf16 %v346, %v346
  %v561 = vpack.c.bf16 %v349, %v349
  %v562 = vpack.c.bf16 %v351, %v351
  %v563 = vpack.c.bf16 %v363, %v363
  %v564 = vpack.c.bf16 %v365, %v365
  %v565 = vpack.c.bf16 %v368, %v368
  %v566 = vpack.c.bf16 %v370, %v370
  %v567 = vpack.c.bf16 %v373, %v373
  %v568 = vpack.c.bf16 %v375, %v375
  %v569 = vpack.c.bf16 %v378, %v378
  %v570 = vpack.c.bf16 %v380, %v380
  %v571 = vpack.c.bf16 %v383, %v383
  %v572 = vpack.c.bf16 %v385, %v385
  %v573 = vpack.c.bf16 %v388, %v388
  %v574 = vpack.c.bf16 %v390, %v390
  %v575 = vpack.c.bf16 %v393, %v393
  %v576 = vpack.c.bf16 %v395, %v395
  %v577 = vpack.c.bf16 %v398, %v398
  %v578 = vpack.c.bf16 %v400, %v400
  %v579 = vpack.c.bf16 %v403, %v403
  %v580 = vpack.c.bf16 %v405, %v405
  %v581 = vpack.c.bf16 %v408, %v408
  %v582 = vpack.c.bf16 %v410, %v410
  %v583 = vpack.c.bf16 %v413, %v413
  %v584 = vpack.c.bf16 %v415, %v415
  %v585 = vpack.c.bf16 %v418, %v418
  %v586 = vpack.c.bf16 %v420, %v420
  %v587 = vpack.c.bf16 %v423, %v423
  %v588 = vpack.c.bf16 %v425, %v425
  %v589 = vpack.c.bf16 %v428, %v428
  %v590 = vpack.c.bf16 %v430, %v430
  %v591 = vpack.c.bf16 %v433, %v433
  %v592 = vpack.c.bf16 %v435, %v435
  %v593 = vpack.c.bf16 %v438, %v438
  %v594 = vpack.c.bf16 %v440, %v440
  %v595 = vpack.c.bf16 %v452, %v452
  %v596 = vpack.c.bf16 %v454, %v454
  %v597 = vpack.c.bf16 %v457, %v457
  %v598 = vpack.c.bf16 %v459, %v459
  %v599 = vpack.c.bf16 %v462, %v462
  %v600 = vpack.c.bf16 %v464, %v464
  %v601 = vpack.c.bf16 %v467, %v467
  %v602 = vpack.c.bf16 %v469, %v469
  %v603 = vpack.c.bf16 %v472, %v472
  %v604 = vpack.c.bf16 %v474, %v474
  %v605 = vpack.c.bf16 %v477, %v477
  %v606 = vpack.c.bf16 %v479, %v479
  %v607 = vpack.c.bf16 %v482, %v482
  %v608 = vpack.c.bf16 %v484, %v484
  %v609 = vpack.c.bf16 %v487, %v487
  %v610 = vpack.c.bf16 %v489, %v489
  %v611 = vpack.c.bf16 %v492, %v492
  %v612 = vpack.c.bf16 %v494, %v494
  %v613 = vpack.c.bf16 %v497, %v497
  %v614 = vpack.c.bf16 %v499, %v499
  %v615 = vpack.c.bf16 %v502, %v502
  %v616 = vpack.c.bf16 %v504, %v504
  %v617 = vpack.c.bf16 %v507, %v507
  %v618 = vpack.c.bf16 %v509, %v509
  %v619 = vpack.c.bf16 %v512, %v512
  %v620 = vpack.c.bf16 %v514, %v514
  %v621 = vpack.c.bf16 %v517, %v517
  %v622 = vpack.c.bf16 %v519, %v519
  %v623 = vpack.c.bf16 %v522, %v522
  %v624 = vpack.c.bf16 %v524, %v524
  %v625 = vpack.c.bf16 %v527, %v527
  %v626 = vpack.c.bf16 %v529, %v529
  %v627 = vld [vmem:[%s3] sm:$0xf]
  %v628 = vld [vmem:[%s3 + $0x4] sm:$0xf]
  %v629 = vld [vmem:[%s3 + $0x8] sm:$0xf]
  %v630 = vld [vmem:[%s3 + $0xc] sm:$0xf]
  %v631 = vld [vmem:[%s3 + $0x10] sm:$0xf]
  %v632 = vld [vmem:[%s3 + $0x14] sm:$0xf]
  %v633 = vld [vmem:[%s3 + $0x18] sm:$0xf]
  %v634 = vld [vmem:[%s3 + $0x1c] sm:$0xf]
  %v635 = vld [vmem:[%s3 + $0x20] sm:$0xf]
  %v636 = vld [vmem:[%s3 + $0x24] sm:$0xf]
  %v637 = vld [vmem:[%s3 + $0x28] sm:$0xf]
  %v638 = vld [vmem:[%s3 + $0x2c] sm:$0xf]
  %v639 = vld [vmem:[%s3 + $0x30] sm:$0xf]
  %v640 = vld [vmem:[%s3 + $0x34] sm:$0xf]
  %v641 = vld [vmem:[%s3 + $0x38] sm:$0xf]
  %v642 = vld [vmem:[%s3 + $0x3c] sm:$0xf]
  %v643 = vlaneseq
  %v644 = vshrl.u32 %v643, 7
  %v645 = vadd.s32 %v644, 8
  %v646 = vadd.s32 %v644, 16
  %v647 = vadd.s32 %v644, 24
  %v648 = vadd.s32 %v644, 32
  %v649 = vadd.s32 %v644, 40
  %v650 = vadd.s32 %v644, 48
  %v651 = vadd.s32 %v644, 56
  %v652 = vadd.s32 %v644, 64
  %v653 = vadd.s32 %v644, 72
  %v654 = vadd.s32 %v644, 80
  %v655 = vadd.s32 %v644, 88
  %v656 = vadd.s32 %v644, 96
  %v657 = vadd.s32 %v644, 104
  %v658 = vadd.s32 %v644, 112
  %v659 = vadd.s32 %v644, 120
  %v660 = vlaneseq
  %v661 = vand.u32 %v660, 127
  %vm662 = vcmp.le.s32.totalorder %v661, %v644
  %vm663 = vcmp.le.s32.totalorder %v661, %v645
  %vm664 = vcmp.le.s32.totalorder %v661, %v646
  %vm665 = vcmp.le.s32.totalorder %v661, %v647
  %vm666 = vcmp.le.s32.totalorder %v661, %v648
  %vm667 = vcmp.le.s32.totalorder %v661, %v649
  %vm668 = vcmp.le.s32.totalorder %v661, %v650
  %vm669 = vcmp.le.s32.totalorder %v661, %v651
  %vm670 = vcmp.le.s32.totalorder %v661, %v652
  %vm671 = vcmp.le.s32.totalorder %v661, %v653
  %vm672 = vcmp.le.s32.totalorder %v661, %v654
  %vm673 = vcmp.le.s32.totalorder %v661, %v655
  %vm674 = vcmp.le.s32.totalorder %v661, %v656
  %vm675 = vcmp.le.s32.totalorder %v661, %v657
  %vm676 = vcmp.le.s32.totalorder %v661, %v658
  %vm677 = vcmp.le.s32.totalorder %v661, %v659
  %vm678 = vcmp.ge.s32.totalorder %v661, 0
  %vm679 = vcmp.lt.s32.totalorder %v661, 64
  %vm680 = vmand %vm678, %vm679
  %v681 = vsel %vm680, 1, 0
  %vm682 = vcmp.eq.s32.totalorder %v681, 1
  %vm683 = vmpackc.low %vm682, %vm682
  %v684 = vsel %vm683, %v531, 0
  %v685 = vsel %vm683, %v532, 0
  %v686 = vsel %vm683, %v533, 0
  %v687 = vsel %vm683, %v534, 0
  %v688 = vsel %vm683, %v535, 0
  %v689 = vsel %vm683, %v536, 0
  %v690 = vsel %vm683, %v537, 0
  %v691 = vsel %vm683, %v538, 0
  %v692 = vsel %vm683, %v539, 0
  %v693 = vsel %vm683, %v540, 0
  %v694 = vsel %vm683, %v541, 0
  %v695 = vsel %vm683, %v542, 0
  %v696 = vsel %vm683, %v543, 0
  %v697 = vsel %vm683, %v544, 0
  %v698 = vsel %vm683, %v545, 0
  %v699 = vsel %vm683, %v546, 0
  %v716 = vunpack.c.l.b16 %v684
  %v717 = vunpack.c.l.b16 %v685
  %v718 = vunpack.c.l.b16 %v686
  %v719 = vunpack.c.l.b16 %v687
  %v720 = vunpack.c.l.b16 %v688
  %v721 = vunpack.c.l.b16 %v689
  %v722 = vunpack.c.l.b16 %v690
  %v723 = vunpack.c.l.b16 %v691
  %v724 = vunpack.c.l.b16 %v692
  %v725 = vunpack.c.l.b16 %v693
  %v726 = vunpack.c.l.b16 %v694
  %v727 = vunpack.c.l.b16 %v695
  %v728 = vunpack.c.l.b16 %v696
  %v729 = vunpack.c.l.b16 %v697
  %v730 = vunpack.c.l.b16 %v698
  %v731 = vunpack.c.l.b16 %v699
  %v732 = vpack.c.b16 %v717, %v716
  %v733 = vpack.c.b16 %v719, %v718
  %v734 = vpack.c.b16 %v721, %v720
  %v735 = vpack.c.b16 %v723, %v722
  %v736 = vpack.c.b16 %v725, %v724
  %v737 = vpack.c.b16 %v727, %v726
  %v738 = vpack.c.b16 %v729, %v728
  %v739 = vpack.c.b16 %v731, %v730
  %v764 = vunpack.c.l.b16 %v627
  %v765 = vunpack.c.l.b16 %v628
  %v766 = vunpack.c.l.b16 %v629
  %v767 = vunpack.c.l.b16 %v630
  %v768 = vunpack.c.l.b16 %v631
  %v769 = vunpack.c.l.b16 %v632
  %v770 = vunpack.c.l.b16 %v633
  %v771 = vunpack.c.l.b16 %v634
  %v772 = vunpack.c.l.b16 %v635
  %v773 = vunpack.c.l.b16 %v636
  %v774 = vunpack.c.l.b16 %v637
  %v775 = vunpack.c.l.b16 %v638
  %v776 = vunpack.c.l.b16 %v639
  %v777 = vunpack.c.l.b16 %v640
  %v778 = vunpack.c.l.b16 %v641
  %v779 = vunpack.c.l.b16 %v642
  %v780 = vpack.c.b16 %v765, %v764
  %v781 = vpack.c.b16 %v767, %v766
  %v782 = vpack.c.b16 %v769, %v768
  %v783 = vpack.c.b16 %v771, %v770
  %v784 = vpack.c.b16 %v773, %v772
  %v785 = vpack.c.b16 %v775, %v774
  %v786 = vpack.c.b16 %v777, %v776
  %v787 = vpack.c.b16 %v779, %v778
  %796 = vmatpush.bf16.msra.mxu0 %v787
  %797 = vmatpush.bf16.msra.mxu0 %v786
  %798 = vmatpush.bf16.msra.mxu0 %v785
  %799 = vmatpush.bf16.msra.mxu0 %v784
  %800 = vmatpush.bf16.msra.mxu0 %v783
  %801 = vmatpush.bf16.msra.mxu0 %v782
  %802 = vmatpush.bf16.msra.mxu0 %v781
  %803 = vmatpush.bf16.msra.mxu0 %v780
  %804 = vmatmul.bf16.gmra.mxu0 %v732
  %v805 = vpop.f32.mrf.mxu0
  %v806 = vadd.f32 0.0, %v805
  %v807 = vpop.f32.mrf.mxu0
  %v808 = vadd.f32 0.0, %v807
  %809 = vmatmul.bf16.gmra.mxu0 %v733
  %v810 = vpop.f32.mrf.mxu0
  %v811 = vadd.f32 0.0, %v810
  %v812 = vpop.f32.mrf.mxu0
  %v813 = vadd.f32 0.0, %v812
  %814 = vmatmul.bf16.gmra.mxu0 %v734
  %v815 = vpop.f32.mrf.mxu0
  %v816 = vadd.f32 0.0, %v815
  %v817 = vpop.f32.mrf.mxu0
  %v818 = vadd.f32 0.0, %v817
  %819 = vmatmul.bf16.gmra.mxu0 %v735
  %v820 = vpop.f32.mrf.mxu0
  %v821 = vadd.f32 0.0, %v820
  %v822 = vpop.f32.mrf.mxu0
  %v823 = vadd.f32 0.0, %v822
  %824 = vmatmul.bf16.gmra.mxu0 %v736
  %v825 = vpop.f32.mrf.mxu0
  %v826 = vadd.f32 0.0, %v825
  %v827 = vpop.f32.mrf.mxu0
  %v828 = vadd.f32 0.0, %v827
  %829 = vmatmul.bf16.gmra.mxu0 %v737
  %v830 = vpop.f32.mrf.mxu0
  %v831 = vadd.f32 0.0, %v830
  %v832 = vpop.f32.mrf.mxu0
  %v833 = vadd.f32 0.0, %v832
  %834 = vmatmul.bf16.gmra.mxu0 %v738
  %v835 = vpop.f32.mrf.mxu0
  %v836 = vadd.f32 0.0, %v835
  %v837 = vpop.f32.mrf.mxu0
  %v838 = vadd.f32 0.0, %v837
  %839 = vmatmul.bf16.gmra.mxu0 %v739
  %v840 = vpop.f32.mrf.mxu0
  %v841 = vadd.f32 0.0, %v840
  %v842 = vpop.f32.mrf.mxu0
  %v843 = vadd.f32 0.0, %v842
  %844 = vdwg.mxu0
  %s846 = sor.u32 256, 1
  %847 = vrot.lane.b32.xlu0 %v806, %s846
  %v848 = vpop.permute.xlu0 %847
  %s850 = sor.u32 256, 9
  %851 = vrot.lane.b32.xlu0 %v808, %s850
  %v852 = vpop.permute.xlu0 %851
  %s854 = sor.u32 256, 17
  %855 = vrot.lane.b32.xlu0 %v811, %s854
  %v856 = vpop.permute.xlu0 %855
  %s858 = sor.u32 256, 25
  %859 = vrot.lane.b32.xlu0 %v813, %s858
  %v860 = vpop.permute.xlu0 %859
  %s862 = sor.u32 256, 33
  %863 = vrot.lane.b32.xlu0 %v816, %s862
  %v864 = vpop.permute.xlu0 %863
  %s866 = sor.u32 256, 41
  %867 = vrot.lane.b32.xlu0 %v818, %s866
  %v868 = vpop.permute.xlu0 %867
  %s870 = sor.u32 256, 49
  %871 = vrot.lane.b32.xlu0 %v821, %s870
  %v872 = vpop.permute.xlu0 %871
  %s874 = sor.u32 256, 57
  %875 = vrot.lane.b32.xlu0 %v823, %s874
  %v876 = vpop.permute.xlu0 %875
  %s878 = sor.u32 256, 65
  %879 = vrot.lane.b32.xlu0 %v826, %s878
  %v880 = vpop.permute.xlu0 %879
  %s882 = sor.u32 256, 73
  %883 = vrot.lane.b32.xlu0 %v828, %s882
  %v884 = vpop.permute.xlu0 %883
  %s886 = sor.u32 256, 81
  %887 = vrot.lane.b32.xlu0 %v831, %s886
  %v888 = vpop.permute.xlu0 %887
  %s890 = sor.u32 256, 89
  %891 = vrot.lane.b32.xlu0 %v833, %s890
  %v892 = vpop.permute.xlu0 %891
  %s894 = sor.u32 256, 97
  %895 = vrot.lane.b32.xlu0 %v836, %s894
  %v896 = vpop.permute.xlu0 %895
  %s898 = sor.u32 256, 105
  %899 = vrot.lane.b32.xlu0 %v838, %s898
  %v900 = vpop.permute.xlu0 %899
  %s902 = sor.u32 256, 113
  %903 = vrot.lane.b32.xlu0 %v841, %s902
  %v904 = vpop.permute.xlu0 %903
  %s906 = sor.u32 256, 121
  %907 = vrot.lane.b32.xlu0 %v843, %s906
  %v908 = vpop.permute.xlu0 %907
  %v909 = vsel %vm662, %v848, 0.0
  %v910 = vsel %vm663, %v852, 0.0
  %v911 = vsel %vm664, %v856, 0.0
  %v912 = vsel %vm665, %v860, 0.0
  %v913 = vsel %vm666, %v864, 0.0
  %v914 = vsel %vm667, %v868, 0.0
  %v915 = vsel %vm668, %v872, 0.0
  %v916 = vsel %vm669, %v876, 0.0
  %v917 = vsel %vm670, %v880, 0.0
  %v918 = vsel %vm671, %v884, 0.0
  %v919 = vsel %vm672, %v888, 0.0
  %v920 = vsel %vm673, %v892, 0.0
  %v921 = vsel %vm674, %v896, 0.0
  %v922 = vsel %vm675, %v900, 0.0
  %v923 = vsel %vm676, %v904, 0.0
  %v924 = vsel %vm677, %v908, 0.0
  %v941 = vunpack.c.l.b16 %v563
  %v942 = vunpack.c.l.b16 %v564
  %v943 = vunpack.c.l.b16 %v565
  %v944 = vunpack.c.l.b16 %v566
  %v945 = vunpack.c.l.b16 %v567
  %v946 = vunpack.c.l.b16 %v568
  %v947 = vunpack.c.l.b16 %v569
  %v948 = vunpack.c.l.b16 %v570
  %v949 = vunpack.c.l.b16 %v571
  %v950 = vunpack.c.l.b16 %v572
  %v951 = vunpack.c.l.b16 %v573
  %v952 = vunpack.c.l.b16 %v574
  %v953 = vunpack.c.l.b16 %v575
  %v954 = vunpack.c.l.b16 %v576
  %v955 = vunpack.c.l.b16 %v577
  %v956 = vunpack.c.l.b16 %v578
  %v957 = vpack.c.b16 %v942, %v941
  %v958 = vpack.c.b16 %v944, %v943
  %v959 = vpack.c.b16 %v946, %v945
  %v960 = vpack.c.b16 %v948, %v947
  %v961 = vpack.c.b16 %v950, %v949
  %v962 = vpack.c.b16 %v952, %v951
  %v963 = vpack.c.b16 %v954, %v953
  %v964 = vpack.c.b16 %v956, %v955
  %973 = vmatpush.bf16.xpose.msra.mxu0 %v964
  %974 = vmatpush.bf16.xpose.msra.mxu0 %v963
  %975 = vmatpush.bf16.xpose.msra.mxu0 %v962
  %976 = vmatpush.bf16.xpose.msra.mxu0 %v961
  %977 = vmatpush.bf16.xpose.msra.mxu0 %v960
  %978 = vmatpush.bf16.xpose.msra.mxu0 %v959
  %979 = vmatpush.bf16.xpose.msra.mxu0 %v958
  %980 = vmatpush.bf16.xpose.msra.mxu0 %v957
  %981 = vmatmul.bf16.gmra.mxu0 %v732
  %v982 = vpop.f32.mrf.mxu0
  %v983 = vadd.f32 %v909, %v982
  %v984 = vpop.f32.mrf.mxu0
  %v985 = vadd.f32 %v910, %v984
  %986 = vmatmul.bf16.gmra.mxu0 %v733
  %v987 = vpop.f32.mrf.mxu0
  %v988 = vadd.f32 %v911, %v987
  %v989 = vpop.f32.mrf.mxu0
  %v990 = vadd.f32 %v912, %v989
  %991 = vmatmul.bf16.gmra.mxu0 %v734
  %v992 = vpop.f32.mrf.mxu0
  %v993 = vadd.f32 %v913, %v992
  %v994 = vpop.f32.mrf.mxu0
  %v995 = vadd.f32 %v914, %v994
  %996 = vmatmul.bf16.gmra.mxu0 %v735
  %v997 = vpop.f32.mrf.mxu0
  %v998 = vadd.f32 %v915, %v997
  %v999 = vpop.f32.mrf.mxu0
  %v1000 = vadd.f32 %v916, %v999
  %1001 = vmatmul.bf16.gmra.mxu0 %v736
  %v1002 = vpop.f32.mrf.mxu0
  %v1003 = vadd.f32 %v917, %v1002
  %v1004 = vpop.f32.mrf.mxu0
  %v1005 = vadd.f32 %v918, %v1004
  %1006 = vmatmul.bf16.gmra.mxu0 %v737
  %v1007 = vpop.f32.mrf.mxu0
  %v1008 = vadd.f32 %v919, %v1007
  %v1009 = vpop.f32.mrf.mxu0
  %v1010 = vadd.f32 %v920, %v1009
  %1011 = vmatmul.bf16.gmra.mxu0 %v738
  %v1012 = vpop.f32.mrf.mxu0
  %v1013 = vadd.f32 %v921, %v1012
  %v1014 = vpop.f32.mrf.mxu0
  %v1015 = vadd.f32 %v922, %v1014
  %1016 = vmatmul.bf16.gmra.mxu0 %v739
  %v1017 = vpop.f32.mrf.mxu0
  %v1018 = vadd.f32 %v923, %v1017
  %v1019 = vpop.f32.mrf.mxu0
  %v1020 = vadd.f32 %v924, %v1019
  %1021 = vdwg.mxu0
  %1022 = vmax.xlane.f32.xlu0 %v983
  %v1023 = vpop.xlane.xlu0 %1022
  %1024 = vmax.xlane.f32.xlu0 %v985
  %v1025 = vpop.xlane.xlu0 %1024
  %1026 = vmax.xlane.f32.xlu0 %v988
  %v1027 = vpop.xlane.xlu0 %1026
  %1028 = vmax.xlane.f32.xlu0 %v990
  %v1029 = vpop.xlane.xlu0 %1028
  %1030 = vmax.xlane.f32.xlu0 %v993
  %v1031 = vpop.xlane.xlu0 %1030
  %1032 = vmax.xlane.f32.xlu0 %v995
  %v1033 = vpop.xlane.xlu0 %1032
  %1034 = vmax.xlane.f32.xlu0 %v998
  %v1035 = vpop.xlane.xlu0 %1034
  %1036 = vmax.xlane.f32.xlu0 %v1000
  %v1037 = vpop.xlane.xlu0 %1036
  %1038 = vmax.xlane.f32.xlu0 %v1003
  %v1039 = vpop.xlane.xlu0 %1038
  %1040 = vmax.xlane.f32.xlu0 %v1005
  %v1041 = vpop.xlane.xlu0 %1040
  %1042 = vmax.xlane.f32.xlu0 %v1008
  %v1043 = vpop.xlane.xlu0 %1042
  %1044 = vmax.xlane.f32.xlu0 %v1010
  %v1045 = vpop.xlane.xlu0 %1044
  %1046 = vmax.xlane.f32.xlu0 %v1013
  %v1047 = vpop.xlane.xlu0 %1046
  %1048 = vmax.xlane.f32.xlu0 %v1015
  %v1049 = vpop.xlane.xlu0 %1048
  %1050 = vmax.xlane.f32.xlu0 %v1018
  %v1051 = vpop.xlane.xlu0 %1050
  %1052 = vmax.xlane.f32.xlu0 %v1020
  %v1053 = vpop.xlane.xlu0 %1052
  %v1054 = vsub.f32 %v983, %v1023
  %v1055 = vsub.f32 %v985, %v1025
  %v1056 = vsub.f32 %v988, %v1027
  %v1057 = vsub.f32 %v990, %v1029
  %v1058 = vsub.f32 %v993, %v1031
  %v1059 = vsub.f32 %v995, %v1033
  %v1060 = vsub.f32 %v998, %v1035
  %v1061 = vsub.f32 %v1000, %v1037
  %v1062 = vsub.f32 %v1003, %v1039
  %v1063 = vsub.f32 %v1005, %v1041
  %v1064 = vsub.f32 %v1008, %v1043
  %v1065 = vsub.f32 %v1010, %v1045
  %v1066 = vsub.f32 %v1013, %v1047
  %v1067 = vsub.f32 %v1015, %v1049
  %v1068 = vsub.f32 %v1018, %v1051
  %v1069 = vsub.f32 %v1020, %v1053
  %v1070 = vmul.f32 %v1054, 1.442695
  %v1071 = vpow.pop %v1070
  %v1072 = vmul.f32 %v1055, 1.442695
  %v1073 = vpow.pop %v1072
  %v1074 = vmul.f32 %v1056, 1.442695
  %v1075 = vpow.pop %v1074
  %v1076 = vmul.f32 %v1057, 1.442695
  %v1077 = vpow.pop %v1076
  %v1078 = vmul.f32 %v1058, 1.442695
  %v1079 = vpow.pop %v1078
  %v1080 = vmul.f32 %v1059, 1.442695
  %v1081 = vpow.pop %v1080
  %v1082 = vmul.f32 %v1060, 1.442695
  %v1083 = vpow.pop %v1082
  %v1084 = vmul.f32 %v1061, 1.442695
  %v1085 = vpow.pop %v1084
  %v1086 = vmul.f32 %v1062, 1.442695
  %v1087 = vpow.pop %v1086
  %v1088 = vmul.f32 %v1063, 1.442695
  %v1089 = vpow.pop %v1088
  %v1090 = vmul.f32 %v1064, 1.442695
  %v1091 = vpow.pop %v1090
  %v1092 = vmul.f32 %v1065, 1.442695
  %v1093 = vpow.pop %v1092
  %v1094 = vmul.f32 %v1066, 1.442695
  %v1095 = vpow.pop %v1094
  %v1096 = vmul.f32 %v1067, 1.442695
  %v1097 = vpow.pop %v1096
  %v1098 = vmul.f32 %v1068, 1.442695
  %v1099 = vpow.pop %v1098
  %v1100 = vmul.f32 %v1069, 1.442695
  %v1101 = vpow.pop %v1100
  %1102 = vadd.xlane.f32.xlu0 %v1071
  %v1103 = vpop.xlane.xlu0 %1102
  %1104 = vadd.xlane.f32.xlu0 %v1073
  %v1105 = vpop.xlane.xlu0 %1104
  %1106 = vadd.xlane.f32.xlu0 %v1075
  %v1107 = vpop.xlane.xlu0 %1106
  %1108 = vadd.xlane.f32.xlu0 %v1077
  %v1109 = vpop.xlane.xlu0 %1108
  %1110 = vadd.xlane.f32.xlu0 %v1079
  %v1111 = vpop.xlane.xlu0 %1110
  %1112 = vadd.xlane.f32.xlu0 %v1081
  %v1113 = vpop.xlane.xlu0 %1112
  %1114 = vadd.xlane.f32.xlu0 %v1083
  %v1115 = vpop.xlane.xlu0 %1114
  %1116 = vadd.xlane.f32.xlu0 %v1085
  %v1117 = vpop.xlane.xlu0 %1116
  %1118 = vadd.xlane.f32.xlu0 %v1087
  %v1119 = vpop.xlane.xlu0 %1118
  %1120 = vadd.xlane.f32.xlu0 %v1089
  %v1121 = vpop.xlane.xlu0 %1120
  %1122 = vadd.xlane.f32.xlu0 %v1091
  %v1123 = vpop.xlane.xlu0 %1122
  %1124 = vadd.xlane.f32.xlu0 %v1093
  %v1125 = vpop.xlane.xlu0 %1124
  %1126 = vadd.xlane.f32.xlu0 %v1095
  %v1127 = vpop.xlane.xlu0 %1126
  %1128 = vadd.xlane.f32.xlu0 %v1097
  %v1129 = vpop.xlane.xlu0 %1128
  %1130 = vadd.xlane.f32.xlu0 %v1099
  %v1131 = vpop.xlane.xlu0 %1130
  %1132 = vadd.xlane.f32.xlu0 %v1101
  %v1133 = vpop.xlane.xlu0 %1132
  %v1134 = vrcp.pop %v1103
  %v1135 = vrcp.pop %v1105
  %v1136 = vrcp.pop %v1107
  %v1137 = vrcp.pop %v1109
  %v1138 = vrcp.pop %v1111
  %v1139 = vrcp.pop %v1113
  %v1140 = vrcp.pop %v1115
  %v1141 = vrcp.pop %v1117
  %v1142 = vrcp.pop %v1119
  %v1143 = vrcp.pop %v1121
  %v1144 = vrcp.pop %v1123
  %v1145 = vrcp.pop %v1125
  %v1146 = vrcp.pop %v1127
  %v1147 = vrcp.pop %v1129
  %v1148 = vrcp.pop %v1131
  %v1149 = vrcp.pop %v1133
  %v1150 = vpack.c.bf16 %v1073, %v1071
  %v1151 = vpack.c.bf16 %v1077, %v1075
  %v1152 = vpack.c.bf16 %v1081, %v1079
  %v1153 = vpack.c.bf16 %v1085, %v1083
  %v1154 = vpack.c.bf16 %v1089, %v1087
  %v1155 = vpack.c.bf16 %v1093, %v1091
  %v1156 = vpack.c.bf16 %v1097, %v1095
  %v1157 = vpack.c.bf16 %v1101, %v1099
  %v1174 = vunpack.c.l.b16 %v595
  %v1175 = vunpack.c.l.b16 %v596
  %v1176 = vunpack.c.l.b16 %v597
  %v1177 = vunpack.c.l.b16 %v598
  %v1178 = vunpack.c.l.b16 %v599
  %v1179 = vunpack.c.l.b16 %v600
  %v1180 = vunpack.c.l.b16 %v601
  %v1181 = vunpack.c.l.b16 %v602
  %v1182 = vunpack.c.l.b16 %v603
  %v1183 = vunpack.c.l.b16 %v604
  %v1184 = vunpack.c.l.b16 %v605
  %v1185 = vunpack.c.l.b16 %v606
  %v1186 = vunpack.c.l.b16 %v607
  %v1187 = vunpack.c.l.b16 %v608
  %v1188 = vunpack.c.l.b16 %v609
  %v1189 = vunpack.c.l.b16 %v610
  %v1190 = vpack.c.b16 %v1175, %v1174
  %v1191 = vpack.c.b16 %v1177, %v1176
  %v1192 = vpack.c.b16 %v1179, %v1178
  %v1193 = vpack.c.b16 %v1181, %v1180
  %v1194 = vpack.c.b16 %v1183, %v1182
  %v1195 = vpack.c.b16 %v1185, %v1184
  %v1196 = vpack.c.b16 %v1187, %v1186
  %v1197 = vpack.c.b16 %v1189, %v1188
  %1206 = vmatpush.bf16.msra.mxu0 %v1197
  %1207 = vmatpush.bf16.msra.mxu0 %v1196
  %1208 = vmatpush.bf16.msra.mxu0 %v1195
  %1209 = vmatpush.bf16.msra.mxu0 %v1194
  %1210 = vmatpush.bf16.msra.mxu0 %v1193
  %1211 = vmatpush.bf16.msra.mxu0 %v1192
  %1212 = vmatpush.bf16.msra.mxu0 %v1191
  %1213 = vmatpush.bf16.msra.mxu0 %v1190
  %1214 = vmatmul.bf16.gmra.mxu0 %v1150
  %v1215 = vpop.f32.mrf.mxu0
  %v1216 = vadd.f32 0.0, %v1215
  %v1217 = vpop.f32.mrf.mxu0
  %v1218 = vadd.f32 0.0, %v1217
  %1219 = vmatmul.bf16.gmra.mxu0 %v1151
  %v1220 = vpop.f32.mrf.mxu0
  %v1221 = vadd.f32 0.0, %v1220
  %v1222 = vpop.f32.mrf.mxu0
  %v1223 = vadd.f32 0.0, %v1222
  %1224 = vmatmul.bf16.gmra.mxu0 %v1152
  %v1225 = vpop.f32.mrf.mxu0
  %v1226 = vadd.f32 0.0, %v1225
  %v1227 = vpop.f32.mrf.mxu0
  %v1228 = vadd.f32 0.0, %v1227
  %1229 = vmatmul.bf16.gmra.mxu0 %v1153
  %v1230 = vpop.f32.mrf.mxu0
  %v1231 = vadd.f32 0.0, %v1230
  %v1232 = vpop.f32.mrf.mxu0
  %v1233 = vadd.f32 0.0, %v1232
  %1234 = vmatmul.bf16.gmra.mxu0 %v1154
  %v1235 = vpop.f32.mrf.mxu0
  %v1236 = vadd.f32 0.0, %v1235
  %v1237 = vpop.f32.mrf.mxu0
  %v1238 = vadd.f32 0.0, %v1237
  %1239 = vmatmul.bf16.gmra.mxu0 %v1155
  %v1240 = vpop.f32.mrf.mxu0
  %v1241 = vadd.f32 0.0, %v1240
  %v1242 = vpop.f32.mrf.mxu0
  %v1243 = vadd.f32 0.0, %v1242
  %1244 = vmatmul.bf16.gmra.mxu0 %v1156
  %v1245 = vpop.f32.mrf.mxu0
  %v1246 = vadd.f32 0.0, %v1245
  %v1247 = vpop.f32.mrf.mxu0
  %v1248 = vadd.f32 0.0, %v1247
  %1249 = vmatmul.bf16.gmra.mxu0 %v1157
  %v1250 = vpop.f32.mrf.mxu0
  %v1251 = vadd.f32 0.0, %v1250
  %v1252 = vpop.f32.mrf.mxu0
  %v1253 = vadd.f32 0.0, %v1252
  %1254 = vdwg.mxu0
  %v1255 = vmul.f32 %v1216, %v1134
  %v1256 = vmul.f32 %v1218, %v1135
  %v1257 = vmul.f32 %v1221, %v1136
  %v1258 = vmul.f32 %v1223, %v1137
  %v1259 = vmul.f32 %v1226, %v1138
  %v1260 = vmul.f32 %v1228, %v1139
  %v1261 = vmul.f32 %v1231, %v1140
  %v1262 = vmul.f32 %v1233, %v1141
  %v1263 = vmul.f32 %v1236, %v1142
  %v1264 = vmul.f32 %v1238, %v1143
  %v1265 = vmul.f32 %v1241, %v1144
  %v1266 = vmul.f32 %v1243, %v1145
  %v1267 = vmul.f32 %v1246, %v1146
  %v1268 = vmul.f32 %v1248, %v1147
  %v1269 = vmul.f32 %v1251, %v1148
  %v1270 = vmul.f32 %v1253, %v1149
  %v1271 = vsel %vm682, %v1255, 0.0
  %v1272 = vsel %vm682, %v1256, 0.0
  %v1273 = vsel %vm682, %v1257, 0.0
  %v1274 = vsel %vm682, %v1258, 0.0
  %v1275 = vsel %vm682, %v1259, 0.0
  %v1276 = vsel %vm682, %v1260, 0.0
  %v1277 = vsel %vm682, %v1261, 0.0
  %v1278 = vsel %vm682, %v1262, 0.0
  %v1279 = vsel %vm682, %v1263, 0.0
  %v1280 = vsel %vm682, %v1264, 0.0
  %v1281 = vsel %vm682, %v1265, 0.0
  %v1282 = vsel %vm682, %v1266, 0.0
  %v1283 = vsel %vm682, %v1267, 0.0
  %v1284 = vsel %vm682, %v1268, 0.0
  %v1285 = vsel %vm682, %v1269, 0.0
  %v1286 = vsel %vm682, %v1270, 0.0
  %v1287 = vadd.f32 %v1271, 0.0
  %v1288 = vadd.f32 %v1272, 0.0
  %v1289 = vadd.f32 %v1273, 0.0
  %v1290 = vadd.f32 %v1274, 0.0
  %v1291 = vadd.f32 %v1275, 0.0
  %v1292 = vadd.f32 %v1276, 0.0
  %v1293 = vadd.f32 %v1277, 0.0
  %v1294 = vadd.f32 %v1278, 0.0
  %v1295 = vadd.f32 %v1279, 0.0
  %v1296 = vadd.f32 %v1280, 0.0
  %v1297 = vadd.f32 %v1281, 0.0
  %v1298 = vadd.f32 %v1282, 0.0
  %v1299 = vadd.f32 %v1283, 0.0
  %v1300 = vadd.f32 %v1284, 0.0
  %v1301 = vadd.f32 %v1285, 0.0
  %v1302 = vadd.f32 %v1286, 0.0
  %vm1303 = vcmp.ge.s32.totalorder %v661, 64
  %vm1304 = vcmp.lt.s32.totalorder %v661, 128
  %vm1305 = vmand %vm1303, %vm1304
  %v1306 = vsel %vm1305, 1, 0
  %vm1307 = vcmp.eq.s32.totalorder %v1306, 1
  %vm1308 = vmpackc.low %vm1307, %vm1307
  %v1309 = vsel %vm1308, %v531, 0
  %v1310 = vsel %vm1308, %v532, 0
  %v1311 = vsel %vm1308, %v533, 0
  %v1312 = vsel %vm1308, %v534, 0
  %v1313 = vsel %vm1308, %v535, 0
  %v1314 = vsel %vm1308, %v536, 0
  %v1315 = vsel %vm1308, %v537, 0
  %v1316 = vsel %vm1308, %v538, 0
  %v1317 = vsel %vm1308, %v539, 0
  %v1318 = vsel %vm1308, %v540, 0
  %v1319 = vsel %vm1308, %v541, 0
  %v1320 = vsel %vm1308, %v542, 0
  %v1321 = vsel %vm1308, %v543, 0
  %v1322 = vsel %vm1308, %v544, 0
  %v1323 = vsel %vm1308, %v545, 0
  %v1324 = vsel %vm1308, %v546, 0
  %v1341 = vunpack.c.l.b16 %v1309
  %v1342 = vunpack.c.l.b16 %v1310
  %v1343 = vunpack.c.l.b16 %v1311
  %v1344 = vunpack.c.l.b16 %v1312
  %v1345 = vunpack.c.l.b16 %v1313
  %v1346 = vunpack.c.l.b16 %v1314
  %v1347 = vunpack.c.l.b16 %v1315
  %v1348 = vunpack.c.l.b16 %v1316
  %v1349 = vunpack.c.l.b16 %v1317
  %v1350 = vunpack.c.l.b16 %v1318
  %v1351 = vunpack.c.l.b16 %v1319
  %v1352 = vunpack.c.l.b16 %v1320
  %v1353 = vunpack.c.l.b16 %v1321
  %v1354 = vunpack.c.l.b16 %v1322
  %v1355 = vunpack.c.l.b16 %v1323
  %v1356 = vunpack.c.l.b16 %v1324
  %v1357 = vpack.c.b16 %v1342, %v1341
  %v1358 = vpack.c.b16 %v1344, %v1343
  %v1359 = vpack.c.b16 %v1346, %v1345
  %v1360 = vpack.c.b16 %v1348, %v1347
  %v1361 = vpack.c.b16 %v1350, %v1349
  %v1362 = vpack.c.b16 %v1352, %v1351
  %v1363 = vpack.c.b16 %v1354, %v1353
  %v1364 = vpack.c.b16 %v1356, %v1355
  %1373 = vmatpush.bf16.msra.mxu0 %v787
  %1374 = vmatpush.bf16.msra.mxu0 %v786
  %1375 = vmatpush.bf16.msra.mxu0 %v785
  %1376 = vmatpush.bf16.msra.mxu0 %v784
  %1377 = vmatpush.bf16.msra.mxu0 %v783
  %1378 = vmatpush.bf16.msra.mxu0 %v782
  %1379 = vmatpush.bf16.msra.mxu0 %v781
  %1380 = vmatpush.bf16.msra.mxu0 %v780
  %1381 = vmatmul.bf16.gmra.mxu0 %v1357
  %v1382 = vpop.f32.mrf.mxu0
  %v1383 = vadd.f32 0.0, %v1382
  %v1384 = vpop.f32.mrf.mxu0
  %v1385 = vadd.f32 0.0, %v1384
  %1386 = vmatmul.bf16.gmra.mxu0 %v1358
  %v1387 = vpop.f32.mrf.mxu0
  %v1388 = vadd.f32 0.0, %v1387
  %v1389 = vpop.f32.mrf.mxu0
  %v1390 = vadd.f32 0.0, %v1389
  %1391 = vmatmul.bf16.gmra.mxu0 %v1359
  %v1392 = vpop.f32.mrf.mxu0
  %v1393 = vadd.f32 0.0, %v1392
  %v1394 = vpop.f32.mrf.mxu0
  %v1395 = vadd.f32 0.0, %v1394
  %1396 = vmatmul.bf16.gmra.mxu0 %v1360
  %v1397 = vpop.f32.mrf.mxu0
  %v1398 = vadd.f32 0.0, %v1397
  %v1399 = vpop.f32.mrf.mxu0
  %v1400 = vadd.f32 0.0, %v1399
  %1401 = vmatmul.bf16.gmra.mxu0 %v1361
  %v1402 = vpop.f32.mrf.mxu0
  %v1403 = vadd.f32 0.0, %v1402
  %v1404 = vpop.f32.mrf.mxu0
  %v1405 = vadd.f32 0.0, %v1404
  %1406 = vmatmul.bf16.gmra.mxu0 %v1362
  %v1407 = vpop.f32.mrf.mxu0
  %v1408 = vadd.f32 0.0, %v1407
  %v1409 = vpop.f32.mrf.mxu0
  %v1410 = vadd.f32 0.0, %v1409
  %1411 = vmatmul.bf16.gmra.mxu0 %v1363
  %v1412 = vpop.f32.mrf.mxu0
  %v1413 = vadd.f32 0.0, %v1412
  %v1414 = vpop.f32.mrf.mxu0
  %v1415 = vadd.f32 0.0, %v1414
  %1416 = vmatmul.bf16.gmra.mxu0 %v1364
  %v1417 = vpop.f32.mrf.mxu0
  %v1418 = vadd.f32 0.0, %v1417
  %v1419 = vpop.f32.mrf.mxu0
  %v1420 = vadd.f32 0.0, %v1419
  %1421 = vdwg.mxu0
  %s1423 = sor.u32 256, 1
  %1424 = vrot.lane.b32.xlu0 %v1383, %s1423
  %v1425 = vpop.permute.xlu0 %1424
  %s1427 = sor.u32 256, 9
  %1428 = vrot.lane.b32.xlu0 %v1385, %s1427
  %v1429 = vpop.permute.xlu0 %1428
  %s1431 = sor.u32 256, 17
  %1432 = vrot.lane.b32.xlu0 %v1388, %s1431
  %v1433 = vpop.permute.xlu0 %1432
  %s1435 = sor.u32 256, 25
  %1436 = vrot.lane.b32.xlu0 %v1390, %s1435
  %v1437 = vpop.permute.xlu0 %1436
  %s1439 = sor.u32 256, 33
  %1440 = vrot.lane.b32.xlu0 %v1393, %s1439
  %v1441 = vpop.permute.xlu0 %1440
  %s1443 = sor.u32 256, 41
  %1444 = vrot.lane.b32.xlu0 %v1395, %s1443
  %v1445 = vpop.permute.xlu0 %1444
  %s1447 = sor.u32 256, 49
  %1448 = vrot.lane.b32.xlu0 %v1398, %s1447
  %v1449 = vpop.permute.xlu0 %1448
  %s1451 = sor.u32 256, 57
  %1452 = vrot.lane.b32.xlu0 %v1400, %s1451
  %v1453 = vpop.permute.xlu0 %1452
  %s1455 = sor.u32 256, 65
  %1456 = vrot.lane.b32.xlu0 %v1403, %s1455
  %v1457 = vpop.permute.xlu0 %1456
  %s1459 = sor.u32 256, 73
  %1460 = vrot.lane.b32.xlu0 %v1405, %s1459
  %v1461 = vpop.permute.xlu0 %1460
  %s1463 = sor.u32 256, 81
  %1464 = vrot.lane.b32.xlu0 %v1408, %s1463
  %v1465 = vpop.permute.xlu0 %1464
  %s1467 = sor.u32 256, 89
  %1468 = vrot.lane.b32.xlu0 %v1410, %s1467
  %v1469 = vpop.permute.xlu0 %1468
  %s1471 = sor.u32 256, 97
  %1472 = vrot.lane.b32.xlu0 %v1413, %s1471
  %v1473 = vpop.permute.xlu0 %1472
  %s1475 = sor.u32 256, 105
  %1476 = vrot.lane.b32.xlu0 %v1415, %s1475
  %v1477 = vpop.permute.xlu0 %1476
  %s1479 = sor.u32 256, 113
  %1480 = vrot.lane.b32.xlu0 %v1418, %s1479
  %v1481 = vpop.permute.xlu0 %1480
  %s1483 = sor.u32 256, 121
  %1484 = vrot.lane.b32.xlu0 %v1420, %s1483
  %v1485 = vpop.permute.xlu0 %1484
  %v1486 = vsel %vm662, %v1425, 0.0
  %v1487 = vsel %vm663, %v1429, 0.0
  %v1488 = vsel %vm664, %v1433, 0.0
  %v1489 = vsel %vm665, %v1437, 0.0
  %v1490 = vsel %vm666, %v1441, 0.0
  %v1491 = vsel %vm667, %v1445, 0.0
  %v1492 = vsel %vm668, %v1449, 0.0
  %v1493 = vsel %vm669, %v1453, 0.0
  %v1494 = vsel %vm670, %v1457, 0.0
  %v1495 = vsel %vm671, %v1461, 0.0
  %v1496 = vsel %vm672, %v1465, 0.0
  %v1497 = vsel %vm673, %v1469, 0.0
  %v1498 = vsel %vm674, %v1473, 0.0
  %v1499 = vsel %vm675, %v1477, 0.0
  %v1500 = vsel %vm676, %v1481, 0.0
  %v1501 = vsel %vm677, %v1485, 0.0
  %1502 = vmatpush.bf16.xpose.msra.mxu0 %v964
  %1503 = vmatpush.bf16.xpose.msra.mxu0 %v963
  %1504 = vmatpush.bf16.xpose.msra.mxu0 %v962
  %1505 = vmatpush.bf16.xpose.msra.mxu0 %v961
  %1506 = vmatpush.bf16.xpose.msra.mxu0 %v960
  %1507 = vmatpush.bf16.xpose.msra.mxu0 %v959
  %1508 = vmatpush.bf16.xpose.msra.mxu0 %v958
  %1509 = vmatpush.bf16.xpose.msra.mxu0 %v957
  %1510 = vmatmul.bf16.gmra.mxu0 %v1357
  %v1511 = vpop.f32.mrf.mxu0
  %v1512 = vadd.f32 %v1486, %v1511
  %v1513 = vpop.f32.mrf.mxu0
  %v1514 = vadd.f32 %v1487, %v1513
  %1515 = vmatmul.bf16.gmra.mxu0 %v1358
  %v1516 = vpop.f32.mrf.mxu0
  %v1517 = vadd.f32 %v1488, %v1516
  %v1518 = vpop.f32.mrf.mxu0
  %v1519 = vadd.f32 %v1489, %v1518
  %1520 = vmatmul.bf16.gmra.mxu0 %v1359
  %v1521 = vpop.f32.mrf.mxu0
  %v1522 = vadd.f32 %v1490, %v1521
  %v1523 = vpop.f32.mrf.mxu0
  %v1524 = vadd.f32 %v1491, %v1523
  %1525 = vmatmul.bf16.gmra.mxu0 %v1360
  %v1526 = vpop.f32.mrf.mxu0
  %v1527 = vadd.f32 %v1492, %v1526
  %v1528 = vpop.f32.mrf.mxu0
  %v1529 = vadd.f32 %v1493, %v1528
  %1530 = vmatmul.bf16.gmra.mxu0 %v1361
  %v1531 = vpop.f32.mrf.mxu0
  %v1532 = vadd.f32 %v1494, %v1531
  %v1533 = vpop.f32.mrf.mxu0
  %v1534 = vadd.f32 %v1495, %v1533
  %1535 = vmatmul.bf16.gmra.mxu0 %v1362
  %v1536 = vpop.f32.mrf.mxu0
  %v1537 = vadd.f32 %v1496, %v1536
  %v1538 = vpop.f32.mrf.mxu0
  %v1539 = vadd.f32 %v1497, %v1538
  %1540 = vmatmul.bf16.gmra.mxu0 %v1363
  %v1541 = vpop.f32.mrf.mxu0
  %v1542 = vadd.f32 %v1498, %v1541
  %v1543 = vpop.f32.mrf.mxu0
  %v1544 = vadd.f32 %v1499, %v1543
  %1545 = vmatmul.bf16.gmra.mxu0 %v1364
  %v1546 = vpop.f32.mrf.mxu0
  %v1547 = vadd.f32 %v1500, %v1546
  %v1548 = vpop.f32.mrf.mxu0
  %v1549 = vadd.f32 %v1501, %v1548
  %1550 = vdwg.mxu0
  %1551 = vmax.xlane.f32.xlu0 %v1512
  %v1552 = vpop.xlane.xlu0 %1551
  %1553 = vmax.xlane.f32.xlu0 %v1514
  %v1554 = vpop.xlane.xlu0 %1553
  %1555 = vmax.xlane.f32.xlu0 %v1517
  %v1556 = vpop.xlane.xlu0 %1555
  %1557 = vmax.xlane.f32.xlu0 %v1519
  %v1558 = vpop.xlane.xlu0 %1557
  %1559 = vmax.xlane.f32.xlu0 %v1522
  %v1560 = vpop.xlane.xlu0 %1559
  %1561 = vmax.xlane.f32.xlu0 %v1524
  %v1562 = vpop.xlane.xlu0 %1561
  %1563 = vmax.xlane.f32.xlu0 %v1527
  %v1564 = vpop.xlane.xlu0 %1563
  %1565 = vmax.xlane.f32.xlu0 %v1529
  %v1566 = vpop.xlane.xlu0 %1565
  %1567 = vmax.xlane.f32.xlu0 %v1532
  %v1568 = vpop.xlane.xlu0 %1567
  %1569 = vmax.xlane.f32.xlu0 %v1534
  %v1570 = vpop.xlane.xlu0 %1569
  %1571 = vmax.xlane.f32.xlu0 %v1537
  %v1572 = vpop.xlane.xlu0 %1571
  %1573 = vmax.xlane.f32.xlu0 %v1539
  %v1574 = vpop.xlane.xlu0 %1573
  %1575 = vmax.xlane.f32.xlu0 %v1542
  %v1576 = vpop.xlane.xlu0 %1575
  %1577 = vmax.xlane.f32.xlu0 %v1544
  %v1578 = vpop.xlane.xlu0 %1577
  %1579 = vmax.xlane.f32.xlu0 %v1547
  %v1580 = vpop.xlane.xlu0 %1579
  %1581 = vmax.xlane.f32.xlu0 %v1549
  %v1582 = vpop.xlane.xlu0 %1581
  %v1583 = vsub.f32 %v1512, %v1552
  %v1584 = vsub.f32 %v1514, %v1554
  %v1585 = vsub.f32 %v1517, %v1556
  %v1586 = vsub.f32 %v1519, %v1558
  %v1587 = vsub.f32 %v1522, %v1560
  %v1588 = vsub.f32 %v1524, %v1562
  %v1589 = vsub.f32 %v1527, %v1564
  %v1590 = vsub.f32 %v1529, %v1566
  %v1591 = vsub.f32 %v1532, %v1568
  %v1592 = vsub.f32 %v1534, %v1570
  %v1593 = vsub.f32 %v1537, %v1572
  %v1594 = vsub.f32 %v1539, %v1574
  %v1595 = vsub.f32 %v1542, %v1576
  %v1596 = vsub.f32 %v1544, %v1578
  %v1597 = vsub.f32 %v1547, %v1580
  %v1598 = vsub.f32 %v1549, %v1582
  %v1599 = vmul.f32 %v1583, 1.442695
  %v1600 = vpow.pop %v1599
  %v1601 = vmul.f32 %v1584, 1.442695
  %v1602 = vpow.pop %v1601
  %v1603 = vmul.f32 %v1585, 1.442695
  %v1604 = vpow.pop %v1603
  %v1605 = vmul.f32 %v1586, 1.442695
  %v1606 = vpow.pop %v1605
  %v1607 = vmul.f32 %v1587, 1.442695
  %v1608 = vpow.pop %v1607
  %v1609 = vmul.f32 %v1588, 1.442695
  %v1610 = vpow.pop %v1609
  %v1611 = vmul.f32 %v1589, 1.442695
  %v1612 = vpow.pop %v1611
  %v1613 = vmul.f32 %v1590, 1.442695
  %v1614 = vpow.pop %v1613
  %v1615 = vmul.f32 %v1591, 1.442695
  %v1616 = vpow.pop %v1615
  %v1617 = vmul.f32 %v1592, 1.442695
  %v1618 = vpow.pop %v1617
  %v1619 = vmul.f32 %v1593, 1.442695
  %v1620 = vpow.pop %v1619
  %v1621 = vmul.f32 %v1594, 1.442695
  %v1622 = vpow.pop %v1621
  %v1623 = vmul.f32 %v1595, 1.442695
  %v1624 = vpow.pop %v1623
  %v1625 = vmul.f32 %v1596, 1.442695
  %v1626 = vpow.pop %v1625
  %v1627 = vmul.f32 %v1597, 1.442695
  %v1628 = vpow.pop %v1627
  %v1629 = vmul.f32 %v1598, 1.442695
  %v1630 = vpow.pop %v1629
  %1631 = vadd.xlane.f32.xlu0 %v1600
  %v1632 = vpop.xlane.xlu0 %1631
  %1633 = vadd.xlane.f32.xlu0 %v1602
  %v1634 = vpop.xlane.xlu0 %1633
  %1635 = vadd.xlane.f32.xlu0 %v1604
  %v1636 = vpop.xlane.xlu0 %1635
  %1637 = vadd.xlane.f32.xlu0 %v1606
  %v1638 = vpop.xlane.xlu0 %1637
  %1639 = vadd.xlane.f32.xlu0 %v1608
  %v1640 = vpop.xlane.xlu0 %1639
  %1641 = vadd.xlane.f32.xlu0 %v1610
  %v1642 = vpop.xlane.xlu0 %1641
  %1643 = vadd.xlane.f32.xlu0 %v1612
  %v1644 = vpop.xlane.xlu0 %1643
  %1645 = vadd.xlane.f32.xlu0 %v1614
  %v1646 = vpop.xlane.xlu0 %1645
  %1647 = vadd.xlane.f32.xlu0 %v1616
  %v1648 = vpop.xlane.xlu0 %1647
  %1649 = vadd.xlane.f32.xlu0 %v1618
  %v1650 = vpop.xlane.xlu0 %1649
  %1651 = vadd.xlane.f32.xlu0 %v1620
  %v1652 = vpop.xlane.xlu0 %1651
  %1653 = vadd.xlane.f32.xlu0 %v1622
  %v1654 = vpop.xlane.xlu0 %1653
  %1655 = vadd.xlane.f32.xlu0 %v1624
  %v1656 = vpop.xlane.xlu0 %1655
  %1657 = vadd.xlane.f32.xlu0 %v1626
  %v1658 = vpop.xlane.xlu0 %1657
  %1659 = vadd.xlane.f32.xlu0 %v1628
  %v1660 = vpop.xlane.xlu0 %1659
  %1661 = vadd.xlane.f32.xlu0 %v1630
  %v1662 = vpop.xlane.xlu0 %1661
  %v1663 = vrcp.pop %v1632
  %v1664 = vrcp.pop %v1634
  %v1665 = vrcp.pop %v1636
  %v1666 = vrcp.pop %v1638
  %v1667 = vrcp.pop %v1640
  %v1668 = vrcp.pop %v1642
  %v1669 = vrcp.pop %v1644
  %v1670 = vrcp.pop %v1646
  %v1671 = vrcp.pop %v1648
  %v1672 = vrcp.pop %v1650
  %v1673 = vrcp.pop %v1652
  %v1674 = vrcp.pop %v1654
  %v1675 = vrcp.pop %v1656
  %v1676 = vrcp.pop %v1658
  %v1677 = vrcp.pop %v1660
  %v1678 = vrcp.pop %v1662
  %v1679 = vpack.c.bf16 %v1602, %v1600
  %v1680 = vpack.c.bf16 %v1606, %v1604
  %v1681 = vpack.c.bf16 %v1610, %v1608
  %v1682 = vpack.c.bf16 %v1614, %v1612
  %v1683 = vpack.c.bf16 %v1618, %v1616
  %v1684 = vpack.c.bf16 %v1622, %v1620
  %v1685 = vpack.c.bf16 %v1626, %v1624
  %v1686 = vpack.c.bf16 %v1630, %v1628
  %1687 = vmatpush.bf16.msra.mxu0 %v1197
  %1688 = vmatpush.bf16.msra.mxu0 %v1196
  %1689 = vmatpush.bf16.msra.mxu0 %v1195
  %1690 = vmatpush.bf16.msra.mxu0 %v1194
  %1691 = vmatpush.bf16.msra.mxu0 %v1193
  %1692 = vmatpush.bf16.msra.mxu0 %v1192
  %1693 = vmatpush.bf16.msra.mxu0 %v1191
  %1694 = vmatpush.bf16.msra.mxu0 %v1190
  %1695 = vmatmul.bf16.gmra.mxu0 %v1679
  %v1696 = vpop.f32.mrf.mxu0
  %v1697 = vadd.f32 0.0, %v1696
  %v1698 = vpop.f32.mrf.mxu0
  %v1699 = vadd.f32 0.0, %v1698
  %1700 = vmatmul.bf16.gmra.mxu0 %v1680
  %v1701 = vpop.f32.mrf.mxu0
  %v1702 = vadd.f32 0.0, %v1701
  %v1703 = vpop.f32.mrf.mxu0
  %v1704 = vadd.f32 0.0, %v1703
  %1705 = vmatmul.bf16.gmra.mxu0 %v1681
  %v1706 = vpop.f32.mrf.mxu0
  %v1707 = vadd.f32 0.0, %v1706
  %v1708 = vpop.f32.mrf.mxu0
  %v1709 = vadd.f32 0.0, %v1708
  %1710 = vmatmul.bf16.gmra.mxu0 %v1682
  %v1711 = vpop.f32.mrf.mxu0
  %v1712 = vadd.f32 0.0, %v1711
  %v1713 = vpop.f32.mrf.mxu0
  %v1714 = vadd.f32 0.0, %v1713
  %1715 = vmatmul.bf16.gmra.mxu0 %v1683
  %v1716 = vpop.f32.mrf.mxu0
  %v1717 = vadd.f32 0.0, %v1716
  %v1718 = vpop.f32.mrf.mxu0
  %v1719 = vadd.f32 0.0, %v1718
  %1720 = vmatmul.bf16.gmra.mxu0 %v1684
  %v1721 = vpop.f32.mrf.mxu0
  %v1722 = vadd.f32 0.0, %v1721
  %v1723 = vpop.f32.mrf.mxu0
  %v1724 = vadd.f32 0.0, %v1723
  %1725 = vmatmul.bf16.gmra.mxu0 %v1685
  %v1726 = vpop.f32.mrf.mxu0
  %v1727 = vadd.f32 0.0, %v1726
  %v1728 = vpop.f32.mrf.mxu0
  %v1729 = vadd.f32 0.0, %v1728
  %1730 = vmatmul.bf16.gmra.mxu0 %v1686
  %v1731 = vpop.f32.mrf.mxu0
  %v1732 = vadd.f32 0.0, %v1731
  %v1733 = vpop.f32.mrf.mxu0
  %v1734 = vadd.f32 0.0, %v1733
  %1735 = vdwg.mxu0
  %v1736 = vmul.f32 %v1697, %v1663
  %v1737 = vmul.f32 %v1699, %v1664
  %v1738 = vmul.f32 %v1702, %v1665
  %v1739 = vmul.f32 %v1704, %v1666
  %v1740 = vmul.f32 %v1707, %v1667
  %v1741 = vmul.f32 %v1709, %v1668
  %v1742 = vmul.f32 %v1712, %v1669
  %v1743 = vmul.f32 %v1714, %v1670
  %v1744 = vmul.f32 %v1717, %v1671
  %v1745 = vmul.f32 %v1719, %v1672
  %v1746 = vmul.f32 %v1722, %v1673
  %v1747 = vmul.f32 %v1724, %v1674
  %v1748 = vmul.f32 %v1727, %v1675
  %v1749 = vmul.f32 %v1729, %v1676
  %v1750 = vmul.f32 %v1732, %v1677
  %v1751 = vmul.f32 %v1734, %v1678
  %v1752 = vsel %vm1307, %v1736, 0.0
  %v1753 = vsel %vm1307, %v1737, 0.0
  %v1754 = vsel %vm1307, %v1738, 0.0
  %v1755 = vsel %vm1307, %v1739, 0.0
  %v1756 = vsel %vm1307, %v1740, 0.0
  %v1757 = vsel %vm1307, %v1741, 0.0
  %v1758 = vsel %vm1307, %v1742, 0.0
  %v1759 = vsel %vm1307, %v1743, 0.0
  %v1760 = vsel %vm1307, %v1744, 0.0
  %v1761 = vsel %vm1307, %v1745, 0.0
  %v1762 = vsel %vm1307, %v1746, 0.0
  %v1763 = vsel %vm1307, %v1747, 0.0
  %v1764 = vsel %vm1307, %v1748, 0.0
  %v1765 = vsel %vm1307, %v1749, 0.0
  %v1766 = vsel %vm1307, %v1750, 0.0
  %v1767 = vsel %vm1307, %v1751, 0.0
  %v1768 = vadd.f32 %v1287, %v1752
  %v1769 = vadd.f32 %v1288, %v1753
  %v1770 = vadd.f32 %v1289, %v1754
  %v1771 = vadd.f32 %v1290, %v1755
  %v1772 = vadd.f32 %v1291, %v1756
  %v1773 = vadd.f32 %v1292, %v1757
  %v1774 = vadd.f32 %v1293, %v1758
  %v1775 = vadd.f32 %v1294, %v1759
  %v1776 = vadd.f32 %v1295, %v1760
  %v1777 = vadd.f32 %v1296, %v1761
  %v1778 = vadd.f32 %v1297, %v1762
  %v1779 = vadd.f32 %v1298, %v1763
  %v1780 = vadd.f32 %v1299, %v1764
  %v1781 = vadd.f32 %v1300, %v1765
  %v1782 = vadd.f32 %v1301, %v1766
  %v1783 = vadd.f32 %v1302, %v1767
  %v1784 = vsel %vm683, %v547, 0
  %v1785 = vsel %vm683, %v548, 0
  %v1786 = vsel %vm683, %v549, 0
  %v1787 = vsel %vm683, %v550, 0
  %v1788 = vsel %vm683, %v551, 0
  %v1789 = vsel %vm683, %v552, 0
  %v1790 = vsel %vm683, %v553, 0
  %v1791 = vsel %vm683, %v554, 0
  %v1792 = vsel %vm683, %v555, 0
  %v1793 = vsel %vm683, %v556, 0
  %v1794 = vsel %vm683, %v557, 0
  %v1795 = vsel %vm683, %v558, 0
  %v1796 = vsel %vm683, %v559, 0
  %v1797 = vsel %vm683, %v560, 0
  %v1798 = vsel %vm683, %v561, 0
  %v1799 = vsel %vm683, %v562, 0
  %v1816 = vunpack.c.l.b16 %v1784
  %v1817 = vunpack.c.l.b16 %v1785
  %v1818 = vunpack.c.l.b16 %v1786
  %v1819 = vunpack.c.l.b16 %v1787
  %v1820 = vunpack.c.l.b16 %v1788
  %v1821 = vunpack.c.l.b16 %v1789
  %v1822 = vunpack.c.l.b16 %v1790
  %v1823 = vunpack.c.l.b16 %v1791
  %v1824 = vunpack.c.l.b16 %v1792
  %v1825 = vunpack.c.l.b16 %v1793
  %v1826 = vunpack.c.l.b16 %v1794
  %v1827 = vunpack.c.l.b16 %v1795
  %v1828 = vunpack.c.l.b16 %v1796
  %v1829 = vunpack.c.l.b16 %v1797
  %v1830 = vunpack.c.l.b16 %v1798
  %v1831 = vunpack.c.l.b16 %v1799
  %v1832 = vpack.c.b16 %v1817, %v1816
  %v1833 = vpack.c.b16 %v1819, %v1818
  %v1834 = vpack.c.b16 %v1821, %v1820
  %v1835 = vpack.c.b16 %v1823, %v1822
  %v1836 = vpack.c.b16 %v1825, %v1824
  %v1837 = vpack.c.b16 %v1827, %v1826
  %v1838 = vpack.c.b16 %v1829, %v1828
  %v1839 = vpack.c.b16 %v1831, %v1830
  %1848 = vmatpush.bf16.msra.mxu0 %v787
  %1849 = vmatpush.bf16.msra.mxu0 %v786
  %1850 = vmatpush.bf16.msra.mxu0 %v785
  %1851 = vmatpush.bf16.msra.mxu0 %v784
  %1852 = vmatpush.bf16.msra.mxu0 %v783
  %1853 = vmatpush.bf16.msra.mxu0 %v782
  %1854 = vmatpush.bf16.msra.mxu0 %v781
  %1855 = vmatpush.bf16.msra.mxu0 %v780
  %1856 = vmatmul.bf16.gmra.mxu0 %v1832
  %v1857 = vpop.f32.mrf.mxu0
  %v1858 = vadd.f32 0.0, %v1857
  %v1859 = vpop.f32.mrf.mxu0
  %v1860 = vadd.f32 0.0, %v1859
  %1861 = vmatmul.bf16.gmra.mxu0 %v1833
  %v1862 = vpop.f32.mrf.mxu0
  %v1863 = vadd.f32 0.0, %v1862
  %v1864 = vpop.f32.mrf.mxu0
  %v1865 = vadd.f32 0.0, %v1864
  %1866 = vmatmul.bf16.gmra.mxu0 %v1834
  %v1867 = vpop.f32.mrf.mxu0
  %v1868 = vadd.f32 0.0, %v1867
  %v1869 = vpop.f32.mrf.mxu0
  %v1870 = vadd.f32 0.0, %v1869
  %1871 = vmatmul.bf16.gmra.mxu0 %v1835
  %v1872 = vpop.f32.mrf.mxu0
  %v1873 = vadd.f32 0.0, %v1872
  %v1874 = vpop.f32.mrf.mxu0
  %v1875 = vadd.f32 0.0, %v1874
  %1876 = vmatmul.bf16.gmra.mxu0 %v1836
  %v1877 = vpop.f32.mrf.mxu0
  %v1878 = vadd.f32 0.0, %v1877
  %v1879 = vpop.f32.mrf.mxu0
  %v1880 = vadd.f32 0.0, %v1879
  %1881 = vmatmul.bf16.gmra.mxu0 %v1837
  %v1882 = vpop.f32.mrf.mxu0
  %v1883 = vadd.f32 0.0, %v1882
  %v1884 = vpop.f32.mrf.mxu0
  %v1885 = vadd.f32 0.0, %v1884
  %1886 = vmatmul.bf16.gmra.mxu0 %v1838
  %v1887 = vpop.f32.mrf.mxu0
  %v1888 = vadd.f32 0.0, %v1887
  %v1889 = vpop.f32.mrf.mxu0
  %v1890 = vadd.f32 0.0, %v1889
  %1891 = vmatmul.bf16.gmra.mxu0 %v1839
  %v1892 = vpop.f32.mrf.mxu0
  %v1893 = vadd.f32 0.0, %v1892
  %v1894 = vpop.f32.mrf.mxu0
  %v1895 = vadd.f32 0.0, %v1894
  %1896 = vdwg.mxu0
  %s1898 = sor.u32 256, 1
  %1899 = vrot.lane.b32.xlu0 %v1858, %s1898
  %v1900 = vpop.permute.xlu0 %1899
  %s1902 = sor.u32 256, 9
  %1903 = vrot.lane.b32.xlu0 %v1860, %s1902
  %v1904 = vpop.permute.xlu0 %1903
  %s1906 = sor.u32 256, 17
  %1907 = vrot.lane.b32.xlu0 %v1863, %s1906
  %v1908 = vpop.permute.xlu0 %1907
  %s1910 = sor.u32 256, 25
  %1911 = vrot.lane.b32.xlu0 %v1865, %s1910
  %v1912 = vpop.permute.xlu0 %1911
  %s1914 = sor.u32 256, 33
  %1915 = vrot.lane.b32.xlu0 %v1868, %s1914
  %v1916 = vpop.permute.xlu0 %1915
  %s1918 = sor.u32 256, 41
  %1919 = vrot.lane.b32.xlu0 %v1870, %s1918
  %v1920 = vpop.permute.xlu0 %1919
  %s1922 = sor.u32 256, 49
  %1923 = vrot.lane.b32.xlu0 %v1873, %s1922
  %v1924 = vpop.permute.xlu0 %1923
  %s1926 = sor.u32 256, 57
  %1927 = vrot.lane.b32.xlu0 %v1875, %s1926
  %v1928 = vpop.permute.xlu0 %1927
  %s1930 = sor.u32 256, 65
  %1931 = vrot.lane.b32.xlu0 %v1878, %s1930
  %v1932 = vpop.permute.xlu0 %1931
  %s1934 = sor.u32 256, 73
  %1935 = vrot.lane.b32.xlu0 %v1880, %s1934
  %v1936 = vpop.permute.xlu0 %1935
  %s1938 = sor.u32 256, 81
  %1939 = vrot.lane.b32.xlu0 %v1883, %s1938
  %v1940 = vpop.permute.xlu0 %1939
  %s1942 = sor.u32 256, 89
  %1943 = vrot.lane.b32.xlu0 %v1885, %s1942
  %v1944 = vpop.permute.xlu0 %1943
  %s1946 = sor.u32 256, 97
  %1947 = vrot.lane.b32.xlu0 %v1888, %s1946
  %v1948 = vpop.permute.xlu0 %1947
  %s1950 = sor.u32 256, 105
  %1951 = vrot.lane.b32.xlu0 %v1890, %s1950
  %v1952 = vpop.permute.xlu0 %1951
  %s1954 = sor.u32 256, 113
  %1955 = vrot.lane.b32.xlu0 %v1893, %s1954
  %v1956 = vpop.permute.xlu0 %1955
  %s1958 = sor.u32 256, 121
  %1959 = vrot.lane.b32.xlu0 %v1895, %s1958
  %v1960 = vpop.permute.xlu0 %1959
  %v1961 = vsel %vm662, %v1900, 0.0
  %v1962 = vsel %vm663, %v1904, 0.0
  %v1963 = vsel %vm664, %v1908, 0.0
  %v1964 = vsel %vm665, %v1912, 0.0
  %v1965 = vsel %vm666, %v1916, 0.0
  %v1966 = vsel %vm667, %v1920, 0.0
  %v1967 = vsel %vm668, %v1924, 0.0
  %v1968 = vsel %vm669, %v1928, 0.0
  %v1969 = vsel %vm670, %v1932, 0.0
  %v1970 = vsel %vm671, %v1936, 0.0
  %v1971 = vsel %vm672, %v1940, 0.0
  %v1972 = vsel %vm673, %v1944, 0.0
  %v1973 = vsel %vm674, %v1948, 0.0
  %v1974 = vsel %vm675, %v1952, 0.0
  %v1975 = vsel %vm676, %v1956, 0.0
  %v1976 = vsel %vm677, %v1960, 0.0
  %v1993 = vunpack.c.l.b16 %v579
  %v1994 = vunpack.c.l.b16 %v580
  %v1995 = vunpack.c.l.b16 %v581
  %v1996 = vunpack.c.l.b16 %v582
  %v1997 = vunpack.c.l.b16 %v583
  %v1998 = vunpack.c.l.b16 %v584
  %v1999 = vunpack.c.l.b16 %v585
  %v2000 = vunpack.c.l.b16 %v586
  %v2001 = vunpack.c.l.b16 %v587
  %v2002 = vunpack.c.l.b16 %v588
  %v2003 = vunpack.c.l.b16 %v589
  %v2004 = vunpack.c.l.b16 %v590
  %v2005 = vunpack.c.l.b16 %v591
  %v2006 = vunpack.c.l.b16 %v592
  %v2007 = vunpack.c.l.b16 %v593
  %v2008 = vunpack.c.l.b16 %v594
  %v2009 = vpack.c.b16 %v1994, %v1993
  %v2010 = vpack.c.b16 %v1996, %v1995
  %v2011 = vpack.c.b16 %v1998, %v1997
  %v2012 = vpack.c.b16 %v2000, %v1999
  %v2013 = vpack.c.b16 %v2002, %v2001
  %v2014 = vpack.c.b16 %v2004, %v2003
  %v2015 = vpack.c.b16 %v2006, %v2005
  %v2016 = vpack.c.b16 %v2008, %v2007
  %2025 = vmatpush.bf16.xpose.msra.mxu0 %v2016
  %2026 = vmatpush.bf16.xpose.msra.mxu0 %v2015
  %2027 = vmatpush.bf16.xpose.msra.mxu0 %v2014
  %2028 = vmatpush.bf16.xpose.msra.mxu0 %v2013
  %2029 = vmatpush.bf16.xpose.msra.mxu0 %v2012
  %2030 = vmatpush.bf16.xpose.msra.mxu0 %v2011
  %2031 = vmatpush.bf16.xpose.msra.mxu0 %v2010
  %2032 = vmatpush.bf16.xpose.msra.mxu0 %v2009
  %2033 = vmatmul.bf16.gmra.mxu0 %v1832
  %v2034 = vpop.f32.mrf.mxu0
  %v2035 = vadd.f32 %v1961, %v2034
  %v2036 = vpop.f32.mrf.mxu0
  %v2037 = vadd.f32 %v1962, %v2036
  %2038 = vmatmul.bf16.gmra.mxu0 %v1833
  %v2039 = vpop.f32.mrf.mxu0
  %v2040 = vadd.f32 %v1963, %v2039
  %v2041 = vpop.f32.mrf.mxu0
  %v2042 = vadd.f32 %v1964, %v2041
  %2043 = vmatmul.bf16.gmra.mxu0 %v1834
  %v2044 = vpop.f32.mrf.mxu0
  %v2045 = vadd.f32 %v1965, %v2044
  %v2046 = vpop.f32.mrf.mxu0
  %v2047 = vadd.f32 %v1966, %v2046
  %2048 = vmatmul.bf16.gmra.mxu0 %v1835
  %v2049 = vpop.f32.mrf.mxu0
  %v2050 = vadd.f32 %v1967, %v2049
  %v2051 = vpop.f32.mrf.mxu0
  %v2052 = vadd.f32 %v1968, %v2051
  %2053 = vmatmul.bf16.gmra.mxu0 %v1836
  %v2054 = vpop.f32.mrf.mxu0
  %v2055 = vadd.f32 %v1969, %v2054
  %v2056 = vpop.f32.mrf.mxu0
  %v2057 = vadd.f32 %v1970, %v2056
  %2058 = vmatmul.bf16.gmra.mxu0 %v1837
  %v2059 = vpop.f32.mrf.mxu0
  %v2060 = vadd.f32 %v1971, %v2059
  %v2061 = vpop.f32.mrf.mxu0
  %v2062 = vadd.f32 %v1972, %v2061
  %2063 = vmatmul.bf16.gmra.mxu0 %v1838
  %v2064 = vpop.f32.mrf.mxu0
  %v2065 = vadd.f32 %v1973, %v2064
  %v2066 = vpop.f32.mrf.mxu0
  %v2067 = vadd.f32 %v1974, %v2066
  %2068 = vmatmul.bf16.gmra.mxu0 %v1839
  %v2069 = vpop.f32.mrf.mxu0
  %v2070 = vadd.f32 %v1975, %v2069
  %v2071 = vpop.f32.mrf.mxu0
  %v2072 = vadd.f32 %v1976, %v2071
  %2073 = vdwg.mxu0
  %2074 = vmax.xlane.f32.xlu0 %v2035
  %v2075 = vpop.xlane.xlu0 %2074
  %2076 = vmax.xlane.f32.xlu0 %v2037
  %v2077 = vpop.xlane.xlu0 %2076
  %2078 = vmax.xlane.f32.xlu0 %v2040
  %v2079 = vpop.xlane.xlu0 %2078
  %2080 = vmax.xlane.f32.xlu0 %v2042
  %v2081 = vpop.xlane.xlu0 %2080
  %2082 = vmax.xlane.f32.xlu0 %v2045
  %v2083 = vpop.xlane.xlu0 %2082
  %2084 = vmax.xlane.f32.xlu0 %v2047
  %v2085 = vpop.xlane.xlu0 %2084
  %2086 = vmax.xlane.f32.xlu0 %v2050
  %v2087 = vpop.xlane.xlu0 %2086
  %2088 = vmax.xlane.f32.xlu0 %v2052
  %v2089 = vpop.xlane.xlu0 %2088
  %2090 = vmax.xlane.f32.xlu0 %v2055
  %v2091 = vpop.xlane.xlu0 %2090
  %2092 = vmax.xlane.f32.xlu0 %v2057
  %v2093 = vpop.xlane.xlu0 %2092
  %2094 = vmax.xlane.f32.xlu0 %v2060
  %v2095 = vpop.xlane.xlu0 %2094
  %2096 = vmax.xlane.f32.xlu0 %v2062
  %v2097 = vpop.xlane.xlu0 %2096
  %2098 = vmax.xlane.f32.xlu0 %v2065
  %v2099 = vpop.xlane.xlu0 %2098
  %2100 = vmax.xlane.f32.xlu0 %v2067
  %v2101 = vpop.xlane.xlu0 %2100
  %2102 = vmax.xlane.f32.xlu0 %v2070
  %v2103 = vpop.xlane.xlu0 %2102
  %2104 = vmax.xlane.f32.xlu0 %v2072
  %v2105 = vpop.xlane.xlu0 %2104
  %v2106 = vsub.f32 %v2035, %v2075
  %v2107 = vsub.f32 %v2037, %v2077
  %v2108 = vsub.f32 %v2040, %v2079
  %v2109 = vsub.f32 %v2042, %v2081
  %v2110 = vsub.f32 %v2045, %v2083
  %v2111 = vsub.f32 %v2047, %v2085
  %v2112 = vsub.f32 %v2050, %v2087
  %v2113 = vsub.f32 %v2052, %v2089
  %v2114 = vsub.f32 %v2055, %v2091
  %v2115 = vsub.f32 %v2057, %v2093
  %v2116 = vsub.f32 %v2060, %v2095
  %v2117 = vsub.f32 %v2062, %v2097
  %v2118 = vsub.f32 %v2065, %v2099
  %v2119 = vsub.f32 %v2067, %v2101
  %v2120 = vsub.f32 %v2070, %v2103
  %v2121 = vsub.f32 %v2072, %v2105
  %v2122 = vmul.f32 %v2106, 1.442695
  %v2123 = vpow.pop %v2122
  %v2124 = vmul.f32 %v2107, 1.442695
  %v2125 = vpow.pop %v2124
  %v2126 = vmul.f32 %v2108, 1.442695
  %v2127 = vpow.pop %v2126
  %v2128 = vmul.f32 %v2109, 1.442695
  %v2129 = vpow.pop %v2128
  %v2130 = vmul.f32 %v2110, 1.442695
  %v2131 = vpow.pop %v2130
  %v2132 = vmul.f32 %v2111, 1.442695
  %v2133 = vpow.pop %v2132
  %v2134 = vmul.f32 %v2112, 1.442695
  %v2135 = vpow.pop %v2134
  %v2136 = vmul.f32 %v2113, 1.442695
  %v2137 = vpow.pop %v2136
  %v2138 = vmul.f32 %v2114, 1.442695
  %v2139 = vpow.pop %v2138
  %v2140 = vmul.f32 %v2115, 1.442695
  %v2141 = vpow.pop %v2140
  %v2142 = vmul.f32 %v2116, 1.442695
  %v2143 = vpow.pop %v2142
  %v2144 = vmul.f32 %v2117, 1.442695
  %v2145 = vpow.pop %v2144
  %v2146 = vmul.f32 %v2118, 1.442695
  %v2147 = vpow.pop %v2146
  %v2148 = vmul.f32 %v2119, 1.442695
  %v2149 = vpow.pop %v2148
  %v2150 = vmul.f32 %v2120, 1.442695
  %v2151 = vpow.pop %v2150
  %v2152 = vmul.f32 %v2121, 1.442695
  %v2153 = vpow.pop %v2152
  %2154 = vadd.xlane.f32.xlu0 %v2123
  %v2155 = vpop.xlane.xlu0 %2154
  %2156 = vadd.xlane.f32.xlu0 %v2125
  %v2157 = vpop.xlane.xlu0 %2156
  %2158 = vadd.xlane.f32.xlu0 %v2127
  %v2159 = vpop.xlane.xlu0 %2158
  %2160 = vadd.xlane.f32.xlu0 %v2129
  %v2161 = vpop.xlane.xlu0 %2160
  %2162 = vadd.xlane.f32.xlu0 %v2131
  %v2163 = vpop.xlane.xlu0 %2162
  %2164 = vadd.xlane.f32.xlu0 %v2133
  %v2165 = vpop.xlane.xlu0 %2164
  %2166 = vadd.xlane.f32.xlu0 %v2135
  %v2167 = vpop.xlane.xlu0 %2166
  %2168 = vadd.xlane.f32.xlu0 %v2137
  %v2169 = vpop.xlane.xlu0 %2168
  %2170 = vadd.xlane.f32.xlu0 %v2139
  %v2171 = vpop.xlane.xlu0 %2170
  %2172 = vadd.xlane.f32.xlu0 %v2141
  %v2173 = vpop.xlane.xlu0 %2172
  %2174 = vadd.xlane.f32.xlu0 %v2143
  %v2175 = vpop.xlane.xlu0 %2174
  %2176 = vadd.xlane.f32.xlu0 %v2145
  %v2177 = vpop.xlane.xlu0 %2176
  %2178 = vadd.xlane.f32.xlu0 %v2147
  %v2179 = vpop.xlane.xlu0 %2178
  %2180 = vadd.xlane.f32.xlu0 %v2149
  %v2181 = vpop.xlane.xlu0 %2180
  %2182 = vadd.xlane.f32.xlu0 %v2151
  %v2183 = vpop.xlane.xlu0 %2182
  %2184 = vadd.xlane.f32.xlu0 %v2153
  %v2185 = vpop.xlane.xlu0 %2184
  %v2186 = vrcp.pop %v2155
  %v2187 = vrcp.pop %v2157
  %v2188 = vrcp.pop %v2159
  %v2189 = vrcp.pop %v2161
  %v2190 = vrcp.pop %v2163
  %v2191 = vrcp.pop %v2165
  %v2192 = vrcp.pop %v2167
  %v2193 = vrcp.pop %v2169
  %v2194 = vrcp.pop %v2171
  %v2195 = vrcp.pop %v2173
  %v2196 = vrcp.pop %v2175
  %v2197 = vrcp.pop %v2177
  %v2198 = vrcp.pop %v2179
  %v2199 = vrcp.pop %v2181
  %v2200 = vrcp.pop %v2183
  %v2201 = vrcp.pop %v2185
  %v2202 = vpack.c.bf16 %v2125, %v2123
  %v2203 = vpack.c.bf16 %v2129, %v2127
  %v2204 = vpack.c.bf16 %v2133, %v2131
  %v2205 = vpack.c.bf16 %v2137, %v2135
  %v2206 = vpack.c.bf16 %v2141, %v2139
  %v2207 = vpack.c.bf16 %v2145, %v2143
  %v2208 = vpack.c.bf16 %v2149, %v2147
  %v2209 = vpack.c.bf16 %v2153, %v2151
  %v2226 = vunpack.c.l.b16 %v611
  %v2227 = vunpack.c.l.b16 %v612
  %v2228 = vunpack.c.l.b16 %v613
  %v2229 = vunpack.c.l.b16 %v614
  %v2230 = vunpack.c.l.b16 %v615
  %v2231 = vunpack.c.l.b16 %v616
  %v2232 = vunpack.c.l.b16 %v617
  %v2233 = vunpack.c.l.b16 %v618
  %v2234 = vunpack.c.l.b16 %v619
  %v2235 = vunpack.c.l.b16 %v620
  %v2236 = vunpack.c.l.b16 %v621
  %v2237 = vunpack.c.l.b16 %v622
  %v2238 = vunpack.c.l.b16 %v623
  %v2239 = vunpack.c.l.b16 %v624
  %v2240 = vunpack.c.l.b16 %v625
  %v2241 = vunpack.c.l.b16 %v626
  %v2242 = vpack.c.b16 %v2227, %v2226
  %v2243 = vpack.c.b16 %v2229, %v2228
  %v2244 = vpack.c.b16 %v2231, %v2230
  %v2245 = vpack.c.b16 %v2233, %v2232
  %v2246 = vpack.c.b16 %v2235, %v2234
  %v2247 = vpack.c.b16 %v2237, %v2236
  %v2248 = vpack.c.b16 %v2239, %v2238
  %v2249 = vpack.c.b16 %v2241, %v2240
  %2258 = vmatpush.bf16.msra.mxu0 %v2249
  %2259 = vmatpush.bf16.msra.mxu0 %v2248
  %2260 = vmatpush.bf16.msra.mxu0 %v2247
  %2261 = vmatpush.bf16.msra.mxu0 %v2246
  %2262 = vmatpush.bf16.msra.mxu0 %v2245
  %2263 = vmatpush.bf16.msra.mxu0 %v2244
  %2264 = vmatpush.bf16.msra.mxu0 %v2243
  %2265 = vmatpush.bf16.msra.mxu0 %v2242
  %2266 = vmatmul.bf16.gmra.mxu0 %v2202
  %v2267 = vpop.f32.mrf.mxu0
  %v2268 = vadd.f32 0.0, %v2267
  %v2269 = vpop.f32.mrf.mxu0
  %v2270 = vadd.f32 0.0, %v2269
  %2271 = vmatmul.bf16.gmra.mxu0 %v2203
  %v2272 = vpop.f32.mrf.mxu0
  %v2273 = vadd.f32 0.0, %v2272
  %v2274 = vpop.f32.mrf.mxu0
  %v2275 = vadd.f32 0.0, %v2274
  %2276 = vmatmul.bf16.gmra.mxu0 %v2204
  %v2277 = vpop.f32.mrf.mxu0
  %v2278 = vadd.f32 0.0, %v2277
  %v2279 = vpop.f32.mrf.mxu0
  %v2280 = vadd.f32 0.0, %v2279
  %2281 = vmatmul.bf16.gmra.mxu0 %v2205
  %v2282 = vpop.f32.mrf.mxu0
  %v2283 = vadd.f32 0.0, %v2282
  %v2284 = vpop.f32.mrf.mxu0
  %v2285 = vadd.f32 0.0, %v2284
  %2286 = vmatmul.bf16.gmra.mxu0 %v2206
  %v2287 = vpop.f32.mrf.mxu0
  %v2288 = vadd.f32 0.0, %v2287
  %v2289 = vpop.f32.mrf.mxu0
  %v2290 = vadd.f32 0.0, %v2289
  %2291 = vmatmul.bf16.gmra.mxu0 %v2207
  %v2292 = vpop.f32.mrf.mxu0
  %v2293 = vadd.f32 0.0, %v2292
  %v2294 = vpop.f32.mrf.mxu0
  %v2295 = vadd.f32 0.0, %v2294
  %2296 = vmatmul.bf16.gmra.mxu0 %v2208
  %v2297 = vpop.f32.mrf.mxu0
  %v2298 = vadd.f32 0.0, %v2297
  %v2299 = vpop.f32.mrf.mxu0
  %v2300 = vadd.f32 0.0, %v2299
  %2301 = vmatmul.bf16.gmra.mxu0 %v2209
  %v2302 = vpop.f32.mrf.mxu0
  %v2303 = vadd.f32 0.0, %v2302
  %v2304 = vpop.f32.mrf.mxu0
  %v2305 = vadd.f32 0.0, %v2304
  %2306 = vdwg.mxu0
  %v2307 = vmul.f32 %v2268, %v2186
  %v2308 = vmul.f32 %v2270, %v2187
  %v2309 = vmul.f32 %v2273, %v2188
  %v2310 = vmul.f32 %v2275, %v2189
  %v2311 = vmul.f32 %v2278, %v2190
  %v2312 = vmul.f32 %v2280, %v2191
  %v2313 = vmul.f32 %v2283, %v2192
  %v2314 = vmul.f32 %v2285, %v2193
  %v2315 = vmul.f32 %v2288, %v2194
  %v2316 = vmul.f32 %v2290, %v2195
  %v2317 = vmul.f32 %v2293, %v2196
  %v2318 = vmul.f32 %v2295, %v2197
  %v2319 = vmul.f32 %v2298, %v2198
  %v2320 = vmul.f32 %v2300, %v2199
  %v2321 = vmul.f32 %v2303, %v2200
  %v2322 = vmul.f32 %v2305, %v2201
  %v2323 = vsel %vm682, %v2307, 0.0
  %v2324 = vsel %vm682, %v2308, 0.0
  %v2325 = vsel %vm682, %v2309, 0.0
  %v2326 = vsel %vm682, %v2310, 0.0
  %v2327 = vsel %vm682, %v2311, 0.0
  %v2328 = vsel %vm682, %v2312, 0.0
  %v2329 = vsel %vm682, %v2313, 0.0
  %v2330 = vsel %vm682, %v2314, 0.0
  %v2331 = vsel %vm682, %v2315, 0.0
  %v2332 = vsel %vm682, %v2316, 0.0
  %v2333 = vsel %vm682, %v2317, 0.0
  %v2334 = vsel %vm682, %v2318, 0.0
  %v2335 = vsel %vm682, %v2319, 0.0
  %v2336 = vsel %vm682, %v2320, 0.0
  %v2337 = vsel %vm682, %v2321, 0.0
  %v2338 = vsel %vm682, %v2322, 0.0
  %v2339 = vadd.f32 %v2323, 0.0
  %v2340 = vadd.f32 %v2324, 0.0
  %v2341 = vadd.f32 %v2325, 0.0
  %v2342 = vadd.f32 %v2326, 0.0
  %v2343 = vadd.f32 %v2327, 0.0
  %v2344 = vadd.f32 %v2328, 0.0
  %v2345 = vadd.f32 %v2329, 0.0
  %v2346 = vadd.f32 %v2330, 0.0
  %v2347 = vadd.f32 %v2331, 0.0
  %v2348 = vadd.f32 %v2332, 0.0
  %v2349 = vadd.f32 %v2333, 0.0
  %v2350 = vadd.f32 %v2334, 0.0
  %v2351 = vadd.f32 %v2335, 0.0
  %v2352 = vadd.f32 %v2336, 0.0
  %v2353 = vadd.f32 %v2337, 0.0
  %v2354 = vadd.f32 %v2338, 0.0
  %v2355 = vsel %vm1308, %v547, 0
  %v2356 = vsel %vm1308, %v548, 0
  %v2357 = vsel %vm1308, %v549, 0
  %v2358 = vsel %vm1308, %v550, 0
  %v2359 = vsel %vm1308, %v551, 0
  %v2360 = vsel %vm1308, %v552, 0
  %v2361 = vsel %vm1308, %v553, 0
  %v2362 = vsel %vm1308, %v554, 0
  %v2363 = vsel %vm1308, %v555, 0
  %v2364 = vsel %vm1308, %v556, 0
  %v2365 = vsel %vm1308, %v557, 0
  %v2366 = vsel %vm1308, %v558, 0
  %v2367 = vsel %vm1308, %v559, 0
  %v2368 = vsel %vm1308, %v560, 0
  %v2369 = vsel %vm1308, %v561, 0
  %v2370 = vsel %vm1308, %v562, 0
  %v2387 = vunpack.c.l.b16 %v2355
  %v2388 = vunpack.c.l.b16 %v2356
  %v2389 = vunpack.c.l.b16 %v2357
  %v2390 = vunpack.c.l.b16 %v2358
  %v2391 = vunpack.c.l.b16 %v2359
  %v2392 = vunpack.c.l.b16 %v2360
  %v2393 = vunpack.c.l.b16 %v2361
  %v2394 = vunpack.c.l.b16 %v2362
  %v2395 = vunpack.c.l.b16 %v2363
  %v2396 = vunpack.c.l.b16 %v2364
  %v2397 = vunpack.c.l.b16 %v2365
  %v2398 = vunpack.c.l.b16 %v2366
  %v2399 = vunpack.c.l.b16 %v2367
  %v2400 = vunpack.c.l.b16 %v2368
  %v2401 = vunpack.c.l.b16 %v2369
  %v2402 = vunpack.c.l.b16 %v2370
  %v2403 = vpack.c.b16 %v2388, %v2387
  %v2404 = vpack.c.b16 %v2390, %v2389
  %v2405 = vpack.c.b16 %v2392, %v2391
  %v2406 = vpack.c.b16 %v2394, %v2393
  %v2407 = vpack.c.b16 %v2396, %v2395
  %v2408 = vpack.c.b16 %v2398, %v2397
  %v2409 = vpack.c.b16 %v2400, %v2399
  %v2410 = vpack.c.b16 %v2402, %v2401
  %2419 = vmatpush.bf16.msra.mxu0 %v787
  %2420 = vmatpush.bf16.msra.mxu0 %v786
  %2421 = vmatpush.bf16.msra.mxu0 %v785
  %2422 = vmatpush.bf16.msra.mxu0 %v784
  %2423 = vmatpush.bf16.msra.mxu0 %v783
  %2424 = vmatpush.bf16.msra.mxu0 %v782
  %2425 = vmatpush.bf16.msra.mxu0 %v781
  %2426 = vmatpush.bf16.msra.mxu0 %v780
  %2427 = vmatmul.bf16.gmra.mxu0 %v2403
  %v2428 = vpop.f32.mrf.mxu0
  %v2429 = vadd.f32 0.0, %v2428
  %v2430 = vpop.f32.mrf.mxu0
  %v2431 = vadd.f32 0.0, %v2430
  %2432 = vmatmul.bf16.gmra.mxu0 %v2404
  %v2433 = vpop.f32.mrf.mxu0
  %v2434 = vadd.f32 0.0, %v2433
  %v2435 = vpop.f32.mrf.mxu0
  %v2436 = vadd.f32 0.0, %v2435
  %2437 = vmatmul.bf16.gmra.mxu0 %v2405
  %v2438 = vpop.f32.mrf.mxu0
  %v2439 = vadd.f32 0.0, %v2438
  %v2440 = vpop.f32.mrf.mxu0
  %v2441 = vadd.f32 0.0, %v2440
  %2442 = vmatmul.bf16.gmra.mxu0 %v2406
  %v2443 = vpop.f32.mrf.mxu0
  %v2444 = vadd.f32 0.0, %v2443
  %v2445 = vpop.f32.mrf.mxu0
  %v2446 = vadd.f32 0.0, %v2445
  %2447 = vmatmul.bf16.gmra.mxu0 %v2407
  %v2448 = vpop.f32.mrf.mxu0
  %v2449 = vadd.f32 0.0, %v2448
  %v2450 = vpop.f32.mrf.mxu0
  %v2451 = vadd.f32 0.0, %v2450
  %2452 = vmatmul.bf16.gmra.mxu0 %v2408
  %v2453 = vpop.f32.mrf.mxu0
  %v2454 = vadd.f32 0.0, %v2453
  %v2455 = vpop.f32.mrf.mxu0
  %v2456 = vadd.f32 0.0, %v2455
  %2457 = vmatmul.bf16.gmra.mxu0 %v2409
  %v2458 = vpop.f32.mrf.mxu0
  %v2459 = vadd.f32 0.0, %v2458
  %v2460 = vpop.f32.mrf.mxu0
  %v2461 = vadd.f32 0.0, %v2460
  %2462 = vmatmul.bf16.gmra.mxu0 %v2410
  %v2463 = vpop.f32.mrf.mxu0
  %v2464 = vadd.f32 0.0, %v2463
  %v2465 = vpop.f32.mrf.mxu0
  %v2466 = vadd.f32 0.0, %v2465
  %2467 = vdwg.mxu0
  %s2469 = sor.u32 256, 1
  %2470 = vrot.lane.b32.xlu0 %v2429, %s2469
  %v2471 = vpop.permute.xlu0 %2470
  %s2473 = sor.u32 256, 9
  %2474 = vrot.lane.b32.xlu0 %v2431, %s2473
  %v2475 = vpop.permute.xlu0 %2474
  %s2477 = sor.u32 256, 17
  %2478 = vrot.lane.b32.xlu0 %v2434, %s2477
  %v2479 = vpop.permute.xlu0 %2478
  %s2481 = sor.u32 256, 25
  %2482 = vrot.lane.b32.xlu0 %v2436, %s2481
  %v2483 = vpop.permute.xlu0 %2482
  %s2485 = sor.u32 256, 33
  %2486 = vrot.lane.b32.xlu0 %v2439, %s2485
  %v2487 = vpop.permute.xlu0 %2486
  %s2489 = sor.u32 256, 41
  %2490 = vrot.lane.b32.xlu0 %v2441, %s2489
  %v2491 = vpop.permute.xlu0 %2490
  %s2493 = sor.u32 256, 49
  %2494 = vrot.lane.b32.xlu0 %v2444, %s2493
  %v2495 = vpop.permute.xlu0 %2494
  %s2497 = sor.u32 256, 57
  %2498 = vrot.lane.b32.xlu0 %v2446, %s2497
  %v2499 = vpop.permute.xlu0 %2498
  %s2501 = sor.u32 256, 65
  %2502 = vrot.lane.b32.xlu0 %v2449, %s2501
  %v2503 = vpop.permute.xlu0 %2502
  %s2505 = sor.u32 256, 73
  %2506 = vrot.lane.b32.xlu0 %v2451, %s2505
  %v2507 = vpop.permute.xlu0 %2506
  %s2509 = sor.u32 256, 81
  %2510 = vrot.lane.b32.xlu0 %v2454, %s2509
  %v2511 = vpop.permute.xlu0 %2510
  %s2513 = sor.u32 256, 89
  %2514 = vrot.lane.b32.xlu0 %v2456, %s2513
  %v2515 = vpop.permute.xlu0 %2514
  %s2517 = sor.u32 256, 97
  %2518 = vrot.lane.b32.xlu0 %v2459, %s2517
  %v2519 = vpop.permute.xlu0 %2518
  %s2521 = sor.u32 256, 105
  %2522 = vrot.lane.b32.xlu0 %v2461, %s2521
  %v2523 = vpop.permute.xlu0 %2522
  %s2525 = sor.u32 256, 113
  %2526 = vrot.lane.b32.xlu0 %v2464, %s2525
  %v2527 = vpop.permute.xlu0 %2526
  %s2529 = sor.u32 256, 121
  %2530 = vrot.lane.b32.xlu0 %v2466, %s2529
  %v2531 = vpop.permute.xlu0 %2530
  %v2532 = vsel %vm662, %v2471, 0.0
  %v2533 = vsel %vm663, %v2475, 0.0
  %v2534 = vsel %vm664, %v2479, 0.0
  %v2535 = vsel %vm665, %v2483, 0.0
  %v2536 = vsel %vm666, %v2487, 0.0
  %v2537 = vsel %vm667, %v2491, 0.0
  %v2538 = vsel %vm668, %v2495, 0.0
  %v2539 = vsel %vm669, %v2499, 0.0
  %v2540 = vsel %vm670, %v2503, 0.0
  %v2541 = vsel %vm671, %v2507, 0.0
  %v2542 = vsel %vm672, %v2511, 0.0
  %v2543 = vsel %vm673, %v2515, 0.0
  %v2544 = vsel %vm674, %v2519, 0.0
  %v2545 = vsel %vm675, %v2523, 0.0
  %v2546 = vsel %vm676, %v2527, 0.0
  %v2547 = vsel %vm677, %v2531, 0.0
  %2548 = vmatpush.bf16.xpose.msra.mxu0 %v2016
  %2549 = vmatpush.bf16.xpose.msra.mxu0 %v2015
  %2550 = vmatpush.bf16.xpose.msra.mxu0 %v2014
  %2551 = vmatpush.bf16.xpose.msra.mxu0 %v2013
  %2552 = vmatpush.bf16.xpose.msra.mxu0 %v2012
  %2553 = vmatpush.bf16.xpose.msra.mxu0 %v2011
  %2554 = vmatpush.bf16.xpose.msra.mxu0 %v2010
  %2555 = vmatpush.bf16.xpose.msra.mxu0 %v2009
  %2556 = vmatmul.bf16.gmra.mxu0 %v2403
  %v2557 = vpop.f32.mrf.mxu0
  %v2558 = vadd.f32 %v2532, %v2557
  %v2559 = vpop.f32.mrf.mxu0
  %v2560 = vadd.f32 %v2533, %v2559
  %2561 = vmatmul.bf16.gmra.mxu0 %v2404
  %v2562 = vpop.f32.mrf.mxu0
  %v2563 = vadd.f32 %v2534, %v2562
  %v2564 = vpop.f32.mrf.mxu0
  %v2565 = vadd.f32 %v2535, %v2564
  %2566 = vmatmul.bf16.gmra.mxu0 %v2405
  %v2567 = vpop.f32.mrf.mxu0
  %v2568 = vadd.f32 %v2536, %v2567
  %v2569 = vpop.f32.mrf.mxu0
  %v2570 = vadd.f32 %v2537, %v2569
  %2571 = vmatmul.bf16.gmra.mxu0 %v2406
  %v2572 = vpop.f32.mrf.mxu0
  %v2573 = vadd.f32 %v2538, %v2572
  %v2574 = vpop.f32.mrf.mxu0
  %v2575 = vadd.f32 %v2539, %v2574
  %2576 = vmatmul.bf16.gmra.mxu0 %v2407
  %v2577 = vpop.f32.mrf.mxu0
  %v2578 = vadd.f32 %v2540, %v2577
  %v2579 = vpop.f32.mrf.mxu0
  %v2580 = vadd.f32 %v2541, %v2579
  %2581 = vmatmul.bf16.gmra.mxu0 %v2408
  %v2582 = vpop.f32.mrf.mxu0
  %v2583 = vadd.f32 %v2542, %v2582
  %v2584 = vpop.f32.mrf.mxu0
  %v2585 = vadd.f32 %v2543, %v2584
  %2586 = vmatmul.bf16.gmra.mxu0 %v2409
  %v2587 = vpop.f32.mrf.mxu0
  %v2588 = vadd.f32 %v2544, %v2587
  %v2589 = vpop.f32.mrf.mxu0
  %v2590 = vadd.f32 %v2545, %v2589
  %2591 = vmatmul.bf16.gmra.mxu0 %v2410
  %v2592 = vpop.f32.mrf.mxu0
  %v2593 = vadd.f32 %v2546, %v2592
  %v2594 = vpop.f32.mrf.mxu0
  %v2595 = vadd.f32 %v2547, %v2594
  %2596 = vdwg.mxu0
  %2597 = vmax.xlane.f32.xlu0 %v2558
  %v2598 = vpop.xlane.xlu0 %2597
  %2599 = vmax.xlane.f32.xlu0 %v2560
  %v2600 = vpop.xlane.xlu0 %2599
  %2601 = vmax.xlane.f32.xlu0 %v2563
  %v2602 = vpop.xlane.xlu0 %2601
  %2603 = vmax.xlane.f32.xlu0 %v2565
  %v2604 = vpop.xlane.xlu0 %2603
  %2605 = vmax.xlane.f32.xlu0 %v2568
  %v2606 = vpop.xlane.xlu0 %2605
  %2607 = vmax.xlane.f32.xlu0 %v2570
  %v2608 = vpop.xlane.xlu0 %2607
  %2609 = vmax.xlane.f32.xlu0 %v2573
  %v2610 = vpop.xlane.xlu0 %2609
  %2611 = vmax.xlane.f32.xlu0 %v2575
  %v2612 = vpop.xlane.xlu0 %2611
  %2613 = vmax.xlane.f32.xlu0 %v2578
  %v2614 = vpop.xlane.xlu0 %2613
  %2615 = vmax.xlane.f32.xlu0 %v2580
  %v2616 = vpop.xlane.xlu0 %2615
  %2617 = vmax.xlane.f32.xlu0 %v2583
  %v2618 = vpop.xlane.xlu0 %2617
  %2619 = vmax.xlane.f32.xlu0 %v2585
  %v2620 = vpop.xlane.xlu0 %2619
  %2621 = vmax.xlane.f32.xlu0 %v2588
  %v2622 = vpop.xlane.xlu0 %2621
  %2623 = vmax.xlane.f32.xlu0 %v2590
  %v2624 = vpop.xlane.xlu0 %2623
  %2625 = vmax.xlane.f32.xlu0 %v2593
  %v2626 = vpop.xlane.xlu0 %2625
  %2627 = vmax.xlane.f32.xlu0 %v2595
  %v2628 = vpop.xlane.xlu0 %2627
  %v2629 = vsub.f32 %v2558, %v2598
  %v2630 = vsub.f32 %v2560, %v2600
  %v2631 = vsub.f32 %v2563, %v2602
  %v2632 = vsub.f32 %v2565, %v2604
  %v2633 = vsub.f32 %v2568, %v2606
  %v2634 = vsub.f32 %v2570, %v2608
  %v2635 = vsub.f32 %v2573, %v2610
  %v2636 = vsub.f32 %v2575, %v2612
  %v2637 = vsub.f32 %v2578, %v2614
  %v2638 = vsub.f32 %v2580, %v2616
  %v2639 = vsub.f32 %v2583, %v2618
  %v2640 = vsub.f32 %v2585, %v2620
  %v2641 = vsub.f32 %v2588, %v2622
  %v2642 = vsub.f32 %v2590, %v2624
  %v2643 = vsub.f32 %v2593, %v2626
  %v2644 = vsub.f32 %v2595, %v2628
  %v2645 = vmul.f32 %v2629, 1.442695
  %v2646 = vpow.pop %v2645
  %v2647 = vmul.f32 %v2630, 1.442695
  %v2648 = vpow.pop %v2647
  %v2649 = vmul.f32 %v2631, 1.442695
  %v2650 = vpow.pop %v2649
  %v2651 = vmul.f32 %v2632, 1.442695
  %v2652 = vpow.pop %v2651
  %v2653 = vmul.f32 %v2633, 1.442695
  %v2654 = vpow.pop %v2653
  %v2655 = vmul.f32 %v2634, 1.442695
  %v2656 = vpow.pop %v2655
  %v2657 = vmul.f32 %v2635, 1.442695
  %v2658 = vpow.pop %v2657
  %v2659 = vmul.f32 %v2636, 1.442695
  %v2660 = vpow.pop %v2659
  %v2661 = vmul.f32 %v2637, 1.442695
  %v2662 = vpow.pop %v2661
  %v2663 = vmul.f32 %v2638, 1.442695
  %v2664 = vpow.pop %v2663
  %v2665 = vmul.f32 %v2639, 1.442695
  %v2666 = vpow.pop %v2665
  %v2667 = vmul.f32 %v2640, 1.442695
  %v2668 = vpow.pop %v2667
  %v2669 = vmul.f32 %v2641, 1.442695
  %v2670 = vpow.pop %v2669
  %v2671 = vmul.f32 %v2642, 1.442695
  %v2672 = vpow.pop %v2671
  %v2673 = vmul.f32 %v2643, 1.442695
  %v2674 = vpow.pop %v2673
  %v2675 = vmul.f32 %v2644, 1.442695
  %v2676 = vpow.pop %v2675
  %2677 = vadd.xlane.f32.xlu0 %v2646
  %v2678 = vpop.xlane.xlu0 %2677
  %2679 = vadd.xlane.f32.xlu0 %v2648
  %v2680 = vpop.xlane.xlu0 %2679
  %2681 = vadd.xlane.f32.xlu0 %v2650
  %v2682 = vpop.xlane.xlu0 %2681
  %2683 = vadd.xlane.f32.xlu0 %v2652
  %v2684 = vpop.xlane.xlu0 %2683
  %2685 = vadd.xlane.f32.xlu0 %v2654
  %v2686 = vpop.xlane.xlu0 %2685
  %2687 = vadd.xlane.f32.xlu0 %v2656
  %v2688 = vpop.xlane.xlu0 %2687
  %2689 = vadd.xlane.f32.xlu0 %v2658
  %v2690 = vpop.xlane.xlu0 %2689
  %2691 = vadd.xlane.f32.xlu0 %v2660
  %v2692 = vpop.xlane.xlu0 %2691
  %2693 = vadd.xlane.f32.xlu0 %v2662
  %v2694 = vpop.xlane.xlu0 %2693
  %2695 = vadd.xlane.f32.xlu0 %v2664
  %v2696 = vpop.xlane.xlu0 %2695
  %2697 = vadd.xlane.f32.xlu0 %v2666
  %v2698 = vpop.xlane.xlu0 %2697
  %2699 = vadd.xlane.f32.xlu0 %v2668
  %v2700 = vpop.xlane.xlu0 %2699
  %2701 = vadd.xlane.f32.xlu0 %v2670
  %v2702 = vpop.xlane.xlu0 %2701
  %2703 = vadd.xlane.f32.xlu0 %v2672
  %v2704 = vpop.xlane.xlu0 %2703
  %2705 = vadd.xlane.f32.xlu0 %v2674
  %v2706 = vpop.xlane.xlu0 %2705
  %2707 = vadd.xlane.f32.xlu0 %v2676
  %v2708 = vpop.xlane.xlu0 %2707
  %v2709 = vrcp.pop %v2678
  %v2710 = vrcp.pop %v2680
  %v2711 = vrcp.pop %v2682
  %v2712 = vrcp.pop %v2684
  %v2713 = vrcp.pop %v2686
  %v2714 = vrcp.pop %v2688
  %v2715 = vrcp.pop %v2690
  %v2716 = vrcp.pop %v2692
  %v2717 = vrcp.pop %v2694
  %v2718 = vrcp.pop %v2696
  %v2719 = vrcp.pop %v2698
  %v2720 = vrcp.pop %v2700
  %v2721 = vrcp.pop %v2702
  %v2722 = vrcp.pop %v2704
  %v2723 = vrcp.pop %v2706
  %v2724 = vrcp.pop %v2708
  %v2725 = vpack.c.bf16 %v2648, %v2646
  %v2726 = vpack.c.bf16 %v2652, %v2650
  %v2727 = vpack.c.bf16 %v2656, %v2654
  %v2728 = vpack.c.bf16 %v2660, %v2658
  %v2729 = vpack.c.bf16 %v2664, %v2662
  %v2730 = vpack.c.bf16 %v2668, %v2666
  %v2731 = vpack.c.bf16 %v2672, %v2670
  %v2732 = vpack.c.bf16 %v2676, %v2674
  %2733 = vmatpush.bf16.msra.mxu0 %v2249
  %2734 = vmatpush.bf16.msra.mxu0 %v2248
  %2735 = vmatpush.bf16.msra.mxu0 %v2247
  %2736 = vmatpush.bf16.msra.mxu0 %v2246
  %2737 = vmatpush.bf16.msra.mxu0 %v2245
  %2738 = vmatpush.bf16.msra.mxu0 %v2244
  %2739 = vmatpush.bf16.msra.mxu0 %v2243
  %2740 = vmatpush.bf16.msra.mxu0 %v2242
  %2741 = vmatmul.bf16.gmra.mxu0 %v2725
  %v2742 = vpop.f32.mrf.mxu0
  %v2743 = vadd.f32 0.0, %v2742
  %v2744 = vpop.f32.mrf.mxu0
  %v2745 = vadd.f32 0.0, %v2744
  %2746 = vmatmul.bf16.gmra.mxu0 %v2726
  %v2747 = vpop.f32.mrf.mxu0
  %v2748 = vadd.f32 0.0, %v2747
  %v2749 = vpop.f32.mrf.mxu0
  %v2750 = vadd.f32 0.0, %v2749
  %2751 = vmatmul.bf16.gmra.mxu0 %v2727
  %v2752 = vpop.f32.mrf.mxu0
  %v2753 = vadd.f32 0.0, %v2752
  %v2754 = vpop.f32.mrf.mxu0
  %v2755 = vadd.f32 0.0, %v2754
  %2756 = vmatmul.bf16.gmra.mxu0 %v2728
  %v2757 = vpop.f32.mrf.mxu0
  %v2758 = vadd.f32 0.0, %v2757
  %v2759 = vpop.f32.mrf.mxu0
  %v2760 = vadd.f32 0.0, %v2759
  %2761 = vmatmul.bf16.gmra.mxu0 %v2729
  %v2762 = vpop.f32.mrf.mxu0
  %v2763 = vadd.f32 0.0, %v2762
  %v2764 = vpop.f32.mrf.mxu0
  %v2765 = vadd.f32 0.0, %v2764
  %2766 = vmatmul.bf16.gmra.mxu0 %v2730
  %v2767 = vpop.f32.mrf.mxu0
  %v2768 = vadd.f32 0.0, %v2767
  %v2769 = vpop.f32.mrf.mxu0
  %v2770 = vadd.f32 0.0, %v2769
  %2771 = vmatmul.bf16.gmra.mxu0 %v2731
  %v2772 = vpop.f32.mrf.mxu0
  %v2773 = vadd.f32 0.0, %v2772
  %v2774 = vpop.f32.mrf.mxu0
  %v2775 = vadd.f32 0.0, %v2774
  %2776 = vmatmul.bf16.gmra.mxu0 %v2732
  %v2777 = vpop.f32.mrf.mxu0
  %v2778 = vadd.f32 0.0, %v2777
  %v2779 = vpop.f32.mrf.mxu0
  %v2780 = vadd.f32 0.0, %v2779
  %2781 = vdwg.mxu0
  %v2782 = vmul.f32 %v2743, %v2709
  %v2783 = vmul.f32 %v2745, %v2710
  %v2784 = vmul.f32 %v2748, %v2711
  %v2785 = vmul.f32 %v2750, %v2712
  %v2786 = vmul.f32 %v2753, %v2713
  %v2787 = vmul.f32 %v2755, %v2714
  %v2788 = vmul.f32 %v2758, %v2715
  %v2789 = vmul.f32 %v2760, %v2716
  %v2790 = vmul.f32 %v2763, %v2717
  %v2791 = vmul.f32 %v2765, %v2718
  %v2792 = vmul.f32 %v2768, %v2719
  %v2793 = vmul.f32 %v2770, %v2720
  %v2794 = vmul.f32 %v2773, %v2721
  %v2795 = vmul.f32 %v2775, %v2722
  %v2796 = vmul.f32 %v2778, %v2723
  %v2797 = vmul.f32 %v2780, %v2724
  %v2798 = vsel %vm1307, %v2782, 0.0
  %v2799 = vsel %vm1307, %v2783, 0.0
  %v2800 = vsel %vm1307, %v2784, 0.0
  %v2801 = vsel %vm1307, %v2785, 0.0
  %v2802 = vsel %vm1307, %v2786, 0.0
  %v2803 = vsel %vm1307, %v2787, 0.0
  %v2804 = vsel %vm1307, %v2788, 0.0
  %v2805 = vsel %vm1307, %v2789, 0.0
  %v2806 = vsel %vm1307, %v2790, 0.0
  %v2807 = vsel %vm1307, %v2791, 0.0
  %v2808 = vsel %vm1307, %v2792, 0.0
  %v2809 = vsel %vm1307, %v2793, 0.0
  %v2810 = vsel %vm1307, %v2794, 0.0
  %v2811 = vsel %vm1307, %v2795, 0.0
  %v2812 = vsel %vm1307, %v2796, 0.0
  %v2813 = vsel %vm1307, %v2797, 0.0
  %v2814 = vadd.f32 %v2339, %v2798
  %v2815 = vadd.f32 %v2340, %v2799
  %v2816 = vadd.f32 %v2341, %v2800
  %v2817 = vadd.f32 %v2342, %v2801
  %v2818 = vadd.f32 %v2343, %v2802
  %v2819 = vadd.f32 %v2344, %v2803
  %v2820 = vadd.f32 %v2345, %v2804
  %v2821 = vadd.f32 %v2346, %v2805
  %v2822 = vadd.f32 %v2347, %v2806
  %v2823 = vadd.f32 %v2348, %v2807
  %v2824 = vadd.f32 %v2349, %v2808
  %v2825 = vadd.f32 %v2350, %v2809
  %v2826 = vadd.f32 %v2351, %v2810
  %v2827 = vadd.f32 %v2352, %v2811
  %v2828 = vadd.f32 %v2353, %v2812
  %v2829 = vadd.f32 %v2354, %v2813
  %v2830 = vpack.c.bf16 %v1769, %v1768
  %v2831 = vpack.c.bf16 %v1771, %v1770
  %v2832 = vpack.c.bf16 %v1773, %v1772
  %v2833 = vpack.c.bf16 %v1775, %v1774
  %v2834 = vpack.c.bf16 %v1777, %v1776
  %v2835 = vpack.c.bf16 %v1779, %v1778
  %v2836 = vpack.c.bf16 %v1781, %v1780
  %v2837 = vpack.c.bf16 %v1783, %v1782
  %v2838 = vpack.c.bf16 %v2815, %v2814
  %v2839 = vpack.c.bf16 %v2817, %v2816
  %v2840 = vpack.c.bf16 %v2819, %v2818
  %v2841 = vpack.c.bf16 %v2821, %v2820
  %v2842 = vpack.c.bf16 %v2823, %v2822
  %v2843 = vpack.c.bf16 %v2825, %v2824
  %v2844 = vpack.c.bf16 %v2827, %v2826
  %v2845 = vpack.c.bf16 %v2829, %v2828
  %v2846 = vld [vmem:[%s4] sm:$0xf]
  %v2847 = vld [vmem:[%s4 + $0x4] sm:$0xf]
  %v2848 = vld [vmem:[%s4 + $0x8] sm:$0xf]
  %v2849 = vld [vmem:[%s4 + $0xc] sm:$0xf]
  %v2850 = vld [vmem:[%s4 + $0x10] sm:$0xf]
  %v2851 = vld [vmem:[%s4 + $0x14] sm:$0xf]
  %v2852 = vld [vmem:[%s4 + $0x18] sm:$0xf]
  %v2853 = vld [vmem:[%s4 + $0x1c] sm:$0xf]
  %v2854 = vld [vmem:[%s4 + $0x20] sm:$0xf]
  %v2855 = vld [vmem:[%s4 + $0x24] sm:$0xf]
  %v2856 = vld [vmem:[%s4 + $0x28] sm:$0xf]
  %v2857 = vld [vmem:[%s4 + $0x2c] sm:$0xf]
  %v2858 = vld [vmem:[%s4 + $0x30] sm:$0xf]
  %v2859 = vld [vmem:[%s4 + $0x34] sm:$0xf]
  %v2860 = vld [vmem:[%s4 + $0x38] sm:$0xf]
  %v2861 = vld [vmem:[%s4 + $0x3c] sm:$0xf]
  %v2862 = vld [vmem:[%s5] sm:$0x1]
  %v2864 = vperm.slane %v2862, 0
  %v2882 = vunpack.c.l.b16 %v2846
  %v2883 = vunpack.c.l.b16 %v2847
  %v2884 = vunpack.c.l.b16 %v2848
  %v2885 = vunpack.c.l.b16 %v2849
  %v2886 = vunpack.c.l.b16 %v2850
  %v2887 = vunpack.c.l.b16 %v2851
  %v2888 = vunpack.c.l.b16 %v2852
  %v2889 = vunpack.c.l.b16 %v2853
  %v2890 = vunpack.c.l.b16 %v2854
  %v2891 = vunpack.c.l.b16 %v2855
  %v2892 = vunpack.c.l.b16 %v2856
  %v2893 = vunpack.c.l.b16 %v2857
  %v2894 = vunpack.c.l.b16 %v2858
  %v2895 = vunpack.c.l.b16 %v2859
  %v2896 = vunpack.c.l.b16 %v2860
  %v2897 = vunpack.c.l.b16 %v2861
  %v2898 = vpack.c.b16 %v2883, %v2882
  %v2899 = vpack.c.b16 %v2885, %v2884
  %v2900 = vpack.c.b16 %v2887, %v2886
  %v2901 = vpack.c.b16 %v2889, %v2888
  %v2902 = vpack.c.b16 %v2891, %v2890
  %v2903 = vpack.c.b16 %v2893, %v2892
  %v2904 = vpack.c.b16 %v2895, %v2894
  %v2905 = vpack.c.b16 %v2897, %v2896
  %2914 = vmatpush.bf16.msra.mxu0 %v2905
  %2915 = vmatpush.bf16.msra.mxu0 %v2904
  %2916 = vmatpush.bf16.msra.mxu0 %v2903
  %2917 = vmatpush.bf16.msra.mxu0 %v2902
  %2918 = vmatpush.bf16.msra.mxu0 %v2901
  %2919 = vmatpush.bf16.msra.mxu0 %v2900
  %2920 = vmatpush.bf16.msra.mxu0 %v2899
  %2921 = vmatpush.bf16.msra.mxu0 %v2898
  %2922 = vmatmul.bf16.gmra.mxu0 %v2830
  %v2923 = vpop.f32.mrf.mxu0
  %v2924 = vadd.f32 %v2864, %v2923
  %v2925 = vpop.f32.mrf.mxu0
  %v2926 = vadd.f32 %v2864, %v2925
  %2927 = vmatmul.bf16.gmra.mxu0 %v2831
  %v2928 = vpop.f32.mrf.mxu0
  %v2929 = vadd.f32 %v2864, %v2928
  %v2930 = vpop.f32.mrf.mxu0
  %v2931 = vadd.f32 %v2864, %v2930
  %2932 = vmatmul.bf16.gmra.mxu0 %v2832
  %v2933 = vpop.f32.mrf.mxu0
  %v2934 = vadd.f32 %v2864, %v2933
  %v2935 = vpop.f32.mrf.mxu0
  %v2936 = vadd.f32 %v2864, %v2935
  %2937 = vmatmul.bf16.gmra.mxu0 %v2833
  %v2938 = vpop.f32.mrf.mxu0
  %v2939 = vadd.f32 %v2864, %v2938
  %v2940 = vpop.f32.mrf.mxu0
  %v2941 = vadd.f32 %v2864, %v2940
  %2942 = vmatmul.bf16.gmra.mxu0 %v2834
  %v2943 = vpop.f32.mrf.mxu0
  %v2944 = vadd.f32 %v2864, %v2943
  %v2945 = vpop.f32.mrf.mxu0
  %v2946 = vadd.f32 %v2864, %v2945
  %2947 = vmatmul.bf16.gmra.mxu0 %v2835
  %v2948 = vpop.f32.mrf.mxu0
  %v2949 = vadd.f32 %v2864, %v2948
  %v2950 = vpop.f32.mrf.mxu0
  %v2951 = vadd.f32 %v2864, %v2950
  %2952 = vmatmul.bf16.gmra.mxu0 %v2836
  %v2953 = vpop.f32.mrf.mxu0
  %v2954 = vadd.f32 %v2864, %v2953
  %v2955 = vpop.f32.mrf.mxu0
  %v2956 = vadd.f32 %v2864, %v2955
  %2957 = vmatmul.bf16.gmra.mxu0 %v2837
  %v2958 = vpop.f32.mrf.mxu0
  %v2959 = vadd.f32 %v2864, %v2958
  %v2960 = vpop.f32.mrf.mxu0
  %v2961 = vadd.f32 %v2864, %v2960
  %2962 = vmatmul.bf16.gmra.mxu0 %v2838
  %v2963 = vpop.f32.mrf.mxu0
  %v2964 = vadd.f32 %v2864, %v2963
  %v2965 = vpop.f32.mrf.mxu0
  %v2966 = vadd.f32 %v2864, %v2965
  %2967 = vmatmul.bf16.gmra.mxu0 %v2839
  %v2968 = vpop.f32.mrf.mxu0
  %v2969 = vadd.f32 %v2864, %v2968
  %v2970 = vpop.f32.mrf.mxu0
  %v2971 = vadd.f32 %v2864, %v2970
  %2972 = vmatmul.bf16.gmra.mxu0 %v2840
  %v2973 = vpop.f32.mrf.mxu0
  %v2974 = vadd.f32 %v2864, %v2973
  %v2975 = vpop.f32.mrf.mxu0
  %v2976 = vadd.f32 %v2864, %v2975
  %2977 = vmatmul.bf16.gmra.mxu0 %v2841
  %v2978 = vpop.f32.mrf.mxu0
  %v2979 = vadd.f32 %v2864, %v2978
  %v2980 = vpop.f32.mrf.mxu0
  %v2981 = vadd.f32 %v2864, %v2980
  %2982 = vmatmul.bf16.gmra.mxu0 %v2842
  %v2983 = vpop.f32.mrf.mxu0
  %v2984 = vadd.f32 %v2864, %v2983
  %v2985 = vpop.f32.mrf.mxu0
  %v2986 = vadd.f32 %v2864, %v2985
  %2987 = vmatmul.bf16.gmra.mxu0 %v2843
  %v2988 = vpop.f32.mrf.mxu0
  %v2989 = vadd.f32 %v2864, %v2988
  %v2990 = vpop.f32.mrf.mxu0
  %v2991 = vadd.f32 %v2864, %v2990
  %2992 = vmatmul.bf16.gmra.mxu0 %v2844
  %v2993 = vpop.f32.mrf.mxu0
  %v2994 = vadd.f32 %v2864, %v2993
  %v2995 = vpop.f32.mrf.mxu0
  %v2996 = vadd.f32 %v2864, %v2995
  %2997 = vmatmul.bf16.gmra.mxu0 %v2845
  %v2998 = vpop.f32.mrf.mxu0
  %v2999 = vadd.f32 %v2864, %v2998
  %v3000 = vpop.f32.mrf.mxu0
  %v3001 = vadd.f32 %v2864, %v3000
  %3002 = vdwg.mxu0
  %v3003 = vadd.f32 %v48, %v2924
  %v3004 = vadd.f32 %v49, %v2926
  %v3005 = vadd.f32 %v50, %v2929
  %v3006 = vadd.f32 %v51, %v2931
  %v3007 = vadd.f32 %v52, %v2934
  %v3008 = vadd.f32 %v53, %v2936
  %v3009 = vadd.f32 %v54, %v2939
  %v3010 = vadd.f32 %v55, %v2941
  %v3011 = vadd.f32 %v56, %v2944
  %v3012 = vadd.f32 %v57, %v2946
  %v3013 = vadd.f32 %v58, %v2949
  %v3014 = vadd.f32 %v59, %v2951
  %v3015 = vadd.f32 %v60, %v2954
  %v3016 = vadd.f32 %v61, %v2956
  %v3017 = vadd.f32 %v62, %v2959
  %v3018 = vadd.f32 %v63, %v2961
  %v3019 = vadd.f32 %v64, %v2964
  %v3020 = vadd.f32 %v65, %v2966
  %v3021 = vadd.f32 %v66, %v2969
  %v3022 = vadd.f32 %v67, %v2971
  %v3023 = vadd.f32 %v68, %v2974
  %v3024 = vadd.f32 %v69, %v2976
  %v3025 = vadd.f32 %v70, %v2979
  %v3026 = vadd.f32 %v71, %v2981
  %v3027 = vadd.f32 %v72, %v2984
  %v3028 = vadd.f32 %v73, %v2986
  %v3029 = vadd.f32 %v74, %v2989
  %v3030 = vadd.f32 %v75, %v2991
  %v3031 = vadd.f32 %v76, %v2994
  %v3032 = vadd.f32 %v77, %v2996
  %v3033 = vadd.f32 %v78, %v2999
  %v3034 = vadd.f32 %v79, %v3001
  %3035 = vadd.xlane.f32.xlu0 %v3003
  %v3036 = vpop.xlane.xlu0 %3035
  %3037 = vadd.xlane.f32.xlu0 %v3004
  %v3038 = vpop.xlane.xlu0 %3037
  %3039 = vadd.xlane.f32.xlu0 %v3005
  %v3040 = vpop.xlane.xlu0 %3039
  %3041 = vadd.xlane.f32.xlu0 %v3006
  %v3042 = vpop.xlane.xlu0 %3041
  %3043 = vadd.xlane.f32.xlu0 %v3007
  %v3044 = vpop.xlane.xlu0 %3043
  %3045 = vadd.xlane.f32.xlu0 %v3008
  %v3046 = vpop.xlane.xlu0 %3045
  %3047 = vadd.xlane.f32.xlu0 %v3009
  %v3048 = vpop.xlane.xlu0 %3047
  %3049 = vadd.xlane.f32.xlu0 %v3010
  %v3050 = vpop.xlane.xlu0 %3049
  %3051 = vadd.xlane.f32.xlu0 %v3011
  %v3052 = vpop.xlane.xlu0 %3051
  %3053 = vadd.xlane.f32.xlu0 %v3012
  %v3054 = vpop.xlane.xlu0 %3053
  %3055 = vadd.xlane.f32.xlu0 %v3013
  %v3056 = vpop.xlane.xlu0 %3055
  %3057 = vadd.xlane.f32.xlu0 %v3014
  %v3058 = vpop.xlane.xlu0 %3057
  %3059 = vadd.xlane.f32.xlu0 %v3015
  %v3060 = vpop.xlane.xlu0 %3059
  %3061 = vadd.xlane.f32.xlu0 %v3016
  %v3062 = vpop.xlane.xlu0 %3061
  %3063 = vadd.xlane.f32.xlu0 %v3017
  %v3064 = vpop.xlane.xlu0 %3063
  %3065 = vadd.xlane.f32.xlu0 %v3018
  %v3066 = vpop.xlane.xlu0 %3065
  %3067 = vadd.xlane.f32.xlu0 %v3019
  %v3068 = vpop.xlane.xlu0 %3067
  %3069 = vadd.xlane.f32.xlu0 %v3020
  %v3070 = vpop.xlane.xlu0 %3069
  %3071 = vadd.xlane.f32.xlu0 %v3021
  %v3072 = vpop.xlane.xlu0 %3071
  %3073 = vadd.xlane.f32.xlu0 %v3022
  %v3074 = vpop.xlane.xlu0 %3073
  %3075 = vadd.xlane.f32.xlu0 %v3023
  %v3076 = vpop.xlane.xlu0 %3075
  %3077 = vadd.xlane.f32.xlu0 %v3024
  %v3078 = vpop.xlane.xlu0 %3077
  %3079 = vadd.xlane.f32.xlu0 %v3025
  %v3080 = vpop.xlane.xlu0 %3079
  %3081 = vadd.xlane.f32.xlu0 %v3026
  %v3082 = vpop.xlane.xlu0 %3081
  %3083 = vadd.xlane.f32.xlu0 %v3027
  %v3084 = vpop.xlane.xlu0 %3083
  %3085 = vadd.xlane.f32.xlu0 %v3028
  %v3086 = vpop.xlane.xlu0 %3085
  %3087 = vadd.xlane.f32.xlu0 %v3029
  %v3088 = vpop.xlane.xlu0 %3087
  %3089 = vadd.xlane.f32.xlu0 %v3030
  %v3090 = vpop.xlane.xlu0 %3089
  %3091 = vadd.xlane.f32.xlu0 %v3031
  %v3092 = vpop.xlane.xlu0 %3091
  %3093 = vadd.xlane.f32.xlu0 %v3032
  %v3094 = vpop.xlane.xlu0 %3093
  %3095 = vadd.xlane.f32.xlu0 %v3033
  %v3096 = vpop.xlane.xlu0 %3095
  %3097 = vadd.xlane.f32.xlu0 %v3034
  %v3098 = vpop.xlane.xlu0 %3097
  %v3099 = vrcp.pop 128.0
  %v3100 = vmul.f32 128.0, %v3099
  %v3101 = vsub.f32 1.0, %v3100
  %v3102 = vmul.f32 %v3099, %v3101
  %v3103 = vadd.f32 %v3099, %v3102
  %vm3104 = vweird.f32 %v3099
  %v3105 = vsel %vm3104, %v3099, %v3103
  %v3106 = vmul.f32 %v3036, %v3105
  %v3107 = vmul.f32 %v3038, %v3105
  %v3108 = vmul.f32 %v3040, %v3105
  %v3109 = vmul.f32 %v3042, %v3105
  %v3110 = vmul.f32 %v3044, %v3105
  %v3111 = vmul.f32 %v3046, %v3105
  %v3112 = vmul.f32 %v3048, %v3105
  %v3113 = vmul.f32 %v3050, %v3105
  %v3114 = vmul.f32 %v3052, %v3105
  %v3115 = vmul.f32 %v3054, %v3105
  %v3116 = vmul.f32 %v3056, %v3105
  %v3117 = vmul.f32 %v3058, %v3105
  %v3118 = vmul.f32 %v3060, %v3105
  %v3119 = vmul.f32 %v3062, %v3105
  %v3120 = vmul.f32 %v3064, %v3105
  %v3121 = vmul.f32 %v3066, %v3105
  %v3122 = vmul.f32 %v3068, %v3105
  %v3123 = vmul.f32 %v3070, %v3105
  %v3124 = vmul.f32 %v3072, %v3105
  %v3125 = vmul.f32 %v3074, %v3105
  %v3126 = vmul.f32 %v3076, %v3105
  %v3127 = vmul.f32 %v3078, %v3105
  %v3128 = vmul.f32 %v3080, %v3105
  %v3129 = vmul.f32 %v3082, %v3105
  %v3130 = vmul.f32 %v3084, %v3105
  %v3131 = vmul.f32 %v3086, %v3105
  %v3132 = vmul.f32 %v3088, %v3105
  %v3133 = vmul.f32 %v3090, %v3105
  %v3134 = vmul.f32 %v3092, %v3105
  %v3135 = vmul.f32 %v3094, %v3105
  %v3136 = vmul.f32 %v3096, %v3105
  %v3137 = vmul.f32 %v3098, %v3105
  %v3138 = vsub.f32 %v3003, %v3106
  %v3139 = vsub.f32 %v3004, %v3107
  %v3140 = vsub.f32 %v3005, %v3108
  %v3141 = vsub.f32 %v3006, %v3109
  %v3142 = vsub.f32 %v3007, %v3110
  %v3143 = vsub.f32 %v3008, %v3111
  %v3144 = vsub.f32 %v3009, %v3112
  %v3145 = vsub.f32 %v3010, %v3113
  %v3146 = vsub.f32 %v3011, %v3114
  %v3147 = vsub.f32 %v3012, %v3115
  %v3148 = vsub.f32 %v3013, %v3116
  %v3149 = vsub.f32 %v3014, %v3117
  %v3150 = vsub.f32 %v3015, %v3118
  %v3151 = vsub.f32 %v3016, %v3119
  %v3152 = vsub.f32 %v3017, %v3120
  %v3153 = vsub.f32 %v3018, %v3121
  %v3154 = vsub.f32 %v3019, %v3122
  %v3155 = vsub.f32 %v3020, %v3123
  %v3156 = vsub.f32 %v3021, %v3124
  %v3157 = vsub.f32 %v3022, %v3125
  %v3158 = vsub.f32 %v3023, %v3126
  %v3159 = vsub.f32 %v3024, %v3127
  %v3160 = vsub.f32 %v3025, %v3128
  %v3161 = vsub.f32 %v3026, %v3129
  %v3162 = vsub.f32 %v3027, %v3130
  %v3163 = vsub.f32 %v3028, %v3131
  %v3164 = vsub.f32 %v3029, %v3132
  %v3165 = vsub.f32 %v3030, %v3133
  %v3166 = vsub.f32 %v3031, %v3134
  %v3167 = vsub.f32 %v3032, %v3135
  %v3168 = vsub.f32 %v3033, %v3136
  %v3169 = vsub.f32 %v3034, %v3137
  %v3170 = vmul.f32 %v3138, %v3138
  %v3171 = vmul.f32 %v3139, %v3139
  %v3172 = vmul.f32 %v3140, %v3140
  %v3173 = vmul.f32 %v3141, %v3141
  %v3174 = vmul.f32 %v3142, %v3142
  %v3175 = vmul.f32 %v3143, %v3143
  %v3176 = vmul.f32 %v3144, %v3144
  %v3177 = vmul.f32 %v3145, %v3145
  %v3178 = vmul.f32 %v3146, %v3146
  %v3179 = vmul.f32 %v3147, %v3147
  %v3180 = vmul.f32 %v3148, %v3148
  %v3181 = vmul.f32 %v3149, %v3149
  %v3182 = vmul.f32 %v3150, %v3150
  %v3183 = vmul.f32 %v3151, %v3151
  %v3184 = vmul.f32 %v3152, %v3152
  %v3185 = vmul.f32 %v3153, %v3153
  %v3186 = vmul.f32 %v3154, %v3154
  %v3187 = vmul.f32 %v3155, %v3155
  %v3188 = vmul.f32 %v3156, %v3156
  %v3189 = vmul.f32 %v3157, %v3157
  %v3190 = vmul.f32 %v3158, %v3158
  %v3191 = vmul.f32 %v3159, %v3159
  %v3192 = vmul.f32 %v3160, %v3160
  %v3193 = vmul.f32 %v3161, %v3161
  %v3194 = vmul.f32 %v3162, %v3162
  %v3195 = vmul.f32 %v3163, %v3163
  %v3196 = vmul.f32 %v3164, %v3164
  %v3197 = vmul.f32 %v3165, %v3165
  %v3198 = vmul.f32 %v3166, %v3166
  %v3199 = vmul.f32 %v3167, %v3167
  %v3200 = vmul.f32 %v3168, %v3168
  %v3201 = vmul.f32 %v3169, %v3169
  %3202 = vadd.xlane.f32.xlu0 %v3170
  %v3203 = vpop.xlane.xlu0 %3202
  %3204 = vadd.xlane.f32.xlu0 %v3171
  %v3205 = vpop.xlane.xlu0 %3204
  %3206 = vadd.xlane.f32.xlu0 %v3172
  %v3207 = vpop.xlane.xlu0 %3206
  %3208 = vadd.xlane.f32.xlu0 %v3173
  %v3209 = vpop.xlane.xlu0 %3208
  %3210 = vadd.xlane.f32.xlu0 %v3174
  %v3211 = vpop.xlane.xlu0 %3210
  %3212 = vadd.xlane.f32.xlu0 %v3175
  %v3213 = vpop.xlane.xlu0 %3212
  %3214 = vadd.xlane.f32.xlu0 %v3176
  %v3215 = vpop.xlane.xlu0 %3214
  %3216 = vadd.xlane.f32.xlu0 %v3177
  %v3217 = vpop.xlane.xlu0 %3216
  %3218 = vadd.xlane.f32.xlu0 %v3178
  %v3219 = vpop.xlane.xlu0 %3218
  %3220 = vadd.xlane.f32.xlu0 %v3179
  %v3221 = vpop.xlane.xlu0 %3220
  %3222 = vadd.xlane.f32.xlu0 %v3180
  %v3223 = vpop.xlane.xlu0 %3222
  %3224 = vadd.xlane.f32.xlu0 %v3181
  %v3225 = vpop.xlane.xlu0 %3224
  %3226 = vadd.xlane.f32.xlu0 %v3182
  %v3227 = vpop.xlane.xlu0 %3226
  %3228 = vadd.xlane.f32.xlu0 %v3183
  %v3229 = vpop.xlane.xlu0 %3228
  %3230 = vadd.xlane.f32.xlu0 %v3184
  %v3231 = vpop.xlane.xlu0 %3230
  %3232 = vadd.xlane.f32.xlu0 %v3185
  %v3233 = vpop.xlane.xlu0 %3232
  %3234 = vadd.xlane.f32.xlu0 %v3186
  %v3235 = vpop.xlane.xlu0 %3234
  %3236 = vadd.xlane.f32.xlu0 %v3187
  %v3237 = vpop.xlane.xlu0 %3236
  %3238 = vadd.xlane.f32.xlu0 %v3188
  %v3239 = vpop.xlane.xlu0 %3238
  %3240 = vadd.xlane.f32.xlu0 %v3189
  %v3241 = vpop.xlane.xlu0 %3240
  %3242 = vadd.xlane.f32.xlu0 %v3190
  %v3243 = vpop.xlane.xlu0 %3242
  %3244 = vadd.xlane.f32.xlu0 %v3191
  %v3245 = vpop.xlane.xlu0 %3244
  %3246 = vadd.xlane.f32.xlu0 %v3192
  %v3247 = vpop.xlane.xlu0 %3246
  %3248 = vadd.xlane.f32.xlu0 %v3193
  %v3249 = vpop.xlane.xlu0 %3248
  %3250 = vadd.xlane.f32.xlu0 %v3194
  %v3251 = vpop.xlane.xlu0 %3250
  %3252 = vadd.xlane.f32.xlu0 %v3195
  %v3253 = vpop.xlane.xlu0 %3252
  %3254 = vadd.xlane.f32.xlu0 %v3196
  %v3255 = vpop.xlane.xlu0 %3254
  %3256 = vadd.xlane.f32.xlu0 %v3197
  %v3257 = vpop.xlane.xlu0 %3256
  %3258 = vadd.xlane.f32.xlu0 %v3198
  %v3259 = vpop.xlane.xlu0 %3258
  %3260 = vadd.xlane.f32.xlu0 %v3199
  %v3261 = vpop.xlane.xlu0 %3260
  %3262 = vadd.xlane.f32.xlu0 %v3200
  %v3263 = vpop.xlane.xlu0 %3262
  %3264 = vadd.xlane.f32.xlu0 %v3201
  %v3265 = vpop.xlane.xlu0 %3264
  %v3266 = vmul.f32 %v3203, %v3105
  %v3267 = vmul.f32 %v3205, %v3105
  %v3268 = vmul.f32 %v3207, %v3105
  %v3269 = vmul.f32 %v3209, %v3105
  %v3270 = vmul.f32 %v3211, %v3105
  %v3271 = vmul.f32 %v3213, %v3105
  %v3272 = vmul.f32 %v3215, %v3105
  %v3273 = vmul.f32 %v3217, %v3105
  %v3274 = vmul.f32 %v3219, %v3105
  %v3275 = vmul.f32 %v3221, %v3105
  %v3276 = vmul.f32 %v3223, %v3105
  %v3277 = vmul.f32 %v3225, %v3105
  %v3278 = vmul.f32 %v3227, %v3105
  %v3279 = vmul.f32 %v3229, %v3105
  %v3280 = vmul.f32 %v3231, %v3105
  %v3281 = vmul.f32 %v3233, %v3105
  %v3282 = vmul.f32 %v3235, %v3105
  %v3283 = vmul.f32 %v3237, %v3105
  %v3284 = vmul.f32 %v3239, %v3105
  %v3285 = vmul.f32 %v3241, %v3105
  %v3286 = vmul.f32 %v3243, %v3105
  %v3287 = vmul.f32 %v3245, %v3105
  %v3288 = vmul.f32 %v3247, %v3105
  %v3289 = vmul.f32 %v3249, %v3105
  %v3290 = vmul.f32 %v3251, %v3105
  %v3291 = vmul.f32 %v3253, %v3105
  %v3292 = vmul.f32 %v3255, %v3105
  %v3293 = vmul.f32 %v3257, %v3105
  %v3294 = vmul.f32 %v3259, %v3105
  %v3295 = vmul.f32 %v3261, %v3105
  %v3296 = vmul.f32 %v3263, %v3105
  %v3297 = vmul.f32 %v3265, %v3105
  %v3298 = vadd.f32 %v3266, 1e-05
  %v3299 = vadd.f32 %v3267, 1e-05
  %v3300 = vadd.f32 %v3268, 1e-05
  %v3301 = vadd.f32 %v3269, 1e-05
  %v3302 = vadd.f32 %v3270, 1e-05
  %v3303 = vadd.f32 %v3271, 1e-05
  %v3304 = vadd.f32 %v3272, 1e-05
  %v3305 = vadd.f32 %v3273, 1e-05
  %v3306 = vadd.f32 %v3274, 1e-05
  %v3307 = vadd.f32 %v3275, 1e-05
  %v3308 = vadd.f32 %v3276, 1e-05
  %v3309 = vadd.f32 %v3277, 1e-05
  %v3310 = vadd.f32 %v3278, 1e-05
  %v3311 = vadd.f32 %v3279, 1e-05
  %v3312 = vadd.f32 %v3280, 1e-05
  %v3313 = vadd.f32 %v3281, 1e-05
  %v3314 = vadd.f32 %v3282, 1e-05
  %v3315 = vadd.f32 %v3283, 1e-05
  %v3316 = vadd.f32 %v3284, 1e-05
  %v3317 = vadd.f32 %v3285, 1e-05
  %v3318 = vadd.f32 %v3286, 1e-05
  %v3319 = vadd.f32 %v3287, 1e-05
  %v3320 = vadd.f32 %v3288, 1e-05
  %v3321 = vadd.f32 %v3289, 1e-05
  %v3322 = vadd.f32 %v3290, 1e-05
  %v3323 = vadd.f32 %v3291, 1e-05
  %v3324 = vadd.f32 %v3292, 1e-05
  %v3325 = vadd.f32 %v3293, 1e-05
  %v3326 = vadd.f32 %v3294, 1e-05
  %v3327 = vadd.f32 %v3295, 1e-05
  %v3328 = vadd.f32 %v3296, 1e-05
  %v3329 = vadd.f32 %v3297, 1e-05
  %v3330 = vrsqrt.pop %v3298
  %v3331 = vmul.f32 %v3330, %v3298
  %v3332 = vmul.f32 %v3331, %v3330
  %v3333 = vmul.f32 0.5, %v3332
  %v3334 = vsub.f32 1.5, %v3333
  %v3335 = vmul.f32 %v3330, %v3334
  %vm3336 = vweird.f32 %v3298
  %vm3337 = vweird.f32 %v3330
  %vm3338 = vmor %vm3336, %vm3337
  %v3339 = vsel %vm3338, %v3330, %v3335
  %v3340 = vrsqrt.pop %v3299
  %v3341 = vmul.f32 %v3340, %v3299
  %v3342 = vmul.f32 %v3341, %v3340
  %v3343 = vmul.f32 0.5, %v3342
  %v3344 = vsub.f32 1.5, %v3343
  %v3345 = vmul.f32 %v3340, %v3344
  %vm3346 = vweird.f32 %v3299
  %vm3347 = vweird.f32 %v3340
  %vm3348 = vmor %vm3346, %vm3347
  %v3349 = vsel %vm3348, %v3340, %v3345
  %v3350 = vrsqrt.pop %v3300
  %v3351 = vmul.f32 %v3350, %v3300
  %v3352 = vmul.f32 %v3351, %v3350
  %v3353 = vmul.f32 0.5, %v3352
  %v3354 = vsub.f32 1.5, %v3353
  %v3355 = vmul.f32 %v3350, %v3354
  %vm3356 = vweird.f32 %v3300
  %vm3357 = vweird.f32 %v3350
  %vm3358 = vmor %vm3356, %vm3357
  %v3359 = vsel %vm3358, %v3350, %v3355
  %v3360 = vrsqrt.pop %v3301
  %v3361 = vmul.f32 %v3360, %v3301
  %v3362 = vmul.f32 %v3361, %v3360
  %v3363 = vmul.f32 0.5, %v3362
  %v3364 = vsub.f32 1.5, %v3363
  %v3365 = vmul.f32 %v3360, %v3364
  %vm3366 = vweird.f32 %v3301
  %vm3367 = vweird.f32 %v3360
  %vm3368 = vmor %vm3366, %vm3367
  %v3369 = vsel %vm3368, %v3360, %v3365
  %v3370 = vrsqrt.pop %v3302
  %v3371 = vmul.f32 %v3370, %v3302
  %v3372 = vmul.f32 %v3371, %v3370
  %v3373 = vmul.f32 0.5, %v3372
  %v3374 = vsub.f32 1.5, %v3373
  %v3375 = vmul.f32 %v3370, %v3374
  %vm3376 = vweird.f32 %v3302
  %vm3377 = vweird.f32 %v3370
  %vm3378 = vmor %vm3376, %vm3377
  %v3379 = vsel %vm3378, %v3370, %v3375
  %v3380 = vrsqrt.pop %v3303
  %v3381 = vmul.f32 %v3380, %v3303
  %v3382 = vmul.f32 %v3381, %v3380
  %v3383 = vmul.f32 0.5, %v3382
  %v3384 = vsub.f32 1.5, %v3383
  %v3385 = vmul.f32 %v3380, %v3384
  %vm3386 = vweird.f32 %v3303
  %vm3387 = vweird.f32 %v3380
  %vm3388 = vmor %vm3386, %vm3387
  %v3389 = vsel %vm3388, %v3380, %v3385
  %v3390 = vrsqrt.pop %v3304
  %v3391 = vmul.f32 %v3390, %v3304
  %v3392 = vmul.f32 %v3391, %v3390
  %v3393 = vmul.f32 0.5, %v3392
  %v3394 = vsub.f32 1.5, %v3393
  %v3395 = vmul.f32 %v3390, %v3394
  %vm3396 = vweird.f32 %v3304
  %vm3397 = vweird.f32 %v3390
  %vm3398 = vmor %vm3396, %vm3397
  %v3399 = vsel %vm3398, %v3390, %v3395
  %v3400 = vrsqrt.pop %v3305
  %v3401 = vmul.f32 %v3400, %v3305
  %v3402 = vmul.f32 %v3401, %v3400
  %v3403 = vmul.f32 0.5, %v3402
  %v3404 = vsub.f32 1.5, %v3403
  %v3405 = vmul.f32 %v3400, %v3404
  %vm3406 = vweird.f32 %v3305
  %vm3407 = vweird.f32 %v3400
  %vm3408 = vmor %vm3406, %vm3407
  %v3409 = vsel %vm3408, %v3400, %v3405
  %v3410 = vrsqrt.pop %v3306
  %v3411 = vmul.f32 %v3410, %v3306
  %v3412 = vmul.f32 %v3411, %v3410
  %v3413 = vmul.f32 0.5, %v3412
  %v3414 = vsub.f32 1.5, %v3413
  %v3415 = vmul.f32 %v3410, %v3414
  %vm3416 = vweird.f32 %v3306
  %vm3417 = vweird.f32 %v3410
  %vm3418 = vmor %vm3416, %vm3417
  %v3419 = vsel %vm3418, %v3410, %v3415
  %v3420 = vrsqrt.pop %v3307
  %v3421 = vmul.f32 %v3420, %v3307
  %v3422 = vmul.f32 %v3421, %v3420
  %v3423 = vmul.f32 0.5, %v3422
  %v3424 = vsub.f32 1.5, %v3423
  %v3425 = vmul.f32 %v3420, %v3424
  %vm3426 = vweird.f32 %v3307
  %vm3427 = vweird.f32 %v3420
  %vm3428 = vmor %vm3426, %vm3427
  %v3429 = vsel %vm3428, %v3420, %v3425
  %v3430 = vrsqrt.pop %v3308
  %v3431 = vmul.f32 %v3430, %v3308
  %v3432 = vmul.f32 %v3431, %v3430
  %v3433 = vmul.f32 0.5, %v3432
  %v3434 = vsub.f32 1.5, %v3433
  %v3435 = vmul.f32 %v3430, %v3434
  %vm3436 = vweird.f32 %v3308
  %vm3437 = vweird.f32 %v3430
  %vm3438 = vmor %vm3436, %vm3437
  %v3439 = vsel %vm3438, %v3430, %v3435
  %v3440 = vrsqrt.pop %v3309
  %v3441 = vmul.f32 %v3440, %v3309
  %v3442 = vmul.f32 %v3441, %v3440
  %v3443 = vmul.f32 0.5, %v3442
  %v3444 = vsub.f32 1.5, %v3443
  %v3445 = vmul.f32 %v3440, %v3444
  %vm3446 = vweird.f32 %v3309
  %vm3447 = vweird.f32 %v3440
  %vm3448 = vmor %vm3446, %vm3447
  %v3449 = vsel %vm3448, %v3440, %v3445
  %v3450 = vrsqrt.pop %v3310
  %v3451 = vmul.f32 %v3450, %v3310
  %v3452 = vmul.f32 %v3451, %v3450
  %v3453 = vmul.f32 0.5, %v3452
  %v3454 = vsub.f32 1.5, %v3453
  %v3455 = vmul.f32 %v3450, %v3454
  %vm3456 = vweird.f32 %v3310
  %vm3457 = vweird.f32 %v3450
  %vm3458 = vmor %vm3456, %vm3457
  %v3459 = vsel %vm3458, %v3450, %v3455
  %v3460 = vrsqrt.pop %v3311
  %v3461 = vmul.f32 %v3460, %v3311
  %v3462 = vmul.f32 %v3461, %v3460
  %v3463 = vmul.f32 0.5, %v3462
  %v3464 = vsub.f32 1.5, %v3463
  %v3465 = vmul.f32 %v3460, %v3464
  %vm3466 = vweird.f32 %v3311
  %vm3467 = vweird.f32 %v3460
  %vm3468 = vmor %vm3466, %vm3467
  %v3469 = vsel %vm3468, %v3460, %v3465
  %v3470 = vrsqrt.pop %v3312
  %v3471 = vmul.f32 %v3470, %v3312
  %v3472 = vmul.f32 %v3471, %v3470
  %v3473 = vmul.f32 0.5, %v3472
  %v3474 = vsub.f32 1.5, %v3473
  %v3475 = vmul.f32 %v3470, %v3474
  %vm3476 = vweird.f32 %v3312
  %vm3477 = vweird.f32 %v3470
  %vm3478 = vmor %vm3476, %vm3477
  %v3479 = vsel %vm3478, %v3470, %v3475
  %v3480 = vrsqrt.pop %v3313
  %v3481 = vmul.f32 %v3480, %v3313
  %v3482 = vmul.f32 %v3481, %v3480
  %v3483 = vmul.f32 0.5, %v3482
  %v3484 = vsub.f32 1.5, %v3483
  %v3485 = vmul.f32 %v3480, %v3484
  %vm3486 = vweird.f32 %v3313
  %vm3487 = vweird.f32 %v3480
  %vm3488 = vmor %vm3486, %vm3487
  %v3489 = vsel %vm3488, %v3480, %v3485
  %v3490 = vrsqrt.pop %v3314
  %v3491 = vmul.f32 %v3490, %v3314
  %v3492 = vmul.f32 %v3491, %v3490
  %v3493 = vmul.f32 0.5, %v3492
  %v3494 = vsub.f32 1.5, %v3493
  %v3495 = vmul.f32 %v3490, %v3494
  %vm3496 = vweird.f32 %v3314
  %vm3497 = vweird.f32 %v3490
  %vm3498 = vmor %vm3496, %vm3497
  %v3499 = vsel %vm3498, %v3490, %v3495
  %v3500 = vrsqrt.pop %v3315
  %v3501 = vmul.f32 %v3500, %v3315
  %v3502 = vmul.f32 %v3501, %v3500
  %v3503 = vmul.f32 0.5, %v3502
  %v3504 = vsub.f32 1.5, %v3503
  %v3505 = vmul.f32 %v3500, %v3504
  %vm3506 = vweird.f32 %v3315
  %vm3507 = vweird.f32 %v3500
  %vm3508 = vmor %vm3506, %vm3507
  %v3509 = vsel %vm3508, %v3500, %v3505
  %v3510 = vrsqrt.pop %v3316
  %v3511 = vmul.f32 %v3510, %v3316
  %v3512 = vmul.f32 %v3511, %v3510
  %v3513 = vmul.f32 0.5, %v3512
  %v3514 = vsub.f32 1.5, %v3513
  %v3515 = vmul.f32 %v3510, %v3514
  %vm3516 = vweird.f32 %v3316
  %vm3517 = vweird.f32 %v3510
  %vm3518 = vmor %vm3516, %vm3517
  %v3519 = vsel %vm3518, %v3510, %v3515
  %v3520 = vrsqrt.pop %v3317
  %v3521 = vmul.f32 %v3520, %v3317
  %v3522 = vmul.f32 %v3521, %v3520
  %v3523 = vmul.f32 0.5, %v3522
  %v3524 = vsub.f32 1.5, %v3523
  %v3525 = vmul.f32 %v3520, %v3524
  %vm3526 = vweird.f32 %v3317
  %vm3527 = vweird.f32 %v3520
  %vm3528 = vmor %vm3526, %vm3527
  %v3529 = vsel %vm3528, %v3520, %v3525
  %v3530 = vrsqrt.pop %v3318
  %v3531 = vmul.f32 %v3530, %v3318
  %v3532 = vmul.f32 %v3531, %v3530
  %v3533 = vmul.f32 0.5, %v3532
  %v3534 = vsub.f32 1.5, %v3533
  %v3535 = vmul.f32 %v3530, %v3534
  %vm3536 = vweird.f32 %v3318
  %vm3537 = vweird.f32 %v3530
  %vm3538 = vmor %vm3536, %vm3537
  %v3539 = vsel %vm3538, %v3530, %v3535
  %v3540 = vrsqrt.pop %v3319
  %v3541 = vmul.f32 %v3540, %v3319
  %v3542 = vmul.f32 %v3541, %v3540
  %v3543 = vmul.f32 0.5, %v3542
  %v3544 = vsub.f32 1.5, %v3543
  %v3545 = vmul.f32 %v3540, %v3544
  %vm3546 = vweird.f32 %v3319
  %vm3547 = vweird.f32 %v3540
  %vm3548 = vmor %vm3546, %vm3547
  %v3549 = vsel %vm3548, %v3540, %v3545
  %v3550 = vrsqrt.pop %v3320
  %v3551 = vmul.f32 %v3550, %v3320
  %v3552 = vmul.f32 %v3551, %v3550
  %v3553 = vmul.f32 0.5, %v3552
  %v3554 = vsub.f32 1.5, %v3553
  %v3555 = vmul.f32 %v3550, %v3554
  %vm3556 = vweird.f32 %v3320
  %vm3557 = vweird.f32 %v3550
  %vm3558 = vmor %vm3556, %vm3557
  %v3559 = vsel %vm3558, %v3550, %v3555
  %v3560 = vrsqrt.pop %v3321
  %v3561 = vmul.f32 %v3560, %v3321
  %v3562 = vmul.f32 %v3561, %v3560
  %v3563 = vmul.f32 0.5, %v3562
  %v3564 = vsub.f32 1.5, %v3563
  %v3565 = vmul.f32 %v3560, %v3564
  %vm3566 = vweird.f32 %v3321
  %vm3567 = vweird.f32 %v3560
  %vm3568 = vmor %vm3566, %vm3567
  %v3569 = vsel %vm3568, %v3560, %v3565
  %v3570 = vrsqrt.pop %v3322
  %v3571 = vmul.f32 %v3570, %v3322
  %v3572 = vmul.f32 %v3571, %v3570
  %v3573 = vmul.f32 0.5, %v3572
  %v3574 = vsub.f32 1.5, %v3573
  %v3575 = vmul.f32 %v3570, %v3574
  %vm3576 = vweird.f32 %v3322
  %vm3577 = vweird.f32 %v3570
  %vm3578 = vmor %vm3576, %vm3577
  %v3579 = vsel %vm3578, %v3570, %v3575
  %v3580 = vrsqrt.pop %v3323
  %v3581 = vmul.f32 %v3580, %v3323
  %v3582 = vmul.f32 %v3581, %v3580
  %v3583 = vmul.f32 0.5, %v3582
  %v3584 = vsub.f32 1.5, %v3583
  %v3585 = vmul.f32 %v3580, %v3584
  %vm3586 = vweird.f32 %v3323
  %vm3587 = vweird.f32 %v3580
  %vm3588 = vmor %vm3586, %vm3587
  %v3589 = vsel %vm3588, %v3580, %v3585
  %v3590 = vrsqrt.pop %v3324
  %v3591 = vmul.f32 %v3590, %v3324
  %v3592 = vmul.f32 %v3591, %v3590
  %v3593 = vmul.f32 0.5, %v3592
  %v3594 = vsub.f32 1.5, %v3593
  %v3595 = vmul.f32 %v3590, %v3594
  %vm3596 = vweird.f32 %v3324
  %vm3597 = vweird.f32 %v3590
  %vm3598 = vmor %vm3596, %vm3597
  %v3599 = vsel %vm3598, %v3590, %v3595
  %v3600 = vrsqrt.pop %v3325
  %v3601 = vmul.f32 %v3600, %v3325
  %v3602 = vmul.f32 %v3601, %v3600
  %v3603 = vmul.f32 0.5, %v3602
  %v3604 = vsub.f32 1.5, %v3603
  %v3605 = vmul.f32 %v3600, %v3604
  %vm3606 = vweird.f32 %v3325
  %vm3607 = vweird.f32 %v3600
  %vm3608 = vmor %vm3606, %vm3607
  %v3609 = vsel %vm3608, %v3600, %v3605
  %v3610 = vrsqrt.pop %v3326
  %v3611 = vmul.f32 %v3610, %v3326
  %v3612 = vmul.f32 %v3611, %v3610
  %v3613 = vmul.f32 0.5, %v3612
  %v3614 = vsub.f32 1.5, %v3613
  %v3615 = vmul.f32 %v3610, %v3614
  %vm3616 = vweird.f32 %v3326
  %vm3617 = vweird.f32 %v3610
  %vm3618 = vmor %vm3616, %vm3617
  %v3619 = vsel %vm3618, %v3610, %v3615
  %v3620 = vrsqrt.pop %v3327
  %v3621 = vmul.f32 %v3620, %v3327
  %v3622 = vmul.f32 %v3621, %v3620
  %v3623 = vmul.f32 0.5, %v3622
  %v3624 = vsub.f32 1.5, %v3623
  %v3625 = vmul.f32 %v3620, %v3624
  %vm3626 = vweird.f32 %v3327
  %vm3627 = vweird.f32 %v3620
  %vm3628 = vmor %vm3626, %vm3627
  %v3629 = vsel %vm3628, %v3620, %v3625
  %v3630 = vrsqrt.pop %v3328
  %v3631 = vmul.f32 %v3630, %v3328
  %v3632 = vmul.f32 %v3631, %v3630
  %v3633 = vmul.f32 0.5, %v3632
  %v3634 = vsub.f32 1.5, %v3633
  %v3635 = vmul.f32 %v3630, %v3634
  %vm3636 = vweird.f32 %v3328
  %vm3637 = vweird.f32 %v3630
  %vm3638 = vmor %vm3636, %vm3637
  %v3639 = vsel %vm3638, %v3630, %v3635
  %v3640 = vrsqrt.pop %v3329
  %v3641 = vmul.f32 %v3640, %v3329
  %v3642 = vmul.f32 %v3641, %v3640
  %v3643 = vmul.f32 0.5, %v3642
  %v3644 = vsub.f32 1.5, %v3643
  %v3645 = vmul.f32 %v3640, %v3644
  %vm3646 = vweird.f32 %v3329
  %vm3647 = vweird.f32 %v3640
  %vm3648 = vmor %vm3646, %vm3647
  %v3649 = vsel %vm3648, %v3640, %v3645
  %v3650 = vmul.f32 %v3138, %v3339
  %v3651 = vmul.f32 %v3139, %v3349
  %v3652 = vmul.f32 %v3140, %v3359
  %v3653 = vmul.f32 %v3141, %v3369
  %v3654 = vmul.f32 %v3142, %v3379
  %v3655 = vmul.f32 %v3143, %v3389
  %v3656 = vmul.f32 %v3144, %v3399
  %v3657 = vmul.f32 %v3145, %v3409
  %v3658 = vmul.f32 %v3146, %v3419
  %v3659 = vmul.f32 %v3147, %v3429
  %v3660 = vmul.f32 %v3148, %v3439
  %v3661 = vmul.f32 %v3149, %v3449
  %v3662 = vmul.f32 %v3150, %v3459
  %v3663 = vmul.f32 %v3151, %v3469
  %v3664 = vmul.f32 %v3152, %v3479
  %v3665 = vmul.f32 %v3153, %v3489
  %v3666 = vmul.f32 %v3154, %v3499
  %v3667 = vmul.f32 %v3155, %v3509
  %v3668 = vmul.f32 %v3156, %v3519
  %v3669 = vmul.f32 %v3157, %v3529
  %v3670 = vmul.f32 %v3158, %v3539
  %v3671 = vmul.f32 %v3159, %v3549
  %v3672 = vmul.f32 %v3160, %v3559
  %v3673 = vmul.f32 %v3161, %v3569
  %v3674 = vmul.f32 %v3162, %v3579
  %v3675 = vmul.f32 %v3163, %v3589
  %v3676 = vmul.f32 %v3164, %v3599
  %v3677 = vmul.f32 %v3165, %v3609
  %v3678 = vmul.f32 %v3166, %v3619
  %v3679 = vmul.f32 %v3167, %v3629
  %v3680 = vmul.f32 %v3168, %v3639
  %v3681 = vmul.f32 %v3169, %v3649
  %v3682 = vld [vmem:[%s6] sm:$0x1]
  %v3684 = vperm.slane %v3682, 0
  %v3686 = vmul.f32 %v3650, %v3684
  %v3687 = vmul.f32 %v3651, %v3684
  %v3688 = vmul.f32 %v3652, %v3684
  %v3689 = vmul.f32 %v3653, %v3684
  %v3690 = vmul.f32 %v3654, %v3684
  %v3691 = vmul.f32 %v3655, %v3684
  %v3692 = vmul.f32 %v3656, %v3684
  %v3693 = vmul.f32 %v3657, %v3684
  %v3694 = vmul.f32 %v3658, %v3684
  %v3695 = vmul.f32 %v3659, %v3684
  %v3696 = vmul.f32 %v3660, %v3684
  %v3697 = vmul.f32 %v3661, %v3684
  %v3698 = vmul.f32 %v3662, %v3684
  %v3699 = vmul.f32 %v3663, %v3684
  %v3700 = vmul.f32 %v3664, %v3684
  %v3701 = vmul.f32 %v3665, %v3684
  %v3702 = vmul.f32 %v3666, %v3684
  %v3703 = vmul.f32 %v3667, %v3684
  %v3704 = vmul.f32 %v3668, %v3684
  %v3705 = vmul.f32 %v3669, %v3684
  %v3706 = vmul.f32 %v3670, %v3684
  %v3707 = vmul.f32 %v3671, %v3684
  %v3708 = vmul.f32 %v3672, %v3684
  %v3709 = vmul.f32 %v3673, %v3684
  %v3710 = vmul.f32 %v3674, %v3684
  %v3711 = vmul.f32 %v3675, %v3684
  %v3712 = vmul.f32 %v3676, %v3684
  %v3713 = vmul.f32 %v3677, %v3684
  %v3714 = vmul.f32 %v3678, %v3684
  %v3715 = vmul.f32 %v3679, %v3684
  %v3716 = vmul.f32 %v3680, %v3684
  %v3717 = vmul.f32 %v3681, %v3684
  %v3718 = vld [vmem:[%s7] sm:$0x1]
  %v3720 = vperm.slane %v3718, 0
  %v3722 = vadd.f32 %v3686, %v3720
  %v3723 = vadd.f32 %v3687, %v3720
  %v3724 = vadd.f32 %v3688, %v3720
  %v3725 = vadd.f32 %v3689, %v3720
  %v3726 = vadd.f32 %v3690, %v3720
  %v3727 = vadd.f32 %v3691, %v3720
  %v3728 = vadd.f32 %v3692, %v3720
  %v3729 = vadd.f32 %v3693, %v3720
  %v3730 = vadd.f32 %v3694, %v3720
  %v3731 = vadd.f32 %v3695, %v3720
  %v3732 = vadd.f32 %v3696, %v3720
  %v3733 = vadd.f32 %v3697, %v3720
  %v3734 = vadd.f32 %v3698, %v3720
  %v3735 = vadd.f32 %v3699, %v3720
  %v3736 = vadd.f32 %v3700, %v3720
  %v3737 = vadd.f32 %v3701, %v3720
  %v3738 = vadd.f32 %v3702, %v3720
  %v3739 = vadd.f32 %v3703, %v3720
  %v3740 = vadd.f32 %v3704, %v3720
  %v3741 = vadd.f32 %v3705, %v3720
  %v3742 = vadd.f32 %v3706, %v3720
  %v3743 = vadd.f32 %v3707, %v3720
  %v3744 = vadd.f32 %v3708, %v3720
  %v3745 = vadd.f32 %v3709, %v3720
  %v3746 = vadd.f32 %v3710, %v3720
  %v3747 = vadd.f32 %v3711, %v3720
  %v3748 = vadd.f32 %v3712, %v3720
  %v3749 = vadd.f32 %v3713, %v3720
  %v3750 = vadd.f32 %v3714, %v3720
  %v3751 = vadd.f32 %v3715, %v3720
  %v3752 = vadd.f32 %v3716, %v3720
  %v3753 = vadd.f32 %v3717, %v3720
  %v3754 = vpack.c.bf16 %v3723, %v3722
  %v3755 = vpack.c.bf16 %v3725, %v3724
  %v3756 = vpack.c.bf16 %v3727, %v3726
  %v3757 = vpack.c.bf16 %v3729, %v3728
  %v3758 = vpack.c.bf16 %v3731, %v3730
  %v3759 = vpack.c.bf16 %v3733, %v3732
  %v3760 = vpack.c.bf16 %v3735, %v3734
  %v3761 = vpack.c.bf16 %v3737, %v3736
  %v3762 = vpack.c.bf16 %v3739, %v3738
  %v3763 = vpack.c.bf16 %v3741, %v3740
  %v3764 = vpack.c.bf16 %v3743, %v3742
  %v3765 = vpack.c.bf16 %v3745, %v3744
  %v3766 = vpack.c.bf16 %v3747, %v3746
  %v3767 = vpack.c.bf16 %v3749, %v3748
  %v3768 = vpack.c.bf16 %v3751, %v3750
  %v3769 = vpack.c.bf16 %v3753, %v3752
  %v3770 = vld [vmem:[%s8] sm:$0xf]
  %v3771 = vld [vmem:[%s8 + $0x4] sm:$0xf]
  %v3772 = vld [vmem:[%s8 + $0x8] sm:$0xf]
  %v3773 = vld [vmem:[%s8 + $0xc] sm:$0xf]
  %v3774 = vld [vmem:[%s8 + $0x10] sm:$0xf]
  %v3775 = vld [vmem:[%s8 + $0x14] sm:$0xf]
  %v3776 = vld [vmem:[%s8 + $0x18] sm:$0xf]
  %v3777 = vld [vmem:[%s8 + $0x1c] sm:$0xf]
  %v3778 = vld [vmem:[%s8 + $0x20] sm:$0xf]
  %v3779 = vld [vmem:[%s8 + $0x24] sm:$0xf]
  %v3780 = vld [vmem:[%s8 + $0x28] sm:$0xf]
  %v3781 = vld [vmem:[%s8 + $0x2c] sm:$0xf]
  %v3782 = vld [vmem:[%s8 + $0x30] sm:$0xf]
  %v3783 = vld [vmem:[%s8 + $0x34] sm:$0xf]
  %v3784 = vld [vmem:[%s8 + $0x38] sm:$0xf]
  %v3785 = vld [vmem:[%s8 + $0x3c] sm:$0xf]
  %v3786 = vld [vmem:[%s9] sm:$0x1]
  %v3788 = vperm.slane %v3786, 0
  %v3806 = vunpack.c.l.b16 %v3770
  %v3807 = vunpack.c.l.b16 %v3771
  %v3808 = vunpack.c.l.b16 %v3772
  %v3809 = vunpack.c.l.b16 %v3773
  %v3810 = vunpack.c.l.b16 %v3774
  %v3811 = vunpack.c.l.b16 %v3775
  %v3812 = vunpack.c.l.b16 %v3776
  %v3813 = vunpack.c.l.b16 %v3777
  %v3814 = vunpack.c.l.b16 %v3778
  %v3815 = vunpack.c.l.b16 %v3779
  %v3816 = vunpack.c.l.b16 %v3780
  %v3817 = vunpack.c.l.b16 %v3781
  %v3818 = vunpack.c.l.b16 %v3782
  %v3819 = vunpack.c.l.b16 %v3783
  %v3820 = vunpack.c.l.b16 %v3784
  %v3821 = vunpack.c.l.b16 %v3785
  %v3822 = vpack.c.b16 %v3807, %v3806
  %v3823 = vpack.c.b16 %v3809, %v3808
  %v3824 = vpack.c.b16 %v3811, %v3810
  %v3825 = vpack.c.b16 %v3813, %v3812
  %v3826 = vpack.c.b16 %v3815, %v3814
  %v3827 = vpack.c.b16 %v3817, %v3816
  %v3828 = vpack.c.b16 %v3819, %v3818
  %v3829 = vpack.c.b16 %v3821, %v3820
  %3838 = vmatpush.bf16.msra.mxu0 %v3829
  %3839 = vmatpush.bf16.msra.mxu0 %v3828
  %3840 = vmatpush.bf16.msra.mxu0 %v3827
  %3841 = vmatpush.bf16.msra.mxu0 %v3826
  %3842 = vmatpush.bf16.msra.mxu0 %v3825
  %3843 = vmatpush.bf16.msra.mxu0 %v3824
  %3844 = vmatpush.bf16.msra.mxu0 %v3823
  %3845 = vmatpush.bf16.msra.mxu0 %v3822
  %3846 = vmatmul.bf16.gmra.mxu0 %v3754
  %v3847 = vpop.f32.mrf.mxu0
  %v3848 = vadd.f32 %v3788, %v3847
  %v3849 = vpop.f32.mrf.mxu0
  %v3850 = vadd.f32 %v3788, %v3849
  %3851 = vmatmul.bf16.gmra.mxu0 %v3755
  %v3852 = vpop.f32.mrf.mxu0
  %v3853 = vadd.f32 %v3788, %v3852
  %v3854 = vpop.f32.mrf.mxu0
  %v3855 = vadd.f32 %v3788, %v3854
  %3856 = vmatmul.bf16.gmra.mxu0 %v3756
  %v3857 = vpop.f32.mrf.mxu0
  %v3858 = vadd.f32 %v3788, %v3857
  %v3859 = vpop.f32.mrf.mxu0
  %v3860 = vadd.f32 %v3788, %v3859
  %3861 = vmatmul.bf16.gmra.mxu0 %v3757
  %v3862 = vpop.f32.mrf.mxu0
  %v3863 = vadd.f32 %v3788, %v3862
  %v3864 = vpop.f32.mrf.mxu0
  %v3865 = vadd.f32 %v3788, %v3864
  %3866 = vmatmul.bf16.gmra.mxu0 %v3758
  %v3867 = vpop.f32.mrf.mxu0
  %v3868 = vadd.f32 %v3788, %v3867
  %v3869 = vpop.f32.mrf.mxu0
  %v3870 = vadd.f32 %v3788, %v3869
  %3871 = vmatmul.bf16.gmra.mxu0 %v3759
  %v3872 = vpop.f32.mrf.mxu0
  %v3873 = vadd.f32 %v3788, %v3872
  %v3874 = vpop.f32.mrf.mxu0
  %v3875 = vadd.f32 %v3788, %v3874
  %3876 = vmatmul.bf16.gmra.mxu0 %v3760
  %v3877 = vpop.f32.mrf.mxu0
  %v3878 = vadd.f32 %v3788, %v3877
  %v3879 = vpop.f32.mrf.mxu0
  %v3880 = vadd.f32 %v3788, %v3879
  %3881 = vmatmul.bf16.gmra.mxu0 %v3761
  %v3882 = vpop.f32.mrf.mxu0
  %v3883 = vadd.f32 %v3788, %v3882
  %v3884 = vpop.f32.mrf.mxu0
  %v3885 = vadd.f32 %v3788, %v3884
  %3886 = vmatmul.bf16.gmra.mxu0 %v3762
  %v3887 = vpop.f32.mrf.mxu0
  %v3888 = vadd.f32 %v3788, %v3887
  %v3889 = vpop.f32.mrf.mxu0
  %v3890 = vadd.f32 %v3788, %v3889
  %3891 = vmatmul.bf16.gmra.mxu0 %v3763
  %v3892 = vpop.f32.mrf.mxu0
  %v3893 = vadd.f32 %v3788, %v3892
  %v3894 = vpop.f32.mrf.mxu0
  %v3895 = vadd.f32 %v3788, %v3894
  %3896 = vmatmul.bf16.gmra.mxu0 %v3764
  %v3897 = vpop.f32.mrf.mxu0
  %v3898 = vadd.f32 %v3788, %v3897
  %v3899 = vpop.f32.mrf.mxu0
  %v3900 = vadd.f32 %v3788, %v3899
  %3901 = vmatmul.bf16.gmra.mxu0 %v3765
  %v3902 = vpop.f32.mrf.mxu0
  %v3903 = vadd.f32 %v3788, %v3902
  %v3904 = vpop.f32.mrf.mxu0
  %v3905 = vadd.f32 %v3788, %v3904
  %3906 = vmatmul.bf16.gmra.mxu0 %v3766
  %v3907 = vpop.f32.mrf.mxu0
  %v3908 = vadd.f32 %v3788, %v3907
  %v3909 = vpop.f32.mrf.mxu0
  %v3910 = vadd.f32 %v3788, %v3909
  %3911 = vmatmul.bf16.gmra.mxu0 %v3767
  %v3912 = vpop.f32.mrf.mxu0
  %v3913 = vadd.f32 %v3788, %v3912
  %v3914 = vpop.f32.mrf.mxu0
  %v3915 = vadd.f32 %v3788, %v3914
  %3916 = vmatmul.bf16.gmra.mxu0 %v3768
  %v3917 = vpop.f32.mrf.mxu0
  %v3918 = vadd.f32 %v3788, %v3917
  %v3919 = vpop.f32.mrf.mxu0
  %v3920 = vadd.f32 %v3788, %v3919
  %3921 = vmatmul.bf16.gmra.mxu0 %v3769
  %v3922 = vpop.f32.mrf.mxu0
  %v3923 = vadd.f32 %v3788, %v3922
  %v3924 = vpop.f32.mrf.mxu0
  %v3925 = vadd.f32 %v3788, %v3924
  %3926 = vdwg.mxu0
  %v3927 = vmul.f32 %v3848, 0.5
  %v3928 = vmul.f32 %v3850, 0.5
  %v3929 = vmul.f32 %v3853, 0.5
  %v3930 = vmul.f32 %v3855, 0.5
  %v3931 = vmul.f32 %v3858, 0.5
  %v3932 = vmul.f32 %v3860, 0.5
  %v3933 = vmul.f32 %v3863, 0.5
  %v3934 = vmul.f32 %v3865, 0.5
  %v3935 = vmul.f32 %v3868, 0.5
  %v3936 = vmul.f32 %v3870, 0.5
  %v3937 = vmul.f32 %v3873, 0.5
  %v3938 = vmul.f32 %v3875, 0.5
  %v3939 = vmul.f32 %v3878, 0.5
  %v3940 = vmul.f32 %v3880, 0.5
  %v3941 = vmul.f32 %v3883, 0.5
  %v3942 = vmul.f32 %v3885, 0.5
  %v3943 = vmul.f32 %v3888, 0.5
  %v3944 = vmul.f32 %v3890, 0.5
  %v3945 = vmul.f32 %v3893, 0.5
  %v3946 = vmul.f32 %v3895, 0.5
  %v3947 = vmul.f32 %v3898, 0.5
  %v3948 = vmul.f32 %v3900, 0.5
  %v3949 = vmul.f32 %v3903, 0.5
  %v3950 = vmul.f32 %v3905, 0.5
  %v3951 = vmul.f32 %v3908, 0.5
  %v3952 = vmul.f32 %v3910, 0.5
  %v3953 = vmul.f32 %v3913, 0.5
  %v3954 = vmul.f32 %v3915, 0.5
  %v3955 = vmul.f32 %v3918, 0.5
  %v3956 = vmul.f32 %v3920, 0.5
  %v3957 = vmul.f32 %v3923, 0.5
  %v3958 = vmul.f32 %v3925, 0.5
  %v3959 = vmul.f32 %v3848, 0.044715
  %v3960 = vmul.f32 %v3850, 0.044715
  %v3961 = vmul.f32 %v3853, 0.044715
  %v3962 = vmul.f32 %v3855, 0.044715
  %v3963 = vmul.f32 %v3858, 0.044715
  %v3964 = vmul.f32 %v3860, 0.044715
  %v3965 = vmul.f32 %v3863, 0.044715
  %v3966 = vmul.f32 %v3865, 0.044715
  %v3967 = vmul.f32 %v3868, 0.044715
  %v3968 = vmul.f32 %v3870, 0.044715
  %v3969 = vmul.f32 %v3873, 0.044715
  %v3970 = vmul.f32 %v3875, 0.044715
  %v3971 = vmul.f32 %v3878, 0.044715
  %v3972 = vmul.f32 %v3880, 0.044715
  %v3973 = vmul.f32 %v3883, 0.044715
  %v3974 = vmul.f32 %v3885, 0.044715
  %v3975 = vmul.f32 %v3888, 0.044715
  %v3976 = vmul.f32 %v3890, 0.044715
  %v3977 = vmul.f32 %v3893, 0.044715
  %v3978 = vmul.f32 %v3895, 0.044715
  %v3979 = vmul.f32 %v3898, 0.044715
  %v3980 = vmul.f32 %v3900, 0.044715
  %v3981 = vmul.f32 %v3903, 0.044715
  %v3982 = vmul.f32 %v3905, 0.044715
  %v3983 = vmul.f32 %v3908, 0.044715
  %v3984 = vmul.f32 %v3910, 0.044715
  %v3985 = vmul.f32 %v3913, 0.044715
  %v3986 = vmul.f32 %v3915, 0.044715
  %v3987 = vmul.f32 %v3918, 0.044715
  %v3988 = vmul.f32 %v3920, 0.044715
  %v3989 = vmul.f32 %v3923, 0.044715
  %v3990 = vmul.f32 %v3925, 0.044715
  %v3991 = vmul.f32 %v3959, %v3848
  %v3992 = vmul.f32 %v3960, %v3850
  %v3993 = vmul.f32 %v3961, %v3853
  %v3994 = vmul.f32 %v3962, %v3855
  %v3995 = vmul.f32 %v3963, %v3858
  %v3996 = vmul.f32 %v3964, %v3860
  %v3997 = vmul.f32 %v3965, %v3863
  %v3998 = vmul.f32 %v3966, %v3865
  %v3999 = vmul.f32 %v3967, %v3868
  %v4000 = vmul.f32 %v3968, %v3870
  %v4001 = vmul.f32 %v3969, %v3873
  %v4002 = vmul.f32 %v3970, %v3875
  %v4003 = vmul.f32 %v3971, %v3878
  %v4004 = vmul.f32 %v3972, %v3880
  %v4005 = vmul.f32 %v3973, %v3883
  %v4006 = vmul.f32 %v3974, %v3885
  %v4007 = vmul.f32 %v3975, %v3888
  %v4008 = vmul.f32 %v3976, %v3890
  %v4009 = vmul.f32 %v3977, %v3893
  %v4010 = vmul.f32 %v3978, %v3895
  %v4011 = vmul.f32 %v3979, %v3898
  %v4012 = vmul.f32 %v3980, %v3900
  %v4013 = vmul.f32 %v3981, %v3903
  %v4014 = vmul.f32 %v3982, %v3905
  %v4015 = vmul.f32 %v3983, %v3908
  %v4016 = vmul.f32 %v3984, %v3910
  %v4017 = vmul.f32 %v3985, %v3913
  %v4018 = vmul.f32 %v3986, %v3915
  %v4019 = vmul.f32 %v3987, %v3918
  %v4020 = vmul.f32 %v3988, %v3920
  %v4021 = vmul.f32 %v3989, %v3923
  %v4022 = vmul.f32 %v3990, %v3925
  %v4023 = vmul.f32 %v3991, %v3848
  %v4024 = vmul.f32 %v3992, %v3850
  %v4025 = vmul.f32 %v3993, %v3853
  %v4026 = vmul.f32 %v3994, %v3855
  %v4027 = vmul.f32 %v3995, %v3858
  %v4028 = vmul.f32 %v3996, %v3860
  %v4029 = vmul.f32 %v3997, %v3863
  %v4030 = vmul.f32 %v3998, %v3865
  %v4031 = vmul.f32 %v3999, %v3868
  %v4032 = vmul.f32 %v4000, %v3870
  %v4033 = vmul.f32 %v4001, %v3873
  %v4034 = vmul.f32 %v4002, %v3875
  %v4035 = vmul.f32 %v4003, %v3878
  %v4036 = vmul.f32 %v4004, %v3880
  %v4037 = vmul.f32 %v4005, %v3883
  %v4038 = vmul.f32 %v4006, %v3885
  %v4039 = vmul.f32 %v4007, %v3888
  %v4040 = vmul.f32 %v4008, %v3890
  %v4041 = vmul.f32 %v4009, %v3893
  %v4042 = vmul.f32 %v4010, %v3895
  %v4043 = vmul.f32 %v4011, %v3898
  %v4044 = vmul.f32 %v4012, %v3900
  %v4045 = vmul.f32 %v4013, %v3903
  %v4046 = vmul.f32 %v4014, %v3905
  %v4047 = vmul.f32 %v4015, %v3908
  %v4048 = vmul.f32 %v4016, %v3910
  %v4049 = vmul.f32 %v4017, %v3913
  %v4050 = vmul.f32 %v4018, %v3915
  %v4051 = vmul.f32 %v4019, %v3918
  %v4052 = vmul.f32 %v4020, %v3920
  %v4053 = vmul.f32 %v4021, %v3923
  %v4054 = vmul.f32 %v4022, %v3925
  %v4055 = vadd.f32 %v3848, %v4023
  %v4056 = vadd.f32 %v3850, %v4024
  %v4057 = vadd.f32 %v3853, %v4025
  %v4058 = vadd.f32 %v3855, %v4026
  %v4059 = vadd.f32 %v3858, %v4027
  %v4060 = vadd.f32 %v3860, %v4028
  %v4061 = vadd.f32 %v3863, %v4029
  %v4062 = vadd.f32 %v3865, %v4030
  %v4063 = vadd.f32 %v3868, %v4031
  %v4064 = vadd.f32 %v3870, %v4032
  %v4065 = vadd.f32 %v3873, %v4033
  %v4066 = vadd.f32 %v3875, %v4034
  %v4067 = vadd.f32 %v3878, %v4035
  %v4068 = vadd.f32 %v3880, %v4036
  %v4069 = vadd.f32 %v3883, %v4037
  %v4070 = vadd.f32 %v3885, %v4038
  %v4071 = vadd.f32 %v3888, %v4039
  %v4072 = vadd.f32 %v3890, %v4040
  %v4073 = vadd.f32 %v3893, %v4041
  %v4074 = vadd.f32 %v3895, %v4042
  %v4075 = vadd.f32 %v3898, %v4043
  %v4076 = vadd.f32 %v3900, %v4044
  %v4077 = vadd.f32 %v3903, %v4045
  %v4078 = vadd.f32 %v3905, %v4046
  %v4079 = vadd.f32 %v3908, %v4047
  %v4080 = vadd.f32 %v3910, %v4048
  %v4081 = vadd.f32 %v3913, %v4049
  %v4082 = vadd.f32 %v3915, %v4050
  %v4083 = vadd.f32 %v3918, %v4051
  %v4084 = vadd.f32 %v3920, %v4052
  %v4085 = vadd.f32 %v3923, %v4053
  %v4086 = vadd.f32 %v3925, %v4054
  %v4087 = vmul.f32 %v4055, 0.7978846
  %v4088 = vmul.f32 %v4056, 0.7978846
  %v4089 = vmul.f32 %v4057, 0.7978846
  %v4090 = vmul.f32 %v4058, 0.7978846
  %v4091 = vmul.f32 %v4059, 0.7978846
  %v4092 = vmul.f32 %v4060, 0.7978846
  %v4093 = vmul.f32 %v4061, 0.7978846
  %v4094 = vmul.f32 %v4062, 0.7978846
  %v4095 = vmul.f32 %v4063, 0.7978846
  %v4096 = vmul.f32 %v4064, 0.7978846
  %v4097 = vmul.f32 %v4065, 0.7978846
  %v4098 = vmul.f32 %v4066, 0.7978846
  %v4099 = vmul.f32 %v4067, 0.7978846
  %v4100 = vmul.f32 %v4068, 0.7978846
  %v4101 = vmul.f32 %v4069, 0.7978846
  %v4102 = vmul.f32 %v4070, 0.7978846
  %v4103 = vmul.f32 %v4071, 0.7978846
  %v4104 = vmul.f32 %v4072, 0.7978846
  %v4105 = vmul.f32 %v4073, 0.7978846
  %v4106 = vmul.f32 %v4074, 0.7978846
  %v4107 = vmul.f32 %v4075, 0.7978846
  %v4108 = vmul.f32 %v4076, 0.7978846
  %v4109 = vmul.f32 %v4077, 0.7978846
  %v4110 = vmul.f32 %v4078, 0.7978846
  %v4111 = vmul.f32 %v4079, 0.7978846
  %v4112 = vmul.f32 %v4080, 0.7978846
  %v4113 = vmul.f32 %v4081, 0.7978846
  %v4114 = vmul.f32 %v4082, 0.7978846
  %v4115 = vmul.f32 %v4083, 0.7978846
  %v4116 = vmul.f32 %v4084, 0.7978846
  %v4117 = vmul.f32 %v4085, 0.7978846
  %v4118 = vmul.f32 %v4086, 0.7978846
  %v4119 = vtanh.pop %v4087
  %v4120 = vtanh.pop %v4088
  %v4121 = vtanh.pop %v4089
  %v4122 = vtanh.pop %v4090
  %v4123 = vtanh.pop %v4091
  %v4124 = vtanh.pop %v4092
  %v4125 = vtanh.pop %v4093
  %v4126 = vtanh.pop %v4094
  %v4127 = vtanh.pop %v4095
  %v4128 = vtanh.pop %v4096
  %v4129 = vtanh.pop %v4097
  %v4130 = vtanh.pop %v4098
  %v4131 = vtanh.pop %v4099
  %v4132 = vtanh.pop %v4100
  %v4133 = vtanh.pop %v4101
  %v4134 = vtanh.pop %v4102
  %v4135 = vtanh.pop %v4103
  %v4136 = vtanh.pop %v4104
  %v4137 = vtanh.pop %v4105
  %v4138 = vtanh.pop %v4106
  %v4139 = vtanh.pop %v4107
  %v4140 = vtanh.pop %v4108
  %v4141 = vtanh.pop %v4109
  %v4142 = vtanh.pop %v4110
  %v4143 = vtanh.pop %v4111
  %v4144 = vtanh.pop %v4112
  %v4145 = vtanh.pop %v4113
  %v4146 = vtanh.pop %v4114
  %v4147 = vtanh.pop %v4115
  %v4148 = vtanh.pop %v4116
  %v4149 = vtanh.pop %v4117
  %v4150 = vtanh.pop %v4118
  %v4151 = vadd.f32 %v4119, 1.0
  %v4152 = vadd.f32 %v4120, 1.0
  %v4153 = vadd.f32 %v4121, 1.0
  %v4154 = vadd.f32 %v4122, 1.0
  %v4155 = vadd.f32 %v4123, 1.0
  %v4156 = vadd.f32 %v4124, 1.0
  %v4157 = vadd.f32 %v4125, 1.0
  %v4158 = vadd.f32 %v4126, 1.0
  %v4159 = vadd.f32 %v4127, 1.0
  %v4160 = vadd.f32 %v4128, 1.0
  %v4161 = vadd.f32 %v4129, 1.0
  %v4162 = vadd.f32 %v4130, 1.0
  %v4163 = vadd.f32 %v4131, 1.0
  %v4164 = vadd.f32 %v4132, 1.0
  %v4165 = vadd.f32 %v4133, 1.0
  %v4166 = vadd.f32 %v4134, 1.0
  %v4167 = vadd.f32 %v4135, 1.0
  %v4168 = vadd.f32 %v4136, 1.0
  %v4169 = vadd.f32 %v4137, 1.0
  %v4170 = vadd.f32 %v4138, 1.0
  %v4171 = vadd.f32 %v4139, 1.0
  %v4172 = vadd.f32 %v4140, 1.0
  %v4173 = vadd.f32 %v4141, 1.0
  %v4174 = vadd.f32 %v4142, 1.0
  %v4175 = vadd.f32 %v4143, 1.0
  %v4176 = vadd.f32 %v4144, 1.0
  %v4177 = vadd.f32 %v4145, 1.0
  %v4178 = vadd.f32 %v4146, 1.0
  %v4179 = vadd.f32 %v4147, 1.0
  %v4180 = vadd.f32 %v4148, 1.0
  %v4181 = vadd.f32 %v4149, 1.0
  %v4182 = vadd.f32 %v4150, 1.0
  %v4183 = vmul.f32 %v3927, %v4151
  %v4184 = vmul.f32 %v3928, %v4152
  %v4185 = vmul.f32 %v3929, %v4153
  %v4186 = vmul.f32 %v3930, %v4154
  %v4187 = vmul.f32 %v3931, %v4155
  %v4188 = vmul.f32 %v3932, %v4156
  %v4189 = vmul.f32 %v3933, %v4157
  %v4190 = vmul.f32 %v3934, %v4158
  %v4191 = vmul.f32 %v3935, %v4159
  %v4192 = vmul.f32 %v3936, %v4160
  %v4193 = vmul.f32 %v3937, %v4161
  %v4194 = vmul.f32 %v3938, %v4162
  %v4195 = vmul.f32 %v3939, %v4163
  %v4196 = vmul.f32 %v3940, %v4164
  %v4197 = vmul.f32 %v3941, %v4165
  %v4198 = vmul.f32 %v3942, %v4166
  %v4199 = vmul.f32 %v3943, %v4167
  %v4200 = vmul.f32 %v3944, %v4168
  %v4201 = vmul.f32 %v3945, %v4169
  %v4202 = vmul.f32 %v3946, %v4170
  %v4203 = vmul.f32 %v3947, %v4171
  %v4204 = vmul.f32 %v3948, %v4172
  %v4205 = vmul.f32 %v3949, %v4173
  %v4206 = vmul.f32 %v3950, %v4174
  %v4207 = vmul.f32 %v3951, %v4175
  %v4208 = vmul.f32 %v3952, %v4176
  %v4209 = vmul.f32 %v3953, %v4177
  %v4210 = vmul.f32 %v3954, %v4178
  %v4211 = vmul.f32 %v3955, %v4179
  %v4212 = vmul.f32 %v3956, %v4180
  %v4213 = vmul.f32 %v3957, %v4181
  %v4214 = vmul.f32 %v3958, %v4182
  %v4215 = vpack.c.bf16 %v4184, %v4183
  %v4216 = vpack.c.bf16 %v4186, %v4185
  %v4217 = vpack.c.bf16 %v4188, %v4187
  %v4218 = vpack.c.bf16 %v4190, %v4189
  %v4219 = vpack.c.bf16 %v4192, %v4191
  %v4220 = vpack.c.bf16 %v4194, %v4193
  %v4221 = vpack.c.bf16 %v4196, %v4195
  %v4222 = vpack.c.bf16 %v4198, %v4197
  %v4223 = vpack.c.bf16 %v4200, %v4199
  %v4224 = vpack.c.bf16 %v4202, %v4201
  %v4225 = vpack.c.bf16 %v4204, %v4203
  %v4226 = vpack.c.bf16 %v4206, %v4205
  %v4227 = vpack.c.bf16 %v4208, %v4207
  %v4228 = vpack.c.bf16 %v4210, %v4209
  %v4229 = vpack.c.bf16 %v4212, %v4211
  %v4230 = vpack.c.bf16 %v4214, %v4213
  %v4231 = vld [vmem:[%s10] sm:$0xf]
  %v4232 = vld [vmem:[%s10 + $0x4] sm:$0xf]
  %v4233 = vld [vmem:[%s10 + $0x8] sm:$0xf]
  %v4234 = vld [vmem:[%s10 + $0xc] sm:$0xf]
  %v4235 = vld [vmem:[%s10 + $0x10] sm:$0xf]
  %v4236 = vld [vmem:[%s10 + $0x14] sm:$0xf]
  %v4237 = vld [vmem:[%s10 + $0x18] sm:$0xf]
  %v4238 = vld [vmem:[%s10 + $0x1c] sm:$0xf]
  %v4239 = vld [vmem:[%s11] sm:$0x1]
  %v4241 = vperm.slane %v4239, 0
  %v4251 = vunpack.c.l.b16 %v4231
  %v4252 = vunpack.c.l.b16 %v4232
  %v4253 = vunpack.c.l.b16 %v4233
  %v4254 = vunpack.c.l.b16 %v4234
  %v4255 = vunpack.c.l.b16 %v4235
  %v4256 = vunpack.c.l.b16 %v4236
  %v4257 = vunpack.c.l.b16 %v4237
  %v4258 = vunpack.c.l.b16 %v4238
  %v4259 = vpack.c.b16 %v4252, %v4251
  %v4260 = vpack.c.b16 %v4254, %v4253
  %v4261 = vpack.c.b16 %v4256, %v4255
  %v4262 = vpack.c.b16 %v4258, %v4257
  %vm4267 = vcmask 523264
  %v4269 = vsel %vm4267, %v4215, 0
  %v4272 = vsel %vm4267, %v4216, 0
  %v4275 = vsel %vm4267, %v4217, 0
  %v4278 = vsel %vm4267, %v4218, 0
  %v4281 = vsel %vm4267, %v4219, 0
  %v4284 = vsel %vm4267, %v4220, 0
  %v4287 = vsel %vm4267, %v4221, 0
  %v4290 = vsel %vm4267, %v4222, 0
  %v4293 = vsel %vm4267, %v4223, 0
  %v4296 = vsel %vm4267, %v4224, 0
  %v4299 = vsel %vm4267, %v4225, 0
  %v4302 = vsel %vm4267, %v4226, 0
  %v4305 = vsel %vm4267, %v4227, 0
  %v4308 = vsel %vm4267, %v4228, 0
  %v4311 = vsel %vm4267, %v4229, 0
  %v4314 = vsel %vm4267, %v4230, 0
  %4316 = vmatpush.bf16.msra.mxu0 0
  %4317 = vmatpush.bf16.msra.mxu0 0
  %4318 = vmatpush.bf16.msra.mxu0 0
  %4319 = vmatpush.bf16.msra.mxu0 0
  %4320 = vmatpush.bf16.msra.mxu0 %v4262
  %4321 = vmatpush.bf16.msra.mxu0 %v4261
  %4322 = vmatpush.bf16.msra.mxu0 %v4260
  %4323 = vmatpush.bf16.msra.mxu0 %v4259
  %4324 = vmatmul.bf16.gmra.mxu0 %v4269
  %v4325 = vpop.f32.mrf.mxu0
  %v4326 = vadd.f32 %v4241, %v4325
  %v4327 = vpop.f32.mrf.mxu0
  %v4328 = vadd.f32 %v4241, %v4327
  %4329 = vmatmul.bf16.gmra.mxu0 %v4272
  %v4330 = vpop.f32.mrf.mxu0
  %v4331 = vadd.f32 %v4241, %v4330
  %v4332 = vpop.f32.mrf.mxu0
  %v4333 = vadd.f32 %v4241, %v4332
  %4334 = vmatmul.bf16.gmra.mxu0 %v4275
  %v4335 = vpop.f32.mrf.mxu0
  %v4336 = vadd.f32 %v4241, %v4335
  %v4337 = vpop.f32.mrf.mxu0
  %v4338 = vadd.f32 %v4241, %v4337
  %4339 = vmatmul.bf16.gmra.mxu0 %v4278
  %v4340 = vpop.f32.mrf.mxu0
  %v4341 = vadd.f32 %v4241, %v4340
  %v4342 = vpop.f32.mrf.mxu0
  %v4343 = vadd.f32 %v4241, %v4342
  %4344 = vmatmul.bf16.gmra.mxu0 %v4281
  %v4345 = vpop.f32.mrf.mxu0
  %v4346 = vadd.f32 %v4241, %v4345
  %v4347 = vpop.f32.mrf.mxu0
  %v4348 = vadd.f32 %v4241, %v4347
  %4349 = vmatmul.bf16.gmra.mxu0 %v4284
  %v4350 = vpop.f32.mrf.mxu0
  %v4351 = vadd.f32 %v4241, %v4350
  %v4352 = vpop.f32.mrf.mxu0
  %v4353 = vadd.f32 %v4241, %v4352
  %4354 = vmatmul.bf16.gmra.mxu0 %v4287
  %v4355 = vpop.f32.mrf.mxu0
  %v4356 = vadd.f32 %v4241, %v4355
  %v4357 = vpop.f32.mrf.mxu0
  %v4358 = vadd.f32 %v4241, %v4357
  %4359 = vmatmul.bf16.gmra.mxu0 %v4290
  %v4360 = vpop.f32.mrf.mxu0
  %v4361 = vadd.f32 %v4241, %v4360
  %v4362 = vpop.f32.mrf.mxu0
  %v4363 = vadd.f32 %v4241, %v4362
  %4364 = vmatmul.bf16.gmra.mxu0 %v4293
  %v4365 = vpop.f32.mrf.mxu0
  %v4366 = vadd.f32 %v4241, %v4365
  %v4367 = vpop.f32.mrf.mxu0
  %v4368 = vadd.f32 %v4241, %v4367
  %4369 = vmatmul.bf16.gmra.mxu0 %v4296
  %v4370 = vpop.f32.mrf.mxu0
  %v4371 = vadd.f32 %v4241, %v4370
  %v4372 = vpop.f32.mrf.mxu0
  %v4373 = vadd.f32 %v4241, %v4372
  %4374 = vmatmul.bf16.gmra.mxu0 %v4299
  %v4375 = vpop.f32.mrf.mxu0
  %v4376 = vadd.f32 %v4241, %v4375
  %v4377 = vpop.f32.mrf.mxu0
  %v4378 = vadd.f32 %v4241, %v4377
  %4379 = vmatmul.bf16.gmra.mxu0 %v4302
  %v4380 = vpop.f32.mrf.mxu0
  %v4381 = vadd.f32 %v4241, %v4380
  %v4382 = vpop.f32.mrf.mxu0
  %v4383 = vadd.f32 %v4241, %v4382
  %4384 = vmatmul.bf16.gmra.mxu0 %v4305
  %v4385 = vpop.f32.mrf.mxu0
  %v4386 = vadd.f32 %v4241, %v4385
  %v4387 = vpop.f32.mrf.mxu0
  %v4388 = vadd.f32 %v4241, %v4387
  %4389 = vmatmul.bf16.gmra.mxu0 %v4308
  %v4390 = vpop.f32.mrf.mxu0
  %v4391 = vadd.f32 %v4241, %v4390
  %v4392 = vpop.f32.mrf.mxu0
  %v4393 = vadd.f32 %v4241, %v4392
  %4394 = vmatmul.bf16.gmra.mxu0 %v4311
  %v4395 = vpop.f32.mrf.mxu0
  %v4396 = vadd.f32 %v4241, %v4395
  %v4397 = vpop.f32.mrf.mxu0
  %v4398 = vadd.f32 %v4241, %v4397
  %4399 = vmatmul.bf16.gmra.mxu0 %v4314
  %v4400 = vpop.f32.mrf.mxu0
  %v4401 = vadd.f32 %v4241, %v4400
  %v4402 = vpop.f32.mrf.mxu0
  %v4403 = vadd.f32 %v4241, %v4402
  %4404 = vdwg.mxu0
  %v4405 = vadd.f32 %v3722, %v4326
  %v4406 = vadd.f32 %v3723, %v4328
  %v4407 = vadd.f32 %v3724, %v4331
  %v4408 = vadd.f32 %v3725, %v4333
  %v4409 = vadd.f32 %v3726, %v4336
  %v4410 = vadd.f32 %v3727, %v4338
  %v4411 = vadd.f32 %v3728, %v4341
  %v4412 = vadd.f32 %v3729, %v4343
  %v4413 = vadd.f32 %v3730, %v4346
  %v4414 = vadd.f32 %v3731, %v4348
  %v4415 = vadd.f32 %v3732, %v4351
  %v4416 = vadd.f32 %v3733, %v4353
  %v4417 = vadd.f32 %v3734, %v4356
  %v4418 = vadd.f32 %v3735, %v4358
  %v4419 = vadd.f32 %v3736, %v4361
  %v4420 = vadd.f32 %v3737, %v4363
  %v4421 = vadd.f32 %v3738, %v4366
  %v4422 = vadd.f32 %v3739, %v4368
  %v4423 = vadd.f32 %v3740, %v4371
  %v4424 = vadd.f32 %v3741, %v4373
  %v4425 = vadd.f32 %v3742, %v4376
  %v4426 = vadd.f32 %v3743, %v4378
  %v4427 = vadd.f32 %v3744, %v4381
  %v4428 = vadd.f32 %v3745, %v4383
  %v4429 = vadd.f32 %v3746, %v4386
  %v4430 = vadd.f32 %v3747, %v4388
  %v4431 = vadd.f32 %v3748, %v4391
  %v4432 = vadd.f32 %v3749, %v4393
  %v4433 = vadd.f32 %v3750, %v4396
  %v4434 = vadd.f32 %v3751, %v4398
  %v4435 = vadd.f32 %v3752, %v4401
  %v4436 = vadd.f32 %v3753, %v4403
  %4437 = vadd.xlane.f32.xlu0 %v4405
  %v4438 = vpop.xlane.xlu0 %4437
  %4439 = vadd.xlane.f32.xlu0 %v4406
  %v4440 = vpop.xlane.xlu0 %4439
  %4441 = vadd.xlane.f32.xlu0 %v4407
  %v4442 = vpop.xlane.xlu0 %4441
  %4443 = vadd.xlane.f32.xlu0 %v4408
  %v4444 = vpop.xlane.xlu0 %4443
  %4445 = vadd.xlane.f32.xlu0 %v4409
  %v4446 = vpop.xlane.xlu0 %4445
  %4447 = vadd.xlane.f32.xlu0 %v4410
  %v4448 = vpop.xlane.xlu0 %4447
  %4449 = vadd.xlane.f32.xlu0 %v4411
  %v4450 = vpop.xlane.xlu0 %4449
  %4451 = vadd.xlane.f32.xlu0 %v4412
  %v4452 = vpop.xlane.xlu0 %4451
  %4453 = vadd.xlane.f32.xlu0 %v4413
  %v4454 = vpop.xlane.xlu0 %4453
  %4455 = vadd.xlane.f32.xlu0 %v4414
  %v4456 = vpop.xlane.xlu0 %4455
  %4457 = vadd.xlane.f32.xlu0 %v4415
  %v4458 = vpop.xlane.xlu0 %4457
  %4459 = vadd.xlane.f32.xlu0 %v4416
  %v4460 = vpop.xlane.xlu0 %4459
  %4461 = vadd.xlane.f32.xlu0 %v4417
  %v4462 = vpop.xlane.xlu0 %4461
  %4463 = vadd.xlane.f32.xlu0 %v4418
  %v4464 = vpop.xlane.xlu0 %4463
  %4465 = vadd.xlane.f32.xlu0 %v4419
  %v4466 = vpop.xlane.xlu0 %4465
  %4467 = vadd.xlane.f32.xlu0 %v4420
  %v4468 = vpop.xlane.xlu0 %4467
  %4469 = vadd.xlane.f32.xlu0 %v4421
  %v4470 = vpop.xlane.xlu0 %4469
  %4471 = vadd.xlane.f32.xlu0 %v4422
  %v4472 = vpop.xlane.xlu0 %4471
  %4473 = vadd.xlane.f32.xlu0 %v4423
  %v4474 = vpop.xlane.xlu0 %4473
  %4475 = vadd.xlane.f32.xlu0 %v4424
  %v4476 = vpop.xlane.xlu0 %4475
  %4477 = vadd.xlane.f32.xlu0 %v4425
  %v4478 = vpop.xlane.xlu0 %4477
  %4479 = vadd.xlane.f32.xlu0 %v4426
  %v4480 = vpop.xlane.xlu0 %4479
  %4481 = vadd.xlane.f32.xlu0 %v4427
  %v4482 = vpop.xlane.xlu0 %4481
  %4483 = vadd.xlane.f32.xlu0 %v4428
  %v4484 = vpop.xlane.xlu0 %4483
  %4485 = vadd.xlane.f32.xlu0 %v4429
  %v4486 = vpop.xlane.xlu0 %4485
  %4487 = vadd.xlane.f32.xlu0 %v4430
  %v4488 = vpop.xlane.xlu0 %4487
  %4489 = vadd.xlane.f32.xlu0 %v4431
  %v4490 = vpop.xlane.xlu0 %4489
  %4491 = vadd.xlane.f32.xlu0 %v4432
  %v4492 = vpop.xlane.xlu0 %4491
  %4493 = vadd.xlane.f32.xlu0 %v4433
  %v4494 = vpop.xlane.xlu0 %4493
  %4495 = vadd.xlane.f32.xlu0 %v4434
  %v4496 = vpop.xlane.xlu0 %4495
  %4497 = vadd.xlane.f32.xlu0 %v4435
  %v4498 = vpop.xlane.xlu0 %4497
  %4499 = vadd.xlane.f32.xlu0 %v4436
  %v4500 = vpop.xlane.xlu0 %4499
  %v4501 = vmul.f32 %v4438, %v3105
  %v4502 = vmul.f32 %v4440, %v3105
  %v4503 = vmul.f32 %v4442, %v3105
  %v4504 = vmul.f32 %v4444, %v3105
  %v4505 = vmul.f32 %v4446, %v3105
  %v4506 = vmul.f32 %v4448, %v3105
  %v4507 = vmul.f32 %v4450, %v3105
  %v4508 = vmul.f32 %v4452, %v3105
  %v4509 = vmul.f32 %v4454, %v3105
  %v4510 = vmul.f32 %v4456, %v3105
  %v4511 = vmul.f32 %v4458, %v3105
  %v4512 = vmul.f32 %v4460, %v3105
  %v4513 = vmul.f32 %v4462, %v3105
  %v4514 = vmul.f32 %v4464, %v3105
  %v4515 = vmul.f32 %v4466, %v3105
  %v4516 = vmul.f32 %v4468, %v3105
  %v4517 = vmul.f32 %v4470, %v3105
  %v4518 = vmul.f32 %v4472, %v3105
  %v4519 = vmul.f32 %v4474, %v3105
  %v4520 = vmul.f32 %v4476, %v3105
  %v4521 = vmul.f32 %v4478, %v3105
  %v4522 = vmul.f32 %v4480, %v3105
  %v4523 = vmul.f32 %v4482, %v3105
  %v4524 = vmul.f32 %v4484, %v3105
  %v4525 = vmul.f32 %v4486, %v3105
  %v4526 = vmul.f32 %v4488, %v3105
  %v4527 = vmul.f32 %v4490, %v3105
  %v4528 = vmul.f32 %v4492, %v3105
  %v4529 = vmul.f32 %v4494, %v3105
  %v4530 = vmul.f32 %v4496, %v3105
  %v4531 = vmul.f32 %v4498, %v3105
  %v4532 = vmul.f32 %v4500, %v3105
  %v4533 = vsub.f32 %v4405, %v4501
  %v4534 = vsub.f32 %v4406, %v4502
  %v4535 = vsub.f32 %v4407, %v4503
  %v4536 = vsub.f32 %v4408, %v4504
  %v4537 = vsub.f32 %v4409, %v4505
  %v4538 = vsub.f32 %v4410, %v4506
  %v4539 = vsub.f32 %v4411, %v4507
  %v4540 = vsub.f32 %v4412, %v4508
  %v4541 = vsub.f32 %v4413, %v4509
  %v4542 = vsub.f32 %v4414, %v4510
  %v4543 = vsub.f32 %v4415, %v4511
  %v4544 = vsub.f32 %v4416, %v4512
  %v4545 = vsub.f32 %v4417, %v4513
  %v4546 = vsub.f32 %v4418, %v4514
  %v4547 = vsub.f32 %v4419, %v4515
  %v4548 = vsub.f32 %v4420, %v4516
  %v4549 = vsub.f32 %v4421, %v4517
  %v4550 = vsub.f32 %v4422, %v4518
  %v4551 = vsub.f32 %v4423, %v4519
  %v4552 = vsub.f32 %v4424, %v4520
  %v4553 = vsub.f32 %v4425, %v4521
  %v4554 = vsub.f32 %v4426, %v4522
  %v4555 = vsub.f32 %v4427, %v4523
  %v4556 = vsub.f32 %v4428, %v4524
  %v4557 = vsub.f32 %v4429, %v4525
  %v4558 = vsub.f32 %v4430, %v4526
  %v4559 = vsub.f32 %v4431, %v4527
  %v4560 = vsub.f32 %v4432, %v4528
  %v4561 = vsub.f32 %v4433, %v4529
  %v4562 = vsub.f32 %v4434, %v4530
  %v4563 = vsub.f32 %v4435, %v4531
  %v4564 = vsub.f32 %v4436, %v4532
  %v4565 = vmul.f32 %v4533, %v4533
  %v4566 = vmul.f32 %v4534, %v4534
  %v4567 = vmul.f32 %v4535, %v4535
  %v4568 = vmul.f32 %v4536, %v4536
  %v4569 = vmul.f32 %v4537, %v4537
  %v4570 = vmul.f32 %v4538, %v4538
  %v4571 = vmul.f32 %v4539, %v4539
  %v4572 = vmul.f32 %v4540, %v4540
  %v4573 = vmul.f32 %v4541, %v4541
  %v4574 = vmul.f32 %v4542, %v4542
  %v4575 = vmul.f32 %v4543, %v4543
  %v4576 = vmul.f32 %v4544, %v4544
  %v4577 = vmul.f32 %v4545, %v4545
  %v4578 = vmul.f32 %v4546, %v4546
  %v4579 = vmul.f32 %v4547, %v4547
  %v4580 = vmul.f32 %v4548, %v4548
  %v4581 = vmul.f32 %v4549, %v4549
  %v4582 = vmul.f32 %v4550, %v4550
  %v4583 = vmul.f32 %v4551, %v4551
  %v4584 = vmul.f32 %v4552, %v4552
  %v4585 = vmul.f32 %v4553, %v4553
  %v4586 = vmul.f32 %v4554, %v4554
  %v4587 = vmul.f32 %v4555, %v4555
  %v4588 = vmul.f32 %v4556, %v4556
  %v4589 = vmul.f32 %v4557, %v4557
  %v4590 = vmul.f32 %v4558, %v4558
  %v4591 = vmul.f32 %v4559, %v4559
  %v4592 = vmul.f32 %v4560, %v4560
  %v4593 = vmul.f32 %v4561, %v4561
  %v4594 = vmul.f32 %v4562, %v4562
  %v4595 = vmul.f32 %v4563, %v4563
  %v4596 = vmul.f32 %v4564, %v4564
  %4597 = vadd.xlane.f32.xlu0 %v4565
  %v4598 = vpop.xlane.xlu0 %4597
  %4599 = vadd.xlane.f32.xlu0 %v4566
  %v4600 = vpop.xlane.xlu0 %4599
  %4601 = vadd.xlane.f32.xlu0 %v4567
  %v4602 = vpop.xlane.xlu0 %4601
  %4603 = vadd.xlane.f32.xlu0 %v4568
  %v4604 = vpop.xlane.xlu0 %4603
  %4605 = vadd.xlane.f32.xlu0 %v4569
  %v4606 = vpop.xlane.xlu0 %4605
  %4607 = vadd.xlane.f32.xlu0 %v4570
  %v4608 = vpop.xlane.xlu0 %4607
  %4609 = vadd.xlane.f32.xlu0 %v4571
  %v4610 = vpop.xlane.xlu0 %4609
  %4611 = vadd.xlane.f32.xlu0 %v4572
  %v4612 = vpop.xlane.xlu0 %4611
  %4613 = vadd.xlane.f32.xlu0 %v4573
  %v4614 = vpop.xlane.xlu0 %4613
  %4615 = vadd.xlane.f32.xlu0 %v4574
  %v4616 = vpop.xlane.xlu0 %4615
  %4617 = vadd.xlane.f32.xlu0 %v4575
  %v4618 = vpop.xlane.xlu0 %4617
  %4619 = vadd.xlane.f32.xlu0 %v4576
  %v4620 = vpop.xlane.xlu0 %4619
  %4621 = vadd.xlane.f32.xlu0 %v4577
  %v4622 = vpop.xlane.xlu0 %4621
  %4623 = vadd.xlane.f32.xlu0 %v4578
  %v4624 = vpop.xlane.xlu0 %4623
  %4625 = vadd.xlane.f32.xlu0 %v4579
  %v4626 = vpop.xlane.xlu0 %4625
  %4627 = vadd.xlane.f32.xlu0 %v4580
  %v4628 = vpop.xlane.xlu0 %4627
  %4629 = vadd.xlane.f32.xlu0 %v4581
  %v4630 = vpop.xlane.xlu0 %4629
  %4631 = vadd.xlane.f32.xlu0 %v4582
  %v4632 = vpop.xlane.xlu0 %4631
  %4633 = vadd.xlane.f32.xlu0 %v4583
  %v4634 = vpop.xlane.xlu0 %4633
  %4635 = vadd.xlane.f32.xlu0 %v4584
  %v4636 = vpop.xlane.xlu0 %4635
  %4637 = vadd.xlane.f32.xlu0 %v4585
  %v4638 = vpop.xlane.xlu0 %4637
  %4639 = vadd.xlane.f32.xlu0 %v4586
  %v4640 = vpop.xlane.xlu0 %4639
  %4641 = vadd.xlane.f32.xlu0 %v4587
  %v4642 = vpop.xlane.xlu0 %4641
  %4643 = vadd.xlane.f32.xlu0 %v4588
  %v4644 = vpop.xlane.xlu0 %4643
  %4645 = vadd.xlane.f32.xlu0 %v4589
  %v4646 = vpop.xlane.xlu0 %4645
  %4647 = vadd.xlane.f32.xlu0 %v4590
  %v4648 = vpop.xlane.xlu0 %4647
  %4649 = vadd.xlane.f32.xlu0 %v4591
  %v4650 = vpop.xlane.xlu0 %4649
  %4651 = vadd.xlane.f32.xlu0 %v4592
  %v4652 = vpop.xlane.xlu0 %4651
  %4653 = vadd.xlane.f32.xlu0 %v4593
  %v4654 = vpop.xlane.xlu0 %4653
  %4655 = vadd.xlane.f32.xlu0 %v4594
  %v4656 = vpop.xlane.xlu0 %4655
  %4657 = vadd.xlane.f32.xlu0 %v4595
  %v4658 = vpop.xlane.xlu0 %4657
  %4659 = vadd.xlane.f32.xlu0 %v4596
  %v4660 = vpop.xlane.xlu0 %4659
  %v4661 = vmul.f32 %v4598, %v3105
  %v4662 = vmul.f32 %v4600, %v3105
  %v4663 = vmul.f32 %v4602, %v3105
  %v4664 = vmul.f32 %v4604, %v3105
  %v4665 = vmul.f32 %v4606, %v3105
  %v4666 = vmul.f32 %v4608, %v3105
  %v4667 = vmul.f32 %v4610, %v3105
  %v4668 = vmul.f32 %v4612, %v3105
  %v4669 = vmul.f32 %v4614, %v3105
  %v4670 = vmul.f32 %v4616, %v3105
  %v4671 = vmul.f32 %v4618, %v3105
  %v4672 = vmul.f32 %v4620, %v3105
  %v4673 = vmul.f32 %v4622, %v3105
  %v4674 = vmul.f32 %v4624, %v3105
  %v4675 = vmul.f32 %v4626, %v3105
  %v4676 = vmul.f32 %v4628, %v3105
  %v4677 = vmul.f32 %v4630, %v3105
  %v4678 = vmul.f32 %v4632, %v3105
  %v4679 = vmul.f32 %v4634, %v3105
  %v4680 = vmul.f32 %v4636, %v3105
  %v4681 = vmul.f32 %v4638, %v3105
  %v4682 = vmul.f32 %v4640, %v3105
  %v4683 = vmul.f32 %v4642, %v3105
  %v4684 = vmul.f32 %v4644, %v3105
  %v4685 = vmul.f32 %v4646, %v3105
  %v4686 = vmul.f32 %v4648, %v3105
  %v4687 = vmul.f32 %v4650, %v3105
  %v4688 = vmul.f32 %v4652, %v3105
  %v4689 = vmul.f32 %v4654, %v3105
  %v4690 = vmul.f32 %v4656, %v3105
  %v4691 = vmul.f32 %v4658, %v3105
  %v4692 = vmul.f32 %v4660, %v3105
  %v4693 = vadd.f32 %v4661, 1e-05
  %v4694 = vadd.f32 %v4662, 1e-05
  %v4695 = vadd.f32 %v4663, 1e-05
  %v4696 = vadd.f32 %v4664, 1e-05
  %v4697 = vadd.f32 %v4665, 1e-05
  %v4698 = vadd.f32 %v4666, 1e-05
  %v4699 = vadd.f32 %v4667, 1e-05
  %v4700 = vadd.f32 %v4668, 1e-05
  %v4701 = vadd.f32 %v4669, 1e-05
  %v4702 = vadd.f32 %v4670, 1e-05
  %v4703 = vadd.f32 %v4671, 1e-05
  %v4704 = vadd.f32 %v4672, 1e-05
  %v4705 = vadd.f32 %v4673, 1e-05
  %v4706 = vadd.f32 %v4674, 1e-05
  %v4707 = vadd.f32 %v4675, 1e-05
  %v4708 = vadd.f32 %v4676, 1e-05
  %v4709 = vadd.f32 %v4677, 1e-05
  %v4710 = vadd.f32 %v4678, 1e-05
  %v4711 = vadd.f32 %v4679, 1e-05
  %v4712 = vadd.f32 %v4680, 1e-05
  %v4713 = vadd.f32 %v4681, 1e-05
  %v4714 = vadd.f32 %v4682, 1e-05
  %v4715 = vadd.f32 %v4683, 1e-05
  %v4716 = vadd.f32 %v4684, 1e-05
  %v4717 = vadd.f32 %v4685, 1e-05
  %v4718 = vadd.f32 %v4686, 1e-05
  %v4719 = vadd.f32 %v4687, 1e-05
  %v4720 = vadd.f32 %v4688, 1e-05
  %v4721 = vadd.f32 %v4689, 1e-05
  %v4722 = vadd.f32 %v4690, 1e-05
  %v4723 = vadd.f32 %v4691, 1e-05
  %v4724 = vadd.f32 %v4692, 1e-05
  %v4725 = vrsqrt.pop %v4693
  %v4726 = vmul.f32 %v4725, %v4693
  %v4727 = vmul.f32 %v4726, %v4725
  %v4728 = vmul.f32 0.5, %v4727
  %v4729 = vsub.f32 1.5, %v4728
  %v4730 = vmul.f32 %v4725, %v4729
  %vm4731 = vweird.f32 %v4693
  %vm4732 = vweird.f32 %v4725
  %vm4733 = vmor %vm4731, %vm4732
  %v4734 = vsel %vm4733, %v4725, %v4730
  %v4735 = vrsqrt.pop %v4694
  %v4736 = vmul.f32 %v4735, %v4694
  %v4737 = vmul.f32 %v4736, %v4735
  %v4738 = vmul.f32 0.5, %v4737
  %v4739 = vsub.f32 1.5, %v4738
  %v4740 = vmul.f32 %v4735, %v4739
  %vm4741 = vweird.f32 %v4694
  %vm4742 = vweird.f32 %v4735
  %vm4743 = vmor %vm4741, %vm4742
  %v4744 = vsel %vm4743, %v4735, %v4740
  %v4745 = vrsqrt.pop %v4695
  %v4746 = vmul.f32 %v4745, %v4695
  %v4747 = vmul.f32 %v4746, %v4745
  %v4748 = vmul.f32 0.5, %v4747
  %v4749 = vsub.f32 1.5, %v4748
  %v4750 = vmul.f32 %v4745, %v4749
  %vm4751 = vweird.f32 %v4695
  %vm4752 = vweird.f32 %v4745
  %vm4753 = vmor %vm4751, %vm4752
  %v4754 = vsel %vm4753, %v4745, %v4750
  %v4755 = vrsqrt.pop %v4696
  %v4756 = vmul.f32 %v4755, %v4696
  %v4757 = vmul.f32 %v4756, %v4755
  %v4758 = vmul.f32 0.5, %v4757
  %v4759 = vsub.f32 1.5, %v4758
  %v4760 = vmul.f32 %v4755, %v4759
  %vm4761 = vweird.f32 %v4696
  %vm4762 = vweird.f32 %v4755
  %vm4763 = vmor %vm4761, %vm4762
  %v4764 = vsel %vm4763, %v4755, %v4760
  %v4765 = vrsqrt.pop %v4697
  %v4766 = vmul.f32 %v4765, %v4697
  %v4767 = vmul.f32 %v4766, %v4765
  %v4768 = vmul.f32 0.5, %v4767
  %v4769 = vsub.f32 1.5, %v4768
  %v4770 = vmul.f32 %v4765, %v4769
  %vm4771 = vweird.f32 %v4697
  %vm4772 = vweird.f32 %v4765
  %vm4773 = vmor %vm4771, %vm4772
  %v4774 = vsel %vm4773, %v4765, %v4770
  %v4775 = vrsqrt.pop %v4698
  %v4776 = vmul.f32 %v4775, %v4698
  %v4777 = vmul.f32 %v4776, %v4775
  %v4778 = vmul.f32 0.5, %v4777
  %v4779 = vsub.f32 1.5, %v4778
  %v4780 = vmul.f32 %v4775, %v4779
  %vm4781 = vweird.f32 %v4698
  %vm4782 = vweird.f32 %v4775
  %vm4783 = vmor %vm4781, %vm4782
  %v4784 = vsel %vm4783, %v4775, %v4780
  %v4785 = vrsqrt.pop %v4699
  %v4786 = vmul.f32 %v4785, %v4699
  %v4787 = vmul.f32 %v4786, %v4785
  %v4788 = vmul.f32 0.5, %v4787
  %v4789 = vsub.f32 1.5, %v4788
  %v4790 = vmul.f32 %v4785, %v4789
  %vm4791 = vweird.f32 %v4699
  %vm4792 = vweird.f32 %v4785
  %vm4793 = vmor %vm4791, %vm4792
  %v4794 = vsel %vm4793, %v4785, %v4790
  %v4795 = vrsqrt.pop %v4700
  %v4796 = vmul.f32 %v4795, %v4700
  %v4797 = vmul.f32 %v4796, %v4795
  %v4798 = vmul.f32 0.5, %v4797
  %v4799 = vsub.f32 1.5, %v4798
  %v4800 = vmul.f32 %v4795, %v4799
  %vm4801 = vweird.f32 %v4700
  %vm4802 = vweird.f32 %v4795
  %vm4803 = vmor %vm4801, %vm4802
  %v4804 = vsel %vm4803, %v4795, %v4800
  %v4805 = vrsqrt.pop %v4701
  %v4806 = vmul.f32 %v4805, %v4701
  %v4807 = vmul.f32 %v4806, %v4805
  %v4808 = vmul.f32 0.5, %v4807
  %v4809 = vsub.f32 1.5, %v4808
  %v4810 = vmul.f32 %v4805, %v4809
  %vm4811 = vweird.f32 %v4701
  %vm4812 = vweird.f32 %v4805
  %vm4813 = vmor %vm4811, %vm4812
  %v4814 = vsel %vm4813, %v4805, %v4810
  %v4815 = vrsqrt.pop %v4702
  %v4816 = vmul.f32 %v4815, %v4702
  %v4817 = vmul.f32 %v4816, %v4815
  %v4818 = vmul.f32 0.5, %v4817
  %v4819 = vsub.f32 1.5, %v4818
  %v4820 = vmul.f32 %v4815, %v4819
  %vm4821 = vweird.f32 %v4702
  %vm4822 = vweird.f32 %v4815
  %vm4823 = vmor %vm4821, %vm4822
  %v4824 = vsel %vm4823, %v4815, %v4820
  %v4825 = vrsqrt.pop %v4703
  %v4826 = vmul.f32 %v4825, %v4703
  %v4827 = vmul.f32 %v4826, %v4825
  %v4828 = vmul.f32 0.5, %v4827
  %v4829 = vsub.f32 1.5, %v4828
  %v4830 = vmul.f32 %v4825, %v4829
  %vm4831 = vweird.f32 %v4703
  %vm4832 = vweird.f32 %v4825
  %vm4833 = vmor %vm4831, %vm4832
  %v4834 = vsel %vm4833, %v4825, %v4830
  %v4835 = vrsqrt.pop %v4704
  %v4836 = vmul.f32 %v4835, %v4704
  %v4837 = vmul.f32 %v4836, %v4835
  %v4838 = vmul.f32 0.5, %v4837
  %v4839 = vsub.f32 1.5, %v4838
  %v4840 = vmul.f32 %v4835, %v4839
  %vm4841 = vweird.f32 %v4704
  %vm4842 = vweird.f32 %v4835
  %vm4843 = vmor %vm4841, %vm4842
  %v4844 = vsel %vm4843, %v4835, %v4840
  %v4845 = vrsqrt.pop %v4705
  %v4846 = vmul.f32 %v4845, %v4705
  %v4847 = vmul.f32 %v4846, %v4845
  %v4848 = vmul.f32 0.5, %v4847
  %v4849 = vsub.f32 1.5, %v4848
  %v4850 = vmul.f32 %v4845, %v4849
  %vm4851 = vweird.f32 %v4705
  %vm4852 = vweird.f32 %v4845
  %vm4853 = vmor %vm4851, %vm4852
  %v4854 = vsel %vm4853, %v4845, %v4850
  %v4855 = vrsqrt.pop %v4706
  %v4856 = vmul.f32 %v4855, %v4706
  %v4857 = vmul.f32 %v4856, %v4855
  %v4858 = vmul.f32 0.5, %v4857
  %v4859 = vsub.f32 1.5, %v4858
  %v4860 = vmul.f32 %v4855, %v4859
  %vm4861 = vweird.f32 %v4706
  %vm4862 = vweird.f32 %v4855
  %vm4863 = vmor %vm4861, %vm4862
  %v4864 = vsel %vm4863, %v4855, %v4860
  %v4865 = vrsqrt.pop %v4707
  %v4866 = vmul.f32 %v4865, %v4707
  %v4867 = vmul.f32 %v4866, %v4865
  %v4868 = vmul.f32 0.5, %v4867
  %v4869 = vsub.f32 1.5, %v4868
  %v4870 = vmul.f32 %v4865, %v4869
  %vm4871 = vweird.f32 %v4707
  %vm4872 = vweird.f32 %v4865
  %vm4873 = vmor %vm4871, %vm4872
  %v4874 = vsel %vm4873, %v4865, %v4870
  %v4875 = vrsqrt.pop %v4708
  %v4876 = vmul.f32 %v4875, %v4708
  %v4877 = vmul.f32 %v4876, %v4875
  %v4878 = vmul.f32 0.5, %v4877
  %v4879 = vsub.f32 1.5, %v4878
  %v4880 = vmul.f32 %v4875, %v4879
  %vm4881 = vweird.f32 %v4708
  %vm4882 = vweird.f32 %v4875
  %vm4883 = vmor %vm4881, %vm4882
  %v4884 = vsel %vm4883, %v4875, %v4880
  %v4885 = vrsqrt.pop %v4709
  %v4886 = vmul.f32 %v4885, %v4709
  %v4887 = vmul.f32 %v4886, %v4885
  %v4888 = vmul.f32 0.5, %v4887
  %v4889 = vsub.f32 1.5, %v4888
  %v4890 = vmul.f32 %v4885, %v4889
  %vm4891 = vweird.f32 %v4709
  %vm4892 = vweird.f32 %v4885
  %vm4893 = vmor %vm4891, %vm4892
  %v4894 = vsel %vm4893, %v4885, %v4890
  %v4895 = vrsqrt.pop %v4710
  %v4896 = vmul.f32 %v4895, %v4710
  %v4897 = vmul.f32 %v4896, %v4895
  %v4898 = vmul.f32 0.5, %v4897
  %v4899 = vsub.f32 1.5, %v4898
  %v4900 = vmul.f32 %v4895, %v4899
  %vm4901 = vweird.f32 %v4710
  %vm4902 = vweird.f32 %v4895
  %vm4903 = vmor %vm4901, %vm4902
  %v4904 = vsel %vm4903, %v4895, %v4900
  %v4905 = vrsqrt.pop %v4711
  %v4906 = vmul.f32 %v4905, %v4711
  %v4907 = vmul.f32 %v4906, %v4905
  %v4908 = vmul.f32 0.5, %v4907
  %v4909 = vsub.f32 1.5, %v4908
  %v4910 = vmul.f32 %v4905, %v4909
  %vm4911 = vweird.f32 %v4711
  %vm4912 = vweird.f32 %v4905
  %vm4913 = vmor %vm4911, %vm4912
  %v4914 = vsel %vm4913, %v4905, %v4910
  %v4915 = vrsqrt.pop %v4712
  %v4916 = vmul.f32 %v4915, %v4712
  %v4917 = vmul.f32 %v4916, %v4915
  %v4918 = vmul.f32 0.5, %v4917
  %v4919 = vsub.f32 1.5, %v4918
  %v4920 = vmul.f32 %v4915, %v4919
  %vm4921 = vweird.f32 %v4712
  %vm4922 = vweird.f32 %v4915
  %vm4923 = vmor %vm4921, %vm4922
  %v4924 = vsel %vm4923, %v4915, %v4920
  %v4925 = vrsqrt.pop %v4713
  %v4926 = vmul.f32 %v4925, %v4713
  %v4927 = vmul.f32 %v4926, %v4925
  %v4928 = vmul.f32 0.5, %v4927
  %v4929 = vsub.f32 1.5, %v4928
  %v4930 = vmul.f32 %v4925, %v4929
  %vm4931 = vweird.f32 %v4713
  %vm4932 = vweird.f32 %v4925
  %vm4933 = vmor %vm4931, %vm4932
  %v4934 = vsel %vm4933, %v4925, %v4930
  %v4935 = vrsqrt.pop %v4714
  %v4936 = vmul.f32 %v4935, %v4714
  %v4937 = vmul.f32 %v4936, %v4935
  %v4938 = vmul.f32 0.5, %v4937
  %v4939 = vsub.f32 1.5, %v4938
  %v4940 = vmul.f32 %v4935, %v4939
  %vm4941 = vweird.f32 %v4714
  %vm4942 = vweird.f32 %v4935
  %vm4943 = vmor %vm4941, %vm4942
  %v4944 = vsel %vm4943, %v4935, %v4940
  %v4945 = vrsqrt.pop %v4715
  %v4946 = vmul.f32 %v4945, %v4715
  %v4947 = vmul.f32 %v4946, %v4945
  %v4948 = vmul.f32 0.5, %v4947
  %v4949 = vsub.f32 1.5, %v4948
  %v4950 = vmul.f32 %v4945, %v4949
  %vm4951 = vweird.f32 %v4715
  %vm4952 = vweird.f32 %v4945
  %vm4953 = vmor %vm4951, %vm4952
  %v4954 = vsel %vm4953, %v4945, %v4950
  %v4955 = vrsqrt.pop %v4716
  %v4956 = vmul.f32 %v4955, %v4716
  %v4957 = vmul.f32 %v4956, %v4955
  %v4958 = vmul.f32 0.5, %v4957
  %v4959 = vsub.f32 1.5, %v4958
  %v4960 = vmul.f32 %v4955, %v4959
  %vm4961 = vweird.f32 %v4716
  %vm4962 = vweird.f32 %v4955
  %vm4963 = vmor %vm4961, %vm4962
  %v4964 = vsel %vm4963, %v4955, %v4960
  %v4965 = vrsqrt.pop %v4717
  %v4966 = vmul.f32 %v4965, %v4717
  %v4967 = vmul.f32 %v4966, %v4965
  %v4968 = vmul.f32 0.5, %v4967
  %v4969 = vsub.f32 1.5, %v4968
  %v4970 = vmul.f32 %v4965, %v4969
  %vm4971 = vweird.f32 %v4717
  %vm4972 = vweird.f32 %v4965
  %vm4973 = vmor %vm4971, %vm4972
  %v4974 = vsel %vm4973, %v4965, %v4970
  %v4975 = vrsqrt.pop %v4718
  %v4976 = vmul.f32 %v4975, %v4718
  %v4977 = vmul.f32 %v4976, %v4975
  %v4978 = vmul.f32 0.5, %v4977
  %v4979 = vsub.f32 1.5, %v4978
  %v4980 = vmul.f32 %v4975, %v4979
  %vm4981 = vweird.f32 %v4718
  %vm4982 = vweird.f32 %v4975
  %vm4983 = vmor %vm4981, %vm4982
  %v4984 = vsel %vm4983, %v4975, %v4980
  %v4985 = vrsqrt.pop %v4719
  %v4986 = vmul.f32 %v4985, %v4719
  %v4987 = vmul.f32 %v4986, %v4985
  %v4988 = vmul.f32 0.5, %v4987
  %v4989 = vsub.f32 1.5, %v4988
  %v4990 = vmul.f32 %v4985, %v4989
  %vm4991 = vweird.f32 %v4719
  %vm4992 = vweird.f32 %v4985
  %vm4993 = vmor %vm4991, %vm4992
  %v4994 = vsel %vm4993, %v4985, %v4990
  %v4995 = vrsqrt.pop %v4720
  %v4996 = vmul.f32 %v4995, %v4720
  %v4997 = vmul.f32 %v4996, %v4995
  %v4998 = vmul.f32 0.5, %v4997
  %v4999 = vsub.f32 1.5, %v4998
  %v5000 = vmul.f32 %v4995, %v4999
  %vm5001 = vweird.f32 %v4720
  %vm5002 = vweird.f32 %v4995
  %vm5003 = vmor %vm5001, %vm5002
  %v5004 = vsel %vm5003, %v4995, %v5000
  %v5005 = vrsqrt.pop %v4721
  %v5006 = vmul.f32 %v5005, %v4721
  %v5007 = vmul.f32 %v5006, %v5005
  %v5008 = vmul.f32 0.5, %v5007
  %v5009 = vsub.f32 1.5, %v5008
  %v5010 = vmul.f32 %v5005, %v5009
  %vm5011 = vweird.f32 %v4721
  %vm5012 = vweird.f32 %v5005
  %vm5013 = vmor %vm5011, %vm5012
  %v5014 = vsel %vm5013, %v5005, %v5010
  %v5015 = vrsqrt.pop %v4722
  %v5016 = vmul.f32 %v5015, %v4722
  %v5017 = vmul.f32 %v5016, %v5015
  %v5018 = vmul.f32 0.5, %v5017
  %v5019 = vsub.f32 1.5, %v5018
  %v5020 = vmul.f32 %v5015, %v5019
  %vm5021 = vweird.f32 %v4722
  %vm5022 = vweird.f32 %v5015
  %vm5023 = vmor %vm5021, %vm5022
  %v5024 = vsel %vm5023, %v5015, %v5020
  %v5025 = vrsqrt.pop %v4723
  %v5026 = vmul.f32 %v5025, %v4723
  %v5027 = vmul.f32 %v5026, %v5025
  %v5028 = vmul.f32 0.5, %v5027
  %v5029 = vsub.f32 1.5, %v5028
  %v5030 = vmul.f32 %v5025, %v5029
  %vm5031 = vweird.f32 %v4723
  %vm5032 = vweird.f32 %v5025
  %vm5033 = vmor %vm5031, %vm5032
  %v5034 = vsel %vm5033, %v5025, %v5030
  %v5035 = vrsqrt.pop %v4724
  %v5036 = vmul.f32 %v5035, %v4724
  %v5037 = vmul.f32 %v5036, %v5035
  %v5038 = vmul.f32 0.5, %v5037
  %v5039 = vsub.f32 1.5, %v5038
  %v5040 = vmul.f32 %v5035, %v5039
  %vm5041 = vweird.f32 %v4724
  %vm5042 = vweird.f32 %v5035
  %vm5043 = vmor %vm5041, %vm5042
  %v5044 = vsel %vm5043, %v5035, %v5040
  %v5045 = vmul.f32 %v4533, %v4734
  %v5046 = vmul.f32 %v4534, %v4744
  %v5047 = vmul.f32 %v4535, %v4754
  %v5048 = vmul.f32 %v4536, %v4764
  %v5049 = vmul.f32 %v4537, %v4774
  %v5050 = vmul.f32 %v4538, %v4784
  %v5051 = vmul.f32 %v4539, %v4794
  %v5052 = vmul.f32 %v4540, %v4804
  %v5053 = vmul.f32 %v4541, %v4814
  %v5054 = vmul.f32 %v4542, %v4824
  %v5055 = vmul.f32 %v4543, %v4834
  %v5056 = vmul.f32 %v4544, %v4844
  %v5057 = vmul.f32 %v4545, %v4854
  %v5058 = vmul.f32 %v4546, %v4864
  %v5059 = vmul.f32 %v4547, %v4874
  %v5060 = vmul.f32 %v4548, %v4884
  %v5061 = vmul.f32 %v4549, %v4894
  %v5062 = vmul.f32 %v4550, %v4904
  %v5063 = vmul.f32 %v4551, %v4914
  %v5064 = vmul.f32 %v4552, %v4924
  %v5065 = vmul.f32 %v4553, %v4934
  %v5066 = vmul.f32 %v4554, %v4944
  %v5067 = vmul.f32 %v4555, %v4954
  %v5068 = vmul.f32 %v4556, %v4964
  %v5069 = vmul.f32 %v4557, %v4974
  %v5070 = vmul.f32 %v4558, %v4984
  %v5071 = vmul.f32 %v4559, %v4994
  %v5072 = vmul.f32 %v4560, %v5004
  %v5073 = vmul.f32 %v4561, %v5014
  %v5074 = vmul.f32 %v4562, %v5024
  %v5075 = vmul.f32 %v4563, %v5034
  %v5076 = vmul.f32 %v4564, %v5044
  %v5077 = vld [vmem:[%s12] sm:$0x1]
  %v5079 = vperm.slane %v5077, 0
  %v5081 = vmul.f32 %v5045, %v5079
  %v5082 = vmul.f32 %v5046, %v5079
  %v5083 = vmul.f32 %v5047, %v5079
  %v5084 = vmul.f32 %v5048, %v5079
  %v5085 = vmul.f32 %v5049, %v5079
  %v5086 = vmul.f32 %v5050, %v5079
  %v5087 = vmul.f32 %v5051, %v5079
  %v5088 = vmul.f32 %v5052, %v5079
  %v5089 = vmul.f32 %v5053, %v5079
  %v5090 = vmul.f32 %v5054, %v5079
  %v5091 = vmul.f32 %v5055, %v5079
  %v5092 = vmul.f32 %v5056, %v5079
  %v5093 = vmul.f32 %v5057, %v5079
  %v5094 = vmul.f32 %v5058, %v5079
  %v5095 = vmul.f32 %v5059, %v5079
  %v5096 = vmul.f32 %v5060, %v5079
  %v5097 = vmul.f32 %v5061, %v5079
  %v5098 = vmul.f32 %v5062, %v5079
  %v5099 = vmul.f32 %v5063, %v5079
  %v5100 = vmul.f32 %v5064, %v5079
  %v5101 = vmul.f32 %v5065, %v5079
  %v5102 = vmul.f32 %v5066, %v5079
  %v5103 = vmul.f32 %v5067, %v5079
  %v5104 = vmul.f32 %v5068, %v5079
  %v5105 = vmul.f32 %v5069, %v5079
  %v5106 = vmul.f32 %v5070, %v5079
  %v5107 = vmul.f32 %v5071, %v5079
  %v5108 = vmul.f32 %v5072, %v5079
  %v5109 = vmul.f32 %v5073, %v5079
  %v5110 = vmul.f32 %v5074, %v5079
  %v5111 = vmul.f32 %v5075, %v5079
  %v5112 = vmul.f32 %v5076, %v5079
  %v5113 = vld [vmem:[%s13] sm:$0x1]
  %v5115 = vperm.slane %v5113, 0
  %v5117 = vadd.f32 %v5081, %v5115
  %v5118 = vadd.f32 %v5082, %v5115
  %v5119 = vadd.f32 %v5083, %v5115
  %v5120 = vadd.f32 %v5084, %v5115
  %v5121 = vadd.f32 %v5085, %v5115
  %v5122 = vadd.f32 %v5086, %v5115
  %v5123 = vadd.f32 %v5087, %v5115
  %v5124 = vadd.f32 %v5088, %v5115
  %v5125 = vadd.f32 %v5089, %v5115
  %v5126 = vadd.f32 %v5090, %v5115
  %v5127 = vadd.f32 %v5091, %v5115
  %v5128 = vadd.f32 %v5092, %v5115
  %v5129 = vadd.f32 %v5093, %v5115
  %v5130 = vadd.f32 %v5094, %v5115
  %v5131 = vadd.f32 %v5095, %v5115
  %v5132 = vadd.f32 %v5096, %v5115
  %v5133 = vadd.f32 %v5097, %v5115
  %v5134 = vadd.f32 %v5098, %v5115
  %v5135 = vadd.f32 %v5099, %v5115
  %v5136 = vadd.f32 %v5100, %v5115
  %v5137 = vadd.f32 %v5101, %v5115
  %v5138 = vadd.f32 %v5102, %v5115
  %v5139 = vadd.f32 %v5103, %v5115
  %v5140 = vadd.f32 %v5104, %v5115
  %v5141 = vadd.f32 %v5105, %v5115
  %v5142 = vadd.f32 %v5106, %v5115
  %v5143 = vadd.f32 %v5107, %v5115
  %v5144 = vadd.f32 %v5108, %v5115
  %v5145 = vadd.f32 %v5109, %v5115
  %v5146 = vadd.f32 %v5110, %v5115
  %v5147 = vadd.f32 %v5111, %v5115
  %v5148 = vadd.f32 %v5112, %v5115
  %5149 = vst [vmem:[%s14] sm:$0xff] %v5117
  %5150 = vst [vmem:[%s14 + $0x8] sm:$0xff] %v5118
  %5151 = vst [vmem:[%s14 + $0x10] sm:$0xff] %v5119
  %5152 = vst [vmem:[%s14 + $0x18] sm:$0xff] %v5120
  %5153 = vst [vmem:[%s14 + $0x20] sm:$0xff] %v5121
  %5154 = vst [vmem:[%s14 + $0x28] sm:$0xff] %v5122
  %5155 = vst [vmem:[%s14 + $0x30] sm:$0xff] %v5123
  %5156 = vst [vmem:[%s14 + $0x38] sm:$0xff] %v5124
  %5157 = vst [vmem:[%s14 + $0x40] sm:$0xff] %v5125
  %5158 = vst [vmem:[%s14 + $0x48] sm:$0xff] %v5126
  %5159 = vst [vmem:[%s14 + $0x50] sm:$0xff] %v5127
  %5160 = vst [vmem:[%s14 + $0x58] sm:$0xff] %v5128
  %5161 = vst [vmem:[%s14 + $0x60] sm:$0xff] %v5129
  %5162 = vst [vmem:[%s14 + $0x68] sm:$0xff] %v5130
  %5163 = vst [vmem:[%s14 + $0x70] sm:$0xff] %v5131
  %5164 = vst [vmem:[%s14 + $0x78] sm:$0xff] %v5132
  %5165 = vst [vmem:[%s14 + $0x80] sm:$0xff] %v5133
  %5166 = vst [vmem:[%s14 + $0x88] sm:$0xff] %v5134
  %5167 = vst [vmem:[%s14 + $0x90] sm:$0xff] %v5135
  %5168 = vst [vmem:[%s14 + $0x98] sm:$0xff] %v5136
  %5169 = vst [vmem:[%s14 + $0xa0] sm:$0xff] %v5137
  %5170 = vst [vmem:[%s14 + $0xa8] sm:$0xff] %v5138
  %5171 = vst [vmem:[%s14 + $0xb0] sm:$0xff] %v5139
  %5172 = vst [vmem:[%s14 + $0xb8] sm:$0xff] %v5140
  %5173 = vst [vmem:[%s14 + $0xc0] sm:$0xff] %v5141
  %5174 = vst [vmem:[%s14 + $0xc8] sm:$0xff] %v5142
  %5175 = vst [vmem:[%s14 + $0xd0] sm:$0xff] %v5143
  %5176 = vst [vmem:[%s14 + $0xd8] sm:$0xff] %v5144
  %5177 = vst [vmem:[%s14 + $0xe0] sm:$0xff] %v5145
  %5178 = vst [vmem:[%s14 + $0xe8] sm:$0xff] %v5146
  %5179 = vst [vmem:[%s14 + $0xf0] sm:$0xff] %v5147
  %5180 = vst [vmem:[%s14 + $0xf8] sm:$0xff] %v5148
  // Predicated region
  $region58: #{encoder_forward.2} parent=0 // pred_check
    _
  $region59: #{encoder_forward.2} parent=0 // pred_check_branch
    %5182 = sbr.rel (0) target = $region61
  $region60: #{encoder_forward.2} parent=0 // pred_region
    _
  $region61: #{encoder_forward.2} parent=0 // pred_fallthru
    _
  // Predicated region
  $region62: #{encoder_forward.2} parent=0 // pred_check
    _
  $region63: #{encoder_forward.2} parent=0 // pred_check_branch
    %5184 = sbr.rel (0) target = $region65
  $region64: #{encoder_forward.2} parent=0 // pred_region
    _
  $region65: #{encoder_forward.2} parent=0 // pred_fallthru
    _

</llo_original>
